<compile_context>
chip_gen: v7x
topology: tpu7x:2x2x1
jax: 0.10.0
libtpu: 0.0.40
codegen_flags: <defaults>
</compile_context>

<pallas_src>
import functools
import math

import jax
import jax.numpy as jnp
from jax.experimental import pallas as pl
from jax.experimental.pallas import tpu as pltpu


# ---------------------------------------------------------------------------
# Kernel 1: single-K-step fused  act(X @ W + shift)  with optional output-N
# split on a "parallel" grid axis (megacore on v7x).
# ---------------------------------------------------------------------------
def _matmul_shift_act_kernel(x_ref, w_ref, shift_ref, o_ref, *, activation):
    y = jnp.dot(x_ref[...], w_ref[...], preferred_element_type=jnp.float32)
    y = y + shift_ref[...]
    if activation == "relu":
        y = jnp.maximum(y, 0.0)
    o_ref[...] = y.astype(o_ref.dtype)


def matmul_shift_act(x, w, shift, *, activation="relu", block_n=None,
                     out_dtype=jnp.bfloat16):
    """act(x @ w + shift); x:(M,K) bf16, w:(K,N) bf16, shift:(1,N) f32."""
    M, K = x.shape
    K2, N = w.shape
    assert K == K2
    if block_n is None or (N % block_n != 0) or (block_n % 128 != 0):
        block_n = N
    nj = N // block_n

    kernel = functools.partial(_matmul_shift_act_kernel, activation=activation)
    return pl.pallas_call(
        kernel,
        out_shape=jax.ShapeDtypeStruct((M, N), out_dtype),
        grid_spec=pltpu.PrefetchScalarGridSpec(
            num_scalar_prefetch=0,
            grid=(nj,),
            in_specs=[
                pl.BlockSpec((M, K), lambda j: (0, 0)),
                pl.BlockSpec((K, block_n), lambda j: (0, j)),
                pl.BlockSpec((1, block_n), lambda j: (0, j)),
            ],
            out_specs=pl.BlockSpec((M, block_n), lambda j: (0, j)),
        ),
        compiler_params=pltpu.CompilerParams(
            dimension_semantics=("parallel",)),
    )(x, w, shift)


# ---------------------------------------------------------------------------
# Kernel 2: classifier head.  Linear(12288->512) accumulated over K blocks,
# epilogue at the last K step folds  Dropout(identity) -> Linear(512->1) ->
# Sigmoid  (sigmoid via tanh for numerical stability).
# ---------------------------------------------------------------------------
def _linear_head_kernel(x_ref, w1_ref, b1_ref, w2_ref, b2_ref, o_ref, acc_ref):
    k = pl.program_id(0)

    @pl.when(k == 0)
    def _():
        acc_ref[...] = jnp.zeros_like(acc_ref)

    acc_ref[...] += jnp.dot(x_ref[...], w1_ref[...],
                            preferred_element_type=jnp.float32)

    @pl.when(k == pl.num_programs(0) - 1)
    def _():
        h = acc_ref[...] + b1_ref[...]                 # (M, 512); dropout = id
        logit = jnp.sum(h * w2_ref[...], axis=-1, keepdims=True) + b2_ref[...]
        p = 0.5 * (jnp.tanh(0.5 * logit) + 1.0)        # stable sigmoid
        o_ref[...] = p.astype(o_ref.dtype)


def linear_head(x, w1, b1, w2_row, b2, *, block_k=2048):
    """sigmoid((x @ w1 + b1) @ w2_row.T + b2); x:(M,K) bf16, w1:(K,H) bf16."""
    M, K = x.shape
    K2, H = w1.shape
    assert K == K2
    if (K % block_k != 0) or (block_k % 128 != 0):
        block_k = K
    nk = K // block_k

    return pl.pallas_call(
        _linear_head_kernel,
        out_shape=jax.ShapeDtypeStruct((M, 1), jnp.float32),
        grid_spec=pltpu.PrefetchScalarGridSpec(
            num_scalar_prefetch=0,
            grid=(nk,),
            in_specs=[
                pl.BlockSpec((M, block_k), lambda k: (0, k)),
                pl.BlockSpec((block_k, H), lambda k: (k, 0)),
                pl.BlockSpec((1, H), lambda k: (0, 0)),
                pl.BlockSpec((1, H), lambda k: (0, 0)),
                pl.BlockSpec((1, 1), lambda k: (0, 0)),
            ],
            out_specs=pl.BlockSpec((M, 1), lambda k: (0, 0)),
            scratch_shapes=[pltpu.VMEM((M, H), jnp.float32)],
        ),
        compiler_params=pltpu.CompilerParams(
            dimension_semantics=("arbitrary",)),
    )(x, w1, b1, w2_row, b2)


# ---------------------------------------------------------------------------
# Glue: im2col for stride-2 Conv1d on a channels-last (N, L, C) activation,
# built from 5 cheap strided slices (no gather).  Column order is (k, cin).
# ---------------------------------------------------------------------------
def conv1d_patches(x_nlc, ksize, stride):
    N, L, C = x_nlc.shape
    L_out = (L - ksize) // stride + 1
    taps = [x_nlc[:, k:k + stride * (L_out - 1) + 1:stride, :]
            for k in range(ksize)]
    patches = jnp.concatenate(taps, axis=-1)          # (N, L_out, ksize*C)
    return patches, L_out


# ---------------------------------------------------------------------------
# Deterministic parameter initialization (PyTorch default init shapes/ranges).
# ---------------------------------------------------------------------------
def init_params(seed=0):
    key = jax.random.PRNGKey(seed)
    keys = iter(jax.random.split(key, 16))

    def u(k, shape, fan_in):
        bound = 1.0 / math.sqrt(fan_in)
        return jax.random.uniform(k, shape, jnp.float32, -bound, bound)

    p = {}
    conv_cfg = [(256, 18, 5), (512, 256, 5), (1024, 512, 5)]
    for i, (cout, cin, ks) in enumerate(conv_cfg, start=1):
        fan_in = cin * ks
        p[f"conv{i}_w"] = u(next(keys), (cout, cin, ks), fan_in)  # (Cout,Cin,K)
        p[f"conv{i}_b"] = u(next(keys), (cout,), fan_in)
        p[f"bn{i}_gamma"] = jnp.ones((cout,), jnp.float32)
        p[f"bn{i}_beta"] = jnp.zeros((cout,), jnp.float32)
        p[f"bn{i}_mean"] = jnp.zeros((cout,), jnp.float32)
        p[f"bn{i}_var"] = jnp.ones((cout,), jnp.float32)
    p["lin1_w"] = u(next(keys), (512, 12288), 12288)   # PyTorch (out, in)
    p["lin1_b"] = u(next(keys), (512,), 12288)
    p["lin2_w"] = u(next(keys), (1, 512), 512)
    p["lin2_b"] = u(next(keys), (1,), 512)
    return p


# ---------------------------------------------------------------------------
# One-time offline weight preparation: fold BatchNorm into conv weights/shift,
# pad conv1's contraction dim to a multiple of 128, pre-permute lin1 weights
# to match the (N, L, C) flatten order, and cast all matmul weights to bf16.
# ---------------------------------------------------------------------------
def prepare_params(params, eps=1e-5):
    prep = {}
    for i in (1, 2, 3):
        w = params[f"conv{i}_w"]                       # (Cout, Cin, K)
        b = params[f"conv{i}_b"]
        gamma, beta = params[f"bn{i}_gamma"], params[f"bn{i}_beta"]
        mean, var = params[f"bn{i}_mean"], params[f"bn{i}_var"]
        cout, cin, ks = w.shape

        inv = 1.0 / jnp.sqrt(var + eps)
        scale = gamma * inv                            # (Cout,)
        shift = (b - mean) * scale + beta              # (Cout,)

        # (k, cin)-major columnized weight, BN scale folded in.
        w_col = jnp.transpose(w, (2, 1, 0)).reshape(ks * cin, cout)
        w_col = w_col * scale[None, :]

        k_in = ks * cin
        k_pad = ((k_in + 127) // 128) * 128            # conv1: 90 -> 128
        if k_pad != k_in:
            w_col = jnp.pad(w_col, ((0, k_pad - k_in), (0, 0)))

        prep[f"conv{i}_w"] = w_col.astype(jnp.bfloat16)
        prep[f"conv{i}_shift"] = shift[None, :].astype(jnp.float32)

    # lin1: PyTorch flatten order of the (C=1024, L=12) activation is c*12+l;
    # our (N, L, C) activation flattens as l*1024+c, so permute the rows once.
    L3, C3 = 12, 1024
    w1 = params["lin1_w"]                              # (512, 12288)
    w1_kc = w1.T.reshape(C3, L3, 512).transpose(1, 0, 2).reshape(L3 * C3, 512)
    prep["lin1_w"] = w1_kc.astype(jnp.bfloat16)
    prep["lin1_b"] = params["lin1_b"][None, :].astype(jnp.float32)   # (1, 512)
    prep["lin2_w_row"] = params["lin2_w"].astype(jnp.float32)        # (1, 512)
    prep["lin2_b"] = params["lin2_b"][None, :].astype(jnp.float32)   # (1, 1)
    return prep


# ---------------------------------------------------------------------------
# Forward pass.
# ---------------------------------------------------------------------------
def discriminator_forward(prep, x_ncl):
    # NCL (PyTorch) -> NLC (kernel layout), bf16 matmul operands.
    x = jnp.transpose(x_ncl, (0, 2, 1)).astype(jnp.bfloat16)
    N = x.shape[0]

    for i in (1, 2, 3):
        w = prep[f"conv{i}_w"]                         # (K_pad, Cout) bf16
        shift = prep[f"conv{i}_shift"]                 # (1, Cout) f32
        k_pad, cout = w.shape

        patches, L_out = conv1d_patches(x, ksize=5, stride=2)
        k_in = patches.shape[-1]
        if k_pad != k_in:                              # conv1: pad 90 -> 128
            patches = jnp.pad(patches, ((0, 0), (0, 0), (0, k_pad - k_in)))
        X = patches.reshape(N * L_out, k_pad)

        # conv3 (biggest conv weight) splits Cout 1024 -> 2x512 on a
        # "parallel" axis so v7x streams half the weights per TensorCore.
        block_n = 512 if i == 3 else None
        y = matmul_shift_act(X, w, shift, activation="relu",
                             block_n=block_n, out_dtype=jnp.bfloat16)
        x = y.reshape(N, L_out, cout)

    # Flatten (N, L, C) directly; lin1 weights were pre-permuted to match.
    flat = x.reshape(N, -1)                            # (N, 12288) bf16

    # Linear(12288->512) + Dropout(id) + Linear(512->1) + Sigmoid in 1 kernel.
    out = linear_head(flat, prep["lin1_w"], prep["lin1_b"],
                      prep["lin2_w_row"], prep["lin2_b"], block_k=2048)
    return out                                         # (N, 1) f32


if __name__ == "__main__":
    # Input length 120 -> conv lengths 58 -> 27 -> 12 ; 1024*12 = 12288
    # (matches Linear(12288, 512) in the PyTorch module).
    params = init_params(seed=0)
    prep = prepare_params(params)
    x = jax.random.normal(jax.random.PRNGKey(0), (2, 18, 120), jnp.float32)

    fwd = jax.jit(discriminator_forward)
    out = fwd(prep, x)
    out = jax.block_until_ready(out)

    assert out.shape == (2, 1)
    assert bool(jnp.all(jnp.isfinite(out)))
    assert bool(jnp.all((out >= 0.0) & (out <= 1.0)))
    print("KERNEL_OK")
</pallas_src>

<mosaic_0001>
module attributes {stable_mosaic.version = 11 : i64} {
  func.func @_matmul_shift_act_kernel(%arg0: i32, %arg1: memref<116x128xbf16, #tpu.memory_space<vmem>>, %arg2: memref<128x256xbf16, #tpu.memory_space<vmem>>, %arg3: memref<1x256xf32, #tpu.memory_space<vmem>>, %arg4: memref<116x256xbf16, #tpu.memory_space<vmem>>) attributes {dimension_semantics = [#tpu.dimension_semantics<parallel>], iteration_bounds = array<i64: 1>, scalar_prefetch = 0 : i64, scratch_operands = 0 : i64, tpu.core_type = #tpu.core_type<tc>, window_params = [{pipeline_mode = #tpu.pipeline_mode<synchronous>, transform_indices = @transform_0, window_bounds = array<i64: 116, 128>}, {transform_indices = @transform_1, window_bounds = array<i64: 128, 256>}, {transform_indices = @transform_2, window_bounds = array<i64: 1, 256>}, {transform_indices = @transform_3, window_bounds = array<i64: 116, 256>}]} {
    %c0 = arith.constant 0 : index
    %c0_0 = arith.constant 0 : index
    %0 = vector.load %arg1[%c0, %c0_0] : memref<116x128xbf16, #tpu.memory_space<vmem>>, vector<116x128xbf16>
    %c0_1 = arith.constant 0 : index
    %c0_2 = arith.constant 0 : index
    %1 = vector.load %arg2[%c0_1, %c0_2] : memref<128x256xbf16, #tpu.memory_space<vmem>>, vector<128x256xbf16>
    %cst = arith.constant dense<0.000000e+00> : vector<116x256xf32>
    %2 = tpu.matmul %0, %1, %cst {dimension_numbers = #tpu.dot_dimension_numbers<[1], [0], [0], [1], [0, 0, 1, 1], [], []>} : vector<116x128xbf16>, vector<128x256xbf16>, vector<116x256xf32> -> vector<116x256xf32>
    %c0_3 = arith.constant 0 : index
    %c0_4 = arith.constant 0 : index
    %3 = vector.load %arg3[%c0_3, %c0_4] : memref<1x256xf32, #tpu.memory_space<vmem>>, vector<1x256xf32>
    %4 = vector.broadcast %3 : vector<1x256xf32> to vector<116x256xf32>
    %5 = arith.addf %2, %4 : vector<116x256xf32>
    %cst_5 = arith.constant 0.000000e+00 : f32
    %6 = vector.broadcast %cst_5 : f32 to vector<116x256xf32>
    %7 = arith.maximumf %5, %6 : vector<116x256xf32>
    %8 = arith.truncf %7 : vector<116x256xf32> to vector<116x256xbf16>
    %c0_6 = arith.constant 0 : index
    %c0_7 = arith.constant 0 : index
    %9 = vector.load %arg4[%c0_6, %c0_7] : memref<116x256xbf16, #tpu.memory_space<vmem>>, vector<116x256xbf16>
    tpu.vector_store %arg4[%c0_6, %c0_7], %8 {strides = array<i32>} : memref<116x256xbf16, #tpu.memory_space<vmem>>, vector<116x256xbf16>,
    return
  }
  func.func @transform_0(%arg0: i32) -> (i32, i32) {
    %c0_i32 = arith.constant 0 : i32
    %c0_i32_0 = arith.constant 0 : i32
    %c0_i32_1 = arith.constant 0 : i32
    return %c0_i32, %c0_i32_0 : i32, i32
  }
  func.func @transform_1(%arg0: i32) -> (i32, i32) {
    %c0_i32 = arith.constant 0 : i32
    %c0_i32_0 = arith.constant 0 : i32
    return %c0_i32, %arg0 : i32, i32
  }
  func.func @transform_2(%arg0: i32) -> (i32, i32) {
    %c0_i32 = arith.constant 0 : i32
    %c0_i32_0 = arith.constant 0 : i32
    return %c0_i32, %arg0 : i32, i32
  }
  func.func @transform_3(%arg0: i32) -> (i32, i32) {
    %c0_i32 = arith.constant 0 : i32
    %c0_i32_0 = arith.constant 0 : i32
    return %c0_i32, %arg0 : i32, i32
  }
}

module attributes {stable_mosaic.version = 11 : i64} {
  func.func @_matmul_shift_act_kernel(%arg0: i32, %arg1: memref<54x1280xbf16, #tpu.memory_space<vmem>>, %arg2: memref<1280x512xbf16, #tpu.memory_space<vmem>>, %arg3: memref<1x512xf32, #tpu.memory_space<vmem>>, %arg4: memref<54x512xbf16, #tpu.memory_space<vmem>>) attributes {dimension_semantics = [#tpu.dimension_semantics<parallel>], iteration_bounds = array<i64: 1>, scalar_prefetch = 0 : i64, scratch_operands = 0 : i64, tpu.core_type = #tpu.core_type<tc>, window_params = [{pipeline_mode = #tpu.pipeline_mode<synchronous>, transform_indices = @transform_0, window_bounds = array<i64: 54, 1280>}, {transform_indices = @transform_1, window_bounds = array<i64: 1280, 512>}, {transform_indices = @transform_2, window_bounds = array<i64: 1, 512>}, {transform_indices = @transform_3, window_bounds = array<i64: 54, 512>}]} {
    %c0 = arith.constant 0 : index
    %c0_0 = arith.constant 0 : index
    %0 = vector.load %arg1[%c0, %c0_0] : memref<54x1280xbf16, #tpu.memory_space<vmem>>, vector<54x1280xbf16>
    %c0_1 = arith.constant 0 : index
    %c0_2 = arith.constant 0 : index
    %1 = vector.load %arg2[%c0_1, %c0_2] : memref<1280x512xbf16, #tpu.memory_space<vmem>>, vector<1280x512xbf16>
    %cst = arith.constant dense<0.000000e+00> : vector<54x512xf32>
    %2 = tpu.matmul %0, %1, %cst {dimension_numbers = #tpu.dot_dimension_numbers<[1], [0], [0], [1], [0, 0, 1, 1], [], []>} : vector<54x1280xbf16>, vector<1280x512xbf16>, vector<54x512xf32> -> vector<54x512xf32>
    %c0_3 = arith.constant 0 : index
    %c0_4 = arith.constant 0 : index
    %3 = vector.load %arg3[%c0_3, %c0_4] : memref<1x512xf32, #tpu.memory_space<vmem>>, vector<1x512xf32>
    %4 = vector.broadcast %3 : vector<1x512xf32> to vector<54x512xf32>
    %5 = arith.addf %2, %4 : vector<54x512xf32>
    %cst_5 = arith.constant 0.000000e+00 : f32
    %6 = vector.broadcast %cst_5 : f32 to vector<54x512xf32>
    %7 = arith.maximumf %5, %6 : vector<54x512xf32>
    %8 = arith.truncf %7 : vector<54x512xf32> to vector<54x512xbf16>
    %c0_6 = arith.constant 0 : index
    %c0_7 = arith.constant 0 : index
    %9 = vector.load %arg4[%c0_6, %c0_7] : memref<54x512xbf16, #tpu.memory_space<vmem>>, vector<54x512xbf16>
    tpu.vector_store %arg4[%c0_6, %c0_7], %8 {strides = array<i32>} : memref<54x512xbf16, #tpu.memory_space<vmem>>, vector<54x512xbf16>,
    return
  }
  func.func @transform_0(%arg0: i32) -> (i32, i32) {
    %c0_i32 = arith.constant 0 : i32
    %c0_i32_0 = arith.constant 0 : i32
    %c0_i32_1 = arith.constant 0 : i32
    return %c0_i32, %c0_i32_0 : i32, i32
  }
  func.func @transform_1(%arg0: i32) -> (i32, i32) {
    %c0_i32 = arith.constant 0 : i32
    %c0_i32_0 = arith.constant 0 : i32
    return %c0_i32, %arg0 : i32, i32
  }
  func.func @transform_2(%arg0: i32) -> (i32, i32) {
    %c0_i32 = arith.constant 0 : i32
    %c0_i32_0 = arith.constant 0 : i32
    return %c0_i32, %arg0 : i32, i32
  }
  func.func @transform_3(%arg0: i32) -> (i32, i32) {
    %c0_i32 = arith.constant 0 : i32
    %c0_i32_0 = arith.constant 0 : i32
    return %c0_i32, %arg0 : i32, i32
  }
}

module attributes {stable_mosaic.version = 11 : i64} {
  func.func @_matmul_shift_act_kernel(%arg0: i32, %arg1: memref<24x2560xbf16, #tpu.memory_space<vmem>>, %arg2: memref<2560x512xbf16, #tpu.memory_space<vmem>>, %arg3: memref<1x512xf32, #tpu.memory_space<vmem>>, %arg4: memref<24x512xbf16, #tpu.memory_space<vmem>>) attributes {dimension_semantics = [#tpu.dimension_semantics<parallel>], iteration_bounds = array<i64: 2>, scalar_prefetch = 0 : i64, scratch_operands = 0 : i64, tpu.core_type = #tpu.core_type<tc>, window_params = [{pipeline_mode = #tpu.pipeline_mode<synchronous>, transform_indices = @transform_0, window_bounds = array<i64: 24, 2560>}, {transform_indices = @transform_1, window_bounds = array<i64: 2560, 512>}, {transform_indices = @transform_2, window_bounds = array<i64: 1, 512>}, {transform_indices = @transform_3, window_bounds = array<i64: 24, 512>}]} {
    %c0 = arith.constant 0 : index
    %c0_0 = arith.constant 0 : index
    %0 = vector.load %arg1[%c0, %c0_0] : memref<24x2560xbf16, #tpu.memory_space<vmem>>, vector<24x2560xbf16>
    %c0_1 = arith.constant 0 : index
    %c0_2 = arith.constant 0 : index
    %1 = vector.load %arg2[%c0_1, %c0_2] : memref<2560x512xbf16, #tpu.memory_space<vmem>>, vector<2560x512xbf16>
    %cst = arith.constant dense<0.000000e+00> : vector<24x512xf32>
    %2 = tpu.matmul %0, %1, %cst {dimension_numbers = #tpu.dot_dimension_numbers<[1], [0], [0], [1], [0, 0, 1, 1], [], []>} : vector<24x2560xbf16>, vector<2560x512xbf16>, vector<24x512xf32> -> vector<24x512xf32>
    %c0_3 = arith.constant 0 : index
    %c0_4 = arith.constant 0 : index
    %3 = vector.load %arg3[%c0_3, %c0_4] : memref<1x512xf32, #tpu.memory_space<vmem>>, vector<1x512xf32>
    %4 = vector.broadcast %3 : vector<1x512xf32> to vector<24x512xf32>
    %5 = arith.addf %2, %4 : vector<24x512xf32>
    %cst_5 = arith.constant 0.000000e+00 : f32
    %6 = vector.broadcast %cst_5 : f32 to vector<24x512xf32>
    %7 = arith.maximumf %5, %6 : vector<24x512xf32>
    %8 = arith.truncf %7 : vector<24x512xf32> to vector<24x512xbf16>
    %c0_6 = arith.constant 0 : index
    %c0_7 = arith.constant 0 : index
    %9 = vector.load %arg4[%c0_6, %c0_7] : memref<24x512xbf16, #tpu.memory_space<vmem>>, vector<24x512xbf16>
    tpu.vector_store %arg4[%c0_6, %c0_7], %8 {strides = array<i32>} : memref<24x512xbf16, #tpu.memory_space<vmem>>, vector<24x512xbf16>,
    return
  }
  func.func @transform_0(%arg0: i32) -> (i32, i32) {
    %c0_i32 = arith.constant 0 : i32
    %c0_i32_0 = arith.constant 0 : i32
    %c0_i32_1 = arith.constant 0 : i32
    return %c0_i32, %c0_i32_0 : i32, i32
  }
  func.func @transform_1(%arg0: i32) -> (i32, i32) {
    %c0_i32 = arith.constant 0 : i32
    %c0_i32_0 = arith.constant 0 : i32
    return %c0_i32, %arg0 : i32, i32
  }
  func.func @transform_2(%arg0: i32) -> (i32, i32) {
    %c0_i32 = arith.constant 0 : i32
    %c0_i32_0 = arith.constant 0 : i32
    return %c0_i32, %arg0 : i32, i32
  }
  func.func @transform_3(%arg0: i32) -> (i32, i32) {
    %c0_i32 = arith.constant 0 : i32
    %c0_i32_0 = arith.constant 0 : i32
    return %c0_i32, %arg0 : i32, i32
  }
}

module attributes {stable_mosaic.version = 11 : i64} {
  func.func @_linear_head_kernel(%arg0: i32, %arg1: memref<2x2048xbf16, #tpu.memory_space<vmem>>, %arg2: memref<2048x512xbf16, #tpu.memory_space<vmem>>, %arg3: memref<1x512xf32, #tpu.memory_space<vmem>>, %arg4: memref<1x512xf32, #tpu.memory_space<vmem>>, %arg5: memref<1x1xf32, #tpu.memory_space<vmem>>, %arg6: memref<2x1xf32, #tpu.memory_space<vmem>>, %arg7: memref<2x512xf32, #tpu.memory_space<vmem>>) attributes {dimension_semantics = [#tpu.dimension_semantics<arbitrary>], iteration_bounds = array<i64: 6>, scalar_prefetch = 0 : i64, scratch_operands = 1 : i64, tpu.core_type = #tpu.core_type<tc>, window_params = [{transform_indices = @transform_0, window_bounds = array<i64: 2, 2048>}, {transform_indices = @transform_1, window_bounds = array<i64: 2048, 512>}, {pipeline_mode = #tpu.pipeline_mode<synchronous>, transform_indices = @transform_2, window_bounds = array<i64: 1, 512>}, {pipeline_mode = #tpu.pipeline_mode<synchronous>, transform_indices = @transform_3, window_bounds = array<i64: 1, 512>}, {pipeline_mode = #tpu.pipeline_mode<synchronous>, transform_indices = @transform_4, window_bounds = array<i64: 1, 1>}, {pipeline_mode = #tpu.pipeline_mode<synchronous>, transform_indices = @transform_5, window_bounds = array<i64: 2, 1>}]} {
    %c0_i32 = arith.constant 0 : i32
    %0 = arith.cmpi eq, %arg0, %c0_i32 : i32
    %1 = arith.extui %0 : i1 to i32
    %c0_i32_0 = arith.constant 0 : i32
    %2 = arith.cmpi ne, %1, %c0_i32_0 : i32
    scf.if %2 {
      %cst_9 = arith.constant 0.000000e+00 : f32
      %12 = vector.broadcast %cst_9 : f32 to vector<2x512xf32>
      %c0_10 = arith.constant 0 : index
      %c0_11 = arith.constant 0 : index
      %13 = vector.load %arg7[%c0_10, %c0_11] : memref<2x512xf32, #tpu.memory_space<vmem>>, vector<2x512xf32>
      tpu.vector_store %arg7[%c0_10, %c0_11], %12 {strides = array<i32>} : memref<2x512xf32, #tpu.memory_space<vmem>>, vector<2x512xf32>,
    } else {
    }
    %c0 = arith.constant 0 : index
    %c0_1 = arith.constant 0 : index
    %3 = vector.load %arg7[%c0, %c0_1] : memref<2x512xf32, #tpu.memory_space<vmem>>, vector<2x512xf32>
    %c0_2 = arith.constant 0 : index
    %c0_3 = arith.constant 0 : index
    %4 = vector.load %arg1[%c0_2, %c0_3] : memref<2x2048xbf16, #tpu.memory_space<vmem>>, vector<2x2048xbf16>
    %c0_4 = arith.constant 0 : index
    %c0_5 = arith.constant 0 : index
    %5 = vector.load %arg2[%c0_4, %c0_5] : memref<2048x512xbf16, #tpu.memory_space<vmem>>, vector<2048x512xbf16>
    %cst = arith.constant dense<0.000000e+00> : vector<2x512xf32>
    %6 = tpu.matmul %4, %5, %cst {dimension_numbers = #tpu.dot_dimension_numbers<[1], [0], [0], [1], [0, 0, 1, 1], [], []>} : vector<2x2048xbf16>, vector<2048x512xbf16>, vector<2x512xf32> -> vector<2x512xf32>
    %7 = arith.addf %3, %6 : vector<2x512xf32>
    %c0_6 = arith.constant 0 : index
    %c0_7 = arith.constant 0 : index
    %8 = vector.load %arg7[%c0_6, %c0_7] : memref<2x512xf32, #tpu.memory_space<vmem>>, vector<2x512xf32>
    tpu.vector_store %arg7[%c0_6, %c0_7], %7 {strides = array<i32>} : memref<2x512xf32, #tpu.memory_space<vmem>>, vector<2x512xf32>,
    %c5_i32 = arith.constant 5 : i32
    %9 = arith.cmpi eq, %arg0, %c5_i32 : i32
    %10 = arith.extui %9 : i1 to i32
    %c0_i32_8 = arith.constant 0 : i32
    %11 = arith.cmpi ne, %10, %c0_i32_8 : i32
    scf.if %11 {
      %c0_9 = arith.constant 0 : index
      %c0_10 = arith.constant 0 : index
      %12 = vector.load %arg7[%c0_9, %c0_10] : memref<2x512xf32, #tpu.memory_space<vmem>>, vector<2x512xf32>
      %c0_11 = arith.constant 0 : index
      %c0_12 = arith.constant 0 : index
      %13 = vector.load %arg3[%c0_11, %c0_12] : memref<1x512xf32, #tpu.memory_space<vmem>>, vector<1x512xf32>
      %14 = vector.broadcast %13 : vector<1x512xf32> to vector<2x512xf32>
      %15 = arith.addf %12, %14 : vector<2x512xf32>
      %c0_13 = arith.constant 0 : index
      %c0_14 = arith.constant 0 : index
      %16 = vector.load %arg4[%c0_13, %c0_14] : memref<1x512xf32, #tpu.memory_space<vmem>>, vector<1x512xf32>
      %17 = vector.broadcast %16 : vector<1x512xf32> to vector<2x512xf32>
      %18 = arith.mulf %15, %17 : vector<2x512xf32>
      %cst_15 = arith.constant dense<0.000000e+00> : vector<2xf32>
      %19 = vector.multi_reduction <add>, %18, %cst_15 [1] : vector<2x512xf32> to vector<2xf32>
      %20 = vector.shape_cast %19 : vector<2xf32> to vector<2x1xf32>
      %c0_16 = arith.constant 0 : index
      %c0_17 = arith.constant 0 : index
      %21 = vector.load %arg5[%c0_16, %c0_17] : memref<1x1xf32, #tpu.memory_space<vmem>>, vector<1x1xf32>
      %22 = vector.broadcast %21 : vector<1x1xf32> to vector<2x1xf32>
      %23 = arith.addf %20, %22 : vector<2x1xf32>
      %cst_18 = arith.constant 5.000000e-01 : f32
      %24 = vector.broadcast %cst_18 : f32 to vector<2x1xf32>
      %25 = arith.mulf %24, %23 : vector<2x1xf32>
      %26 = math.tanh %25 : vector<2x1xf32>
      %cst_19 = arith.constant 1.000000e+00 : f32
      %27 = vector.broadcast %cst_19 : f32 to vector<2x1xf32>
      %28 = arith.addf %26, %27 : vector<2x1xf32>
      %cst_20 = arith.constant 5.000000e-01 : f32
      %29 = vector.broadcast %cst_20 : f32 to vector<2x1xf32>
      %30 = arith.mulf %29, %28 : vector<2x1xf32>
      %c0_21 = arith.constant 0 : index
      %c0_22 = arith.constant 0 : index
      %31 = vector.load %arg6[%c0_21, %c0_22] : memref<2x1xf32, #tpu.memory_space<vmem>>, vector<2x1xf32>
      tpu.vector_store %arg6[%c0_21, %c0_22], %30 {strides = array<i32>} : memref<2x1xf32, #tpu.memory_space<vmem>>, vector<2x1xf32>,
    } else {
    }
    return
  }
  func.func @transform_0(%arg0: i32) -> (i32, i32) {
    %c0_i32 = arith.constant 0 : i32
    %c0_i32_0 = arith.constant 0 : i32
    return %c0_i32, %arg0 : i32, i32
  }
  func.func @transform_1(%arg0: i32) -> (i32, i32) {
    %c0_i32 = arith.constant 0 : i32
    %c0_i32_0 = arith.constant 0 : i32
    return %arg0, %c0_i32 : i32, i32
  }
  func.func @transform_2(%arg0: i32) -> (i32, i32) {
    %c0_i32 = arith.constant 0 : i32
    %c0_i32_0 = arith.constant 0 : i32
    %c0_i32_1 = arith.constant 0 : i32
    return %c0_i32, %c0_i32_0 : i32, i32
  }
  func.func @transform_3(%arg0: i32) -> (i32, i32) {
    %c0_i32 = arith.constant 0 : i32
    %c0_i32_0 = arith.constant 0 : i32
    %c0_i32_1 = arith.constant 0 : i32
    return %c0_i32, %c0_i32_0 : i32, i32
  }
  func.func @transform_4(%arg0: i32) -> (i32, i32) {
    %c0_i32 = arith.constant 0 : i32
    %c0_i32_0 = arith.constant 0 : i32
    %c0_i32_1 = arith.constant 0 : i32
    return %c0_i32, %c0_i32_0 : i32, i32
  }
  func.func @transform_5(%arg0: i32) -> (i32, i32) {
    %c0_i32 = arith.constant 0 : i32
    %c0_i32_0 = arith.constant 0 : i32
    %c0_i32_1 = arith.constant 0 : i32
    return %c0_i32, %c0_i32_0 : i32, i32
  }
}

</mosaic_0001>

<llo_original>
// kernel: discriminator_forward.4
$region0: #{discriminator_forward.4}
  #allocation0 [shape = 'u32[]', space=smem, size = 0x4, offset = 0x4, fixed_abs, tag = 'smem constant byte address 0x4 - core index']
  #allocation1 [shape = 'u32[144,128]{1,0:T(1,128)}', space=vmem, size = 0x12000, scoped, tag = 'internal scratch']
  %s0 = inlined_call_operand.vmem [shape: bf16[116,128], index: 0, kind: input, shape index: {}]
  %s1 = inlined_call_operand.hbm [shape: bf16[128,256], index: 1, kind: input, shape index: {}]
  %s2 = inlined_call_operand.hbm [shape: f32[1,256], index: 2, kind: input, shape index: {}]
  %s3 = inlined_call_operand.vmem [shape: bf16[116,256], index: 3, kind: output, shape index: {}]
  %s4 = sld [smem:[#allocation0]]
  $region30: #{discriminator_forward.4} parent=0
    _
  %s6 = ssub.s32 1, %s4
  %s7 = scalar_select 0, %s6, %s4
  $region1: #{discriminator_forward.4} parent=0
    #allocation2 [shape = 'u8[65536]{0}', space=vmem, size = 0x10000, scoped, tag = 'input window, operand 1, single buffered']
    #allocation3 [shape = 's32[1]{0}', space=sflag, size = 0x4, scoped, tag = 'scoped memory for discriminator_forward.4']
    #allocation4 [shape = 'u8[1024]{0}', space=vmem, size = 0x400, scoped, tag = 'input window, operand 2, single buffered']
    #allocation5 [shape = 's32[1]{0}', space=sflag, size = 0x4, scoped, tag = 'scoped memory for discriminator_forward.4']
    %8 = vsyncpa [#allocation3], 0
    %9 = vsyncpa [#allocation5], 0
    // Predicated region
    $region2: #{discriminator_forward.4} parent=1 // pred_check
      _
    $region3: #{discriminator_forward.4} parent=1 // pred_check_branch
      %11 = sbr.rel (0) target = $region5
    $region4: #{discriminator_forward.4} parent=1 // pred_region
      _
    $region5: #{discriminator_forward.4} parent=1 // pred_fallthru
      _
    // Predicated region
    $region6: #{discriminator_forward.4} parent=1 // pred_check
      _
    $region7: #{discriminator_forward.4} parent=1 // pred_check_branch
      %13 = sbr.rel (0) target = $region9
    $region8: #{discriminator_forward.4} parent=1 // pred_region
      %s15 = ssub.s32 2048, 2048
      %16 = vsyncadd [#allocation3], %s15
      %s17 = sshll.u32 [#allocation2], 4
      %s18 = int_to_ptr.vmem [resolvable:$true] %s17
      %23 = dma.hbm_to_vmem [thread:$0]  %s1, 2048, %s18, [#allocation3], 128, 128, 8
    $region9: #{discriminator_forward.4} parent=1 // pred_fallthru
      _
    // Predicated region
    $region10: #{discriminator_forward.4} parent=1 // pred_check
      _
    $region11: #{discriminator_forward.4} parent=1 // pred_check_branch
      %25 = sbr.rel (0) target = $region13
    $region12: #{discriminator_forward.4} parent=1 // pred_region
      %s27 = ssub.s32 32, 32
      %28 = vsyncadd [#allocation5], %s27
      %s30 = sshll.u32 [#allocation4], 4
      %s31 = int_to_ptr.vmem [resolvable:$true] %s30
      %33 = dma.hbm_to_vmem [thread:$0]  %s2, 32, %s31, [#allocation5]
    $region13: #{discriminator_forward.4} parent=1 // pred_fallthru
      _
    // Predicated region
    $region14: #{discriminator_forward.4} parent=1 // pred_check
      _
    $region15: #{discriminator_forward.4} parent=1 // pred_check_branch
      %35 = sbr.rel (0) target = $region17
    $region16: #{discriminator_forward.4} parent=1 // pred_region
      %36 = dma.done [#allocation3], 2048
    $region17: #{discriminator_forward.4} parent=1 // pred_fallthru
      _
    // Predicated region
    $region18: #{discriminator_forward.4} parent=1 // pred_check
      _
    $region19: #{discriminator_forward.4} parent=1 // pred_check_branch
      %38 = sbr.rel (0) target = $region21
    $region20: #{discriminator_forward.4} parent=1 // pred_region
      %39 = dma.done [#allocation5], 32
    $region21: #{discriminator_forward.4} parent=1 // pred_fallthru
      _
    %v41 = vld [vmem:[%s0] sm:$0xf]
    %v42 = vld [vmem:[%s0 + $0x4] sm:$0xf]
    %v43 = vld [vmem:[%s0 + $0x8] sm:$0xf]
    %v44 = vld [vmem:[%s0 + $0xc] sm:$0xf]
    %v45 = vld [vmem:[%s0 + $0x10] sm:$0xf]
    %v46 = vld [vmem:[%s0 + $0x14] sm:$0xf]
    %v47 = vld [vmem:[%s0 + $0x18] sm:$0xf]
    %v48 = vld [vmem:[%s0 + $0x1c] sm:$0xf]
    %v49 = vld [vmem:[%s0 + $0x20] sm:$0xf]
    %v50 = vld [vmem:[%s0 + $0x24] sm:$0xf]
    %v51 = vld [vmem:[%s0 + $0x28] sm:$0xf]
    %v52 = vld [vmem:[%s0 + $0x2c] sm:$0xf]
    %v53 = vld [vmem:[%s0 + $0x30] sm:$0xf]
    %v54 = vld [vmem:[%s0 + $0x34] sm:$0xf]
    %v55 = vld [vmem:[%s0 + $0x38] sm:$0x3]
    %v56 = vld [vmem:[#allocation2] sm:$0xff]
    %v57 = vld [vmem:[#allocation2 + $0x8] sm:$0xff]
    %v58 = vld [vmem:[#allocation2 + $0x10] sm:$0xff]
    %v59 = vld [vmem:[#allocation2 + $0x18] sm:$0xff]
    %v60 = vld [vmem:[#allocation2 + $0x20] sm:$0xff]
    %v61 = vld [vmem:[#allocation2 + $0x28] sm:$0xff]
    %v62 = vld [vmem:[#allocation2 + $0x30] sm:$0xff]
    %v63 = vld [vmem:[#allocation2 + $0x38] sm:$0xff]
    %v64 = vld [vmem:[#allocation2 + $0x40] sm:$0xff]
    %v65 = vld [vmem:[#allocation2 + $0x48] sm:$0xff]
    %v66 = vld [vmem:[#allocation2 + $0x50] sm:$0xff]
    %v67 = vld [vmem:[#allocation2 + $0x58] sm:$0xff]
    %v68 = vld [vmem:[#allocation2 + $0x60] sm:$0xff]
    %v69 = vld [vmem:[#allocation2 + $0x68] sm:$0xff]
    %v70 = vld [vmem:[#allocation2 + $0x70] sm:$0xff]
    %v71 = vld [vmem:[#allocation2 + $0x78] sm:$0xff]
    %v72 = vld [vmem:[#allocation4] sm:$0x3]
    %v74 = vlaneseq
    %v75 = vshrl.u32 %v74, 7
    %v76 = vsub.s32 0, %v75
    %v77 = vrot.slane %v72, %v76
    %v78 = vlaneseq
    %v79 = vshrl.u32 %v78, 7
    %v80 = vsub.s32 1, %v79
    %v81 = vrot.slane %v72, %v80
    %v99 = vunpack.c.l.b16 %v41
    %v100 = vunpack.c.l.b16 %v42
    %v101 = vunpack.c.l.b16 %v43
    %v102 = vunpack.c.l.b16 %v44
    %v103 = vunpack.c.l.b16 %v45
    %v104 = vunpack.c.l.b16 %v46
    %v105 = vunpack.c.l.b16 %v47
    %v106 = vunpack.c.l.b16 %v48
    %v107 = vunpack.c.l.b16 %v49
    %v108 = vunpack.c.l.b16 %v50
    %v109 = vunpack.c.l.b16 %v51
    %v110 = vunpack.c.l.b16 %v52
    %v111 = vunpack.c.l.b16 %v53
    %v112 = vunpack.c.l.b16 %v54
    %v113 = vunpack.c.l.b16 %v55
    %v114 = vpack.c.b16 %v100, %v99
    %v115 = vpack.c.b16 %v102, %v101
    %v116 = vpack.c.b16 %v104, %v103
    %v117 = vpack.c.b16 %v106, %v105
    %v118 = vpack.c.b16 %v108, %v107
    %v119 = vpack.c.b16 %v110, %v109
    %v120 = vpack.c.b16 %v112, %v111
    %v121 = vpack.c.b16 %v113, %v113
    %v146 = vunpack.c.l.b16 %v56
    %v147 = vunpack.c.h.b16 %v56
    %v148 = vunpack.c.l.b16 %v57
    %v149 = vunpack.c.h.b16 %v57
    %v150 = vunpack.c.l.b16 %v58
    %v151 = vunpack.c.h.b16 %v58
    %v152 = vunpack.c.l.b16 %v59
    %v153 = vunpack.c.h.b16 %v59
    %v154 = vunpack.c.l.b16 %v60
    %v155 = vunpack.c.h.b16 %v60
    %v156 = vunpack.c.l.b16 %v61
    %v157 = vunpack.c.h.b16 %v61
    %v158 = vunpack.c.l.b16 %v62
    %v159 = vunpack.c.h.b16 %v62
    %v160 = vunpack.c.l.b16 %v63
    %v161 = vunpack.c.h.b16 %v63
    %v162 = vunpack.c.l.b16 %v64
    %v163 = vunpack.c.h.b16 %v64
    %v164 = vunpack.c.l.b16 %v65
    %v165 = vunpack.c.h.b16 %v65
    %v166 = vunpack.c.l.b16 %v66
    %v167 = vunpack.c.h.b16 %v66
    %v168 = vunpack.c.l.b16 %v67
    %v169 = vunpack.c.h.b16 %v67
    %v170 = vunpack.c.l.b16 %v68
    %v171 = vunpack.c.h.b16 %v68
    %v172 = vunpack.c.l.b16 %v69
    %v173 = vunpack.c.h.b16 %v69
    %v174 = vunpack.c.l.b16 %v70
    %v175 = vunpack.c.h.b16 %v70
    %v176 = vunpack.c.l.b16 %v71
    %v177 = vunpack.c.h.b16 %v71
    %v178 = vpack.c.b16 %v148, %v146
    %v179 = vpack.c.b16 %v149, %v147
    %v180 = vpack.c.b16 %v152, %v150
    %v181 = vpack.c.b16 %v153, %v151
    %v182 = vpack.c.b16 %v156, %v154
    %v183 = vpack.c.b16 %v157, %v155
    %v184 = vpack.c.b16 %v160, %v158
    %v185 = vpack.c.b16 %v161, %v159
    %v186 = vpack.c.b16 %v164, %v162
    %v187 = vpack.c.b16 %v165, %v163
    %v188 = vpack.c.b16 %v168, %v166
    %v189 = vpack.c.b16 %v169, %v167
    %v190 = vpack.c.b16 %v172, %v170
    %v191 = vpack.c.b16 %v173, %v171
    %v192 = vpack.c.b16 %v176, %v174
    %v193 = vpack.c.b16 %v177, %v175
    %210 = vmatprep.subr.bf16.mxu0 %v179
    %211 = vmatpush1.bf16.msra.mxu0 %v178
    %212 = vmatprep.subr.bf16.mxu0 %v181
    %213 = vmatpush1.bf16.msra.mxu0 %v180
    %214 = vmatprep.subr.bf16.mxu0 %v183
    %215 = vmatpush1.bf16.msra.mxu0 %v182
    %216 = vmatprep.subr.bf16.mxu0 %v185
    %217 = vmatpush1.bf16.msra.mxu0 %v184
    %218 = vmatprep.subr.bf16.mxu0 %v187
    %219 = vmatpush1.bf16.msra.mxu0 %v186
    %220 = vmatprep.subr.bf16.mxu0 %v189
    %221 = vmatpush1.bf16.msra.mxu0 %v188
    %222 = vmatprep.subr.bf16.mxu0 %v191
    %223 = vmatpush1.bf16.msra.mxu0 %v190
    %224 = vmatprep.subr.bf16.mxu0 %v193
    %225 = vmatpush1.bf16.msra.mxu0 %v192
    %226 = vmatprep.subr.bf16.mxu0 0
    %227 = vmatpush1.bf16.msra.mxu0 0
    %228 = vmatprep.subr.bf16.mxu0 0
    %229 = vmatpush1.bf16.msra.mxu0 0
    %230 = vmatprep.subr.bf16.mxu0 0
    %231 = vmatpush1.bf16.msra.mxu0 0
    %232 = vmatprep.subr.bf16.mxu0 0
    %233 = vmatpush1.bf16.msra.mxu0 0
    %234 = vmatprep.subr.bf16.mxu0 0
    %235 = vmatpush1.bf16.msra.mxu0 0
    %236 = vmatprep.subr.bf16.mxu0 0
    %237 = vmatpush1.bf16.msra.mxu0 0
    %238 = vmatprep.subr.bf16.mxu0 0
    %239 = vmatpush1.bf16.msra.mxu0 0
    %240 = vmatprep.subr.bf16.mxu0 0
    %241 = vmatpush1.bf16.msra.mxu0 0
    %242 = vmatprep.mubr.bf16.mxu0 0
    %243 = vmatmul.mubr.bf16.gmra.mrb[0].mxu0 %v114
    %v244 = vpop.f32.mrb[0].mxu0
    %v245 = vadd.f32 %v77, %v244
    %v246 = vpop.f32.mrb[0].mxu0
    %v247 = vadd.f32 %v81, %v246
    %v248 = vpop.f32.mrb[0].mxu0
    %v249 = vadd.f32 %v77, %v248
    %v250 = vpop.f32.mrb[0].mxu0
    %v251 = vadd.f32 %v81, %v250
    %252 = vmatprep.mubr.bf16.mxu0 0
    %253 = vmatmul.mubr.bf16.gmra.mrb[0].mxu0 %v115
    %v254 = vpop.f32.mrb[0].mxu0
    %v255 = vadd.f32 %v77, %v254
    %v256 = vpop.f32.mrb[0].mxu0
    %v257 = vadd.f32 %v81, %v256
    %v258 = vpop.f32.mrb[0].mxu0
    %v259 = vadd.f32 %v77, %v258
    %v260 = vpop.f32.mrb[0].mxu0
    %v261 = vadd.f32 %v81, %v260
    %262 = vmatprep.mubr.bf16.mxu0 0
    %263 = vmatmul.mubr.bf16.gmra.mrb[0].mxu0 %v116
    %v264 = vpop.f32.mrb[0].mxu0
    %v265 = vadd.f32 %v77, %v264
    %v266 = vpop.f32.mrb[0].mxu0
    %v267 = vadd.f32 %v81, %v266
    %v268 = vpop.f32.mrb[0].mxu0
    %v269 = vadd.f32 %v77, %v268
    %v270 = vpop.f32.mrb[0].mxu0
    %v271 = vadd.f32 %v81, %v270
    %272 = vmatprep.mubr.bf16.mxu0 0
    %273 = vmatmul.mubr.bf16.gmra.mrb[0].mxu0 %v117
    %v274 = vpop.f32.mrb[0].mxu0
    %v275 = vadd.f32 %v77, %v274
    %v276 = vpop.f32.mrb[0].mxu0
    %v277 = vadd.f32 %v81, %v276
    %v278 = vpop.f32.mrb[0].mxu0
    %v279 = vadd.f32 %v77, %v278
    %v280 = vpop.f32.mrb[0].mxu0
    %v281 = vadd.f32 %v81, %v280
    %282 = vmatprep.mubr.bf16.mxu0 0
    %283 = vmatmul.mubr.bf16.gmra.mrb[0].mxu0 %v118
    %v284 = vpop.f32.mrb[0].mxu0
    %v285 = vadd.f32 %v77, %v284
    %v286 = vpop.f32.mrb[0].mxu0
    %v287 = vadd.f32 %v81, %v286
    %v288 = vpop.f32.mrb[0].mxu0
    %v289 = vadd.f32 %v77, %v288
    %v290 = vpop.f32.mrb[0].mxu0
    %v291 = vadd.f32 %v81, %v290
    %292 = vmatprep.mubr.bf16.mxu0 0
    %293 = vmatmul.mubr.bf16.gmra.mrb[0].mxu0 %v119
    %v294 = vpop.f32.mrb[0].mxu0
    %v295 = vadd.f32 %v77, %v294
    %v296 = vpop.f32.mrb[0].mxu0
    %v297 = vadd.f32 %v81, %v296
    %v298 = vpop.f32.mrb[0].mxu0
    %v299 = vadd.f32 %v77, %v298
    %v300 = vpop.f32.mrb[0].mxu0
    %v301 = vadd.f32 %v81, %v300
    %302 = vmatprep.mubr.bf16.mxu0 0
    %303 = vmatmul.mubr.bf16.gmra.mrb[0].mxu0 %v120
    %v304 = vpop.f32.mrb[0].mxu0
    %v305 = vadd.f32 %v77, %v304
    %v306 = vpop.f32.mrb[0].mxu0
    %v307 = vadd.f32 %v81, %v306
    %v308 = vpop.f32.mrb[0].mxu0
    %v309 = vadd.f32 %v77, %v308
    %v310 = vpop.f32.mrb[0].mxu0
    %v311 = vadd.f32 %v81, %v310
    %312 = vmatprep.mubr.bf16.mxu0 0
    %313 = vmatmul.mubr.bf16.gmra.mrb[0].mxu0 %v121
    %v314 = vpop.f32.mrb[0].mxu0
    %v315 = vadd.f32 %v77, %v314
    %v316 = vpop.f32.mrb[0].mxu0
    %v317 = vadd.f32 %v81, %v316
    %v318 = vpop.f32.mrb[0].mxu0
    %v319 = vpop.f32.mrb[0].mxu0
    %320 = vdwg.mxu0
    %v321 = vmax.f32 %v245, 0.0
    %v322 = vmax.f32 %v247, 0.0
    %v323 = vmax.f32 %v249, 0.0
    %v324 = vmax.f32 %v251, 0.0
    %v325 = vmax.f32 %v255, 0.0
    %v326 = vmax.f32 %v257, 0.0
    %v327 = vmax.f32 %v259, 0.0
    %v328 = vmax.f32 %v261, 0.0
    %v329 = vmax.f32 %v265, 0.0
    %v330 = vmax.f32 %v267, 0.0
    %v331 = vmax.f32 %v269, 0.0
    %v332 = vmax.f32 %v271, 0.0
    %v333 = vmax.f32 %v275, 0.0
    %v334 = vmax.f32 %v277, 0.0
    %v335 = vmax.f32 %v279, 0.0
    %v336 = vmax.f32 %v281, 0.0
    %v337 = vmax.f32 %v285, 0.0
    %v338 = vmax.f32 %v287, 0.0
    %v339 = vmax.f32 %v289, 0.0
    %v340 = vmax.f32 %v291, 0.0
    %v341 = vmax.f32 %v295, 0.0
    %v342 = vmax.f32 %v297, 0.0
    %v343 = vmax.f32 %v299, 0.0
    %v344 = vmax.f32 %v301, 0.0
    %v345 = vmax.f32 %v305, 0.0
    %v346 = vmax.f32 %v307, 0.0
    %v347 = vmax.f32 %v309, 0.0
    %v348 = vmax.f32 %v311, 0.0
    %v349 = vmax.f32 %v315, 0.0
    %v350 = vmax.f32 %v317, 0.0
    %v351 = vpack.c.bf16 %v323, %v321
    %v352 = vpack.c.bf16 %v324, %v322
    %v353 = vpack.c.bf16 %v327, %v325
    %v354 = vpack.c.bf16 %v328, %v326
    %v355 = vpack.c.bf16 %v331, %v329
    %v356 = vpack.c.bf16 %v332, %v330
    %v357 = vpack.c.bf16 %v335, %v333
    %v358 = vpack.c.bf16 %v336, %v334
    %v359 = vpack.c.bf16 %v339, %v337
    %v360 = vpack.c.bf16 %v340, %v338
    %v361 = vpack.c.bf16 %v343, %v341
    %v362 = vpack.c.bf16 %v344, %v342
    %v363 = vpack.c.bf16 %v347, %v345
    %v364 = vpack.c.bf16 %v348, %v346
    %v365 = vpack.c.bf16 %v349, %v349
    %v366 = vpack.c.bf16 %v350, %v350
    %v383 = vunpack.c.l.b16 %v351
    %v384 = vunpack.c.l.b16 %v352
    %v385 = vunpack.c.h.b16 %v351
    %v386 = vunpack.c.h.b16 %v352
    %v387 = vunpack.c.l.b16 %v353
    %v388 = vunpack.c.l.b16 %v354
    %v389 = vunpack.c.h.b16 %v353
    %v390 = vunpack.c.h.b16 %v354
    %v391 = vunpack.c.l.b16 %v355
    %v392 = vunpack.c.l.b16 %v356
    %v393 = vunpack.c.h.b16 %v355
    %v394 = vunpack.c.h.b16 %v356
    %v395 = vunpack.c.l.b16 %v357
    %v396 = vunpack.c.l.b16 %v358
    %v397 = vunpack.c.h.b16 %v357
    %v398 = vunpack.c.h.b16 %v358
    %v399 = vunpack.c.l.b16 %v359
    %v400 = vunpack.c.l.b16 %v360
    %v401 = vunpack.c.h.b16 %v359
    %v402 = vunpack.c.h.b16 %v360
    %v403 = vunpack.c.l.b16 %v361
    %v404 = vunpack.c.l.b16 %v362
    %v405 = vunpack.c.h.b16 %v361
    %v406 = vunpack.c.h.b16 %v362
    %v407 = vunpack.c.l.b16 %v363
    %v408 = vunpack.c.l.b16 %v364
    %v409 = vunpack.c.h.b16 %v363
    %v410 = vunpack.c.h.b16 %v364
    %v411 = vunpack.c.l.b16 %v365
    %v412 = vunpack.c.l.b16 %v366
    %v413 = vpack.c.b16 %v384, %v383
    %v414 = vpack.c.b16 %v386, %v385
    %v415 = vpack.c.b16 %v388, %v387
    %v416 = vpack.c.b16 %v390, %v389
    %v417 = vpack.c.b16 %v392, %v391
    %v418 = vpack.c.b16 %v394, %v393
    %v419 = vpack.c.b16 %v396, %v395
    %v420 = vpack.c.b16 %v398, %v397
    %v421 = vpack.c.b16 %v400, %v399
    %v422 = vpack.c.b16 %v402, %v401
    %v423 = vpack.c.b16 %v404, %v403
    %v424 = vpack.c.b16 %v406, %v405
    %v425 = vpack.c.b16 %v408, %v407
    %v426 = vpack.c.b16 %v410, %v409
    %v427 = vpack.c.b16 %v412, %v411
    %443 = vst [vmem:[%s3] sm:$0xff] %v413
    %444 = vst [vmem:[%s3 + $0x8] sm:$0xff] %v414
    %445 = vst [vmem:[%s3 + $0x10] sm:$0xff] %v415
    %446 = vst [vmem:[%s3 + $0x18] sm:$0xff] %v416
    %447 = vst [vmem:[%s3 + $0x20] sm:$0xff] %v417
    %448 = vst [vmem:[%s3 + $0x28] sm:$0xff] %v418
    %449 = vst [vmem:[%s3 + $0x30] sm:$0xff] %v419
    %450 = vst [vmem:[%s3 + $0x38] sm:$0xff] %v420
    %451 = vst [vmem:[%s3 + $0x40] sm:$0xff] %v421
    %452 = vst [vmem:[%s3 + $0x48] sm:$0xff] %v422
    %453 = vst [vmem:[%s3 + $0x50] sm:$0xff] %v423
    %454 = vst [vmem:[%s3 + $0x58] sm:$0xff] %v424
    %455 = vst [vmem:[%s3 + $0x60] sm:$0xff] %v425
    %456 = vst [vmem:[%s3 + $0x68] sm:$0xff] %v426
    %457 = vst [vmem:[%s3 + $0x70] sm:$0x33] %v427
    // Predicated region
    $region22: #{discriminator_forward.4} parent=1 // pred_check
      _
    $region23: #{discriminator_forward.4} parent=1 // pred_check_branch
      %459 = sbr.rel (0) target = $region25
    $region24: #{discriminator_forward.4} parent=1 // pred_region
      _
    $region25: #{discriminator_forward.4} parent=1 // pred_fallthru
      _
    // Predicated region
    $region26: #{discriminator_forward.4} parent=1 // pred_check
      _
    $region27: #{discriminator_forward.4} parent=1 // pred_check_branch
      %461 = sbr.rel (0) target = $region29
    $region28: #{discriminator_forward.4} parent=1 // pred_region
      _
    $region29: #{discriminator_forward.4} parent=1 // pred_fallthru
      _
    %462 = vsyncpa [#allocation3], 1
    %463 = vsyncpa [#allocation5], 1

// kernel: discriminator_forward.5
$region0: #{discriminator_forward.5}
  #allocation0 [shape = 'u32[]', space=smem, size = 0x4, offset = 0x4, fixed_abs, tag = 'smem constant byte address 0x4 - core index']
  #allocation1 [shape = 'u32[144,128]{1,0:T(1,128)}', space=vmem, size = 0x12000, scoped, tag = 'internal scratch']
  %s0 = inlined_call_operand.vmem [shape: bf16[54,1280], index: 0, kind: input, shape index: {}]
  %s1 = inlined_call_operand.hbm [shape: bf16[1280,512], index: 1, kind: input, shape index: {}]
  %s2 = inlined_call_operand.hbm [shape: f32[1,512], index: 2, kind: input, shape index: {}]
  %s3 = inlined_call_operand.vmem [shape: bf16[54,512], index: 3, kind: output, shape index: {}]
  %s4 = sld [smem:[#allocation0]]
  $region30: #{discriminator_forward.5} parent=0
    _
  %s6 = ssub.s32 1, %s4
  %s7 = scalar_select 0, %s6, %s4
  $region1: #{discriminator_forward.5} parent=0
    #allocation2 [shape = 'u8[1310720]{0}', space=vmem, size = 0x140000, scoped, tag = 'input window, operand 1, single buffered']
    #allocation3 [shape = 's32[1]{0}', space=sflag, size = 0x4, scoped, tag = 'scoped memory for discriminator_forward.5']
    #allocation4 [shape = 'u8[2048]{0}', space=vmem, size = 0x800, scoped, tag = 'input window, operand 2, single buffered']
    #allocation5 [shape = 's32[1]{0}', space=sflag, size = 0x4, scoped, tag = 'scoped memory for discriminator_forward.5']
    %8 = vsyncpa [#allocation3], 0
    %9 = vsyncpa [#allocation5], 0
    // Predicated region
    $region2: #{discriminator_forward.5} parent=1 // pred_check
      _
    $region3: #{discriminator_forward.5} parent=1 // pred_check_branch
      %11 = sbr.rel (0) target = $region5
    $region4: #{discriminator_forward.5} parent=1 // pred_region
      _
    $region5: #{discriminator_forward.5} parent=1 // pred_fallthru
      _
    // Predicated region
    $region6: #{discriminator_forward.5} parent=1 // pred_check
      _
    $region7: #{discriminator_forward.5} parent=1 // pred_check_branch
      %13 = sbr.rel (0) target = $region9
    $region8: #{discriminator_forward.5} parent=1 // pred_region
      %s15 = ssub.s32 40960, 40960
      %16 = vsyncadd [#allocation3], %s15
      %s17 = sshll.u32 [#allocation2], 4
      %s18 = int_to_ptr.vmem [resolvable:$true] %s17
      %23 = dma.hbm_to_vmem [thread:$0]  %s1, 40960, %s18, [#allocation3], 256, 256, 16
    $region9: #{discriminator_forward.5} parent=1 // pred_fallthru
      _
    // Predicated region
    $region10: #{discriminator_forward.5} parent=1 // pred_check
      _
    $region11: #{discriminator_forward.5} parent=1 // pred_check_branch
      %25 = sbr.rel (0) target = $region13
    $region12: #{discriminator_forward.5} parent=1 // pred_region
      %s27 = ssub.s32 64, 64
      %28 = vsyncadd [#allocation5], %s27
      %s30 = sshll.u32 [#allocation4], 4
      %s31 = int_to_ptr.vmem [resolvable:$true] %s30
      %33 = dma.hbm_to_vmem [thread:$0]  %s2, 64, %s31, [#allocation5]
    $region13: #{discriminator_forward.5} parent=1 // pred_fallthru
      _
    // Predicated region
    $region14: #{discriminator_forward.5} parent=1 // pred_check
      _
    $region15: #{discriminator_forward.5} parent=1 // pred_check_branch
      %35 = sbr.rel (0) target = $region17
    $region16: #{discriminator_forward.5} parent=1 // pred_region
      %36 = dma.done [#allocation3], 40960
    $region17: #{discriminator_forward.5} parent=1 // pred_fallthru
      _
    // Predicated region
    $region18: #{discriminator_forward.5} parent=1 // pred_check
      _
    $region19: #{discriminator_forward.5} parent=1 // pred_check_branch
      %38 = sbr.rel (0) target = $region21
    $region20: #{discriminator_forward.5} parent=1 // pred_region
      %39 = dma.done [#allocation5], 64
    $region21: #{discriminator_forward.5} parent=1 // pred_fallthru
      _
    %v40 = vld [vmem:[%s0] sm:$0xff]
    %v41 = vld [vmem:[%s0 + $0x8] sm:$0xff]
    %v42 = vld [vmem:[%s0 + $0x10] sm:$0xff]
    %v43 = vld [vmem:[%s0 + $0x18] sm:$0xff]
    %v44 = vld [vmem:[%s0 + $0x20] sm:$0xff]
    %v45 = vld [vmem:[%s0 + $0x28] sm:$0xff]
    %v46 = vld [vmem:[%s0 + $0x30] sm:$0xff]
    %v47 = vld [vmem:[%s0 + $0x38] sm:$0xff]
    %v48 = vld [vmem:[%s0 + $0x40] sm:$0xff]
    %v49 = vld [vmem:[%s0 + $0x48] sm:$0xff]
    %v50 = vld [vmem:[%s0 + $0x50] sm:$0xff]
    %v51 = vld [vmem:[%s0 + $0x58] sm:$0xff]
    %v52 = vld [vmem:[%s0 + $0x60] sm:$0xff]
    %v53 = vld [vmem:[%s0 + $0x68] sm:$0xff]
    %v54 = vld [vmem:[%s0 + $0x70] sm:$0xff]
    %v55 = vld [vmem:[%s0 + $0x78] sm:$0xff]
    %v56 = vld [vmem:[%s0 + $0x80] sm:$0xff]
    %v57 = vld [vmem:[%s0 + $0x88] sm:$0xff]
    %v58 = vld [vmem:[%s0 + $0x90] sm:$0xff]
    %v59 = vld [vmem:[%s0 + $0x98] sm:$0xff]
    %v60 = vld [vmem:[%s0 + $0xa0] sm:$0xff]
    %v61 = vld [vmem:[%s0 + $0xa8] sm:$0xff]
    %v62 = vld [vmem:[%s0 + $0xb0] sm:$0xff]
    %v63 = vld [vmem:[%s0 + $0xb8] sm:$0xff]
    %v64 = vld [vmem:[%s0 + $0xc0] sm:$0xff]
    %v65 = vld [vmem:[%s0 + $0xc8] sm:$0xff]
    %v66 = vld [vmem:[%s0 + $0xd0] sm:$0xff]
    %v67 = vld [vmem:[%s0 + $0xd8] sm:$0xff]
    %v68 = vld [vmem:[%s0 + $0xe0] sm:$0xff]
    %v69 = vld [vmem:[%s0 + $0xe8] sm:$0xff]
    %v70 = vld [vmem:[%s0 + $0xf0] sm:$0x77]
    %v71 = vld [vmem:[%s0 + $0xf8] sm:$0x77]
    %v72 = vld [vmem:[%s0 + $0x100] sm:$0x77]
    %v73 = vld [vmem:[%s0 + $0x108] sm:$0x77]
    %v74 = vld [vmem:[%s0 + $0x110] sm:$0x77]
    %v75 = vld [vmem:[#allocation2] sm:$0xff]
    %v76 = vld [vmem:[#allocation2 + $0x8] sm:$0xff]
    %v77 = vld [vmem:[#allocation2 + $0x10] sm:$0xff]
    %v78 = vld [vmem:[#allocation2 + $0x18] sm:$0xff]
    %v79 = vld [vmem:[#allocation2 + $0x20] sm:$0xff]
    %v80 = vld [vmem:[#allocation2 + $0x28] sm:$0xff]
    %v81 = vld [vmem:[#allocation2 + $0x30] sm:$0xff]
    %v82 = vld [vmem:[#allocation2 + $0x38] sm:$0xff]
    %v83 = vld [vmem:[#allocation2 + $0x40] sm:$0xff]
    %v84 = vld [vmem:[#allocation2 + $0x48] sm:$0xff]
    %v85 = vld [vmem:[#allocation2 + $0x50] sm:$0xff]
    %v86 = vld [vmem:[#allocation2 + $0x58] sm:$0xff]
    %v87 = vld [vmem:[#allocation2 + $0x60] sm:$0xff]
    %v88 = vld [vmem:[#allocation2 + $0x68] sm:$0xff]
    %v89 = vld [vmem:[#allocation2 + $0x70] sm:$0xff]
    %v90 = vld [vmem:[#allocation2 + $0x78] sm:$0xff]
    %v91 = vld [vmem:[#allocation2 + $0x80] sm:$0xff]
    %v92 = vld [vmem:[#allocation2 + $0x88] sm:$0xff]
    %v93 = vld [vmem:[#allocation2 + $0x90] sm:$0xff]
    %v94 = vld [vmem:[#allocation2 + $0x98] sm:$0xff]
    %v95 = vld [vmem:[#allocation2 + $0xa0] sm:$0xff]
    %v96 = vld [vmem:[#allocation2 + $0xa8] sm:$0xff]
    %v97 = vld [vmem:[#allocation2 + $0xb0] sm:$0xff]
    %v98 = vld [vmem:[#allocation2 + $0xb8] sm:$0xff]
    %v99 = vld [vmem:[#allocation2 + $0xc0] sm:$0xff]
    %v100 = vld [vmem:[#allocation2 + $0xc8] sm:$0xff]
    %v101 = vld [vmem:[#allocation2 + $0xd0] sm:$0xff]
    %v102 = vld [vmem:[#allocation2 + $0xd8] sm:$0xff]
    %v103 = vld [vmem:[#allocation2 + $0xe0] sm:$0xff]
    %v104 = vld [vmem:[#allocation2 + $0xe8] sm:$0xff]
    %v105 = vld [vmem:[#allocation2 + $0xf0] sm:$0xff]
    %v106 = vld [vmem:[#allocation2 + $0xf8] sm:$0xff]
    %v107 = vld [vmem:[#allocation2 + $0x100] sm:$0xff]
    %v108 = vld [vmem:[#allocation2 + $0x108] sm:$0xff]
    %v109 = vld [vmem:[#allocation2 + $0x110] sm:$0xff]
    %v110 = vld [vmem:[#allocation2 + $0x118] sm:$0xff]
    %v111 = vld [vmem:[#allocation2 + $0x120] sm:$0xff]
    %v112 = vld [vmem:[#allocation2 + $0x128] sm:$0xff]
    %v113 = vld [vmem:[#allocation2 + $0x130] sm:$0xff]
    %v114 = vld [vmem:[#allocation2 + $0x138] sm:$0xff]
    %v115 = vld [vmem:[#allocation2 + $0x140] sm:$0xff]
    %v116 = vld [vmem:[#allocation2 + $0x148] sm:$0xff]
    %v117 = vld [vmem:[#allocation2 + $0x150] sm:$0xff]
    %v118 = vld [vmem:[#allocation2 + $0x158] sm:$0xff]
    %v119 = vld [vmem:[#allocation2 + $0x160] sm:$0xff]
    %v120 = vld [vmem:[#allocation2 + $0x168] sm:$0xff]
    %v121 = vld [vmem:[#allocation2 + $0x170] sm:$0xff]
    %v122 = vld [vmem:[#allocation2 + $0x178] sm:$0xff]
    %v123 = vld [vmem:[#allocation2 + $0x180] sm:$0xff]
    %v124 = vld [vmem:[#allocation2 + $0x188] sm:$0xff]
    %v125 = vld [vmem:[#allocation2 + $0x190] sm:$0xff]
    %v126 = vld [vmem:[#allocation2 + $0x198] sm:$0xff]
    %v127 = vld [vmem:[#allocation2 + $0x1a0] sm:$0xff]
    %v128 = vld [vmem:[#allocation2 + $0x1a8] sm:$0xff]
    %v129 = vld [vmem:[#allocation2 + $0x1b0] sm:$0xff]
    %v130 = vld [vmem:[#allocation2 + $0x1b8] sm:$0xff]
    %v131 = vld [vmem:[#allocation2 + $0x1c0] sm:$0xff]
    %v132 = vld [vmem:[#allocation2 + $0x1c8] sm:$0xff]
    %v133 = vld [vmem:[#allocation2 + $0x1d0] sm:$0xff]
    %v134 = vld [vmem:[#allocation2 + $0x1d8] sm:$0xff]
    %v135 = vld [vmem:[#allocation2 + $0x1e0] sm:$0xff]
    %v136 = vld [vmem:[#allocation2 + $0x1e8] sm:$0xff]
    %v137 = vld [vmem:[#allocation2 + $0x1f0] sm:$0xff]
    %v138 = vld [vmem:[#allocation2 + $0x1f8] sm:$0xff]
    %v139 = vld [vmem:[#allocation2 + $0x200] sm:$0xff]
    %v140 = vld [vmem:[#allocation2 + $0x208] sm:$0xff]
    %v141 = vld [vmem:[#allocation2 + $0x210] sm:$0xff]
    %v142 = vld [vmem:[#allocation2 + $0x218] sm:$0xff]
    %v143 = vld [vmem:[#allocation2 + $0x220] sm:$0xff]
    %v144 = vld [vmem:[#allocation2 + $0x228] sm:$0xff]
    %v145 = vld [vmem:[#allocation2 + $0x230] sm:$0xff]
    %v146 = vld [vmem:[#allocation2 + $0x238] sm:$0xff]
    %v147 = vld [vmem:[#allocation2 + $0x240] sm:$0xff]
    %v148 = vld [vmem:[#allocation2 + $0x248] sm:$0xff]
    %v149 = vld [vmem:[#allocation2 + $0x250] sm:$0xff]
    %v150 = vld [vmem:[#allocation2 + $0x258] sm:$0xff]
    %v151 = vld [vmem:[#allocation2 + $0x260] sm:$0xff]
    %v152 = vld [vmem:[#allocation2 + $0x268] sm:$0xff]
    %v153 = vld [vmem:[#allocation2 + $0x270] sm:$0xff]
    %v154 = vld [vmem:[#allocation2 + $0x278] sm:$0xff]
    %v155 = vld [vmem:[#allocation2 + $0x280] sm:$0xff]
    %v156 = vld [vmem:[#allocation2 + $0x288] sm:$0xff]
    %v157 = vld [vmem:[#allocation2 + $0x290] sm:$0xff]
    %v158 = vld [vmem:[#allocation2 + $0x298] sm:$0xff]
    %v159 = vld [vmem:[#allocation2 + $0x2a0] sm:$0xff]
    %v160 = vld [vmem:[#allocation2 + $0x2a8] sm:$0xff]
    %v161 = vld [vmem:[#allocation2 + $0x2b0] sm:$0xff]
    %v162 = vld [vmem:[#allocation2 + $0x2b8] sm:$0xff]
    %v163 = vld [vmem:[#allocation2 + $0x2c0] sm:$0xff]
    %v164 = vld [vmem:[#allocation2 + $0x2c8] sm:$0xff]
    %v165 = vld [vmem:[#allocation2 + $0x2d0] sm:$0xff]
    %v166 = vld [vmem:[#allocation2 + $0x2d8] sm:$0xff]
    %v167 = vld [vmem:[#allocation2 + $0x2e0] sm:$0xff]
    %v168 = vld [vmem:[#allocation2 + $0x2e8] sm:$0xff]
    %v169 = vld [vmem:[#allocation2 + $0x2f0] sm:$0xff]
    %v170 = vld [vmem:[#allocation2 + $0x2f8] sm:$0xff]
    %v171 = vld [vmem:[#allocation2 + $0x300] sm:$0xff]
    %v172 = vld [vmem:[#allocation2 + $0x308] sm:$0xff]
    %v173 = vld [vmem:[#allocation2 + $0x310] sm:$0xff]
    %v174 = vld [vmem:[#allocation2 + $0x318] sm:$0xff]
    %v175 = vld [vmem:[#allocation2 + $0x320] sm:$0xff]
    %v176 = vld [vmem:[#allocation2 + $0x328] sm:$0xff]
    %v177 = vld [vmem:[#allocation2 + $0x330] sm:$0xff]
    %v178 = vld [vmem:[#allocation2 + $0x338] sm:$0xff]
    %v179 = vld [vmem:[#allocation2 + $0x340] sm:$0xff]
    %v180 = vld [vmem:[#allocation2 + $0x348] sm:$0xff]
    %v181 = vld [vmem:[#allocation2 + $0x350] sm:$0xff]
    %v182 = vld [vmem:[#allocation2 + $0x358] sm:$0xff]
    %v183 = vld [vmem:[#allocation2 + $0x360] sm:$0xff]
    %v184 = vld [vmem:[#allocation2 + $0x368] sm:$0xff]
    %v185 = vld [vmem:[#allocation2 + $0x370] sm:$0xff]
    %v186 = vld [vmem:[#allocation2 + $0x378] sm:$0xff]
    %v187 = vld [vmem:[#allocation2 + $0x380] sm:$0xff]
    %v188 = vld [vmem:[#allocation2 + $0x388] sm:$0xff]
    %v189 = vld [vmem:[#allocation2 + $0x390] sm:$0xff]
    %v190 = vld [vmem:[#allocation2 + $0x398] sm:$0xff]
    %v191 = vld [vmem:[#allocation2 + $0x3a0] sm:$0xff]
    %v192 = vld [vmem:[#allocation2 + $0x3a8] sm:$0xff]
    %v193 = vld [vmem:[#allocation2 + $0x3b0] sm:$0xff]
    %v194 = vld [vmem:[#allocation2 + $0x3b8] sm:$0xff]
    %v195 = vld [vmem:[#allocation2 + $0x3c0] sm:$0xff]
    %v196 = vld [vmem:[#allocation2 + $0x3c8] sm:$0xff]
    %v197 = vld [vmem:[#allocation2 + $0x3d0] sm:$0xff]
    %v198 = vld [vmem:[#allocation2 + $0x3d8] sm:$0xff]
    %v199 = vld [vmem:[#allocation2 + $0x3e0] sm:$0xff]
    %v200 = vld [vmem:[#allocation2 + $0x3e8] sm:$0xff]
    %v201 = vld [vmem:[#allocation2 + $0x3f0] sm:$0xff]
    %v202 = vld [vmem:[#allocation2 + $0x3f8] sm:$0xff]
    %v203 = vld [vmem:[#allocation2 + $0x400] sm:$0xff]
    %v204 = vld [vmem:[#allocation2 + $0x408] sm:$0xff]
    %v205 = vld [vmem:[#allocation2 + $0x410] sm:$0xff]
    %v206 = vld [vmem:[#allocation2 + $0x418] sm:$0xff]
    %v207 = vld [vmem:[#allocation2 + $0x420] sm:$0xff]
    %v208 = vld [vmem:[#allocation2 + $0x428] sm:$0xff]
    %v209 = vld [vmem:[#allocation2 + $0x430] sm:$0xff]
    %v210 = vld [vmem:[#allocation2 + $0x438] sm:$0xff]
    %v211 = vld [vmem:[#allocation2 + $0x440] sm:$0xff]
    %v212 = vld [vmem:[#allocation2 + $0x448] sm:$0xff]
    %v213 = vld [vmem:[#allocation2 + $0x450] sm:$0xff]
    %v214 = vld [vmem:[#allocation2 + $0x458] sm:$0xff]
    %v215 = vld [vmem:[#allocation2 + $0x460] sm:$0xff]
    %v216 = vld [vmem:[#allocation2 + $0x468] sm:$0xff]
    %v217 = vld [vmem:[#allocation2 + $0x470] sm:$0xff]
    %v218 = vld [vmem:[#allocation2 + $0x478] sm:$0xff]
    %v219 = vld [vmem:[#allocation2 + $0x480] sm:$0xff]
    %v220 = vld [vmem:[#allocation2 + $0x488] sm:$0xff]
    %v221 = vld [vmem:[#allocation2 + $0x490] sm:$0xff]
    %v222 = vld [vmem:[#allocation2 + $0x498] sm:$0xff]
    %v223 = vld [vmem:[#allocation2 + $0x4a0] sm:$0xff]
    %v224 = vld [vmem:[#allocation2 + $0x4a8] sm:$0xff]
    %v225 = vld [vmem:[#allocation2 + $0x4b0] sm:$0xff]
    %v226 = vld [vmem:[#allocation2 + $0x4b8] sm:$0xff]
    %v227 = vld [vmem:[#allocation2 + $0x4c0] sm:$0xff]
    %v228 = vld [vmem:[#allocation2 + $0x4c8] sm:$0xff]
    %v229 = vld [vmem:[#allocation2 + $0x4d0] sm:$0xff]
    %v230 = vld [vmem:[#allocation2 + $0x4d8] sm:$0xff]
    %v231 = vld [vmem:[#allocation2 + $0x4e0] sm:$0xff]
    %v232 = vld [vmem:[#allocation2 + $0x4e8] sm:$0xff]
    %v233 = vld [vmem:[#allocation2 + $0x4f0] sm:$0xff]
    %v234 = vld [vmem:[#allocation2 + $0x4f8] sm:$0xff]
    %v235 = vld [vmem:[#allocation2 + $0x500] sm:$0xff]
    %v236 = vld [vmem:[#allocation2 + $0x508] sm:$0xff]
    %v237 = vld [vmem:[#allocation2 + $0x510] sm:$0xff]
    %v238 = vld [vmem:[#allocation2 + $0x518] sm:$0xff]
    %v239 = vld [vmem:[#allocation2 + $0x520] sm:$0xff]
    %v240 = vld [vmem:[#allocation2 + $0x528] sm:$0xff]
    %v241 = vld [vmem:[#allocation2 + $0x530] sm:$0xff]
    %v242 = vld [vmem:[#allocation2 + $0x538] sm:$0xff]
    %v243 = vld [vmem:[#allocation2 + $0x540] sm:$0xff]
    %v244 = vld [vmem:[#allocation2 + $0x548] sm:$0xff]
    %v245 = vld [vmem:[#allocation2 + $0x550] sm:$0xff]
    %v246 = vld [vmem:[#allocation2 + $0x558] sm:$0xff]
    %v247 = vld [vmem:[#allocation2 + $0x560] sm:$0xff]
    %v248 = vld [vmem:[#allocation2 + $0x568] sm:$0xff]
    %v249 = vld [vmem:[#allocation2 + $0x570] sm:$0xff]
    %v250 = vld [vmem:[#allocation2 + $0x578] sm:$0xff]
    %v251 = vld [vmem:[#allocation2 + $0x580] sm:$0xff]
    %v252 = vld [vmem:[#allocation2 + $0x588] sm:$0xff]
    %v253 = vld [vmem:[#allocation2 + $0x590] sm:$0xff]
    %v254 = vld [vmem:[#allocation2 + $0x598] sm:$0xff]
    %v255 = vld [vmem:[#allocation2 + $0x5a0] sm:$0xff]
    %v256 = vld [vmem:[#allocation2 + $0x5a8] sm:$0xff]
    %v257 = vld [vmem:[#allocation2 + $0x5b0] sm:$0xff]
    %v258 = vld [vmem:[#allocation2 + $0x5b8] sm:$0xff]
    %v259 = vld [vmem:[#allocation2 + $0x5c0] sm:$0xff]
    %v260 = vld [vmem:[#allocation2 + $0x5c8] sm:$0xff]
    %v261 = vld [vmem:[#allocation2 + $0x5d0] sm:$0xff]
    %v262 = vld [vmem:[#allocation2 + $0x5d8] sm:$0xff]
    %v263 = vld [vmem:[#allocation2 + $0x5e0] sm:$0xff]
    %v264 = vld [vmem:[#allocation2 + $0x5e8] sm:$0xff]
    %v265 = vld [vmem:[#allocation2 + $0x5f0] sm:$0xff]
    %v266 = vld [vmem:[#allocation2 + $0x5f8] sm:$0xff]
    %v267 = vld [vmem:[#allocation2 + $0x600] sm:$0xff]
    %v268 = vld [vmem:[#allocation2 + $0x608] sm:$0xff]
    %v269 = vld [vmem:[#allocation2 + $0x610] sm:$0xff]
    %v270 = vld [vmem:[#allocation2 + $0x618] sm:$0xff]
    %v271 = vld [vmem:[#allocation2 + $0x620] sm:$0xff]
    %v272 = vld [vmem:[#allocation2 + $0x628] sm:$0xff]
    %v273 = vld [vmem:[#allocation2 + $0x630] sm:$0xff]
    %v274 = vld [vmem:[#allocation2 + $0x638] sm:$0xff]
    %v275 = vld [vmem:[#allocation2 + $0x640] sm:$0xff]
    %v276 = vld [vmem:[#allocation2 + $0x648] sm:$0xff]
    %v277 = vld [vmem:[#allocation2 + $0x650] sm:$0xff]
    %v278 = vld [vmem:[#allocation2 + $0x658] sm:$0xff]
    %v279 = vld [vmem:[#allocation2 + $0x660] sm:$0xff]
    %v280 = vld [vmem:[#allocation2 + $0x668] sm:$0xff]
    %v281 = vld [vmem:[#allocation2 + $0x670] sm:$0xff]
    %v282 = vld [vmem:[#allocation2 + $0x678] sm:$0xff]
    %v283 = vld [vmem:[#allocation2 + $0x680] sm:$0xff]
    %v284 = vld [vmem:[#allocation2 + $0x688] sm:$0xff]
    %v285 = vld [vmem:[#allocation2 + $0x690] sm:$0xff]
    %v286 = vld [vmem:[#allocation2 + $0x698] sm:$0xff]
    %v287 = vld [vmem:[#allocation2 + $0x6a0] sm:$0xff]
    %v288 = vld [vmem:[#allocation2 + $0x6a8] sm:$0xff]
    %v289 = vld [vmem:[#allocation2 + $0x6b0] sm:$0xff]
    %v290 = vld [vmem:[#allocation2 + $0x6b8] sm:$0xff]
    %v291 = vld [vmem:[#allocation2 + $0x6c0] sm:$0xff]
    %v292 = vld [vmem:[#allocation2 + $0x6c8] sm:$0xff]
    %v293 = vld [vmem:[#allocation2 + $0x6d0] sm:$0xff]
    %v294 = vld [vmem:[#allocation2 + $0x6d8] sm:$0xff]
    %v295 = vld [vmem:[#allocation2 + $0x6e0] sm:$0xff]
    %v296 = vld [vmem:[#allocation2 + $0x6e8] sm:$0xff]
    %v297 = vld [vmem:[#allocation2 + $0x6f0] sm:$0xff]
    %v298 = vld [vmem:[#allocation2 + $0x6f8] sm:$0xff]
    %v299 = vld [vmem:[#allocation2 + $0x700] sm:$0xff]
    %v300 = vld [vmem:[#allocation2 + $0x708] sm:$0xff]
    %v301 = vld [vmem:[#allocation2 + $0x710] sm:$0xff]
    %v302 = vld [vmem:[#allocation2 + $0x718] sm:$0xff]
    %v303 = vld [vmem:[#allocation2 + $0x720] sm:$0xff]
    %v304 = vld [vmem:[#allocation2 + $0x728] sm:$0xff]
    %v305 = vld [vmem:[#allocation2 + $0x730] sm:$0xff]
    %v306 = vld [vmem:[#allocation2 + $0x738] sm:$0xff]
    %v307 = vld [vmem:[#allocation2 + $0x740] sm:$0xff]
    %v308 = vld [vmem:[#allocation2 + $0x748] sm:$0xff]
    %v309 = vld [vmem:[#allocation2 + $0x750] sm:$0xff]
    %v310 = vld [vmem:[#allocation2 + $0x758] sm:$0xff]
    %v311 = vld [vmem:[#allocation2 + $0x760] sm:$0xff]
    %v312 = vld [vmem:[#allocation2 + $0x768] sm:$0xff]
    %v313 = vld [vmem:[#allocation2 + $0x770] sm:$0xff]
    %v314 = vld [vmem:[#allocation2 + $0x778] sm:$0xff]
    %v315 = vld [vmem:[#allocation2 + $0x780] sm:$0xff]
    %v316 = vld [vmem:[#allocation2 + $0x788] sm:$0xff]
    %v317 = vld [vmem:[#allocation2 + $0x790] sm:$0xff]
    %v318 = vld [vmem:[#allocation2 + $0x798] sm:$0xff]
    %v319 = vld [vmem:[#allocation2 + $0x7a0] sm:$0xff]
    %v320 = vld [vmem:[#allocation2 + $0x7a8] sm:$0xff]
    %v321 = vld [vmem:[#allocation2 + $0x7b0] sm:$0xff]
    %v322 = vld [vmem:[#allocation2 + $0x7b8] sm:$0xff]
    %v323 = vld [vmem:[#allocation2 + $0x7c0] sm:$0xff]
    %v324 = vld [vmem:[#allocation2 + $0x7c8] sm:$0xff]
    %v325 = vld [vmem:[#allocation2 + $0x7d0] sm:$0xff]
    %v326 = vld [vmem:[#allocation2 + $0x7d8] sm:$0xff]
    %v327 = vld [vmem:[#allocation2 + $0x7e0] sm:$0xff]
    %v328 = vld [vmem:[#allocation2 + $0x7e8] sm:$0xff]
    %v329 = vld [vmem:[#allocation2 + $0x7f0] sm:$0xff]
    %v330 = vld [vmem:[#allocation2 + $0x7f8] sm:$0xff]
    %v331 = vld [vmem:[#allocation2 + $0x800] sm:$0xff]
    %v332 = vld [vmem:[#allocation2 + $0x808] sm:$0xff]
    %v333 = vld [vmem:[#allocation2 + $0x810] sm:$0xff]
    %v334 = vld [vmem:[#allocation2 + $0x818] sm:$0xff]
    %v335 = vld [vmem:[#allocation2 + $0x820] sm:$0xff]
    %v336 = vld [vmem:[#allocation2 + $0x828] sm:$0xff]
    %v337 = vld [vmem:[#allocation2 + $0x830] sm:$0xff]
    %v338 = vld [vmem:[#allocation2 + $0x838] sm:$0xff]
    %v339 = vld [vmem:[#allocation2 + $0x840] sm:$0xff]
    %v340 = vld [vmem:[#allocation2 + $0x848] sm:$0xff]
    %v341 = vld [vmem:[#allocation2 + $0x850] sm:$0xff]
    %v342 = vld [vmem:[#allocation2 + $0x858] sm:$0xff]
    %v343 = vld [vmem:[#allocation2 + $0x860] sm:$0xff]
    %v344 = vld [vmem:[#allocation2 + $0x868] sm:$0xff]
    %v345 = vld [vmem:[#allocation2 + $0x870] sm:$0xff]
    %v346 = vld [vmem:[#allocation2 + $0x878] sm:$0xff]
    %v347 = vld [vmem:[#allocation2 + $0x880] sm:$0xff]
    %v348 = vld [vmem:[#allocation2 + $0x888] sm:$0xff]
    %v349 = vld [vmem:[#allocation2 + $0x890] sm:$0xff]
    %v350 = vld [vmem:[#allocation2 + $0x898] sm:$0xff]
    %v351 = vld [vmem:[#allocation2 + $0x8a0] sm:$0xff]
    %v352 = vld [vmem:[#allocation2 + $0x8a8] sm:$0xff]
    %v353 = vld [vmem:[#allocation2 + $0x8b0] sm:$0xff]
    %v354 = vld [vmem:[#allocation2 + $0x8b8] sm:$0xff]
    %v355 = vld [vmem:[#allocation2 + $0x8c0] sm:$0xff]
    %v356 = vld [vmem:[#allocation2 + $0x8c8] sm:$0xff]
    %v357 = vld [vmem:[#allocation2 + $0x8d0] sm:$0xff]
    %v358 = vld [vmem:[#allocation2 + $0x8d8] sm:$0xff]
    %v359 = vld [vmem:[#allocation2 + $0x8e0] sm:$0xff]
    %v360 = vld [vmem:[#allocation2 + $0x8e8] sm:$0xff]
    %v361 = vld [vmem:[#allocation2 + $0x8f0] sm:$0xff]
    %v362 = vld [vmem:[#allocation2 + $0x8f8] sm:$0xff]
    %v363 = vld [vmem:[#allocation2 + $0x900] sm:$0xff]
    %v364 = vld [vmem:[#allocation2 + $0x908] sm:$0xff]
    %v365 = vld [vmem:[#allocation2 + $0x910] sm:$0xff]
    %v366 = vld [vmem:[#allocation2 + $0x918] sm:$0xff]
    %v367 = vld [vmem:[#allocation2 + $0x920] sm:$0xff]
    %v368 = vld [vmem:[#allocation2 + $0x928] sm:$0xff]
    %v369 = vld [vmem:[#allocation2 + $0x930] sm:$0xff]
    %v370 = vld [vmem:[#allocation2 + $0x938] sm:$0xff]
    %v371 = vld [vmem:[#allocation2 + $0x940] sm:$0xff]
    %v372 = vld [vmem:[#allocation2 + $0x948] sm:$0xff]
    %v373 = vld [vmem:[#allocation2 + $0x950] sm:$0xff]
    %v374 = vld [vmem:[#allocation2 + $0x958] sm:$0xff]
    %v375 = vld [vmem:[#allocation2 + $0x960] sm:$0xff]
    %v376 = vld [vmem:[#allocation2 + $0x968] sm:$0xff]
    %v377 = vld [vmem:[#allocation2 + $0x970] sm:$0xff]
    %v378 = vld [vmem:[#allocation2 + $0x978] sm:$0xff]
    %v379 = vld [vmem:[#allocation2 + $0x980] sm:$0xff]
    %v380 = vld [vmem:[#allocation2 + $0x988] sm:$0xff]
    %v381 = vld [vmem:[#allocation2 + $0x990] sm:$0xff]
    %v382 = vld [vmem:[#allocation2 + $0x998] sm:$0xff]
    %v383 = vld [vmem:[#allocation2 + $0x9a0] sm:$0xff]
    %v384 = vld [vmem:[#allocation2 + $0x9a8] sm:$0xff]
    %v385 = vld [vmem:[#allocation2 + $0x9b0] sm:$0xff]
    %v386 = vld [vmem:[#allocation2 + $0x9b8] sm:$0xff]
    %v387 = vld [vmem:[#allocation2 + $0x9c0] sm:$0xff]
    %v388 = vld [vmem:[#allocation2 + $0x9c8] sm:$0xff]
    %v389 = vld [vmem:[#allocation2 + $0x9d0] sm:$0xff]
    %v390 = vld [vmem:[#allocation2 + $0x9d8] sm:$0xff]
    %v391 = vld [vmem:[#allocation2 + $0x9e0] sm:$0xff]
    %v392 = vld [vmem:[#allocation2 + $0x9e8] sm:$0xff]
    %v393 = vld [vmem:[#allocation2 + $0x9f0] sm:$0xff]
    %v394 = vld [vmem:[#allocation2 + $0x9f8] sm:$0xff]
    %v395 = vld [vmem:[#allocation4] sm:$0xf]
    %v397 = vlaneseq
    %v398 = vshrl.u32 %v397, 7
    %v399 = vsub.s32 0, %v398
    %v400 = vrot.slane %v395, %v399
    %v401 = vlaneseq
    %v402 = vshrl.u32 %v401, 7
    %v403 = vsub.s32 1, %v402
    %v404 = vrot.slane %v395, %v403
    %v405 = vlaneseq
    %v406 = vshrl.u32 %v405, 7
    %v407 = vsub.s32 2, %v406
    %v408 = vrot.slane %v395, %v407
    %v409 = vlaneseq
    %v410 = vshrl.u32 %v409, 7
    %v411 = vsub.s32 3, %v410
    %v412 = vrot.slane %v395, %v411
    %v452 = vunpack.c.l.b16 %v40
    %v453 = vunpack.c.h.b16 %v40
    %v454 = vunpack.c.l.b16 %v41
    %v455 = vunpack.c.h.b16 %v41
    %v456 = vunpack.c.l.b16 %v42
    %v457 = vunpack.c.h.b16 %v42
    %v458 = vunpack.c.l.b16 %v43
    %v459 = vunpack.c.h.b16 %v43
    %v460 = vunpack.c.l.b16 %v44
    %v461 = vunpack.c.h.b16 %v44
    %v462 = vunpack.c.l.b16 %v45
    %v463 = vunpack.c.h.b16 %v45
    %v464 = vunpack.c.l.b16 %v46
    %v465 = vunpack.c.h.b16 %v46
    %v466 = vunpack.c.l.b16 %v47
    %v467 = vunpack.c.h.b16 %v47
    %v468 = vunpack.c.l.b16 %v48
    %v469 = vunpack.c.h.b16 %v48
    %v470 = vunpack.c.l.b16 %v49
    %v471 = vunpack.c.h.b16 %v49
    %v472 = vunpack.c.l.b16 %v50
    %v473 = vunpack.c.h.b16 %v50
    %v474 = vunpack.c.l.b16 %v51
    %v475 = vunpack.c.h.b16 %v51
    %v476 = vunpack.c.l.b16 %v52
    %v477 = vunpack.c.h.b16 %v52
    %v478 = vunpack.c.l.b16 %v53
    %v479 = vunpack.c.h.b16 %v53
    %v480 = vunpack.c.l.b16 %v54
    %v481 = vunpack.c.h.b16 %v54
    %v482 = vunpack.c.l.b16 %v55
    %v483 = vunpack.c.h.b16 %v55
    %v484 = vunpack.c.l.b16 %v56
    %v485 = vunpack.c.h.b16 %v56
    %v486 = vunpack.c.l.b16 %v57
    %v487 = vunpack.c.h.b16 %v57
    %v488 = vunpack.c.l.b16 %v58
    %v489 = vunpack.c.h.b16 %v58
    %v490 = vunpack.c.l.b16 %v59
    %v491 = vunpack.c.h.b16 %v59
    %v492 = vunpack.c.l.b16 %v60
    %v493 = vunpack.c.h.b16 %v60
    %v494 = vunpack.c.l.b16 %v61
    %v495 = vunpack.c.h.b16 %v61
    %v496 = vunpack.c.l.b16 %v62
    %v497 = vunpack.c.h.b16 %v62
    %v498 = vunpack.c.l.b16 %v63
    %v499 = vunpack.c.h.b16 %v63
    %v500 = vunpack.c.l.b16 %v64
    %v501 = vunpack.c.h.b16 %v64
    %v502 = vunpack.c.l.b16 %v65
    %v503 = vunpack.c.h.b16 %v65
    %v504 = vunpack.c.l.b16 %v66
    %v505 = vunpack.c.h.b16 %v66
    %v506 = vunpack.c.l.b16 %v67
    %v507 = vunpack.c.h.b16 %v67
    %v508 = vunpack.c.l.b16 %v68
    %v509 = vunpack.c.h.b16 %v68
    %v510 = vunpack.c.l.b16 %v69
    %v511 = vunpack.c.h.b16 %v69
    %v512 = vunpack.c.l.b16 %v70
    %v513 = vunpack.c.h.b16 %v70
    %v514 = vunpack.c.l.b16 %v71
    %v515 = vunpack.c.h.b16 %v71
    %v516 = vunpack.c.l.b16 %v72
    %v517 = vunpack.c.h.b16 %v72
    %v518 = vunpack.c.l.b16 %v73
    %v519 = vunpack.c.h.b16 %v73
    %v520 = vunpack.c.l.b16 %v74
    %v521 = vunpack.c.h.b16 %v74
    %v522 = vpack.c.b16 %v462, %v452
    %v523 = vpack.c.b16 %v463, %v453
    %v524 = vpack.c.b16 %v464, %v454
    %v525 = vpack.c.b16 %v465, %v455
    %v526 = vpack.c.b16 %v466, %v456
    %v527 = vpack.c.b16 %v467, %v457
    %v528 = vpack.c.b16 %v468, %v458
    %v529 = vpack.c.b16 %v469, %v459
    %v530 = vpack.c.b16 %v470, %v460
    %v531 = vpack.c.b16 %v471, %v461
    %v532 = vpack.c.b16 %v482, %v472
    %v533 = vpack.c.b16 %v483, %v473
    %v534 = vpack.c.b16 %v484, %v474
    %v535 = vpack.c.b16 %v485, %v475
    %v536 = vpack.c.b16 %v486, %v476
    %v537 = vpack.c.b16 %v487, %v477
    %v538 = vpack.c.b16 %v488, %v478
    %v539 = vpack.c.b16 %v489, %v479
    %v540 = vpack.c.b16 %v490, %v480
    %v541 = vpack.c.b16 %v491, %v481
    %v542 = vpack.c.b16 %v502, %v492
    %v543 = vpack.c.b16 %v503, %v493
    %v544 = vpack.c.b16 %v504, %v494
    %v545 = vpack.c.b16 %v505, %v495
    %v546 = vpack.c.b16 %v506, %v496
    %v547 = vpack.c.b16 %v507, %v497
    %v548 = vpack.c.b16 %v508, %v498
    %v549 = vpack.c.b16 %v509, %v499
    %v550 = vpack.c.b16 %v510, %v500
    %v551 = vpack.c.b16 %v511, %v501
    %v552 = vpack.c.b16 %v512, %v512
    %v553 = vpack.c.b16 %v513, %v513
    %v554 = vpack.c.b16 %v514, %v514
    %v555 = vpack.c.b16 %v515, %v515
    %v556 = vpack.c.b16 %v516, %v516
    %v557 = vpack.c.b16 %v517, %v517
    %v558 = vpack.c.b16 %v518, %v518
    %v559 = vpack.c.b16 %v519, %v519
    %v560 = vpack.c.b16 %v520, %v520
    %v561 = vpack.c.b16 %v521, %v521
    %v922 = vunpack.c.l.b16 %v75
    %v923 = vunpack.c.h.b16 %v75
    %v924 = vunpack.c.l.b16 %v76
    %v925 = vunpack.c.h.b16 %v76
    %v926 = vunpack.c.l.b16 %v77
    %v927 = vunpack.c.h.b16 %v77
    %v928 = vunpack.c.l.b16 %v78
    %v929 = vunpack.c.h.b16 %v78
    %v930 = vunpack.c.l.b16 %v79
    %v931 = vunpack.c.h.b16 %v79
    %v932 = vunpack.c.l.b16 %v80
    %v933 = vunpack.c.h.b16 %v80
    %v934 = vunpack.c.l.b16 %v81
    %v935 = vunpack.c.h.b16 %v81
    %v936 = vunpack.c.l.b16 %v82
    %v937 = vunpack.c.h.b16 %v82
    %v938 = vunpack.c.l.b16 %v83
    %v939 = vunpack.c.h.b16 %v83
    %v940 = vunpack.c.l.b16 %v84
    %v941 = vunpack.c.h.b16 %v84
    %v942 = vunpack.c.l.b16 %v85
    %v943 = vunpack.c.h.b16 %v85
    %v944 = vunpack.c.l.b16 %v86
    %v945 = vunpack.c.h.b16 %v86
    %v946 = vunpack.c.l.b16 %v87
    %v947 = vunpack.c.h.b16 %v87
    %v948 = vunpack.c.l.b16 %v88
    %v949 = vunpack.c.h.b16 %v88
    %v950 = vunpack.c.l.b16 %v89
    %v951 = vunpack.c.h.b16 %v89
    %v952 = vunpack.c.l.b16 %v90
    %v953 = vunpack.c.h.b16 %v90
    %v954 = vunpack.c.l.b16 %v91
    %v955 = vunpack.c.h.b16 %v91
    %v956 = vunpack.c.l.b16 %v92
    %v957 = vunpack.c.h.b16 %v92
    %v958 = vunpack.c.l.b16 %v93
    %v959 = vunpack.c.h.b16 %v93
    %v960 = vunpack.c.l.b16 %v94
    %v961 = vunpack.c.h.b16 %v94
    %v962 = vunpack.c.l.b16 %v95
    %v963 = vunpack.c.h.b16 %v95
    %v964 = vunpack.c.l.b16 %v96
    %v965 = vunpack.c.h.b16 %v96
    %v966 = vunpack.c.l.b16 %v97
    %v967 = vunpack.c.h.b16 %v97
    %v968 = vunpack.c.l.b16 %v98
    %v969 = vunpack.c.h.b16 %v98
    %v970 = vunpack.c.l.b16 %v99
    %v971 = vunpack.c.h.b16 %v99
    %v972 = vunpack.c.l.b16 %v100
    %v973 = vunpack.c.h.b16 %v100
    %v974 = vunpack.c.l.b16 %v101
    %v975 = vunpack.c.h.b16 %v101
    %v976 = vunpack.c.l.b16 %v102
    %v977 = vunpack.c.h.b16 %v102
    %v978 = vunpack.c.l.b16 %v103
    %v979 = vunpack.c.h.b16 %v103
    %v980 = vunpack.c.l.b16 %v104
    %v981 = vunpack.c.h.b16 %v104
    %v982 = vunpack.c.l.b16 %v105
    %v983 = vunpack.c.h.b16 %v105
    %v984 = vunpack.c.l.b16 %v106
    %v985 = vunpack.c.h.b16 %v106
    %v986 = vunpack.c.l.b16 %v107
    %v987 = vunpack.c.h.b16 %v107
    %v988 = vunpack.c.l.b16 %v108
    %v989 = vunpack.c.h.b16 %v108
    %v990 = vunpack.c.l.b16 %v109
    %v991 = vunpack.c.h.b16 %v109
    %v992 = vunpack.c.l.b16 %v110
    %v993 = vunpack.c.h.b16 %v110
    %v994 = vunpack.c.l.b16 %v111
    %v995 = vunpack.c.h.b16 %v111
    %v996 = vunpack.c.l.b16 %v112
    %v997 = vunpack.c.h.b16 %v112
    %v998 = vunpack.c.l.b16 %v113
    %v999 = vunpack.c.h.b16 %v113
    %v1000 = vunpack.c.l.b16 %v114
    %v1001 = vunpack.c.h.b16 %v114
    %v1002 = vunpack.c.l.b16 %v115
    %v1003 = vunpack.c.h.b16 %v115
    %v1004 = vunpack.c.l.b16 %v116
    %v1005 = vunpack.c.h.b16 %v116
    %v1006 = vunpack.c.l.b16 %v117
    %v1007 = vunpack.c.h.b16 %v117
    %v1008 = vunpack.c.l.b16 %v118
    %v1009 = vunpack.c.h.b16 %v118
    %v1010 = vunpack.c.l.b16 %v119
    %v1011 = vunpack.c.h.b16 %v119
    %v1012 = vunpack.c.l.b16 %v120
    %v1013 = vunpack.c.h.b16 %v120
    %v1014 = vunpack.c.l.b16 %v121
    %v1015 = vunpack.c.h.b16 %v121
    %v1016 = vunpack.c.l.b16 %v122
    %v1017 = vunpack.c.h.b16 %v122
    %v1018 = vunpack.c.l.b16 %v123
    %v1019 = vunpack.c.h.b16 %v123
    %v1020 = vunpack.c.l.b16 %v124
    %v1021 = vunpack.c.h.b16 %v124
    %v1022 = vunpack.c.l.b16 %v125
    %v1023 = vunpack.c.h.b16 %v125
    %v1024 = vunpack.c.l.b16 %v126
    %v1025 = vunpack.c.h.b16 %v126
    %v1026 = vunpack.c.l.b16 %v127
    %v1027 = vunpack.c.h.b16 %v127
    %v1028 = vunpack.c.l.b16 %v128
    %v1029 = vunpack.c.h.b16 %v128
    %v1030 = vunpack.c.l.b16 %v129
    %v1031 = vunpack.c.h.b16 %v129
    %v1032 = vunpack.c.l.b16 %v130
    %v1033 = vunpack.c.h.b16 %v130
    %v1034 = vunpack.c.l.b16 %v131
    %v1035 = vunpack.c.h.b16 %v131
    %v1036 = vunpack.c.l.b16 %v132
    %v1037 = vunpack.c.h.b16 %v132
    %v1038 = vunpack.c.l.b16 %v133
    %v1039 = vunpack.c.h.b16 %v133
    %v1040 = vunpack.c.l.b16 %v134
    %v1041 = vunpack.c.h.b16 %v134
    %v1042 = vunpack.c.l.b16 %v135
    %v1043 = vunpack.c.h.b16 %v135
    %v1044 = vunpack.c.l.b16 %v136
    %v1045 = vunpack.c.h.b16 %v136
    %v1046 = vunpack.c.l.b16 %v137
    %v1047 = vunpack.c.h.b16 %v137
    %v1048 = vunpack.c.l.b16 %v138
    %v1049 = vunpack.c.h.b16 %v138
    %v1050 = vunpack.c.l.b16 %v139
    %v1051 = vunpack.c.h.b16 %v139
    %v1052 = vunpack.c.l.b16 %v140
    %v1053 = vunpack.c.h.b16 %v140
    %v1054 = vunpack.c.l.b16 %v141
    %v1055 = vunpack.c.h.b16 %v141
    %v1056 = vunpack.c.l.b16 %v142
    %v1057 = vunpack.c.h.b16 %v142
    %v1058 = vunpack.c.l.b16 %v143
    %v1059 = vunpack.c.h.b16 %v143
    %v1060 = vunpack.c.l.b16 %v144
    %v1061 = vunpack.c.h.b16 %v144
    %v1062 = vunpack.c.l.b16 %v145
    %v1063 = vunpack.c.h.b16 %v145
    %v1064 = vunpack.c.l.b16 %v146
    %v1065 = vunpack.c.h.b16 %v146
    %v1066 = vunpack.c.l.b16 %v147
    %v1067 = vunpack.c.h.b16 %v147
    %v1068 = vunpack.c.l.b16 %v148
    %v1069 = vunpack.c.h.b16 %v148
    %v1070 = vunpack.c.l.b16 %v149
    %v1071 = vunpack.c.h.b16 %v149
    %v1072 = vunpack.c.l.b16 %v150
    %v1073 = vunpack.c.h.b16 %v150
    %v1074 = vunpack.c.l.b16 %v151
    %v1075 = vunpack.c.h.b16 %v151
    %v1076 = vunpack.c.l.b16 %v152
    %v1077 = vunpack.c.h.b16 %v152
    %v1078 = vunpack.c.l.b16 %v153
    %v1079 = vunpack.c.h.b16 %v153
    %v1080 = vunpack.c.l.b16 %v154
    %v1081 = vunpack.c.h.b16 %v154
    %v1082 = vunpack.c.l.b16 %v155
    %v1083 = vunpack.c.h.b16 %v155
    %v1084 = vunpack.c.l.b16 %v156
    %v1085 = vunpack.c.h.b16 %v156
    %v1086 = vunpack.c.l.b16 %v157
    %v1087 = vunpack.c.h.b16 %v157
    %v1088 = vunpack.c.l.b16 %v158
    %v1089 = vunpack.c.h.b16 %v158
    %v1090 = vunpack.c.l.b16 %v159
    %v1091 = vunpack.c.h.b16 %v159
    %v1092 = vunpack.c.l.b16 %v160
    %v1093 = vunpack.c.h.b16 %v160
    %v1094 = vunpack.c.l.b16 %v161
    %v1095 = vunpack.c.h.b16 %v161
    %v1096 = vunpack.c.l.b16 %v162
    %v1097 = vunpack.c.h.b16 %v162
    %v1098 = vunpack.c.l.b16 %v163
    %v1099 = vunpack.c.h.b16 %v163
    %v1100 = vunpack.c.l.b16 %v164
    %v1101 = vunpack.c.h.b16 %v164
    %v1102 = vunpack.c.l.b16 %v165
    %v1103 = vunpack.c.h.b16 %v165
    %v1104 = vunpack.c.l.b16 %v166
    %v1105 = vunpack.c.h.b16 %v166
    %v1106 = vunpack.c.l.b16 %v167
    %v1107 = vunpack.c.h.b16 %v167
    %v1108 = vunpack.c.l.b16 %v168
    %v1109 = vunpack.c.h.b16 %v168
    %v1110 = vunpack.c.l.b16 %v169
    %v1111 = vunpack.c.h.b16 %v169
    %v1112 = vunpack.c.l.b16 %v170
    %v1113 = vunpack.c.h.b16 %v170
    %v1114 = vunpack.c.l.b16 %v171
    %v1115 = vunpack.c.h.b16 %v171
    %v1116 = vunpack.c.l.b16 %v172
    %v1117 = vunpack.c.h.b16 %v172
    %v1118 = vunpack.c.l.b16 %v173
    %v1119 = vunpack.c.h.b16 %v173
    %v1120 = vunpack.c.l.b16 %v174
    %v1121 = vunpack.c.h.b16 %v174
    %v1122 = vunpack.c.l.b16 %v175
    %v1123 = vunpack.c.h.b16 %v175
    %v1124 = vunpack.c.l.b16 %v176
    %v1125 = vunpack.c.h.b16 %v176
    %v1126 = vunpack.c.l.b16 %v177
    %v1127 = vunpack.c.h.b16 %v177
    %v1128 = vunpack.c.l.b16 %v178
    %v1129 = vunpack.c.h.b16 %v178
    %v1130 = vunpack.c.l.b16 %v179
    %v1131 = vunpack.c.h.b16 %v179
    %v1132 = vunpack.c.l.b16 %v180
    %v1133 = vunpack.c.h.b16 %v180
    %v1134 = vunpack.c.l.b16 %v181
    %v1135 = vunpack.c.h.b16 %v181
    %v1136 = vunpack.c.l.b16 %v182
    %v1137 = vunpack.c.h.b16 %v182
    %v1138 = vunpack.c.l.b16 %v183
    %v1139 = vunpack.c.h.b16 %v183
    %v1140 = vunpack.c.l.b16 %v184
    %v1141 = vunpack.c.h.b16 %v184
    %v1142 = vunpack.c.l.b16 %v185
    %v1143 = vunpack.c.h.b16 %v185
    %v1144 = vunpack.c.l.b16 %v186
    %v1145 = vunpack.c.h.b16 %v186
    %v1146 = vunpack.c.l.b16 %v187
    %v1147 = vunpack.c.h.b16 %v187
    %v1148 = vunpack.c.l.b16 %v188
    %v1149 = vunpack.c.h.b16 %v188
    %v1150 = vunpack.c.l.b16 %v189
    %v1151 = vunpack.c.h.b16 %v189
    %v1152 = vunpack.c.l.b16 %v190
    %v1153 = vunpack.c.h.b16 %v190
    %v1154 = vunpack.c.l.b16 %v191
    %v1155 = vunpack.c.h.b16 %v191
    %v1156 = vunpack.c.l.b16 %v192
    %v1157 = vunpack.c.h.b16 %v192
    %v1158 = vunpack.c.l.b16 %v193
    %v1159 = vunpack.c.h.b16 %v193
    %v1160 = vunpack.c.l.b16 %v194
    %v1161 = vunpack.c.h.b16 %v194
    %v1162 = vunpack.c.l.b16 %v195
    %v1163 = vunpack.c.h.b16 %v195
    %v1164 = vunpack.c.l.b16 %v196
    %v1165 = vunpack.c.h.b16 %v196
    %v1166 = vunpack.c.l.b16 %v197
    %v1167 = vunpack.c.h.b16 %v197
    %v1168 = vunpack.c.l.b16 %v198
    %v1169 = vunpack.c.h.b16 %v198
    %v1170 = vunpack.c.l.b16 %v199
    %v1171 = vunpack.c.h.b16 %v199
    %v1172 = vunpack.c.l.b16 %v200
    %v1173 = vunpack.c.h.b16 %v200
    %v1174 = vunpack.c.l.b16 %v201
    %v1175 = vunpack.c.h.b16 %v201
    %v1176 = vunpack.c.l.b16 %v202
    %v1177 = vunpack.c.h.b16 %v202
    %v1178 = vunpack.c.l.b16 %v203
    %v1179 = vunpack.c.h.b16 %v203
    %v1180 = vunpack.c.l.b16 %v204
    %v1181 = vunpack.c.h.b16 %v204
    %v1182 = vunpack.c.l.b16 %v205
    %v1183 = vunpack.c.h.b16 %v205
    %v1184 = vunpack.c.l.b16 %v206
    %v1185 = vunpack.c.h.b16 %v206
    %v1186 = vunpack.c.l.b16 %v207
    %v1187 = vunpack.c.h.b16 %v207
    %v1188 = vunpack.c.l.b16 %v208
    %v1189 = vunpack.c.h.b16 %v208
    %v1190 = vunpack.c.l.b16 %v209
    %v1191 = vunpack.c.h.b16 %v209
    %v1192 = vunpack.c.l.b16 %v210
    %v1193 = vunpack.c.h.b16 %v210
    %v1194 = vunpack.c.l.b16 %v211
    %v1195 = vunpack.c.h.b16 %v211
    %v1196 = vunpack.c.l.b16 %v212
    %v1197 = vunpack.c.h.b16 %v212
    %v1198 = vunpack.c.l.b16 %v213
    %v1199 = vunpack.c.h.b16 %v213
    %v1200 = vunpack.c.l.b16 %v214
    %v1201 = vunpack.c.h.b16 %v214
    %v1202 = vunpack.c.l.b16 %v215
    %v1203 = vunpack.c.h.b16 %v215
    %v1204 = vunpack.c.l.b16 %v216
    %v1205 = vunpack.c.h.b16 %v216
    %v1206 = vunpack.c.l.b16 %v217
    %v1207 = vunpack.c.h.b16 %v217
    %v1208 = vunpack.c.l.b16 %v218
    %v1209 = vunpack.c.h.b16 %v218
    %v1210 = vunpack.c.l.b16 %v219
    %v1211 = vunpack.c.h.b16 %v219
    %v1212 = vunpack.c.l.b16 %v220
    %v1213 = vunpack.c.h.b16 %v220
    %v1214 = vunpack.c.l.b16 %v221
    %v1215 = vunpack.c.h.b16 %v221
    %v1216 = vunpack.c.l.b16 %v222
    %v1217 = vunpack.c.h.b16 %v222
    %v1218 = vunpack.c.l.b16 %v223
    %v1219 = vunpack.c.h.b16 %v223
    %v1220 = vunpack.c.l.b16 %v224
    %v1221 = vunpack.c.h.b16 %v224
    %v1222 = vunpack.c.l.b16 %v225
    %v1223 = vunpack.c.h.b16 %v225
    %v1224 = vunpack.c.l.b16 %v226
    %v1225 = vunpack.c.h.b16 %v226
    %v1226 = vunpack.c.l.b16 %v227
    %v1227 = vunpack.c.h.b16 %v227
    %v1228 = vunpack.c.l.b16 %v228
    %v1229 = vunpack.c.h.b16 %v228
    %v1230 = vunpack.c.l.b16 %v229
    %v1231 = vunpack.c.h.b16 %v229
    %v1232 = vunpack.c.l.b16 %v230
    %v1233 = vunpack.c.h.b16 %v230
    %v1234 = vunpack.c.l.b16 %v231
    %v1235 = vunpack.c.h.b16 %v231
    %v1236 = vunpack.c.l.b16 %v232
    %v1237 = vunpack.c.h.b16 %v232
    %v1238 = vunpack.c.l.b16 %v233
    %v1239 = vunpack.c.h.b16 %v233
    %v1240 = vunpack.c.l.b16 %v234
    %v1241 = vunpack.c.h.b16 %v234
    %v1242 = vunpack.c.l.b16 %v235
    %v1243 = vunpack.c.h.b16 %v235
    %v1244 = vunpack.c.l.b16 %v236
    %v1245 = vunpack.c.h.b16 %v236
    %v1246 = vunpack.c.l.b16 %v237
    %v1247 = vunpack.c.h.b16 %v237
    %v1248 = vunpack.c.l.b16 %v238
    %v1249 = vunpack.c.h.b16 %v238
    %v1250 = vunpack.c.l.b16 %v239
    %v1251 = vunpack.c.h.b16 %v239
    %v1252 = vunpack.c.l.b16 %v240
    %v1253 = vunpack.c.h.b16 %v240
    %v1254 = vunpack.c.l.b16 %v241
    %v1255 = vunpack.c.h.b16 %v241
    %v1256 = vunpack.c.l.b16 %v242
    %v1257 = vunpack.c.h.b16 %v242
    %v1258 = vunpack.c.l.b16 %v243
    %v1259 = vunpack.c.h.b16 %v243
    %v1260 = vunpack.c.l.b16 %v244
    %v1261 = vunpack.c.h.b16 %v244
    %v1262 = vunpack.c.l.b16 %v245
    %v1263 = vunpack.c.h.b16 %v245
    %v1264 = vunpack.c.l.b16 %v246
    %v1265 = vunpack.c.h.b16 %v246
    %v1266 = vunpack.c.l.b16 %v247
    %v1267 = vunpack.c.h.b16 %v247
    %v1268 = vunpack.c.l.b16 %v248
    %v1269 = vunpack.c.h.b16 %v248
    %v1270 = vunpack.c.l.b16 %v249
    %v1271 = vunpack.c.h.b16 %v249
    %v1272 = vunpack.c.l.b16 %v250
    %v1273 = vunpack.c.h.b16 %v250
    %v1274 = vunpack.c.l.b16 %v251
    %v1275 = vunpack.c.h.b16 %v251
    %v1276 = vunpack.c.l.b16 %v252
    %v1277 = vunpack.c.h.b16 %v252
    %v1278 = vunpack.c.l.b16 %v253
    %v1279 = vunpack.c.h.b16 %v253
    %v1280 = vunpack.c.l.b16 %v254
    %v1281 = vunpack.c.h.b16 %v254
    %v1282 = vunpack.c.l.b16 %v255
    %v1283 = vunpack.c.h.b16 %v255
    %v1284 = vunpack.c.l.b16 %v256
    %v1285 = vunpack.c.h.b16 %v256
    %v1286 = vunpack.c.l.b16 %v257
    %v1287 = vunpack.c.h.b16 %v257
    %v1288 = vunpack.c.l.b16 %v258
    %v1289 = vunpack.c.h.b16 %v258
    %v1290 = vunpack.c.l.b16 %v259
    %v1291 = vunpack.c.h.b16 %v259
    %v1292 = vunpack.c.l.b16 %v260
    %v1293 = vunpack.c.h.b16 %v260
    %v1294 = vunpack.c.l.b16 %v261
    %v1295 = vunpack.c.h.b16 %v261
    %v1296 = vunpack.c.l.b16 %v262
    %v1297 = vunpack.c.h.b16 %v262
    %v1298 = vunpack.c.l.b16 %v263
    %v1299 = vunpack.c.h.b16 %v263
    %v1300 = vunpack.c.l.b16 %v264
    %v1301 = vunpack.c.h.b16 %v264
    %v1302 = vunpack.c.l.b16 %v265
    %v1303 = vunpack.c.h.b16 %v265
    %v1304 = vunpack.c.l.b16 %v266
    %v1305 = vunpack.c.h.b16 %v266
    %v1306 = vunpack.c.l.b16 %v267
    %v1307 = vunpack.c.h.b16 %v267
    %v1308 = vunpack.c.l.b16 %v268
    %v1309 = vunpack.c.h.b16 %v268
    %v1310 = vunpack.c.l.b16 %v269
    %v1311 = vunpack.c.h.b16 %v269
    %v1312 = vunpack.c.l.b16 %v270
    %v1313 = vunpack.c.h.b16 %v270
    %v1314 = vunpack.c.l.b16 %v271
    %v1315 = vunpack.c.h.b16 %v271
    %v1316 = vunpack.c.l.b16 %v272
    %v1317 = vunpack.c.h.b16 %v272
    %v1318 = vunpack.c.l.b16 %v273
    %v1319 = vunpack.c.h.b16 %v273
    %v1320 = vunpack.c.l.b16 %v274
    %v1321 = vunpack.c.h.b16 %v274
    %v1322 = vunpack.c.l.b16 %v275
    %v1323 = vunpack.c.h.b16 %v275
    %v1324 = vunpack.c.l.b16 %v276
    %v1325 = vunpack.c.h.b16 %v276
    %v1326 = vunpack.c.l.b16 %v277
    %v1327 = vunpack.c.h.b16 %v277
    %v1328 = vunpack.c.l.b16 %v278
    %v1329 = vunpack.c.h.b16 %v278
    %v1330 = vunpack.c.l.b16 %v279
    %v1331 = vunpack.c.h.b16 %v279
    %v1332 = vunpack.c.l.b16 %v280
    %v1333 = vunpack.c.h.b16 %v280
    %v1334 = vunpack.c.l.b16 %v281
    %v1335 = vunpack.c.h.b16 %v281
    %v1336 = vunpack.c.l.b16 %v282
    %v1337 = vunpack.c.h.b16 %v282
    %v1338 = vunpack.c.l.b16 %v283
    %v1339 = vunpack.c.h.b16 %v283
    %v1340 = vunpack.c.l.b16 %v284
    %v1341 = vunpack.c.h.b16 %v284
    %v1342 = vunpack.c.l.b16 %v285
    %v1343 = vunpack.c.h.b16 %v285
    %v1344 = vunpack.c.l.b16 %v286
    %v1345 = vunpack.c.h.b16 %v286
    %v1346 = vunpack.c.l.b16 %v287
    %v1347 = vunpack.c.h.b16 %v287
    %v1348 = vunpack.c.l.b16 %v288
    %v1349 = vunpack.c.h.b16 %v288
    %v1350 = vunpack.c.l.b16 %v289
    %v1351 = vunpack.c.h.b16 %v289
    %v1352 = vunpack.c.l.b16 %v290
    %v1353 = vunpack.c.h.b16 %v290
    %v1354 = vunpack.c.l.b16 %v291
    %v1355 = vunpack.c.h.b16 %v291
    %v1356 = vunpack.c.l.b16 %v292
    %v1357 = vunpack.c.h.b16 %v292
    %v1358 = vunpack.c.l.b16 %v293
    %v1359 = vunpack.c.h.b16 %v293
    %v1360 = vunpack.c.l.b16 %v294
    %v1361 = vunpack.c.h.b16 %v294
    %v1362 = vunpack.c.l.b16 %v295
    %v1363 = vunpack.c.h.b16 %v295
    %v1364 = vunpack.c.l.b16 %v296
    %v1365 = vunpack.c.h.b16 %v296
    %v1366 = vunpack.c.l.b16 %v297
    %v1367 = vunpack.c.h.b16 %v297
    %v1368 = vunpack.c.l.b16 %v298
    %v1369 = vunpack.c.h.b16 %v298
    %v1370 = vunpack.c.l.b16 %v299
    %v1371 = vunpack.c.h.b16 %v299
    %v1372 = vunpack.c.l.b16 %v300
    %v1373 = vunpack.c.h.b16 %v300
    %v1374 = vunpack.c.l.b16 %v301
    %v1375 = vunpack.c.h.b16 %v301
    %v1376 = vunpack.c.l.b16 %v302
    %v1377 = vunpack.c.h.b16 %v302
    %v1378 = vunpack.c.l.b16 %v303
    %v1379 = vunpack.c.h.b16 %v303
    %v1380 = vunpack.c.l.b16 %v304
    %v1381 = vunpack.c.h.b16 %v304
    %v1382 = vunpack.c.l.b16 %v305
    %v1383 = vunpack.c.h.b16 %v305
    %v1384 = vunpack.c.l.b16 %v306
    %v1385 = vunpack.c.h.b16 %v306
    %v1386 = vunpack.c.l.b16 %v307
    %v1387 = vunpack.c.h.b16 %v307
    %v1388 = vunpack.c.l.b16 %v308
    %v1389 = vunpack.c.h.b16 %v308
    %v1390 = vunpack.c.l.b16 %v309
    %v1391 = vunpack.c.h.b16 %v309
    %v1392 = vunpack.c.l.b16 %v310
    %v1393 = vunpack.c.h.b16 %v310
    %v1394 = vunpack.c.l.b16 %v311
    %v1395 = vunpack.c.h.b16 %v311
    %v1396 = vunpack.c.l.b16 %v312
    %v1397 = vunpack.c.h.b16 %v312
    %v1398 = vunpack.c.l.b16 %v313
    %v1399 = vunpack.c.h.b16 %v313
    %v1400 = vunpack.c.l.b16 %v314
    %v1401 = vunpack.c.h.b16 %v314
    %v1402 = vunpack.c.l.b16 %v315
    %v1403 = vunpack.c.h.b16 %v315
    %v1404 = vunpack.c.l.b16 %v316
    %v1405 = vunpack.c.h.b16 %v316
    %v1406 = vunpack.c.l.b16 %v317
    %v1407 = vunpack.c.h.b16 %v317
    %v1408 = vunpack.c.l.b16 %v318
    %v1409 = vunpack.c.h.b16 %v318
    %v1410 = vunpack.c.l.b16 %v319
    %v1411 = vunpack.c.h.b16 %v319
    %v1412 = vunpack.c.l.b16 %v320
    %v1413 = vunpack.c.h.b16 %v320
    %v1414 = vunpack.c.l.b16 %v321
    %v1415 = vunpack.c.h.b16 %v321
    %v1416 = vunpack.c.l.b16 %v322
    %v1417 = vunpack.c.h.b16 %v322
    %v1418 = vunpack.c.l.b16 %v323
    %v1419 = vunpack.c.h.b16 %v323
    %v1420 = vunpack.c.l.b16 %v324
    %v1421 = vunpack.c.h.b16 %v324
    %v1422 = vunpack.c.l.b16 %v325
    %v1423 = vunpack.c.h.b16 %v325
    %v1424 = vunpack.c.l.b16 %v326
    %v1425 = vunpack.c.h.b16 %v326
    %v1426 = vunpack.c.l.b16 %v327
    %v1427 = vunpack.c.h.b16 %v327
    %v1428 = vunpack.c.l.b16 %v328
    %v1429 = vunpack.c.h.b16 %v328
    %v1430 = vunpack.c.l.b16 %v329
    %v1431 = vunpack.c.h.b16 %v329
    %v1432 = vunpack.c.l.b16 %v330
    %v1433 = vunpack.c.h.b16 %v330
    %v1434 = vunpack.c.l.b16 %v331
    %v1435 = vunpack.c.h.b16 %v331
    %v1436 = vunpack.c.l.b16 %v332
    %v1437 = vunpack.c.h.b16 %v332
    %v1438 = vunpack.c.l.b16 %v333
    %v1439 = vunpack.c.h.b16 %v333
    %v1440 = vunpack.c.l.b16 %v334
    %v1441 = vunpack.c.h.b16 %v334
    %v1442 = vunpack.c.l.b16 %v335
    %v1443 = vunpack.c.h.b16 %v335
    %v1444 = vunpack.c.l.b16 %v336
    %v1445 = vunpack.c.h.b16 %v336
    %v1446 = vunpack.c.l.b16 %v337
    %v1447 = vunpack.c.h.b16 %v337
    %v1448 = vunpack.c.l.b16 %v338
    %v1449 = vunpack.c.h.b16 %v338
    %v1450 = vunpack.c.l.b16 %v339
    %v1451 = vunpack.c.h.b16 %v339
    %v1452 = vunpack.c.l.b16 %v340
    %v1453 = vunpack.c.h.b16 %v340
    %v1454 = vunpack.c.l.b16 %v341
    %v1455 = vunpack.c.h.b16 %v341
    %v1456 = vunpack.c.l.b16 %v342
    %v1457 = vunpack.c.h.b16 %v342
    %v1458 = vunpack.c.l.b16 %v343
    %v1459 = vunpack.c.h.b16 %v343
    %v1460 = vunpack.c.l.b16 %v344
    %v1461 = vunpack.c.h.b16 %v344
    %v1462 = vunpack.c.l.b16 %v345
    %v1463 = vunpack.c.h.b16 %v345
    %v1464 = vunpack.c.l.b16 %v346
    %v1465 = vunpack.c.h.b16 %v346
    %v1466 = vunpack.c.l.b16 %v347
    %v1467 = vunpack.c.h.b16 %v347
    %v1468 = vunpack.c.l.b16 %v348
    %v1469 = vunpack.c.h.b16 %v348
    %v1470 = vunpack.c.l.b16 %v349
    %v1471 = vunpack.c.h.b16 %v349
    %v1472 = vunpack.c.l.b16 %v350
    %v1473 = vunpack.c.h.b16 %v350
    %v1474 = vunpack.c.l.b16 %v351
    %v1475 = vunpack.c.h.b16 %v351
    %v1476 = vunpack.c.l.b16 %v352
    %v1477 = vunpack.c.h.b16 %v352
    %v1478 = vunpack.c.l.b16 %v353
    %v1479 = vunpack.c.h.b16 %v353
    %v1480 = vunpack.c.l.b16 %v354
    %v1481 = vunpack.c.h.b16 %v354
    %v1482 = vunpack.c.l.b16 %v355
    %v1483 = vunpack.c.h.b16 %v355
    %v1484 = vunpack.c.l.b16 %v356
    %v1485 = vunpack.c.h.b16 %v356
    %v1486 = vunpack.c.l.b16 %v357
    %v1487 = vunpack.c.h.b16 %v357
    %v1488 = vunpack.c.l.b16 %v358
    %v1489 = vunpack.c.h.b16 %v358
    %v1490 = vunpack.c.l.b16 %v359
    %v1491 = vunpack.c.h.b16 %v359
    %v1492 = vunpack.c.l.b16 %v360
    %v1493 = vunpack.c.h.b16 %v360
    %v1494 = vunpack.c.l.b16 %v361
    %v1495 = vunpack.c.h.b16 %v361
    %v1496 = vunpack.c.l.b16 %v362
    %v1497 = vunpack.c.h.b16 %v362
    %v1498 = vunpack.c.l.b16 %v363
    %v1499 = vunpack.c.h.b16 %v363
    %v1500 = vunpack.c.l.b16 %v364
    %v1501 = vunpack.c.h.b16 %v364
    %v1502 = vunpack.c.l.b16 %v365
    %v1503 = vunpack.c.h.b16 %v365
    %v1504 = vunpack.c.l.b16 %v366
    %v1505 = vunpack.c.h.b16 %v366
    %v1506 = vunpack.c.l.b16 %v367
    %v1507 = vunpack.c.h.b16 %v367
    %v1508 = vunpack.c.l.b16 %v368
    %v1509 = vunpack.c.h.b16 %v368
    %v1510 = vunpack.c.l.b16 %v369
    %v1511 = vunpack.c.h.b16 %v369
    %v1512 = vunpack.c.l.b16 %v370
    %v1513 = vunpack.c.h.b16 %v370
    %v1514 = vunpack.c.l.b16 %v371
    %v1515 = vunpack.c.h.b16 %v371
    %v1516 = vunpack.c.l.b16 %v372
    %v1517 = vunpack.c.h.b16 %v372
    %v1518 = vunpack.c.l.b16 %v373
    %v1519 = vunpack.c.h.b16 %v373
    %v1520 = vunpack.c.l.b16 %v374
    %v1521 = vunpack.c.h.b16 %v374
    %v1522 = vunpack.c.l.b16 %v375
    %v1523 = vunpack.c.h.b16 %v375
    %v1524 = vunpack.c.l.b16 %v376
    %v1525 = vunpack.c.h.b16 %v376
    %v1526 = vunpack.c.l.b16 %v377
    %v1527 = vunpack.c.h.b16 %v377
    %v1528 = vunpack.c.l.b16 %v378
    %v1529 = vunpack.c.h.b16 %v378
    %v1530 = vunpack.c.l.b16 %v379
    %v1531 = vunpack.c.h.b16 %v379
    %v1532 = vunpack.c.l.b16 %v380
    %v1533 = vunpack.c.h.b16 %v380
    %v1534 = vunpack.c.l.b16 %v381
    %v1535 = vunpack.c.h.b16 %v381
    %v1536 = vunpack.c.l.b16 %v382
    %v1537 = vunpack.c.h.b16 %v382
    %v1538 = vunpack.c.l.b16 %v383
    %v1539 = vunpack.c.h.b16 %v383
    %v1540 = vunpack.c.l.b16 %v384
    %v1541 = vunpack.c.h.b16 %v384
    %v1542 = vunpack.c.l.b16 %v385
    %v1543 = vunpack.c.h.b16 %v385
    %v1544 = vunpack.c.l.b16 %v386
    %v1545 = vunpack.c.h.b16 %v386
    %v1546 = vunpack.c.l.b16 %v387
    %v1547 = vunpack.c.h.b16 %v387
    %v1548 = vunpack.c.l.b16 %v388
    %v1549 = vunpack.c.h.b16 %v388
    %v1550 = vunpack.c.l.b16 %v389
    %v1551 = vunpack.c.h.b16 %v389
    %v1552 = vunpack.c.l.b16 %v390
    %v1553 = vunpack.c.h.b16 %v390
    %v1554 = vunpack.c.l.b16 %v391
    %v1555 = vunpack.c.h.b16 %v391
    %v1556 = vunpack.c.l.b16 %v392
    %v1557 = vunpack.c.h.b16 %v392
    %v1558 = vunpack.c.l.b16 %v393
    %v1559 = vunpack.c.h.b16 %v393
    %v1560 = vunpack.c.l.b16 %v394
    %v1561 = vunpack.c.h.b16 %v394
    %v1562 = vpack.c.b16 %v926, %v922
    %v1563 = vpack.c.b16 %v927, %v923
    %v1564 = vpack.c.b16 %v928, %v924
    %v1565 = vpack.c.b16 %v929, %v925
    %v1566 = vpack.c.b16 %v934, %v930
    %v1567 = vpack.c.b16 %v935, %v931
    %v1568 = vpack.c.b16 %v936, %v932
    %v1569 = vpack.c.b16 %v937, %v933
    %v1570 = vpack.c.b16 %v942, %v938
    %v1571 = vpack.c.b16 %v943, %v939
    %v1572 = vpack.c.b16 %v944, %v940
    %v1573 = vpack.c.b16 %v945, %v941
    %v1574 = vpack.c.b16 %v950, %v946
    %v1575 = vpack.c.b16 %v951, %v947
    %v1576 = vpack.c.b16 %v952, %v948
    %v1577 = vpack.c.b16 %v953, %v949
    %v1578 = vpack.c.b16 %v958, %v954
    %v1579 = vpack.c.b16 %v959, %v955
    %v1580 = vpack.c.b16 %v960, %v956
    %v1581 = vpack.c.b16 %v961, %v957
    %v1582 = vpack.c.b16 %v966, %v962
    %v1583 = vpack.c.b16 %v967, %v963
    %v1584 = vpack.c.b16 %v968, %v964
    %v1585 = vpack.c.b16 %v969, %v965
    %v1586 = vpack.c.b16 %v974, %v970
    %v1587 = vpack.c.b16 %v975, %v971
    %v1588 = vpack.c.b16 %v976, %v972
    %v1589 = vpack.c.b16 %v977, %v973
    %v1590 = vpack.c.b16 %v982, %v978
    %v1591 = vpack.c.b16 %v983, %v979
    %v1592 = vpack.c.b16 %v984, %v980
    %v1593 = vpack.c.b16 %v985, %v981
    %v1594 = vpack.c.b16 %v990, %v986
    %v1595 = vpack.c.b16 %v991, %v987
    %v1596 = vpack.c.b16 %v992, %v988
    %v1597 = vpack.c.b16 %v993, %v989
    %v1598 = vpack.c.b16 %v998, %v994
    %v1599 = vpack.c.b16 %v999, %v995
    %v1600 = vpack.c.b16 %v1000, %v996
    %v1601 = vpack.c.b16 %v1001, %v997
    %v1602 = vpack.c.b16 %v1006, %v1002
    %v1603 = vpack.c.b16 %v1007, %v1003
    %v1604 = vpack.c.b16 %v1008, %v1004
    %v1605 = vpack.c.b16 %v1009, %v1005
    %v1606 = vpack.c.b16 %v1014, %v1010
    %v1607 = vpack.c.b16 %v1015, %v1011
    %v1608 = vpack.c.b16 %v1016, %v1012
    %v1609 = vpack.c.b16 %v1017, %v1013
    %v1610 = vpack.c.b16 %v1022, %v1018
    %v1611 = vpack.c.b16 %v1023, %v1019
    %v1612 = vpack.c.b16 %v1024, %v1020
    %v1613 = vpack.c.b16 %v1025, %v1021
    %v1614 = vpack.c.b16 %v1030, %v1026
    %v1615 = vpack.c.b16 %v1031, %v1027
    %v1616 = vpack.c.b16 %v1032, %v1028
    %v1617 = vpack.c.b16 %v1033, %v1029
    %v1618 = vpack.c.b16 %v1038, %v1034
    %v1619 = vpack.c.b16 %v1039, %v1035
    %v1620 = vpack.c.b16 %v1040, %v1036
    %v1621 = vpack.c.b16 %v1041, %v1037
    %v1622 = vpack.c.b16 %v1046, %v1042
    %v1623 = vpack.c.b16 %v1047, %v1043
    %v1624 = vpack.c.b16 %v1048, %v1044
    %v1625 = vpack.c.b16 %v1049, %v1045
    %v1626 = vpack.c.b16 %v1054, %v1050
    %v1627 = vpack.c.b16 %v1055, %v1051
    %v1628 = vpack.c.b16 %v1056, %v1052
    %v1629 = vpack.c.b16 %v1057, %v1053
    %v1630 = vpack.c.b16 %v1062, %v1058
    %v1631 = vpack.c.b16 %v1063, %v1059
    %v1632 = vpack.c.b16 %v1064, %v1060
    %v1633 = vpack.c.b16 %v1065, %v1061
    %v1634 = vpack.c.b16 %v1070, %v1066
    %v1635 = vpack.c.b16 %v1071, %v1067
    %v1636 = vpack.c.b16 %v1072, %v1068
    %v1637 = vpack.c.b16 %v1073, %v1069
    %v1638 = vpack.c.b16 %v1078, %v1074
    %v1639 = vpack.c.b16 %v1079, %v1075
    %v1640 = vpack.c.b16 %v1080, %v1076
    %v1641 = vpack.c.b16 %v1081, %v1077
    %v1642 = vpack.c.b16 %v1086, %v1082
    %v1643 = vpack.c.b16 %v1087, %v1083
    %v1644 = vpack.c.b16 %v1088, %v1084
    %v1645 = vpack.c.b16 %v1089, %v1085
    %v1646 = vpack.c.b16 %v1094, %v1090
    %v1647 = vpack.c.b16 %v1095, %v1091
    %v1648 = vpack.c.b16 %v1096, %v1092
    %v1649 = vpack.c.b16 %v1097, %v1093
    %v1650 = vpack.c.b16 %v1102, %v1098
    %v1651 = vpack.c.b16 %v1103, %v1099
    %v1652 = vpack.c.b16 %v1104, %v1100
    %v1653 = vpack.c.b16 %v1105, %v1101
    %v1654 = vpack.c.b16 %v1110, %v1106
    %v1655 = vpack.c.b16 %v1111, %v1107
    %v1656 = vpack.c.b16 %v1112, %v1108
    %v1657 = vpack.c.b16 %v1113, %v1109
    %v1658 = vpack.c.b16 %v1118, %v1114
    %v1659 = vpack.c.b16 %v1119, %v1115
    %v1660 = vpack.c.b16 %v1120, %v1116
    %v1661 = vpack.c.b16 %v1121, %v1117
    %v1662 = vpack.c.b16 %v1126, %v1122
    %v1663 = vpack.c.b16 %v1127, %v1123
    %v1664 = vpack.c.b16 %v1128, %v1124
    %v1665 = vpack.c.b16 %v1129, %v1125
    %v1666 = vpack.c.b16 %v1134, %v1130
    %v1667 = vpack.c.b16 %v1135, %v1131
    %v1668 = vpack.c.b16 %v1136, %v1132
    %v1669 = vpack.c.b16 %v1137, %v1133
    %v1670 = vpack.c.b16 %v1142, %v1138
    %v1671 = vpack.c.b16 %v1143, %v1139
    %v1672 = vpack.c.b16 %v1144, %v1140
    %v1673 = vpack.c.b16 %v1145, %v1141
    %v1674 = vpack.c.b16 %v1150, %v1146
    %v1675 = vpack.c.b16 %v1151, %v1147
    %v1676 = vpack.c.b16 %v1152, %v1148
    %v1677 = vpack.c.b16 %v1153, %v1149
    %v1678 = vpack.c.b16 %v1158, %v1154
    %v1679 = vpack.c.b16 %v1159, %v1155
    %v1680 = vpack.c.b16 %v1160, %v1156
    %v1681 = vpack.c.b16 %v1161, %v1157
    %v1682 = vpack.c.b16 %v1166, %v1162
    %v1683 = vpack.c.b16 %v1167, %v1163
    %v1684 = vpack.c.b16 %v1168, %v1164
    %v1685 = vpack.c.b16 %v1169, %v1165
    %v1686 = vpack.c.b16 %v1174, %v1170
    %v1687 = vpack.c.b16 %v1175, %v1171
    %v1688 = vpack.c.b16 %v1176, %v1172
    %v1689 = vpack.c.b16 %v1177, %v1173
    %v1690 = vpack.c.b16 %v1182, %v1178
    %v1691 = vpack.c.b16 %v1183, %v1179
    %v1692 = vpack.c.b16 %v1184, %v1180
    %v1693 = vpack.c.b16 %v1185, %v1181
    %v1694 = vpack.c.b16 %v1190, %v1186
    %v1695 = vpack.c.b16 %v1191, %v1187
    %v1696 = vpack.c.b16 %v1192, %v1188
    %v1697 = vpack.c.b16 %v1193, %v1189
    %v1698 = vpack.c.b16 %v1198, %v1194
    %v1699 = vpack.c.b16 %v1199, %v1195
    %v1700 = vpack.c.b16 %v1200, %v1196
    %v1701 = vpack.c.b16 %v1201, %v1197
    %v1702 = vpack.c.b16 %v1206, %v1202
    %v1703 = vpack.c.b16 %v1207, %v1203
    %v1704 = vpack.c.b16 %v1208, %v1204
    %v1705 = vpack.c.b16 %v1209, %v1205
    %v1706 = vpack.c.b16 %v1214, %v1210
    %v1707 = vpack.c.b16 %v1215, %v1211
    %v1708 = vpack.c.b16 %v1216, %v1212
    %v1709 = vpack.c.b16 %v1217, %v1213
    %v1710 = vpack.c.b16 %v1222, %v1218
    %v1711 = vpack.c.b16 %v1223, %v1219
    %v1712 = vpack.c.b16 %v1224, %v1220
    %v1713 = vpack.c.b16 %v1225, %v1221
    %v1714 = vpack.c.b16 %v1230, %v1226
    %v1715 = vpack.c.b16 %v1231, %v1227
    %v1716 = vpack.c.b16 %v1232, %v1228
    %v1717 = vpack.c.b16 %v1233, %v1229
    %v1718 = vpack.c.b16 %v1238, %v1234
    %v1719 = vpack.c.b16 %v1239, %v1235
    %v1720 = vpack.c.b16 %v1240, %v1236
    %v1721 = vpack.c.b16 %v1241, %v1237
    %v1722 = vpack.c.b16 %v1246, %v1242
    %v1723 = vpack.c.b16 %v1247, %v1243
    %v1724 = vpack.c.b16 %v1248, %v1244
    %v1725 = vpack.c.b16 %v1249, %v1245
    %v1726 = vpack.c.b16 %v1254, %v1250
    %v1727 = vpack.c.b16 %v1255, %v1251
    %v1728 = vpack.c.b16 %v1256, %v1252
    %v1729 = vpack.c.b16 %v1257, %v1253
    %v1730 = vpack.c.b16 %v1262, %v1258
    %v1731 = vpack.c.b16 %v1263, %v1259
    %v1732 = vpack.c.b16 %v1264, %v1260
    %v1733 = vpack.c.b16 %v1265, %v1261
    %v1734 = vpack.c.b16 %v1270, %v1266
    %v1735 = vpack.c.b16 %v1271, %v1267
    %v1736 = vpack.c.b16 %v1272, %v1268
    %v1737 = vpack.c.b16 %v1273, %v1269
    %v1738 = vpack.c.b16 %v1278, %v1274
    %v1739 = vpack.c.b16 %v1279, %v1275
    %v1740 = vpack.c.b16 %v1280, %v1276
    %v1741 = vpack.c.b16 %v1281, %v1277
    %v1742 = vpack.c.b16 %v1286, %v1282
    %v1743 = vpack.c.b16 %v1287, %v1283
    %v1744 = vpack.c.b16 %v1288, %v1284
    %v1745 = vpack.c.b16 %v1289, %v1285
    %v1746 = vpack.c.b16 %v1294, %v1290
    %v1747 = vpack.c.b16 %v1295, %v1291
    %v1748 = vpack.c.b16 %v1296, %v1292
    %v1749 = vpack.c.b16 %v1297, %v1293
    %v1750 = vpack.c.b16 %v1302, %v1298
    %v1751 = vpack.c.b16 %v1303, %v1299
    %v1752 = vpack.c.b16 %v1304, %v1300
    %v1753 = vpack.c.b16 %v1305, %v1301
    %v1754 = vpack.c.b16 %v1310, %v1306
    %v1755 = vpack.c.b16 %v1311, %v1307
    %v1756 = vpack.c.b16 %v1312, %v1308
    %v1757 = vpack.c.b16 %v1313, %v1309
    %v1758 = vpack.c.b16 %v1318, %v1314
    %v1759 = vpack.c.b16 %v1319, %v1315
    %v1760 = vpack.c.b16 %v1320, %v1316
    %v1761 = vpack.c.b16 %v1321, %v1317
    %v1762 = vpack.c.b16 %v1326, %v1322
    %v1763 = vpack.c.b16 %v1327, %v1323
    %v1764 = vpack.c.b16 %v1328, %v1324
    %v1765 = vpack.c.b16 %v1329, %v1325
    %v1766 = vpack.c.b16 %v1334, %v1330
    %v1767 = vpack.c.b16 %v1335, %v1331
    %v1768 = vpack.c.b16 %v1336, %v1332
    %v1769 = vpack.c.b16 %v1337, %v1333
    %v1770 = vpack.c.b16 %v1342, %v1338
    %v1771 = vpack.c.b16 %v1343, %v1339
    %v1772 = vpack.c.b16 %v1344, %v1340
    %v1773 = vpack.c.b16 %v1345, %v1341
    %v1774 = vpack.c.b16 %v1350, %v1346
    %v1775 = vpack.c.b16 %v1351, %v1347
    %v1776 = vpack.c.b16 %v1352, %v1348
    %v1777 = vpack.c.b16 %v1353, %v1349
    %v1778 = vpack.c.b16 %v1358, %v1354
    %v1779 = vpack.c.b16 %v1359, %v1355
    %v1780 = vpack.c.b16 %v1360, %v1356
    %v1781 = vpack.c.b16 %v1361, %v1357
    %v1782 = vpack.c.b16 %v1366, %v1362
    %v1783 = vpack.c.b16 %v1367, %v1363
    %v1784 = vpack.c.b16 %v1368, %v1364
    %v1785 = vpack.c.b16 %v1369, %v1365
    %v1786 = vpack.c.b16 %v1374, %v1370
    %v1787 = vpack.c.b16 %v1375, %v1371
    %v1788 = vpack.c.b16 %v1376, %v1372
    %v1789 = vpack.c.b16 %v1377, %v1373
    %v1790 = vpack.c.b16 %v1382, %v1378
    %v1791 = vpack.c.b16 %v1383, %v1379
    %v1792 = vpack.c.b16 %v1384, %v1380
    %v1793 = vpack.c.b16 %v1385, %v1381
    %v1794 = vpack.c.b16 %v1390, %v1386
    %v1795 = vpack.c.b16 %v1391, %v1387
    %v1796 = vpack.c.b16 %v1392, %v1388
    %v1797 = vpack.c.b16 %v1393, %v1389
    %v1798 = vpack.c.b16 %v1398, %v1394
    %v1799 = vpack.c.b16 %v1399, %v1395
    %v1800 = vpack.c.b16 %v1400, %v1396
    %v1801 = vpack.c.b16 %v1401, %v1397
    %v1802 = vpack.c.b16 %v1406, %v1402
    %v1803 = vpack.c.b16 %v1407, %v1403
    %v1804 = vpack.c.b16 %v1408, %v1404
    %v1805 = vpack.c.b16 %v1409, %v1405
    %v1806 = vpack.c.b16 %v1414, %v1410
    %v1807 = vpack.c.b16 %v1415, %v1411
    %v1808 = vpack.c.b16 %v1416, %v1412
    %v1809 = vpack.c.b16 %v1417, %v1413
    %v1810 = vpack.c.b16 %v1422, %v1418
    %v1811 = vpack.c.b16 %v1423, %v1419
    %v1812 = vpack.c.b16 %v1424, %v1420
    %v1813 = vpack.c.b16 %v1425, %v1421
    %v1814 = vpack.c.b16 %v1430, %v1426
    %v1815 = vpack.c.b16 %v1431, %v1427
    %v1816 = vpack.c.b16 %v1432, %v1428
    %v1817 = vpack.c.b16 %v1433, %v1429
    %v1818 = vpack.c.b16 %v1438, %v1434
    %v1819 = vpack.c.b16 %v1439, %v1435
    %v1820 = vpack.c.b16 %v1440, %v1436
    %v1821 = vpack.c.b16 %v1441, %v1437
    %v1822 = vpack.c.b16 %v1446, %v1442
    %v1823 = vpack.c.b16 %v1447, %v1443
    %v1824 = vpack.c.b16 %v1448, %v1444
    %v1825 = vpack.c.b16 %v1449, %v1445
    %v1826 = vpack.c.b16 %v1454, %v1450
    %v1827 = vpack.c.b16 %v1455, %v1451
    %v1828 = vpack.c.b16 %v1456, %v1452
    %v1829 = vpack.c.b16 %v1457, %v1453
    %v1830 = vpack.c.b16 %v1462, %v1458
    %v1831 = vpack.c.b16 %v1463, %v1459
    %v1832 = vpack.c.b16 %v1464, %v1460
    %v1833 = vpack.c.b16 %v1465, %v1461
    %v1834 = vpack.c.b16 %v1470, %v1466
    %v1835 = vpack.c.b16 %v1471, %v1467
    %v1836 = vpack.c.b16 %v1472, %v1468
    %v1837 = vpack.c.b16 %v1473, %v1469
    %v1838 = vpack.c.b16 %v1478, %v1474
    %v1839 = vpack.c.b16 %v1479, %v1475
    %v1840 = vpack.c.b16 %v1480, %v1476
    %v1841 = vpack.c.b16 %v1481, %v1477
    %v1842 = vpack.c.b16 %v1486, %v1482
    %v1843 = vpack.c.b16 %v1487, %v1483
    %v1844 = vpack.c.b16 %v1488, %v1484
    %v1845 = vpack.c.b16 %v1489, %v1485
    %v1846 = vpack.c.b16 %v1494, %v1490
    %v1847 = vpack.c.b16 %v1495, %v1491
    %v1848 = vpack.c.b16 %v1496, %v1492
    %v1849 = vpack.c.b16 %v1497, %v1493
    %v1850 = vpack.c.b16 %v1502, %v1498
    %v1851 = vpack.c.b16 %v1503, %v1499
    %v1852 = vpack.c.b16 %v1504, %v1500
    %v1853 = vpack.c.b16 %v1505, %v1501
    %v1854 = vpack.c.b16 %v1510, %v1506
    %v1855 = vpack.c.b16 %v1511, %v1507
    %v1856 = vpack.c.b16 %v1512, %v1508
    %v1857 = vpack.c.b16 %v1513, %v1509
    %v1858 = vpack.c.b16 %v1518, %v1514
    %v1859 = vpack.c.b16 %v1519, %v1515
    %v1860 = vpack.c.b16 %v1520, %v1516
    %v1861 = vpack.c.b16 %v1521, %v1517
    %v1862 = vpack.c.b16 %v1526, %v1522
    %v1863 = vpack.c.b16 %v1527, %v1523
    %v1864 = vpack.c.b16 %v1528, %v1524
    %v1865 = vpack.c.b16 %v1529, %v1525
    %v1866 = vpack.c.b16 %v1534, %v1530
    %v1867 = vpack.c.b16 %v1535, %v1531
    %v1868 = vpack.c.b16 %v1536, %v1532
    %v1869 = vpack.c.b16 %v1537, %v1533
    %v1870 = vpack.c.b16 %v1542, %v1538
    %v1871 = vpack.c.b16 %v1543, %v1539
    %v1872 = vpack.c.b16 %v1544, %v1540
    %v1873 = vpack.c.b16 %v1545, %v1541
    %v1874 = vpack.c.b16 %v1550, %v1546
    %v1875 = vpack.c.b16 %v1551, %v1547
    %v1876 = vpack.c.b16 %v1552, %v1548
    %v1877 = vpack.c.b16 %v1553, %v1549
    %v1878 = vpack.c.b16 %v1558, %v1554
    %v1879 = vpack.c.b16 %v1559, %v1555
    %v1880 = vpack.c.b16 %v1560, %v1556
    %v1881 = vpack.c.b16 %v1561, %v1557
    %2202 = vmatprep.subr.bf16.mxu0 %v1563
    %2203 = vmatpush1.bf16.msra.mxu0 %v1562
    %2204 = vmatprep.subr.bf16.mxu0 %v1567
    %2205 = vmatpush1.bf16.msra.mxu0 %v1566
    %2206 = vmatprep.subr.bf16.mxu0 %v1571
    %2207 = vmatpush1.bf16.msra.mxu0 %v1570
    %2208 = vmatprep.subr.bf16.mxu0 %v1575
    %2209 = vmatpush1.bf16.msra.mxu0 %v1574
    %2210 = vmatprep.subr.bf16.mxu0 %v1579
    %2211 = vmatpush1.bf16.msra.mxu0 %v1578
    %2212 = vmatprep.subr.bf16.mxu0 %v1583
    %2213 = vmatpush1.bf16.msra.mxu0 %v1582
    %2214 = vmatprep.subr.bf16.mxu0 %v1587
    %2215 = vmatpush1.bf16.msra.mxu0 %v1586
    %2216 = vmatprep.subr.bf16.mxu0 %v1591
    %2217 = vmatpush1.bf16.msra.mxu0 %v1590
    %2218 = vmatprep.subr.bf16.mxu0 %v1595
    %2219 = vmatpush1.bf16.msra.mxu0 %v1594
    %2220 = vmatprep.subr.bf16.mxu0 %v1599
    %2221 = vmatpush1.bf16.msra.mxu0 %v1598
    %2222 = vmatprep.subr.bf16.mxu0 %v1603
    %2223 = vmatpush1.bf16.msra.mxu0 %v1602
    %2224 = vmatprep.subr.bf16.mxu0 %v1607
    %2225 = vmatpush1.bf16.msra.mxu0 %v1606
    %2226 = vmatprep.subr.bf16.mxu0 %v1611
    %2227 = vmatpush1.bf16.msra.mxu0 %v1610
    %2228 = vmatprep.subr.bf16.mxu0 %v1615
    %2229 = vmatpush1.bf16.msra.mxu0 %v1614
    %2230 = vmatprep.subr.bf16.mxu0 %v1619
    %2231 = vmatpush1.bf16.msra.mxu0 %v1618
    %2232 = vmatprep.subr.bf16.mxu0 %v1623
    %2233 = vmatpush1.bf16.msra.mxu0 %v1622
    %2234 = vmatprep.mubr.bf16.mxu0 %v523
    %2235 = vmatmul.mubr.bf16.gmra.mrb[0].mxu0 %v522
    %v2236 = vpop.f32.mrb[0].mxu0
    %v2237 = vadd.f32 %v400, %v2236
    %v2238 = vpop.f32.mrb[0].mxu0
    %v2239 = vadd.f32 %v404, %v2238
    %v2240 = vpop.f32.mrb[0].mxu0
    %v2241 = vadd.f32 %v400, %v2240
    %v2242 = vpop.f32.mrb[0].mxu0
    %v2243 = vadd.f32 %v404, %v2242
    %2244 = vmatprep.mubr.bf16.mxu0 %v533
    %2245 = vmatmul.mubr.bf16.gmra.mrb[0].mxu0 %v532
    %v2246 = vpop.f32.mrb[0].mxu0
    %v2247 = vadd.f32 %v400, %v2246
    %v2248 = vpop.f32.mrb[0].mxu0
    %v2249 = vadd.f32 %v404, %v2248
    %v2250 = vpop.f32.mrb[0].mxu0
    %v2251 = vadd.f32 %v400, %v2250
    %v2252 = vpop.f32.mrb[0].mxu0
    %v2253 = vadd.f32 %v404, %v2252
    %2254 = vmatprep.mubr.bf16.mxu0 %v543
    %2255 = vmatmul.mubr.bf16.gmra.mrb[0].mxu0 %v542
    %v2256 = vpop.f32.mrb[0].mxu0
    %v2257 = vadd.f32 %v400, %v2256
    %v2258 = vpop.f32.mrb[0].mxu0
    %v2259 = vadd.f32 %v404, %v2258
    %v2260 = vpop.f32.mrb[0].mxu0
    %v2261 = vadd.f32 %v400, %v2260
    %v2262 = vpop.f32.mrb[0].mxu0
    %v2263 = vadd.f32 %v404, %v2262
    %2264 = vmatprep.mubr.bf16.mxu0 %v553
    %2265 = vmatmul.mubr.bf16.gmra.mrb[0].mxu0 %v552
    %v2266 = vpop.f32.mrb[0].mxu0
    %v2267 = vadd.f32 %v400, %v2266
    %v2268 = vpop.f32.mrb[0].mxu0
    %v2269 = vadd.f32 %v404, %v2268
    %v2270 = vpop.f32.mrb[0].mxu0
    %v2271 = vpop.f32.mrb[0].mxu0
    %2272 = vdwg.mxu0
    %2273 = vmatprep.subr.bf16.mxu0 %v1627
    %2274 = vmatpush1.bf16.msra.mxu0 %v1626
    %2275 = vmatprep.subr.bf16.mxu0 %v1631
    %2276 = vmatpush1.bf16.msra.mxu0 %v1630
    %2277 = vmatprep.subr.bf16.mxu0 %v1635
    %2278 = vmatpush1.bf16.msra.mxu0 %v1634
    %2279 = vmatprep.subr.bf16.mxu0 %v1639
    %2280 = vmatpush1.bf16.msra.mxu0 %v1638
    %2281 = vmatprep.subr.bf16.mxu0 %v1643
    %2282 = vmatpush1.bf16.msra.mxu0 %v1642
    %2283 = vmatprep.subr.bf16.mxu0 %v1647
    %2284 = vmatpush1.bf16.msra.mxu0 %v1646
    %2285 = vmatprep.subr.bf16.mxu0 %v1651
    %2286 = vmatpush1.bf16.msra.mxu0 %v1650
    %2287 = vmatprep.subr.bf16.mxu0 %v1655
    %2288 = vmatpush1.bf16.msra.mxu0 %v1654
    %2289 = vmatprep.subr.bf16.mxu0 %v1659
    %2290 = vmatpush1.bf16.msra.mxu0 %v1658
    %2291 = vmatprep.subr.bf16.mxu0 %v1663
    %2292 = vmatpush1.bf16.msra.mxu0 %v1662
    %2293 = vmatprep.subr.bf16.mxu0 %v1667
    %2294 = vmatpush1.bf16.msra.mxu0 %v1666
    %2295 = vmatprep.subr.bf16.mxu0 %v1671
    %2296 = vmatpush1.bf16.msra.mxu0 %v1670
    %2297 = vmatprep.subr.bf16.mxu0 %v1675
    %2298 = vmatpush1.bf16.msra.mxu0 %v1674
    %2299 = vmatprep.subr.bf16.mxu0 %v1679
    %2300 = vmatpush1.bf16.msra.mxu0 %v1678
    %2301 = vmatprep.subr.bf16.mxu0 %v1683
    %2302 = vmatpush1.bf16.msra.mxu0 %v1682
    %2303 = vmatprep.subr.bf16.mxu0 %v1687
    %2304 = vmatpush1.bf16.msra.mxu0 %v1686
    %2305 = vmatprep.mubr.bf16.mxu0 %v525
    %2306 = vmatmul.mubr.bf16.gmra.mrb[0].mxu0 %v524
    %v2307 = vpop.f32.mrb[0].mxu0
    %v2308 = vadd.f32 %v2237, %v2307
    %v2309 = vpop.f32.mrb[0].mxu0
    %v2310 = vadd.f32 %v2239, %v2309
    %v2311 = vpop.f32.mrb[0].mxu0
    %v2312 = vadd.f32 %v2241, %v2311
    %v2313 = vpop.f32.mrb[0].mxu0
    %v2314 = vadd.f32 %v2243, %v2313
    %2315 = vmatprep.mubr.bf16.mxu0 %v535
    %2316 = vmatmul.mubr.bf16.gmra.mrb[0].mxu0 %v534
    %v2317 = vpop.f32.mrb[0].mxu0
    %v2318 = vadd.f32 %v2247, %v2317
    %v2319 = vpop.f32.mrb[0].mxu0
    %v2320 = vadd.f32 %v2249, %v2319
    %v2321 = vpop.f32.mrb[0].mxu0
    %v2322 = vadd.f32 %v2251, %v2321
    %v2323 = vpop.f32.mrb[0].mxu0
    %v2324 = vadd.f32 %v2253, %v2323
    %2325 = vmatprep.mubr.bf16.mxu0 %v545
    %2326 = vmatmul.mubr.bf16.gmra.mrb[0].mxu0 %v544
    %v2327 = vpop.f32.mrb[0].mxu0
    %v2328 = vadd.f32 %v2257, %v2327
    %v2329 = vpop.f32.mrb[0].mxu0
    %v2330 = vadd.f32 %v2259, %v2329
    %v2331 = vpop.f32.mrb[0].mxu0
    %v2332 = vadd.f32 %v2261, %v2331
    %v2333 = vpop.f32.mrb[0].mxu0
    %v2334 = vadd.f32 %v2263, %v2333
    %2335 = vmatprep.mubr.bf16.mxu0 %v555
    %2336 = vmatmul.mubr.bf16.gmra.mrb[0].mxu0 %v554
    %v2337 = vpop.f32.mrb[0].mxu0
    %v2338 = vadd.f32 %v2267, %v2337
    %v2339 = vpop.f32.mrb[0].mxu0
    %v2340 = vadd.f32 %v2269, %v2339
    %v2341 = vpop.f32.mrb[0].mxu0
    %v2342 = vpop.f32.mrb[0].mxu0
    %2343 = vdwg.mxu0
    %2344 = vmatprep.subr.bf16.mxu0 %v1691
    %2345 = vmatpush1.bf16.msra.mxu0 %v1690
    %2346 = vmatprep.subr.bf16.mxu0 %v1695
    %2347 = vmatpush1.bf16.msra.mxu0 %v1694
    %2348 = vmatprep.subr.bf16.mxu0 %v1699
    %2349 = vmatpush1.bf16.msra.mxu0 %v1698
    %2350 = vmatprep.subr.bf16.mxu0 %v1703
    %2351 = vmatpush1.bf16.msra.mxu0 %v1702
    %2352 = vmatprep.subr.bf16.mxu0 %v1707
    %2353 = vmatpush1.bf16.msra.mxu0 %v1706
    %2354 = vmatprep.subr.bf16.mxu0 %v1711
    %2355 = vmatpush1.bf16.msra.mxu0 %v1710
    %2356 = vmatprep.subr.bf16.mxu0 %v1715
    %2357 = vmatpush1.bf16.msra.mxu0 %v1714
    %2358 = vmatprep.subr.bf16.mxu0 %v1719
    %2359 = vmatpush1.bf16.msra.mxu0 %v1718
    %2360 = vmatprep.subr.bf16.mxu0 %v1723
    %2361 = vmatpush1.bf16.msra.mxu0 %v1722
    %2362 = vmatprep.subr.bf16.mxu0 %v1727
    %2363 = vmatpush1.bf16.msra.mxu0 %v1726
    %2364 = vmatprep.subr.bf16.mxu0 %v1731
    %2365 = vmatpush1.bf16.msra.mxu0 %v1730
    %2366 = vmatprep.subr.bf16.mxu0 %v1735
    %2367 = vmatpush1.bf16.msra.mxu0 %v1734
    %2368 = vmatprep.subr.bf16.mxu0 %v1739
    %2369 = vmatpush1.bf16.msra.mxu0 %v1738
    %2370 = vmatprep.subr.bf16.mxu0 %v1743
    %2371 = vmatpush1.bf16.msra.mxu0 %v1742
    %2372 = vmatprep.subr.bf16.mxu0 %v1747
    %2373 = vmatpush1.bf16.msra.mxu0 %v1746
    %2374 = vmatprep.subr.bf16.mxu0 %v1751
    %2375 = vmatpush1.bf16.msra.mxu0 %v1750
    %2376 = vmatprep.mubr.bf16.mxu0 %v527
    %2377 = vmatmul.mubr.bf16.gmra.mrb[0].mxu0 %v526
    %v2378 = vpop.f32.mrb[0].mxu0
    %v2379 = vadd.f32 %v2308, %v2378
    %v2380 = vpop.f32.mrb[0].mxu0
    %v2381 = vadd.f32 %v2310, %v2380
    %v2382 = vpop.f32.mrb[0].mxu0
    %v2383 = vadd.f32 %v2312, %v2382
    %v2384 = vpop.f32.mrb[0].mxu0
    %v2385 = vadd.f32 %v2314, %v2384
    %2386 = vmatprep.mubr.bf16.mxu0 %v537
    %2387 = vmatmul.mubr.bf16.gmra.mrb[0].mxu0 %v536
    %v2388 = vpop.f32.mrb[0].mxu0
    %v2389 = vadd.f32 %v2318, %v2388
    %v2390 = vpop.f32.mrb[0].mxu0
    %v2391 = vadd.f32 %v2320, %v2390
    %v2392 = vpop.f32.mrb[0].mxu0
    %v2393 = vadd.f32 %v2322, %v2392
    %v2394 = vpop.f32.mrb[0].mxu0
    %v2395 = vadd.f32 %v2324, %v2394
    %2396 = vmatprep.mubr.bf16.mxu0 %v547
    %2397 = vmatmul.mubr.bf16.gmra.mrb[0].mxu0 %v546
    %v2398 = vpop.f32.mrb[0].mxu0
    %v2399 = vadd.f32 %v2328, %v2398
    %v2400 = vpop.f32.mrb[0].mxu0
    %v2401 = vadd.f32 %v2330, %v2400
    %v2402 = vpop.f32.mrb[0].mxu0
    %v2403 = vadd.f32 %v2332, %v2402
    %v2404 = vpop.f32.mrb[0].mxu0
    %v2405 = vadd.f32 %v2334, %v2404
    %2406 = vmatprep.mubr.bf16.mxu0 %v557
    %2407 = vmatmul.mubr.bf16.gmra.mrb[0].mxu0 %v556
    %v2408 = vpop.f32.mrb[0].mxu0
    %v2409 = vadd.f32 %v2338, %v2408
    %v2410 = vpop.f32.mrb[0].mxu0
    %v2411 = vadd.f32 %v2340, %v2410
    %v2412 = vpop.f32.mrb[0].mxu0
    %v2413 = vpop.f32.mrb[0].mxu0
    %2414 = vdwg.mxu0
    %2415 = vmatprep.subr.bf16.mxu0 %v1755
    %2416 = vmatpush1.bf16.msra.mxu0 %v1754
    %2417 = vmatprep.subr.bf16.mxu0 %v1759
    %2418 = vmatpush1.bf16.msra.mxu0 %v1758
    %2419 = vmatprep.subr.bf16.mxu0 %v1763
    %2420 = vmatpush1.bf16.msra.mxu0 %v1762
    %2421 = vmatprep.subr.bf16.mxu0 %v1767
    %2422 = vmatpush1.bf16.msra.mxu0 %v1766
    %2423 = vmatprep.subr.bf16.mxu0 %v1771
    %2424 = vmatpush1.bf16.msra.mxu0 %v1770
    %2425 = vmatprep.subr.bf16.mxu0 %v1775
    %2426 = vmatpush1.bf16.msra.mxu0 %v1774
    %2427 = vmatprep.subr.bf16.mxu0 %v1779
    %2428 = vmatpush1.bf16.msra.mxu0 %v1778
    %2429 = vmatprep.subr.bf16.mxu0 %v1783
    %2430 = vmatpush1.bf16.msra.mxu0 %v1782
    %2431 = vmatprep.subr.bf16.mxu0 %v1787
    %2432 = vmatpush1.bf16.msra.mxu0 %v1786
    %2433 = vmatprep.subr.bf16.mxu0 %v1791
    %2434 = vmatpush1.bf16.msra.mxu0 %v1790
    %2435 = vmatprep.subr.bf16.mxu0 %v1795
    %2436 = vmatpush1.bf16.msra.mxu0 %v1794
    %2437 = vmatprep.subr.bf16.mxu0 %v1799
    %2438 = vmatpush1.bf16.msra.mxu0 %v1798
    %2439 = vmatprep.subr.bf16.mxu0 %v1803
    %2440 = vmatpush1.bf16.msra.mxu0 %v1802
    %2441 = vmatprep.subr.bf16.mxu0 %v1807
    %2442 = vmatpush1.bf16.msra.mxu0 %v1806
    %2443 = vmatprep.subr.bf16.mxu0 %v1811
    %2444 = vmatpush1.bf16.msra.mxu0 %v1810
    %2445 = vmatprep.subr.bf16.mxu0 %v1815
    %2446 = vmatpush1.bf16.msra.mxu0 %v1814
    %2447 = vmatprep.mubr.bf16.mxu0 %v529
    %2448 = vmatmul.mubr.bf16.gmra.mrb[0].mxu0 %v528
    %v2449 = vpop.f32.mrb[0].mxu0
    %v2450 = vadd.f32 %v2379, %v2449
    %v2451 = vpop.f32.mrb[0].mxu0
    %v2452 = vadd.f32 %v2381, %v2451
    %v2453 = vpop.f32.mrb[0].mxu0
    %v2454 = vadd.f32 %v2383, %v2453
    %v2455 = vpop.f32.mrb[0].mxu0
    %v2456 = vadd.f32 %v2385, %v2455
    %2457 = vmatprep.mubr.bf16.mxu0 %v539
    %2458 = vmatmul.mubr.bf16.gmra.mrb[0].mxu0 %v538
    %v2459 = vpop.f32.mrb[0].mxu0
    %v2460 = vadd.f32 %v2389, %v2459
    %v2461 = vpop.f32.mrb[0].mxu0
    %v2462 = vadd.f32 %v2391, %v2461
    %v2463 = vpop.f32.mrb[0].mxu0
    %v2464 = vadd.f32 %v2393, %v2463
    %v2465 = vpop.f32.mrb[0].mxu0
    %v2466 = vadd.f32 %v2395, %v2465
    %2467 = vmatprep.mubr.bf16.mxu0 %v549
    %2468 = vmatmul.mubr.bf16.gmra.mrb[0].mxu0 %v548
    %v2469 = vpop.f32.mrb[0].mxu0
    %v2470 = vadd.f32 %v2399, %v2469
    %v2471 = vpop.f32.mrb[0].mxu0
    %v2472 = vadd.f32 %v2401, %v2471
    %v2473 = vpop.f32.mrb[0].mxu0
    %v2474 = vadd.f32 %v2403, %v2473
    %v2475 = vpop.f32.mrb[0].mxu0
    %v2476 = vadd.f32 %v2405, %v2475
    %2477 = vmatprep.mubr.bf16.mxu0 %v559
    %2478 = vmatmul.mubr.bf16.gmra.mrb[0].mxu0 %v558
    %v2479 = vpop.f32.mrb[0].mxu0
    %v2480 = vadd.f32 %v2409, %v2479
    %v2481 = vpop.f32.mrb[0].mxu0
    %v2482 = vadd.f32 %v2411, %v2481
    %v2483 = vpop.f32.mrb[0].mxu0
    %v2484 = vpop.f32.mrb[0].mxu0
    %2485 = vdwg.mxu0
    %2486 = vmatprep.subr.bf16.mxu0 %v1819
    %2487 = vmatpush1.bf16.msra.mxu0 %v1818
    %2488 = vmatprep.subr.bf16.mxu0 %v1823
    %2489 = vmatpush1.bf16.msra.mxu0 %v1822
    %2490 = vmatprep.subr.bf16.mxu0 %v1827
    %2491 = vmatpush1.bf16.msra.mxu0 %v1826
    %2492 = vmatprep.subr.bf16.mxu0 %v1831
    %2493 = vmatpush1.bf16.msra.mxu0 %v1830
    %2494 = vmatprep.subr.bf16.mxu0 %v1835
    %2495 = vmatpush1.bf16.msra.mxu0 %v1834
    %2496 = vmatprep.subr.bf16.mxu0 %v1839
    %2497 = vmatpush1.bf16.msra.mxu0 %v1838
    %2498 = vmatprep.subr.bf16.mxu0 %v1843
    %2499 = vmatpush1.bf16.msra.mxu0 %v1842
    %2500 = vmatprep.subr.bf16.mxu0 %v1847
    %2501 = vmatpush1.bf16.msra.mxu0 %v1846
    %2502 = vmatprep.subr.bf16.mxu0 %v1851
    %2503 = vmatpush1.bf16.msra.mxu0 %v1850
    %2504 = vmatprep.subr.bf16.mxu0 %v1855
    %2505 = vmatpush1.bf16.msra.mxu0 %v1854
    %2506 = vmatprep.subr.bf16.mxu0 %v1859
    %2507 = vmatpush1.bf16.msra.mxu0 %v1858
    %2508 = vmatprep.subr.bf16.mxu0 %v1863
    %2509 = vmatpush1.bf16.msra.mxu0 %v1862
    %2510 = vmatprep.subr.bf16.mxu0 %v1867
    %2511 = vmatpush1.bf16.msra.mxu0 %v1866
    %2512 = vmatprep.subr.bf16.mxu0 %v1871
    %2513 = vmatpush1.bf16.msra.mxu0 %v1870
    %2514 = vmatprep.subr.bf16.mxu0 %v1875
    %2515 = vmatpush1.bf16.msra.mxu0 %v1874
    %2516 = vmatprep.subr.bf16.mxu0 %v1879
    %2517 = vmatpush1.bf16.msra.mxu0 %v1878
    %2518 = vmatprep.mubr.bf16.mxu0 %v531
    %2519 = vmatmul.mubr.bf16.gmra.mrb[0].mxu0 %v530
    %v2520 = vpop.f32.mrb[0].mxu0
    %v2521 = vadd.f32 %v2450, %v2520
    %v2522 = vpop.f32.mrb[0].mxu0
    %v2523 = vadd.f32 %v2452, %v2522
    %v2524 = vpop.f32.mrb[0].mxu0
    %v2525 = vadd.f32 %v2454, %v2524
    %v2526 = vpop.f32.mrb[0].mxu0
    %v2527 = vadd.f32 %v2456, %v2526
    %2528 = vmatprep.mubr.bf16.mxu0 %v541
    %2529 = vmatmul.mubr.bf16.gmra.mrb[0].mxu0 %v540
    %v2530 = vpop.f32.mrb[0].mxu0
    %v2531 = vadd.f32 %v2460, %v2530
    %v2532 = vpop.f32.mrb[0].mxu0
    %v2533 = vadd.f32 %v2462, %v2532
    %v2534 = vpop.f32.mrb[0].mxu0
    %v2535 = vadd.f32 %v2464, %v2534
    %v2536 = vpop.f32.mrb[0].mxu0
    %v2537 = vadd.f32 %v2466, %v2536
    %2538 = vmatprep.mubr.bf16.mxu0 %v551
    %2539 = vmatmul.mubr.bf16.gmra.mrb[0].mxu0 %v550
    %v2540 = vpop.f32.mrb[0].mxu0
    %v2541 = vadd.f32 %v2470, %v2540
    %v2542 = vpop.f32.mrb[0].mxu0
    %v2543 = vadd.f32 %v2472, %v2542
    %v2544 = vpop.f32.mrb[0].mxu0
    %v2545 = vadd.f32 %v2474, %v2544
    %v2546 = vpop.f32.mrb[0].mxu0
    %v2547 = vadd.f32 %v2476, %v2546
    %2548 = vmatprep.mubr.bf16.mxu0 %v561
    %2549 = vmatmul.mubr.bf16.gmra.mrb[0].mxu0 %v560
    %v2550 = vpop.f32.mrb[0].mxu0
    %v2551 = vadd.f32 %v2480, %v2550
    %v2552 = vpop.f32.mrb[0].mxu0
    %v2553 = vadd.f32 %v2482, %v2552
    %v2554 = vpop.f32.mrb[0].mxu0
    %v2555 = vpop.f32.mrb[0].mxu0
    %2556 = vdwg.mxu0
    %2557 = vmatprep.subr.bf16.mxu0 %v1565
    %2558 = vmatpush1.bf16.msra.mxu0 %v1564
    %2559 = vmatprep.subr.bf16.mxu0 %v1569
    %2560 = vmatpush1.bf16.msra.mxu0 %v1568
    %2561 = vmatprep.subr.bf16.mxu0 %v1573
    %2562 = vmatpush1.bf16.msra.mxu0 %v1572
    %2563 = vmatprep.subr.bf16.mxu0 %v1577
    %2564 = vmatpush1.bf16.msra.mxu0 %v1576
    %2565 = vmatprep.subr.bf16.mxu0 %v1581
    %2566 = vmatpush1.bf16.msra.mxu0 %v1580
    %2567 = vmatprep.subr.bf16.mxu0 %v1585
    %2568 = vmatpush1.bf16.msra.mxu0 %v1584
    %2569 = vmatprep.subr.bf16.mxu0 %v1589
    %2570 = vmatpush1.bf16.msra.mxu0 %v1588
    %2571 = vmatprep.subr.bf16.mxu0 %v1593
    %2572 = vmatpush1.bf16.msra.mxu0 %v1592
    %2573 = vmatprep.subr.bf16.mxu0 %v1597
    %2574 = vmatpush1.bf16.msra.mxu0 %v1596
    %2575 = vmatprep.subr.bf16.mxu0 %v1601
    %2576 = vmatpush1.bf16.msra.mxu0 %v1600
    %2577 = vmatprep.subr.bf16.mxu0 %v1605
    %2578 = vmatpush1.bf16.msra.mxu0 %v1604
    %2579 = vmatprep.subr.bf16.mxu0 %v1609
    %2580 = vmatpush1.bf16.msra.mxu0 %v1608
    %2581 = vmatprep.subr.bf16.mxu0 %v1613
    %2582 = vmatpush1.bf16.msra.mxu0 %v1612
    %2583 = vmatprep.subr.bf16.mxu0 %v1617
    %2584 = vmatpush1.bf16.msra.mxu0 %v1616
    %2585 = vmatprep.subr.bf16.mxu0 %v1621
    %2586 = vmatpush1.bf16.msra.mxu0 %v1620
    %2587 = vmatprep.subr.bf16.mxu0 %v1625
    %2588 = vmatpush1.bf16.msra.mxu0 %v1624
    %2589 = vmatprep.mubr.bf16.mxu0 %v523
    %2590 = vmatmul.mubr.bf16.gmra.mrb[0].mxu0 %v522
    %v2591 = vpop.f32.mrb[0].mxu0
    %v2592 = vadd.f32 %v408, %v2591
    %v2593 = vpop.f32.mrb[0].mxu0
    %v2594 = vadd.f32 %v412, %v2593
    %v2595 = vpop.f32.mrb[0].mxu0
    %v2596 = vadd.f32 %v408, %v2595
    %v2597 = vpop.f32.mrb[0].mxu0
    %v2598 = vadd.f32 %v412, %v2597
    %2599 = vmatprep.mubr.bf16.mxu0 %v533
    %2600 = vmatmul.mubr.bf16.gmra.mrb[0].mxu0 %v532
    %v2601 = vpop.f32.mrb[0].mxu0
    %v2602 = vadd.f32 %v408, %v2601
    %v2603 = vpop.f32.mrb[0].mxu0
    %v2604 = vadd.f32 %v412, %v2603
    %v2605 = vpop.f32.mrb[0].mxu0
    %v2606 = vadd.f32 %v408, %v2605
    %v2607 = vpop.f32.mrb[0].mxu0
    %v2608 = vadd.f32 %v412, %v2607
    %2609 = vmatprep.mubr.bf16.mxu0 %v543
    %2610 = vmatmul.mubr.bf16.gmra.mrb[0].mxu0 %v542
    %v2611 = vpop.f32.mrb[0].mxu0
    %v2612 = vadd.f32 %v408, %v2611
    %v2613 = vpop.f32.mrb[0].mxu0
    %v2614 = vadd.f32 %v412, %v2613
    %v2615 = vpop.f32.mrb[0].mxu0
    %v2616 = vadd.f32 %v408, %v2615
    %v2617 = vpop.f32.mrb[0].mxu0
    %v2618 = vadd.f32 %v412, %v2617
    %2619 = vmatprep.mubr.bf16.mxu0 %v553
    %2620 = vmatmul.mubr.bf16.gmra.mrb[0].mxu0 %v552
    %v2621 = vpop.f32.mrb[0].mxu0
    %v2622 = vadd.f32 %v408, %v2621
    %v2623 = vpop.f32.mrb[0].mxu0
    %v2624 = vadd.f32 %v412, %v2623
    %v2625 = vpop.f32.mrb[0].mxu0
    %v2626 = vpop.f32.mrb[0].mxu0
    %2627 = vdwg.mxu0
    %2628 = vmatprep.subr.bf16.mxu0 %v1629
    %2629 = vmatpush1.bf16.msra.mxu0 %v1628
    %2630 = vmatprep.subr.bf16.mxu0 %v1633
    %2631 = vmatpush1.bf16.msra.mxu0 %v1632
    %2632 = vmatprep.subr.bf16.mxu0 %v1637
    %2633 = vmatpush1.bf16.msra.mxu0 %v1636
    %2634 = vmatprep.subr.bf16.mxu0 %v1641
    %2635 = vmatpush1.bf16.msra.mxu0 %v1640
    %2636 = vmatprep.subr.bf16.mxu0 %v1645
    %2637 = vmatpush1.bf16.msra.mxu0 %v1644
    %2638 = vmatprep.subr.bf16.mxu0 %v1649
    %2639 = vmatpush1.bf16.msra.mxu0 %v1648
    %2640 = vmatprep.subr.bf16.mxu0 %v1653
    %2641 = vmatpush1.bf16.msra.mxu0 %v1652
    %2642 = vmatprep.subr.bf16.mxu0 %v1657
    %2643 = vmatpush1.bf16.msra.mxu0 %v1656
    %2644 = vmatprep.subr.bf16.mxu0 %v1661
    %2645 = vmatpush1.bf16.msra.mxu0 %v1660
    %2646 = vmatprep.subr.bf16.mxu0 %v1665
    %2647 = vmatpush1.bf16.msra.mxu0 %v1664
    %2648 = vmatprep.subr.bf16.mxu0 %v1669
    %2649 = vmatpush1.bf16.msra.mxu0 %v1668
    %2650 = vmatprep.subr.bf16.mxu0 %v1673
    %2651 = vmatpush1.bf16.msra.mxu0 %v1672
    %2652 = vmatprep.subr.bf16.mxu0 %v1677
    %2653 = vmatpush1.bf16.msra.mxu0 %v1676
    %2654 = vmatprep.subr.bf16.mxu0 %v1681
    %2655 = vmatpush1.bf16.msra.mxu0 %v1680
    %2656 = vmatprep.subr.bf16.mxu0 %v1685
    %2657 = vmatpush1.bf16.msra.mxu0 %v1684
    %2658 = vmatprep.subr.bf16.mxu0 %v1689
    %2659 = vmatpush1.bf16.msra.mxu0 %v1688
    %2660 = vmatprep.mubr.bf16.mxu0 %v525
    %2661 = vmatmul.mubr.bf16.gmra.mrb[0].mxu0 %v524
    %v2662 = vpop.f32.mrb[0].mxu0
    %v2663 = vadd.f32 %v2592, %v2662
    %v2664 = vpop.f32.mrb[0].mxu0
    %v2665 = vadd.f32 %v2594, %v2664
    %v2666 = vpop.f32.mrb[0].mxu0
    %v2667 = vadd.f32 %v2596, %v2666
    %v2668 = vpop.f32.mrb[0].mxu0
    %v2669 = vadd.f32 %v2598, %v2668
    %2670 = vmatprep.mubr.bf16.mxu0 %v535
    %2671 = vmatmul.mubr.bf16.gmra.mrb[0].mxu0 %v534
    %v2672 = vpop.f32.mrb[0].mxu0
    %v2673 = vadd.f32 %v2602, %v2672
    %v2674 = vpop.f32.mrb[0].mxu0
    %v2675 = vadd.f32 %v2604, %v2674
    %v2676 = vpop.f32.mrb[0].mxu0
    %v2677 = vadd.f32 %v2606, %v2676
    %v2678 = vpop.f32.mrb[0].mxu0
    %v2679 = vadd.f32 %v2608, %v2678
    %2680 = vmatprep.mubr.bf16.mxu0 %v545
    %2681 = vmatmul.mubr.bf16.gmra.mrb[0].mxu0 %v544
    %v2682 = vpop.f32.mrb[0].mxu0
    %v2683 = vadd.f32 %v2612, %v2682
    %v2684 = vpop.f32.mrb[0].mxu0
    %v2685 = vadd.f32 %v2614, %v2684
    %v2686 = vpop.f32.mrb[0].mxu0
    %v2687 = vadd.f32 %v2616, %v2686
    %v2688 = vpop.f32.mrb[0].mxu0
    %v2689 = vadd.f32 %v2618, %v2688
    %2690 = vmatprep.mubr.bf16.mxu0 %v555
    %2691 = vmatmul.mubr.bf16.gmra.mrb[0].mxu0 %v554
    %v2692 = vpop.f32.mrb[0].mxu0
    %v2693 = vadd.f32 %v2622, %v2692
    %v2694 = vpop.f32.mrb[0].mxu0
    %v2695 = vadd.f32 %v2624, %v2694
    %v2696 = vpop.f32.mrb[0].mxu0
    %v2697 = vpop.f32.mrb[0].mxu0
    %2698 = vdwg.mxu0
    %2699 = vmatprep.subr.bf16.mxu0 %v1693
    %2700 = vmatpush1.bf16.msra.mxu0 %v1692
    %2701 = vmatprep.subr.bf16.mxu0 %v1697
    %2702 = vmatpush1.bf16.msra.mxu0 %v1696
    %2703 = vmatprep.subr.bf16.mxu0 %v1701
    %2704 = vmatpush1.bf16.msra.mxu0 %v1700
    %2705 = vmatprep.subr.bf16.mxu0 %v1705
    %2706 = vmatpush1.bf16.msra.mxu0 %v1704
    %2707 = vmatprep.subr.bf16.mxu0 %v1709
    %2708 = vmatpush1.bf16.msra.mxu0 %v1708
    %2709 = vmatprep.subr.bf16.mxu0 %v1713
    %2710 = vmatpush1.bf16.msra.mxu0 %v1712
    %2711 = vmatprep.subr.bf16.mxu0 %v1717
    %2712 = vmatpush1.bf16.msra.mxu0 %v1716
    %2713 = vmatprep.subr.bf16.mxu0 %v1721
    %2714 = vmatpush1.bf16.msra.mxu0 %v1720
    %2715 = vmatprep.subr.bf16.mxu0 %v1725
    %2716 = vmatpush1.bf16.msra.mxu0 %v1724
    %2717 = vmatprep.subr.bf16.mxu0 %v1729
    %2718 = vmatpush1.bf16.msra.mxu0 %v1728
    %2719 = vmatprep.subr.bf16.mxu0 %v1733
    %2720 = vmatpush1.bf16.msra.mxu0 %v1732
    %2721 = vmatprep.subr.bf16.mxu0 %v1737
    %2722 = vmatpush1.bf16.msra.mxu0 %v1736
    %2723 = vmatprep.subr.bf16.mxu0 %v1741
    %2724 = vmatpush1.bf16.msra.mxu0 %v1740
    %2725 = vmatprep.subr.bf16.mxu0 %v1745
    %2726 = vmatpush1.bf16.msra.mxu0 %v1744
    %2727 = vmatprep.subr.bf16.mxu0 %v1749
    %2728 = vmatpush1.bf16.msra.mxu0 %v1748
    %2729 = vmatprep.subr.bf16.mxu0 %v1753
    %2730 = vmatpush1.bf16.msra.mxu0 %v1752
    %2731 = vmatprep.mubr.bf16.mxu0 %v527
    %2732 = vmatmul.mubr.bf16.gmra.mrb[0].mxu0 %v526
    %v2733 = vpop.f32.mrb[0].mxu0
    %v2734 = vadd.f32 %v2663, %v2733
    %v2735 = vpop.f32.mrb[0].mxu0
    %v2736 = vadd.f32 %v2665, %v2735
    %v2737 = vpop.f32.mrb[0].mxu0
    %v2738 = vadd.f32 %v2667, %v2737
    %v2739 = vpop.f32.mrb[0].mxu0
    %v2740 = vadd.f32 %v2669, %v2739
    %2741 = vmatprep.mubr.bf16.mxu0 %v537
    %2742 = vmatmul.mubr.bf16.gmra.mrb[0].mxu0 %v536
    %v2743 = vpop.f32.mrb[0].mxu0
    %v2744 = vadd.f32 %v2673, %v2743
    %v2745 = vpop.f32.mrb[0].mxu0
    %v2746 = vadd.f32 %v2675, %v2745
    %v2747 = vpop.f32.mrb[0].mxu0
    %v2748 = vadd.f32 %v2677, %v2747
    %v2749 = vpop.f32.mrb[0].mxu0
    %v2750 = vadd.f32 %v2679, %v2749
    %2751 = vmatprep.mubr.bf16.mxu0 %v547
    %2752 = vmatmul.mubr.bf16.gmra.mrb[0].mxu0 %v546
    %v2753 = vpop.f32.mrb[0].mxu0
    %v2754 = vadd.f32 %v2683, %v2753
    %v2755 = vpop.f32.mrb[0].mxu0
    %v2756 = vadd.f32 %v2685, %v2755
    %v2757 = vpop.f32.mrb[0].mxu0
    %v2758 = vadd.f32 %v2687, %v2757
    %v2759 = vpop.f32.mrb[0].mxu0
    %v2760 = vadd.f32 %v2689, %v2759
    %2761 = vmatprep.mubr.bf16.mxu0 %v557
    %2762 = vmatmul.mubr.bf16.gmra.mrb[0].mxu0 %v556
    %v2763 = vpop.f32.mrb[0].mxu0
    %v2764 = vadd.f32 %v2693, %v2763
    %v2765 = vpop.f32.mrb[0].mxu0
    %v2766 = vadd.f32 %v2695, %v2765
    %v2767 = vpop.f32.mrb[0].mxu0
    %v2768 = vpop.f32.mrb[0].mxu0
    %2769 = vdwg.mxu0
    %2770 = vmatprep.subr.bf16.mxu0 %v1757
    %2771 = vmatpush1.bf16.msra.mxu0 %v1756
    %2772 = vmatprep.subr.bf16.mxu0 %v1761
    %2773 = vmatpush1.bf16.msra.mxu0 %v1760
    %2774 = vmatprep.subr.bf16.mxu0 %v1765
    %2775 = vmatpush1.bf16.msra.mxu0 %v1764
    %2776 = vmatprep.subr.bf16.mxu0 %v1769
    %2777 = vmatpush1.bf16.msra.mxu0 %v1768
    %2778 = vmatprep.subr.bf16.mxu0 %v1773
    %2779 = vmatpush1.bf16.msra.mxu0 %v1772
    %2780 = vmatprep.subr.bf16.mxu0 %v1777
    %2781 = vmatpush1.bf16.msra.mxu0 %v1776
    %2782 = vmatprep.subr.bf16.mxu0 %v1781
    %2783 = vmatpush1.bf16.msra.mxu0 %v1780
    %2784 = vmatprep.subr.bf16.mxu0 %v1785
    %2785 = vmatpush1.bf16.msra.mxu0 %v1784
    %2786 = vmatprep.subr.bf16.mxu0 %v1789
    %2787 = vmatpush1.bf16.msra.mxu0 %v1788
    %2788 = vmatprep.subr.bf16.mxu0 %v1793
    %2789 = vmatpush1.bf16.msra.mxu0 %v1792
    %2790 = vmatprep.subr.bf16.mxu0 %v1797
    %2791 = vmatpush1.bf16.msra.mxu0 %v1796
    %2792 = vmatprep.subr.bf16.mxu0 %v1801
    %2793 = vmatpush1.bf16.msra.mxu0 %v1800
    %2794 = vmatprep.subr.bf16.mxu0 %v1805
    %2795 = vmatpush1.bf16.msra.mxu0 %v1804
    %2796 = vmatprep.subr.bf16.mxu0 %v1809
    %2797 = vmatpush1.bf16.msra.mxu0 %v1808
    %2798 = vmatprep.subr.bf16.mxu0 %v1813
    %2799 = vmatpush1.bf16.msra.mxu0 %v1812
    %2800 = vmatprep.subr.bf16.mxu0 %v1817
    %2801 = vmatpush1.bf16.msra.mxu0 %v1816
    %2802 = vmatprep.mubr.bf16.mxu0 %v529
    %2803 = vmatmul.mubr.bf16.gmra.mrb[0].mxu0 %v528
    %v2804 = vpop.f32.mrb[0].mxu0
    %v2805 = vadd.f32 %v2734, %v2804
    %v2806 = vpop.f32.mrb[0].mxu0
    %v2807 = vadd.f32 %v2736, %v2806
    %v2808 = vpop.f32.mrb[0].mxu0
    %v2809 = vadd.f32 %v2738, %v2808
    %v2810 = vpop.f32.mrb[0].mxu0
    %v2811 = vadd.f32 %v2740, %v2810
    %2812 = vmatprep.mubr.bf16.mxu0 %v539
    %2813 = vmatmul.mubr.bf16.gmra.mrb[0].mxu0 %v538
    %v2814 = vpop.f32.mrb[0].mxu0
    %v2815 = vadd.f32 %v2744, %v2814
    %v2816 = vpop.f32.mrb[0].mxu0
    %v2817 = vadd.f32 %v2746, %v2816
    %v2818 = vpop.f32.mrb[0].mxu0
    %v2819 = vadd.f32 %v2748, %v2818
    %v2820 = vpop.f32.mrb[0].mxu0
    %v2821 = vadd.f32 %v2750, %v2820
    %2822 = vmatprep.mubr.bf16.mxu0 %v549
    %2823 = vmatmul.mubr.bf16.gmra.mrb[0].mxu0 %v548
    %v2824 = vpop.f32.mrb[0].mxu0
    %v2825 = vadd.f32 %v2754, %v2824
    %v2826 = vpop.f32.mrb[0].mxu0
    %v2827 = vadd.f32 %v2756, %v2826
    %v2828 = vpop.f32.mrb[0].mxu0
    %v2829 = vadd.f32 %v2758, %v2828
    %v2830 = vpop.f32.mrb[0].mxu0
    %v2831 = vadd.f32 %v2760, %v2830
    %2832 = vmatprep.mubr.bf16.mxu0 %v559
    %2833 = vmatmul.mubr.bf16.gmra.mrb[0].mxu0 %v558
    %v2834 = vpop.f32.mrb[0].mxu0
    %v2835 = vadd.f32 %v2764, %v2834
    %v2836 = vpop.f32.mrb[0].mxu0
    %v2837 = vadd.f32 %v2766, %v2836
    %v2838 = vpop.f32.mrb[0].mxu0
    %v2839 = vpop.f32.mrb[0].mxu0
    %2840 = vdwg.mxu0
    %2841 = vmatprep.subr.bf16.mxu0 %v1821
    %2842 = vmatpush1.bf16.msra.mxu0 %v1820
    %2843 = vmatprep.subr.bf16.mxu0 %v1825
    %2844 = vmatpush1.bf16.msra.mxu0 %v1824
    %2845 = vmatprep.subr.bf16.mxu0 %v1829
    %2846 = vmatpush1.bf16.msra.mxu0 %v1828
    %2847 = vmatprep.subr.bf16.mxu0 %v1833
    %2848 = vmatpush1.bf16.msra.mxu0 %v1832
    %2849 = vmatprep.subr.bf16.mxu0 %v1837
    %2850 = vmatpush1.bf16.msra.mxu0 %v1836
    %2851 = vmatprep.subr.bf16.mxu0 %v1841
    %2852 = vmatpush1.bf16.msra.mxu0 %v1840
    %2853 = vmatprep.subr.bf16.mxu0 %v1845
    %2854 = vmatpush1.bf16.msra.mxu0 %v1844
    %2855 = vmatprep.subr.bf16.mxu0 %v1849
    %2856 = vmatpush1.bf16.msra.mxu0 %v1848
    %2857 = vmatprep.subr.bf16.mxu0 %v1853
    %2858 = vmatpush1.bf16.msra.mxu0 %v1852
    %2859 = vmatprep.subr.bf16.mxu0 %v1857
    %2860 = vmatpush1.bf16.msra.mxu0 %v1856
    %2861 = vmatprep.subr.bf16.mxu0 %v1861
    %2862 = vmatpush1.bf16.msra.mxu0 %v1860
    %2863 = vmatprep.subr.bf16.mxu0 %v1865
    %2864 = vmatpush1.bf16.msra.mxu0 %v1864
    %2865 = vmatprep.subr.bf16.mxu0 %v1869
    %2866 = vmatpush1.bf16.msra.mxu0 %v1868
    %2867 = vmatprep.subr.bf16.mxu0 %v1873
    %2868 = vmatpush1.bf16.msra.mxu0 %v1872
    %2869 = vmatprep.subr.bf16.mxu0 %v1877
    %2870 = vmatpush1.bf16.msra.mxu0 %v1876
    %2871 = vmatprep.subr.bf16.mxu0 %v1881
    %2872 = vmatpush1.bf16.msra.mxu0 %v1880
    %2873 = vmatprep.mubr.bf16.mxu0 %v531
    %2874 = vmatmul.mubr.bf16.gmra.mrb[0].mxu0 %v530
    %v2875 = vpop.f32.mrb[0].mxu0
    %v2876 = vadd.f32 %v2805, %v2875
    %v2877 = vpop.f32.mrb[0].mxu0
    %v2878 = vadd.f32 %v2807, %v2877
    %v2879 = vpop.f32.mrb[0].mxu0
    %v2880 = vadd.f32 %v2809, %v2879
    %v2881 = vpop.f32.mrb[0].mxu0
    %v2882 = vadd.f32 %v2811, %v2881
    %2883 = vmatprep.mubr.bf16.mxu0 %v541
    %2884 = vmatmul.mubr.bf16.gmra.mrb[0].mxu0 %v540
    %v2885 = vpop.f32.mrb[0].mxu0
    %v2886 = vadd.f32 %v2815, %v2885
    %v2887 = vpop.f32.mrb[0].mxu0
    %v2888 = vadd.f32 %v2817, %v2887
    %v2889 = vpop.f32.mrb[0].mxu0
    %v2890 = vadd.f32 %v2819, %v2889
    %v2891 = vpop.f32.mrb[0].mxu0
    %v2892 = vadd.f32 %v2821, %v2891
    %2893 = vmatprep.mubr.bf16.mxu0 %v551
    %2894 = vmatmul.mubr.bf16.gmra.mrb[0].mxu0 %v550
    %v2895 = vpop.f32.mrb[0].mxu0
    %v2896 = vadd.f32 %v2825, %v2895
    %v2897 = vpop.f32.mrb[0].mxu0
    %v2898 = vadd.f32 %v2827, %v2897
    %v2899 = vpop.f32.mrb[0].mxu0
    %v2900 = vadd.f32 %v2829, %v2899
    %v2901 = vpop.f32.mrb[0].mxu0
    %v2902 = vadd.f32 %v2831, %v2901
    %2903 = vmatprep.mubr.bf16.mxu0 %v561
    %2904 = vmatmul.mubr.bf16.gmra.mrb[0].mxu0 %v560
    %v2905 = vpop.f32.mrb[0].mxu0
    %v2906 = vadd.f32 %v2835, %v2905
    %v2907 = vpop.f32.mrb[0].mxu0
    %v2908 = vadd.f32 %v2837, %v2907
    %v2909 = vpop.f32.mrb[0].mxu0
    %v2910 = vpop.f32.mrb[0].mxu0
    %2911 = vdwg.mxu0
    %v2912 = vmax.f32 %v2521, 0.0
    %v2913 = vmax.f32 %v2523, 0.0
    %v2914 = vmax.f32 %v2876, 0.0
    %v2915 = vmax.f32 %v2878, 0.0
    %v2916 = vmax.f32 %v2525, 0.0
    %v2917 = vmax.f32 %v2527, 0.0
    %v2918 = vmax.f32 %v2880, 0.0
    %v2919 = vmax.f32 %v2882, 0.0
    %v2920 = vmax.f32 %v2531, 0.0
    %v2921 = vmax.f32 %v2533, 0.0
    %v2922 = vmax.f32 %v2886, 0.0
    %v2923 = vmax.f32 %v2888, 0.0
    %v2924 = vmax.f32 %v2535, 0.0
    %v2925 = vmax.f32 %v2537, 0.0
    %v2926 = vmax.f32 %v2890, 0.0
    %v2927 = vmax.f32 %v2892, 0.0
    %v2928 = vmax.f32 %v2541, 0.0
    %v2929 = vmax.f32 %v2543, 0.0
    %v2930 = vmax.f32 %v2896, 0.0
    %v2931 = vmax.f32 %v2898, 0.0
    %v2932 = vmax.f32 %v2545, 0.0
    %v2933 = vmax.f32 %v2547, 0.0
    %v2934 = vmax.f32 %v2900, 0.0
    %v2935 = vmax.f32 %v2902, 0.0
    %v2936 = vmax.f32 %v2551, 0.0
    %v2937 = vmax.f32 %v2553, 0.0
    %v2938 = vmax.f32 %v2906, 0.0
    %v2939 = vmax.f32 %v2908, 0.0
    %v2940 = vpack.c.bf16 %v2916, %v2912
    %v2941 = vpack.c.bf16 %v2917, %v2913
    %v2942 = vpack.c.bf16 %v2918, %v2914
    %v2943 = vpack.c.bf16 %v2919, %v2915
    %v2944 = vpack.c.bf16 %v2924, %v2920
    %v2945 = vpack.c.bf16 %v2925, %v2921
    %v2946 = vpack.c.bf16 %v2926, %v2922
    %v2947 = vpack.c.bf16 %v2927, %v2923
    %v2948 = vpack.c.bf16 %v2932, %v2928
    %v2949 = vpack.c.bf16 %v2933, %v2929
    %v2950 = vpack.c.bf16 %v2934, %v2930
    %v2951 = vpack.c.bf16 %v2935, %v2931
    %v2952 = vpack.c.bf16 %v2936, %v2936
    %v2953 = vpack.c.bf16 %v2937, %v2937
    %v2954 = vpack.c.bf16 %v2938, %v2938
    %v2955 = vpack.c.bf16 %v2939, %v2939
    %v2972 = vunpack.c.l.b16 %v2940
    %v2973 = vunpack.c.l.b16 %v2941
    %v2974 = vunpack.c.l.b16 %v2942
    %v2975 = vunpack.c.l.b16 %v2943
    %v2976 = vunpack.c.h.b16 %v2940
    %v2977 = vunpack.c.h.b16 %v2941
    %v2978 = vunpack.c.h.b16 %v2942
    %v2979 = vunpack.c.h.b16 %v2943
    %v2980 = vunpack.c.l.b16 %v2944
    %v2981 = vunpack.c.l.b16 %v2945
    %v2982 = vunpack.c.l.b16 %v2946
    %v2983 = vunpack.c.l.b16 %v2947
    %v2984 = vunpack.c.h.b16 %v2944
    %v2985 = vunpack.c.h.b16 %v2945
    %v2986 = vunpack.c.h.b16 %v2946
    %v2987 = vunpack.c.h.b16 %v2947
    %v2988 = vunpack.c.l.b16 %v2948
    %v2989 = vunpack.c.l.b16 %v2949
    %v2990 = vunpack.c.l.b16 %v2950
    %v2991 = vunpack.c.l.b16 %v2951
    %v2992 = vunpack.c.h.b16 %v2948
    %v2993 = vunpack.c.h.b16 %v2949
    %v2994 = vunpack.c.h.b16 %v2950
    %v2995 = vunpack.c.h.b16 %v2951
    %v2996 = vunpack.c.l.b16 %v2952
    %v2997 = vunpack.c.l.b16 %v2953
    %v2998 = vunpack.c.l.b16 %v2954
    %v2999 = vunpack.c.l.b16 %v2955
    %v3000 = vpack.c.b16 %v2973, %v2972
    %v3001 = vpack.c.b16 %v2975, %v2974
    %v3002 = vpack.c.b16 %v2977, %v2976
    %v3003 = vpack.c.b16 %v2979, %v2978
    %v3004 = vpack.c.b16 %v2981, %v2980
    %v3005 = vpack.c.b16 %v2983, %v2982
    %v3006 = vpack.c.b16 %v2985, %v2984
    %v3007 = vpack.c.b16 %v2987, %v2986
    %v3008 = vpack.c.b16 %v2989, %v2988
    %v3009 = vpack.c.b16 %v2991, %v2990
    %v3010 = vpack.c.b16 %v2993, %v2992
    %v3011 = vpack.c.b16 %v2995, %v2994
    %v3012 = vpack.c.b16 %v2997, %v2996
    %v3013 = vpack.c.b16 %v2999, %v2998
    %3028 = vst [vmem:[%s3] sm:$0xff] %v3000
    %3029 = vst [vmem:[%s3 + $0x8] sm:$0xff] %v3001
    %3030 = vst [vmem:[%s3 + $0x10] sm:$0xff] %v3002
    %3031 = vst [vmem:[%s3 + $0x18] sm:$0xff] %v3003
    %3032 = vst [vmem:[%s3 + $0x20] sm:$0xff] %v3004
    %3033 = vst [vmem:[%s3 + $0x28] sm:$0xff] %v3005
    %3034 = vst [vmem:[%s3 + $0x30] sm:$0xff] %v3006
    %3035 = vst [vmem:[%s3 + $0x38] sm:$0xff] %v3007
    %3036 = vst [vmem:[%s3 + $0x40] sm:$0xff] %v3008
    %3037 = vst [vmem:[%s3 + $0x48] sm:$0xff] %v3009
    %3038 = vst [vmem:[%s3 + $0x50] sm:$0xff] %v3010
    %3039 = vst [vmem:[%s3 + $0x58] sm:$0xff] %v3011
    %3040 = vst [vmem:[%s3 + $0x60] sm:$0x77] %v3012
    %3041 = vst [vmem:[%s3 + $0x68] sm:$0x77] %v3013
    // Predicated region
    $region22: #{discriminator_forward.5} parent=1 // pred_check
      _
    $region23: #{discriminator_forward.5} parent=1 // pred_check_branch
      %3043 = sbr.rel (0) target = $region25
    $region24: #{discriminator_forward.5} parent=1 // pred_region
      _
    $region25: #{discriminator_forward.5} parent=1 // pred_fallthru
      _
    // Predicated region
    $region26: #{discriminator_forward.5} parent=1 // pred_check
      _
    $region27: #{discriminator_forward.5} parent=1 // pred_check_branch
      %3045 = sbr.rel (0) target = $region29
    $region28: #{discriminator_forward.5} parent=1 // pred_region
      _
    $region29: #{discriminator_forward.5} parent=1 // pred_fallthru
      _
    %3046 = vsyncpa [#allocation3], 1
    %3047 = vsyncpa [#allocation5], 1

// kernel: discriminator_forward.7
$region0: #{discriminator_forward.7}
  #allocation0 [shape = 'u32[]', space=smem, size = 0x4, offset = 0x4, fixed_abs, tag = 'smem constant byte address 0x4 - core index']
  #allocation1 [shape = 'u32[144,128]{1,0:T(1,128)}', space=vmem, size = 0x12000, scoped, tag = 'internal scratch']
  #allocation2 [shape = 'f32[2,512]{1,0:T(2,128)}', space=vmem, size = 0x1000, scoped, tag = 'scratch operand']
  #allocation3 [shape = 'f32[1,1]{1,0:T(1,128)S(1)}', space=vmem, size = 0x200, scoped, tag = 'scoped memory for discriminator_forward.7']
  %s0 = inlined_call_operand.vmem [shape: bf16[2,12288], index: 0, kind: input, shape index: {}]
  %s1 = inlined_call_operand.hbm [shape: bf16[12288,512], index: 1, kind: input, shape index: {}]
  %s2 = inlined_call_operand.vmem [shape: f32[1,512], index: 2, kind: input, shape index: {}]
  %s3 = inlined_call_operand.vmem [shape: f32[1,512], index: 3, kind: input, shape index: {}]
  %s4 = inlined_call_operand.<no memory space> [shape: f32[1,1], index: 4, kind: input, shape index: {}]
  %s5 = inlined_call_operand.vmem [shape: f32[2,1], index: 5, kind: output, shape index: {}]
  %s6 = sld [smem:[#allocation0]]
  $region65: #{discriminator_forward.7} parent=0
    _
  %s8 = ssub.s32 1, %s6
  %s9 = scalar_select 0, %s8, %s6
  %v10 = vstv %s4
  %11 = vst [vmem:[#allocation3] sm:$0x1] %v10
  $region1: #{discriminator_forward.7} parent=0
    #allocation4 [shape = 'u8[4194304]{0}', space=vmem, size = 0x400000, scoped, tag = 'input window, operand 1']
    #allocation5 [shape = 's32[2]{0}', space=sflag, size = 0x8, scoped, tag = 'scoped memory for discriminator_forward.7']
    %12 = vsyncpa [#allocation5], 0
    %s13 = scalar_lea.sflag [#allocation5], 1
    %14 = vsyncpa %s13, 0
    loop: start=0, step=1, limit=8
    $region2: #{discriminator_forward.7} parent=1 // loop_pre_header
      _
    $region3: #{discriminator_forward.7} parent=1 // loop_header
      %s16 = sphi 0, %s20
      %p17 = scmp.ge.s32.totalorder %s16, 8
      %s26 = sphi 0, %s28
      %s29 = sphi 0, %s26
      %s30 = sphi 0, %s29
      %s46 = sphi 0, %s30
      %s52 = sphi 0, %s54
      %s55 = sphi 0, %s52
      %s56 = sphi 0, %s55
      %s72 = sphi 0, %s56
      %s76 = sphi 0, %s76
      %s78 = sphi 0, %s76
      %s79 = sphi 0, %s78
      %s93 = sphi 0, %s79
      %s97 = sphi 0, %s97
      %s99 = sphi 0, %s97
      %s100 = sphi 0, %s99
      %s114 = sphi 0, %s100
      %s118 = sphi 0, %s118
      %s120 = sphi 0, %s118
      %s121 = sphi 0, %s120
      %s135 = sphi 0, %s121
      %s139 = sphi 0, %s139
      %s141 = sphi 0, %s139
      %s142 = sphi 0, %s141
      %s156 = sphi 0, %s142
    $region4: #{discriminator_forward.7} parent=1 // loop_header_branch
      %19 = sbr.rel (%p17) target = $region8
    $region5: #{discriminator_forward.7} parent=1 // loop_body
      %s21 = ssub.s32 %s16, 1
      %s22 = ssub.s32 %s16, 2
      %s23 = sadd.s32 %s16, 1
      %s24 = ssub.s32 %s16, %s23
      %p25 = scmp.eq.s32.totalorder %s24, 0
      %s27 = sadd.s32 %s26, 1
      %s28 = scalar_select %p25, %s26, %s27
      %p31 = pneg %p25
      %p32 = scmp.eq.s32.totalorder %s16, 5
      %p33 = por %p31, %p32
      %p34 = scmp.ne.s32.totalorder %s26, %s29
      %p35 = scmp.eq.s32.totalorder %s16, 0
      %p36 = por %p34, %p35
      %p37 = scmp.ne.s32.totalorder %s26, %s29
      %p38 = scmp.eq.s32.totalorder %s21, 5
      %p39 = por %p37, %p38
      %p40 = scmp.ne.s32.totalorder %s29, %s30
      %p41 = scmp.eq.s32.totalorder %s21, 0
      %p42 = por %p40, %p41
      %p43 = scmp.ne.s32.totalorder %s29, %s30
      %p44 = scmp.eq.s32.totalorder %s22, 5
      %p45 = por %p43, %p44
      %p47 = scmp.ne.s32.totalorder %s30, %s46
      %p48 = scmp.eq.s32.totalorder %s22, 0
      %p49 = por %p47, %p48
      %s50 = ssub.s32 %s16, %s23
      %p51 = scmp.eq.s32.totalorder %s50, 0
      %s53 = sadd.s32 %s52, 1
      %s54 = scalar_select %p51, %s52, %s53
      %p57 = pneg %p51
      %p58 = scmp.eq.s32.totalorder %s16, 5
      %p59 = por %p57, %p58
      %p60 = scmp.ne.s32.totalorder %s52, %s55
      %p61 = scmp.eq.s32.totalorder %s16, 0
      %p62 = por %p60, %p61
      %p63 = scmp.ne.s32.totalorder %s52, %s55
      %p64 = scmp.eq.s32.totalorder %s21, 5
      %p65 = por %p63, %p64
      %p66 = scmp.ne.s32.totalorder %s55, %s56
      %p67 = scmp.eq.s32.totalorder %s21, 0
      %p68 = por %p66, %p67
      %p69 = scmp.ne.s32.totalorder %s55, %s56
      %p70 = scmp.eq.s32.totalorder %s22, 5
      %p71 = por %p69, %p70
      %p73 = scmp.ne.s32.totalorder %s56, %s72
      %p74 = scmp.eq.s32.totalorder %s22, 0
      %p75 = por %p73, %p74
      %s77 = sadd.s32 %s76, 1
      %p80 = scmp.eq.s32.totalorder %s16, 5
      %p81 = scmp.ne.s32.totalorder %s76, %s78
      %p82 = scmp.eq.s32.totalorder %s16, 0
      %p83 = por %p81, %p82
      %p84 = scmp.ne.s32.totalorder %s76, %s78
      %p85 = scmp.eq.s32.totalorder %s21, 5
      %p86 = por %p84, %p85
      %p87 = scmp.ne.s32.totalorder %s78, %s79
      %p88 = scmp.eq.s32.totalorder %s21, 0
      %p89 = por %p87, %p88
      %p90 = scmp.ne.s32.totalorder %s78, %s79
      %p91 = scmp.eq.s32.totalorder %s22, 5
      %p92 = por %p90, %p91
      %p94 = scmp.ne.s32.totalorder %s79, %s93
      %p95 = scmp.eq.s32.totalorder %s22, 0
      %p96 = por %p94, %p95
      %s98 = sadd.s32 %s97, 1
      %p101 = scmp.eq.s32.totalorder %s16, 5
      %p102 = scmp.ne.s32.totalorder %s97, %s99
      %p103 = scmp.eq.s32.totalorder %s16, 0
      %p104 = por %p102, %p103
      %p105 = scmp.ne.s32.totalorder %s97, %s99
      %p106 = scmp.eq.s32.totalorder %s21, 5
      %p107 = por %p105, %p106
      %p108 = scmp.ne.s32.totalorder %s99, %s100
      %p109 = scmp.eq.s32.totalorder %s21, 0
      %p110 = por %p108, %p109
      %p111 = scmp.ne.s32.totalorder %s99, %s100
      %p112 = scmp.eq.s32.totalorder %s22, 5
      %p113 = por %p111, %p112
      %p115 = scmp.ne.s32.totalorder %s100, %s114
      %p116 = scmp.eq.s32.totalorder %s22, 0
      %p117 = por %p115, %p116
      %s119 = sadd.s32 %s118, 1
      %p122 = scmp.eq.s32.totalorder %s16, 5
      %p123 = scmp.ne.s32.totalorder %s118, %s120
      %p124 = scmp.eq.s32.totalorder %s16, 0
      %p125 = por %p123, %p124
      %p126 = scmp.ne.s32.totalorder %s118, %s120
      %p127 = scmp.eq.s32.totalorder %s21, 5
      %p128 = por %p126, %p127
      %p129 = scmp.ne.s32.totalorder %s120, %s121
      %p130 = scmp.eq.s32.totalorder %s21, 0
      %p131 = por %p129, %p130
      %p132 = scmp.ne.s32.totalorder %s120, %s121
      %p133 = scmp.eq.s32.totalorder %s22, 5
      %p134 = por %p132, %p133
      %p136 = scmp.ne.s32.totalorder %s121, %s135
      %p137 = scmp.eq.s32.totalorder %s22, 0
      %p138 = por %p136, %p137
      %s140 = sadd.s32 %s139, 1
      %p143 = scmp.eq.s32.totalorder %s16, 5
      %p144 = scmp.ne.s32.totalorder %s139, %s141
      %p145 = scmp.eq.s32.totalorder %s16, 0
      %p146 = por %p144, %p145
      %p147 = scmp.ne.s32.totalorder %s139, %s141
      %p148 = scmp.eq.s32.totalorder %s21, 5
      %p149 = por %p147, %p148
      %p150 = scmp.ne.s32.totalorder %s141, %s142
      %p151 = scmp.eq.s32.totalorder %s21, 0
      %p152 = por %p150, %p151
      %p153 = scmp.ne.s32.totalorder %s141, %s142
      %p154 = scmp.eq.s32.totalorder %s22, 5
      %p155 = por %p153, %p154
      %p157 = scmp.ne.s32.totalorder %s142, %s156
      %p158 = scmp.eq.s32.totalorder %s22, 0
      %p159 = por %p157, %p158
      %p160 = scmp.le.s32.totalorder 1, %s16
      %p161 = scmp.lt.s32.totalorder %s16, 7
      %p162 = pnand %p160, %p161
      %p163 = pneg %p162
      // Predicated region
      $region9: #{discriminator_forward.7} parent=5 // pred_check
        _
      $region10: #{discriminator_forward.7} parent=5 // pred_check_branch
        %165 = sbr.rel (%p162) target = $region12
      $region11: #{discriminator_forward.7} parent=5 // pred_region
        %s166 = ssub.s32 %s16, 1
        // Predicated region
        $region13: #{discriminator_forward.7} parent=11 // pred_check
          %p167 = pneg %p89
        $region14: #{discriminator_forward.7} parent=11 // pred_check_branch
          %169 = sbr.rel (%p167) target = $region16
        $region15: #{discriminator_forward.7} parent=11 // pred_region
          _
        $region16: #{discriminator_forward.7} parent=11 // pred_fallthru
          _
        // Predicated region
        $region17: #{discriminator_forward.7} parent=11 // pred_check
          %p170 = pneg %p110
        $region18: #{discriminator_forward.7} parent=11 // pred_check_branch
          %172 = sbr.rel (%p170) target = $region20
        $region19: #{discriminator_forward.7} parent=11 // pred_region
          _
        $region20: #{discriminator_forward.7} parent=11 // pred_fallthru
          _
        // Predicated region
        $region21: #{discriminator_forward.7} parent=11 // pred_check
          %p173 = pneg %p131
        $region22: #{discriminator_forward.7} parent=11 // pred_check_branch
          %175 = sbr.rel (%p173) target = $region24
        $region23: #{discriminator_forward.7} parent=11 // pred_region
          _
        $region24: #{discriminator_forward.7} parent=11 // pred_fallthru
          _
      $region12: #{discriminator_forward.7} parent=5 // pred_fallthru
        _
      %p176 = scmp.lt.s32.totalorder %s16, 6
      // Predicated region
      $region25: #{discriminator_forward.7} parent=5 // pred_check
        %p177 = pneg %p176
      $region26: #{discriminator_forward.7} parent=5 // pred_check_branch
        %179 = sbr.rel (%p177) target = $region28
      $region27: #{discriminator_forward.7} parent=5 // pred_region
        // Predicated region
        $region29: #{discriminator_forward.7} parent=27 // pred_check
          %p180 = pneg %p36
        $region30: #{discriminator_forward.7} parent=27 // pred_check_branch
          %182 = sbr.rel (%p180) target = $region32
        $region31: #{discriminator_forward.7} parent=27 // pred_region
          %s183 = smul.u32 16, %s16
          %p184 = scmp.lt.s32.totalorder %s183, 95
          %s185 = scalar_select %p184, %s183, 95
          %s186 = scalar_lea.vmem %s0, %s185
          %s187 = smul.u32 16, %s16
        $region32: #{discriminator_forward.7} parent=27 // pred_fallthru
          _
        // Predicated region
        $region33: #{discriminator_forward.7} parent=27 // pred_check
          %p188 = pneg %p62
        $region34: #{discriminator_forward.7} parent=27 // pred_check_branch
          %190 = sbr.rel (%p188) target = $region36
        $region35: #{discriminator_forward.7} parent=27 // pred_region
          %s191 = sand.u32 %s52, 1
          %s192 = scalar_lea.sflag [#allocation5], %s191
          %s193 = sand.u32 %s52, 1
          %s194 = smul.addr %s193, 4096
          %s195 = scalar_lea.vmem [#allocation4], %s194
          %s196 = smul.u32 256, %s16
          %s198 = ssub.s32 65536, 65536
          %199 = vsyncadd %s192, %s198
          %s200 = smul.addr %s196, 4
          %s201 = smul.addr %s200, 64
          %s202 = scalar_lea.hbm %s1, %s201
          %s203 = sshll.u32 %s195, 4
          %s204 = int_to_ptr.vmem [resolvable:$true] %s203
          %209 = dma.hbm_to_vmem [thread:$0]  %s202, 65536, %s204, %s192, 256, 256, 16
        $region36: #{discriminator_forward.7} parent=27 // pred_fallthru
          _
      $region28: #{discriminator_forward.7} parent=5 // pred_fallthru
        _
      %p210 = scmp.le.s32.totalorder 1, %s16
      %p211 = scmp.lt.s32.totalorder %s16, 7
      %p212 = pnand %p210, %p211
      %p213 = pneg %p212
      // Predicated region
      $region37: #{discriminator_forward.7} parent=5 // pred_check
        _
      $region38: #{discriminator_forward.7} parent=5 // pred_check_branch
        %215 = sbr.rel (%p212) target = $region40
      $region39: #{discriminator_forward.7} parent=5 // pred_region
        %s216 = ssub.s32 %s16, 1
        %s217 = sand.u32 %s55, 1
        %s218 = scalar_lea.sflag [#allocation5], %s217
        %s219 = sand.u32 %s55, 1
        %s220 = smul.addr %s219, 4096
        %s221 = scalar_lea.vmem [#allocation4], %s220
        // Predicated region
        $region41: #{discriminator_forward.7} parent=39 // pred_check
          %p222 = pneg %p68
        $region42: #{discriminator_forward.7} parent=39 // pred_check_branch
          %224 = sbr.rel (%p222) target = $region44
        $region43: #{discriminator_forward.7} parent=39 // pred_region
          %225 = dma.done %s218, 65536
        $region44: #{discriminator_forward.7} parent=39 // pred_fallthru
          _
        %s226 = smul.u32 16, %s21
        %p227 = scmp.lt.s32.totalorder %s226, 95
        %s228 = scalar_select %p227, %s226, 95
        %s229 = scalar_lea.vmem %s0, %s228
        %p230 = pneg %p42
        %p231 = pneg %p39
        %s232 = sand.u32 %s55, 1
        %s233 = scalar_lea.sflag [#allocation5], %s232
        %s234 = sand.u32 %s55, 1
        %s235 = smul.addr %s234, 4096
        %s236 = scalar_lea.vmem [#allocation4], %s235
        %p237 = pneg %p68
        %p238 = pneg %p65
        %p239 = pneg %p89
        %p240 = pneg %p86
        %p241 = pneg %p110
        %p242 = pneg %p107
        %p243 = pneg %p131
        %p244 = pneg %p128
        %p245 = pneg %p152
        %p246 = pneg %p149
        %s247 = smul.u32 16, %s21
        %p248 = scmp.lt.s32.totalorder %s247, 95
        %s249 = scalar_select %p248, %s247, 95
        %s250 = scalar_lea.vmem %s0, %s249
        %s251 = smul.u32 16, %s21
        %s252 = smul.u32 256, %s21
        %p253 = scmp.eq.s32.totalorder %s21, 0
        // Predicated region
        $region45: #{discriminator_forward.7} parent=39 // pred_check
          %p254 = pneg %p253
        $region46: #{discriminator_forward.7} parent=39 // pred_check_branch
          %256 = sbr.rel (%p254) target = $region48
        $region47: #{discriminator_forward.7} parent=39 // pred_region
          %257 = vst [vmem:[#allocation2] sm:$0xff] 0.0
        $region48: #{discriminator_forward.7} parent=39 // pred_fallthru
          _
        %v258 = vld [vmem:[#allocation2] sm:$0xff]
        %v259 = vld [vmem:[%s250] sm:$0xff]
        %v260 = vld [vmem:[%s250 + $0x8] sm:$0xff]
        %v261 = vld [vmem:[%s221] sm:$0xff]
        %v262 = vld [vmem:[%s221 + $0x8] sm:$0xff]
        %v263 = vld [vmem:[%s221 + $0x10] sm:$0xff]
        %v264 = vld [vmem:[%s221 + $0x18] sm:$0xff]
        %v265 = vld [vmem:[%s221 + $0x20] sm:$0xff]
        %v266 = vld [vmem:[%s221 + $0x28] sm:$0xff]
        %v267 = vld [vmem:[%s221 + $0x30] sm:$0xff]
        %v268 = vld [vmem:[%s221 + $0x38] sm:$0xff]
        %v269 = vld [vmem:[%s221 + $0x40] sm:$0xff]
        %v270 = vld [vmem:[%s221 + $0x48] sm:$0xff]
        %v271 = vld [vmem:[%s221 + $0x50] sm:$0xff]
        %v272 = vld [vmem:[%s221 + $0x58] sm:$0xff]
        %v273 = vld [vmem:[%s221 + $0x60] sm:$0xff]
        %v274 = vld [vmem:[%s221 + $0x68] sm:$0xff]
        %v275 = vld [vmem:[%s221 + $0x70] sm:$0xff]
        %v276 = vld [vmem:[%s221 + $0x78] sm:$0xff]
        %v277 = vld [vmem:[%s221 + $0x80] sm:$0xff]
        %v278 = vld [vmem:[%s221 + $0x88] sm:$0xff]
        %v279 = vld [vmem:[%s221 + $0x90] sm:$0xff]
        %v280 = vld [vmem:[%s221 + $0x98] sm:$0xff]
        %v281 = vld [vmem:[%s221 + $0xa0] sm:$0xff]
        %v282 = vld [vmem:[%s221 + $0xa8] sm:$0xff]
        %v283 = vld [vmem:[%s221 + $0xb0] sm:$0xff]
        %v284 = vld [vmem:[%s221 + $0xb8] sm:$0xff]
        %v285 = vld [vmem:[%s221 + $0xc0] sm:$0xff]
        %v286 = vld [vmem:[%s221 + $0xc8] sm:$0xff]
        %v287 = vld [vmem:[%s221 + $0xd0] sm:$0xff]
        %v288 = vld [vmem:[%s221 + $0xd8] sm:$0xff]
        %v289 = vld [vmem:[%s221 + $0xe0] sm:$0xff]
        %v290 = vld [vmem:[%s221 + $0xe8] sm:$0xff]
        %v291 = vld [vmem:[%s221 + $0xf0] sm:$0xff]
        %v292 = vld [vmem:[%s221 + $0xf8] sm:$0xff]
        %v293 = vld [vmem:[%s221 + $0x100] sm:$0xff]
        %v294 = vld [vmem:[%s221 + $0x108] sm:$0xff]
        %v295 = vld [vmem:[%s221 + $0x110] sm:$0xff]
        %v296 = vld [vmem:[%s221 + $0x118] sm:$0xff]
        %v297 = vld [vmem:[%s221 + $0x120] sm:$0xff]
        %v298 = vld [vmem:[%s221 + $0x128] sm:$0xff]
        %v299 = vld [vmem:[%s221 + $0x130] sm:$0xff]
        %v300 = vld [vmem:[%s221 + $0x138] sm:$0xff]
        %v301 = vld [vmem:[%s221 + $0x140] sm:$0xff]
        %v302 = vld [vmem:[%s221 + $0x148] sm:$0xff]
        %v303 = vld [vmem:[%s221 + $0x150] sm:$0xff]
        %v304 = vld [vmem:[%s221 + $0x158] sm:$0xff]
        %v305 = vld [vmem:[%s221 + $0x160] sm:$0xff]
        %v306 = vld [vmem:[%s221 + $0x168] sm:$0xff]
        %v307 = vld [vmem:[%s221 + $0x170] sm:$0xff]
        %v308 = vld [vmem:[%s221 + $0x178] sm:$0xff]
        %v309 = vld [vmem:[%s221 + $0x180] sm:$0xff]
        %v310 = vld [vmem:[%s221 + $0x188] sm:$0xff]
        %v311 = vld [vmem:[%s221 + $0x190] sm:$0xff]
        %v312 = vld [vmem:[%s221 + $0x198] sm:$0xff]
        %v313 = vld [vmem:[%s221 + $0x1a0] sm:$0xff]
        %v314 = vld [vmem:[%s221 + $0x1a8] sm:$0xff]
        %v315 = vld [vmem:[%s221 + $0x1b0] sm:$0xff]
        %v316 = vld [vmem:[%s221 + $0x1b8] sm:$0xff]
        %v317 = vld [vmem:[%s221 + $0x1c0] sm:$0xff]
        %v318 = vld [vmem:[%s221 + $0x1c8] sm:$0xff]
        %v319 = vld [vmem:[%s221 + $0x1d0] sm:$0xff]
        %v320 = vld [vmem:[%s221 + $0x1d8] sm:$0xff]
        %v321 = vld [vmem:[%s221 + $0x1e0] sm:$0xff]
        %v322 = vld [vmem:[%s221 + $0x1e8] sm:$0xff]
        %v323 = vld [vmem:[%s221 + $0x1f0] sm:$0xff]
        %v324 = vld [vmem:[%s221 + $0x1f8] sm:$0xff]
        %v325 = vld [vmem:[%s221 + $0x200] sm:$0xff]
        %v326 = vld [vmem:[%s221 + $0x208] sm:$0xff]
        %v327 = vld [vmem:[%s221 + $0x210] sm:$0xff]
        %v328 = vld [vmem:[%s221 + $0x218] sm:$0xff]
        %v329 = vld [vmem:[%s221 + $0x220] sm:$0xff]
        %v330 = vld [vmem:[%s221 + $0x228] sm:$0xff]
        %v331 = vld [vmem:[%s221 + $0x230] sm:$0xff]
        %v332 = vld [vmem:[%s221 + $0x238] sm:$0xff]
        %v333 = vld [vmem:[%s221 + $0x240] sm:$0xff]
        %v334 = vld [vmem:[%s221 + $0x248] sm:$0xff]
        %v335 = vld [vmem:[%s221 + $0x250] sm:$0xff]
        %v336 = vld [vmem:[%s221 + $0x258] sm:$0xff]
        %v337 = vld [vmem:[%s221 + $0x260] sm:$0xff]
        %v338 = vld [vmem:[%s221 + $0x268] sm:$0xff]
        %v339 = vld [vmem:[%s221 + $0x270] sm:$0xff]
        %v340 = vld [vmem:[%s221 + $0x278] sm:$0xff]
        %v341 = vld [vmem:[%s221 + $0x280] sm:$0xff]
        %v342 = vld [vmem:[%s221 + $0x288] sm:$0xff]
        %v343 = vld [vmem:[%s221 + $0x290] sm:$0xff]
        %v344 = vld [vmem:[%s221 + $0x298] sm:$0xff]
        %v345 = vld [vmem:[%s221 + $0x2a0] sm:$0xff]
        %v346 = vld [vmem:[%s221 + $0x2a8] sm:$0xff]
        %v347 = vld [vmem:[%s221 + $0x2b0] sm:$0xff]
        %v348 = vld [vmem:[%s221 + $0x2b8] sm:$0xff]
        %v349 = vld [vmem:[%s221 + $0x2c0] sm:$0xff]
        %v350 = vld [vmem:[%s221 + $0x2c8] sm:$0xff]
        %v351 = vld [vmem:[%s221 + $0x2d0] sm:$0xff]
        %v352 = vld [vmem:[%s221 + $0x2d8] sm:$0xff]
        %v353 = vld [vmem:[%s221 + $0x2e0] sm:$0xff]
        %v354 = vld [vmem:[%s221 + $0x2e8] sm:$0xff]
        %v355 = vld [vmem:[%s221 + $0x2f0] sm:$0xff]
        %v356 = vld [vmem:[%s221 + $0x2f8] sm:$0xff]
        %v357 = vld [vmem:[%s221 + $0x300] sm:$0xff]
        %v358 = vld [vmem:[%s221 + $0x308] sm:$0xff]
        %v359 = vld [vmem:[%s221 + $0x310] sm:$0xff]
        %v360 = vld [vmem:[%s221 + $0x318] sm:$0xff]
        %v361 = vld [vmem:[%s221 + $0x320] sm:$0xff]
        %v362 = vld [vmem:[%s221 + $0x328] sm:$0xff]
        %v363 = vld [vmem:[%s221 + $0x330] sm:$0xff]
        %v364 = vld [vmem:[%s221 + $0x338] sm:$0xff]
        %v365 = vld [vmem:[%s221 + $0x340] sm:$0xff]
        %v366 = vld [vmem:[%s221 + $0x348] sm:$0xff]
        %v367 = vld [vmem:[%s221 + $0x350] sm:$0xff]
        %v368 = vld [vmem:[%s221 + $0x358] sm:$0xff]
        %v369 = vld [vmem:[%s221 + $0x360] sm:$0xff]
        %v370 = vld [vmem:[%s221 + $0x368] sm:$0xff]
        %v371 = vld [vmem:[%s221 + $0x370] sm:$0xff]
        %v372 = vld [vmem:[%s221 + $0x378] sm:$0xff]
        %v373 = vld [vmem:[%s221 + $0x380] sm:$0xff]
        %v374 = vld [vmem:[%s221 + $0x388] sm:$0xff]
        %v375 = vld [vmem:[%s221 + $0x390] sm:$0xff]
        %v376 = vld [vmem:[%s221 + $0x398] sm:$0xff]
        %v377 = vld [vmem:[%s221 + $0x3a0] sm:$0xff]
        %v378 = vld [vmem:[%s221 + $0x3a8] sm:$0xff]
        %v379 = vld [vmem:[%s221 + $0x3b0] sm:$0xff]
        %v380 = vld [vmem:[%s221 + $0x3b8] sm:$0xff]
        %v381 = vld [vmem:[%s221 + $0x3c0] sm:$0xff]
        %v382 = vld [vmem:[%s221 + $0x3c8] sm:$0xff]
        %v383 = vld [vmem:[%s221 + $0x3d0] sm:$0xff]
        %v384 = vld [vmem:[%s221 + $0x3d8] sm:$0xff]
        %v385 = vld [vmem:[%s221 + $0x3e0] sm:$0xff]
        %v386 = vld [vmem:[%s221 + $0x3e8] sm:$0xff]
        %v387 = vld [vmem:[%s221 + $0x3f0] sm:$0xff]
        %v388 = vld [vmem:[%s221 + $0x3f8] sm:$0xff]
        %v389 = vld [vmem:[%s221 + $0x400] sm:$0xff]
        %v390 = vld [vmem:[%s221 + $0x408] sm:$0xff]
        %v391 = vld [vmem:[%s221 + $0x410] sm:$0xff]
        %v392 = vld [vmem:[%s221 + $0x418] sm:$0xff]
        %v393 = vld [vmem:[%s221 + $0x420] sm:$0xff]
        %v394 = vld [vmem:[%s221 + $0x428] sm:$0xff]
        %v395 = vld [vmem:[%s221 + $0x430] sm:$0xff]
        %v396 = vld [vmem:[%s221 + $0x438] sm:$0xff]
        %v397 = vld [vmem:[%s221 + $0x440] sm:$0xff]
        %v398 = vld [vmem:[%s221 + $0x448] sm:$0xff]
        %v399 = vld [vmem:[%s221 + $0x450] sm:$0xff]
        %v400 = vld [vmem:[%s221 + $0x458] sm:$0xff]
        %v401 = vld [vmem:[%s221 + $0x460] sm:$0xff]
        %v402 = vld [vmem:[%s221 + $0x468] sm:$0xff]
        %v403 = vld [vmem:[%s221 + $0x470] sm:$0xff]
        %v404 = vld [vmem:[%s221 + $0x478] sm:$0xff]
        %v405 = vld [vmem:[%s221 + $0x480] sm:$0xff]
        %v406 = vld [vmem:[%s221 + $0x488] sm:$0xff]
        %v407 = vld [vmem:[%s221 + $0x490] sm:$0xff]
        %v408 = vld [vmem:[%s221 + $0x498] sm:$0xff]
        %v409 = vld [vmem:[%s221 + $0x4a0] sm:$0xff]
        %v410 = vld [vmem:[%s221 + $0x4a8] sm:$0xff]
        %v411 = vld [vmem:[%s221 + $0x4b0] sm:$0xff]
        %v412 = vld [vmem:[%s221 + $0x4b8] sm:$0xff]
        %v413 = vld [vmem:[%s221 + $0x4c0] sm:$0xff]
        %v414 = vld [vmem:[%s221 + $0x4c8] sm:$0xff]
        %v415 = vld [vmem:[%s221 + $0x4d0] sm:$0xff]
        %v416 = vld [vmem:[%s221 + $0x4d8] sm:$0xff]
        %v417 = vld [vmem:[%s221 + $0x4e0] sm:$0xff]
        %v418 = vld [vmem:[%s221 + $0x4e8] sm:$0xff]
        %v419 = vld [vmem:[%s221 + $0x4f0] sm:$0xff]
        %v420 = vld [vmem:[%s221 + $0x4f8] sm:$0xff]
        %v421 = vld [vmem:[%s221 + $0x500] sm:$0xff]
        %v422 = vld [vmem:[%s221 + $0x508] sm:$0xff]
        %v423 = vld [vmem:[%s221 + $0x510] sm:$0xff]
        %v424 = vld [vmem:[%s221 + $0x518] sm:$0xff]
        %v425 = vld [vmem:[%s221 + $0x520] sm:$0xff]
        %v426 = vld [vmem:[%s221 + $0x528] sm:$0xff]
        %v427 = vld [vmem:[%s221 + $0x530] sm:$0xff]
        %v428 = vld [vmem:[%s221 + $0x538] sm:$0xff]
        %v429 = vld [vmem:[%s221 + $0x540] sm:$0xff]
        %v430 = vld [vmem:[%s221 + $0x548] sm:$0xff]
        %v431 = vld [vmem:[%s221 + $0x550] sm:$0xff]
        %v432 = vld [vmem:[%s221 + $0x558] sm:$0xff]
        %v433 = vld [vmem:[%s221 + $0x560] sm:$0xff]
        %v434 = vld [vmem:[%s221 + $0x568] sm:$0xff]
        %v435 = vld [vmem:[%s221 + $0x570] sm:$0xff]
        %v436 = vld [vmem:[%s221 + $0x578] sm:$0xff]
        %v437 = vld [vmem:[%s221 + $0x580] sm:$0xff]
        %v438 = vld [vmem:[%s221 + $0x588] sm:$0xff]
        %v439 = vld [vmem:[%s221 + $0x590] sm:$0xff]
        %v440 = vld [vmem:[%s221 + $0x598] sm:$0xff]
        %v441 = vld [vmem:[%s221 + $0x5a0] sm:$0xff]
        %v442 = vld [vmem:[%s221 + $0x5a8] sm:$0xff]
        %v443 = vld [vmem:[%s221 + $0x5b0] sm:$0xff]
        %v444 = vld [vmem:[%s221 + $0x5b8] sm:$0xff]
        %v445 = vld [vmem:[%s221 + $0x5c0] sm:$0xff]
        %v446 = vld [vmem:[%s221 + $0x5c8] sm:$0xff]
        %v447 = vld [vmem:[%s221 + $0x5d0] sm:$0xff]
        %v448 = vld [vmem:[%s221 + $0x5d8] sm:$0xff]
        %v449 = vld [vmem:[%s221 + $0x5e0] sm:$0xff]
        %v450 = vld [vmem:[%s221 + $0x5e8] sm:$0xff]
        %v451 = vld [vmem:[%s221 + $0x5f0] sm:$0xff]
        %v452 = vld [vmem:[%s221 + $0x5f8] sm:$0xff]
        %v453 = vld [vmem:[%s221 + $0x600] sm:$0xff]
        %v454 = vld [vmem:[%s221 + $0x608] sm:$0xff]
        %v455 = vld [vmem:[%s221 + $0x610] sm:$0xff]
        %v456 = vld [vmem:[%s221 + $0x618] sm:$0xff]
        %v457 = vld [vmem:[%s221 + $0x620] sm:$0xff]
        %v458 = vld [vmem:[%s221 + $0x628] sm:$0xff]
        %v459 = vld [vmem:[%s221 + $0x630] sm:$0xff]
        %v460 = vld [vmem:[%s221 + $0x638] sm:$0xff]
        %v461 = vld [vmem:[%s221 + $0x640] sm:$0xff]
        %v462 = vld [vmem:[%s221 + $0x648] sm:$0xff]
        %v463 = vld [vmem:[%s221 + $0x650] sm:$0xff]
        %v464 = vld [vmem:[%s221 + $0x658] sm:$0xff]
        %v465 = vld [vmem:[%s221 + $0x660] sm:$0xff]
        %v466 = vld [vmem:[%s221 + $0x668] sm:$0xff]
        %v467 = vld [vmem:[%s221 + $0x670] sm:$0xff]
        %v468 = vld [vmem:[%s221 + $0x678] sm:$0xff]
        %v469 = vld [vmem:[%s221 + $0x680] sm:$0xff]
        %v470 = vld [vmem:[%s221 + $0x688] sm:$0xff]
        %v471 = vld [vmem:[%s221 + $0x690] sm:$0xff]
        %v472 = vld [vmem:[%s221 + $0x698] sm:$0xff]
        %v473 = vld [vmem:[%s221 + $0x6a0] sm:$0xff]
        %v474 = vld [vmem:[%s221 + $0x6a8] sm:$0xff]
        %v475 = vld [vmem:[%s221 + $0x6b0] sm:$0xff]
        %v476 = vld [vmem:[%s221 + $0x6b8] sm:$0xff]
        %v477 = vld [vmem:[%s221 + $0x6c0] sm:$0xff]
        %v478 = vld [vmem:[%s221 + $0x6c8] sm:$0xff]
        %v479 = vld [vmem:[%s221 + $0x6d0] sm:$0xff]
        %v480 = vld [vmem:[%s221 + $0x6d8] sm:$0xff]
        %v481 = vld [vmem:[%s221 + $0x6e0] sm:$0xff]
        %v482 = vld [vmem:[%s221 + $0x6e8] sm:$0xff]
        %v483 = vld [vmem:[%s221 + $0x6f0] sm:$0xff]
        %v484 = vld [vmem:[%s221 + $0x6f8] sm:$0xff]
        %v485 = vld [vmem:[%s221 + $0x700] sm:$0xff]
        %v486 = vld [vmem:[%s221 + $0x708] sm:$0xff]
        %v487 = vld [vmem:[%s221 + $0x710] sm:$0xff]
        %v488 = vld [vmem:[%s221 + $0x718] sm:$0xff]
        %v489 = vld [vmem:[%s221 + $0x720] sm:$0xff]
        %v490 = vld [vmem:[%s221 + $0x728] sm:$0xff]
        %v491 = vld [vmem:[%s221 + $0x730] sm:$0xff]
        %v492 = vld [vmem:[%s221 + $0x738] sm:$0xff]
        %v493 = vld [vmem:[%s221 + $0x740] sm:$0xff]
        %v494 = vld [vmem:[%s221 + $0x748] sm:$0xff]
        %v495 = vld [vmem:[%s221 + $0x750] sm:$0xff]
        %v496 = vld [vmem:[%s221 + $0x758] sm:$0xff]
        %v497 = vld [vmem:[%s221 + $0x760] sm:$0xff]
        %v498 = vld [vmem:[%s221 + $0x768] sm:$0xff]
        %v499 = vld [vmem:[%s221 + $0x770] sm:$0xff]
        %v500 = vld [vmem:[%s221 + $0x778] sm:$0xff]
        %v501 = vld [vmem:[%s221 + $0x780] sm:$0xff]
        %v502 = vld [vmem:[%s221 + $0x788] sm:$0xff]
        %v503 = vld [vmem:[%s221 + $0x790] sm:$0xff]
        %v504 = vld [vmem:[%s221 + $0x798] sm:$0xff]
        %v505 = vld [vmem:[%s221 + $0x7a0] sm:$0xff]
        %v506 = vld [vmem:[%s221 + $0x7a8] sm:$0xff]
        %v507 = vld [vmem:[%s221 + $0x7b0] sm:$0xff]
        %v508 = vld [vmem:[%s221 + $0x7b8] sm:$0xff]
        %v509 = vld [vmem:[%s221 + $0x7c0] sm:$0xff]
        %v510 = vld [vmem:[%s221 + $0x7c8] sm:$0xff]
        %v511 = vld [vmem:[%s221 + $0x7d0] sm:$0xff]
        %v512 = vld [vmem:[%s221 + $0x7d8] sm:$0xff]
        %v513 = vld [vmem:[%s221 + $0x7e0] sm:$0xff]
        %v514 = vld [vmem:[%s221 + $0x7e8] sm:$0xff]
        %v515 = vld [vmem:[%s221 + $0x7f0] sm:$0xff]
        %v516 = vld [vmem:[%s221 + $0x7f8] sm:$0xff]
        %v517 = vld [vmem:[%s221 + $0x800] sm:$0xff]
        %v518 = vld [vmem:[%s221 + $0x808] sm:$0xff]
        %v519 = vld [vmem:[%s221 + $0x810] sm:$0xff]
        %v520 = vld [vmem:[%s221 + $0x818] sm:$0xff]
        %v521 = vld [vmem:[%s221 + $0x820] sm:$0xff]
        %v522 = vld [vmem:[%s221 + $0x828] sm:$0xff]
        %v523 = vld [vmem:[%s221 + $0x830] sm:$0xff]
        %v524 = vld [vmem:[%s221 + $0x838] sm:$0xff]
        %v525 = vld [vmem:[%s221 + $0x840] sm:$0xff]
        %v526 = vld [vmem:[%s221 + $0x848] sm:$0xff]
        %v527 = vld [vmem:[%s221 + $0x850] sm:$0xff]
        %v528 = vld [vmem:[%s221 + $0x858] sm:$0xff]
        %v529 = vld [vmem:[%s221 + $0x860] sm:$0xff]
        %v530 = vld [vmem:[%s221 + $0x868] sm:$0xff]
        %v531 = vld [vmem:[%s221 + $0x870] sm:$0xff]
        %v532 = vld [vmem:[%s221 + $0x878] sm:$0xff]
        %v533 = vld [vmem:[%s221 + $0x880] sm:$0xff]
        %v534 = vld [vmem:[%s221 + $0x888] sm:$0xff]
        %v535 = vld [vmem:[%s221 + $0x890] sm:$0xff]
        %v536 = vld [vmem:[%s221 + $0x898] sm:$0xff]
        %v537 = vld [vmem:[%s221 + $0x8a0] sm:$0xff]
        %v538 = vld [vmem:[%s221 + $0x8a8] sm:$0xff]
        %v539 = vld [vmem:[%s221 + $0x8b0] sm:$0xff]
        %v540 = vld [vmem:[%s221 + $0x8b8] sm:$0xff]
        %v541 = vld [vmem:[%s221 + $0x8c0] sm:$0xff]
        %v542 = vld [vmem:[%s221 + $0x8c8] sm:$0xff]
        %v543 = vld [vmem:[%s221 + $0x8d0] sm:$0xff]
        %v544 = vld [vmem:[%s221 + $0x8d8] sm:$0xff]
        %v545 = vld [vmem:[%s221 + $0x8e0] sm:$0xff]
        %v546 = vld [vmem:[%s221 + $0x8e8] sm:$0xff]
        %v547 = vld [vmem:[%s221 + $0x8f0] sm:$0xff]
        %v548 = vld [vmem:[%s221 + $0x8f8] sm:$0xff]
        %v549 = vld [vmem:[%s221 + $0x900] sm:$0xff]
        %v550 = vld [vmem:[%s221 + $0x908] sm:$0xff]
        %v551 = vld [vmem:[%s221 + $0x910] sm:$0xff]
        %v552 = vld [vmem:[%s221 + $0x918] sm:$0xff]
        %v553 = vld [vmem:[%s221 + $0x920] sm:$0xff]
        %v554 = vld [vmem:[%s221 + $0x928] sm:$0xff]
        %v555 = vld [vmem:[%s221 + $0x930] sm:$0xff]
        %v556 = vld [vmem:[%s221 + $0x938] sm:$0xff]
        %v557 = vld [vmem:[%s221 + $0x940] sm:$0xff]
        %v558 = vld [vmem:[%s221 + $0x948] sm:$0xff]
        %v559 = vld [vmem:[%s221 + $0x950] sm:$0xff]
        %v560 = vld [vmem:[%s221 + $0x958] sm:$0xff]
        %v561 = vld [vmem:[%s221 + $0x960] sm:$0xff]
        %v562 = vld [vmem:[%s221 + $0x968] sm:$0xff]
        %v563 = vld [vmem:[%s221 + $0x970] sm:$0xff]
        %v564 = vld [vmem:[%s221 + $0x978] sm:$0xff]
        %v565 = vld [vmem:[%s221 + $0x980] sm:$0xff]
        %v566 = vld [vmem:[%s221 + $0x988] sm:$0xff]
        %v567 = vld [vmem:[%s221 + $0x990] sm:$0xff]
        %v568 = vld [vmem:[%s221 + $0x998] sm:$0xff]
        %v569 = vld [vmem:[%s221 + $0x9a0] sm:$0xff]
        %v570 = vld [vmem:[%s221 + $0x9a8] sm:$0xff]
        %v571 = vld [vmem:[%s221 + $0x9b0] sm:$0xff]
        %v572 = vld [vmem:[%s221 + $0x9b8] sm:$0xff]
        %v573 = vld [vmem:[%s221 + $0x9c0] sm:$0xff]
        %v574 = vld [vmem:[%s221 + $0x9c8] sm:$0xff]
        %v575 = vld [vmem:[%s221 + $0x9d0] sm:$0xff]
        %v576 = vld [vmem:[%s221 + $0x9d8] sm:$0xff]
        %v577 = vld [vmem:[%s221 + $0x9e0] sm:$0xff]
        %v578 = vld [vmem:[%s221 + $0x9e8] sm:$0xff]
        %v579 = vld [vmem:[%s221 + $0x9f0] sm:$0xff]
        %v580 = vld [vmem:[%s221 + $0x9f8] sm:$0xff]
        %v581 = vld [vmem:[%s221 + $0xa00] sm:$0xff]
        %v582 = vld [vmem:[%s221 + $0xa08] sm:$0xff]
        %v583 = vld [vmem:[%s221 + $0xa10] sm:$0xff]
        %v584 = vld [vmem:[%s221 + $0xa18] sm:$0xff]
        %v585 = vld [vmem:[%s221 + $0xa20] sm:$0xff]
        %v586 = vld [vmem:[%s221 + $0xa28] sm:$0xff]
        %v587 = vld [vmem:[%s221 + $0xa30] sm:$0xff]
        %v588 = vld [vmem:[%s221 + $0xa38] sm:$0xff]
        %v589 = vld [vmem:[%s221 + $0xa40] sm:$0xff]
        %v590 = vld [vmem:[%s221 + $0xa48] sm:$0xff]
        %v591 = vld [vmem:[%s221 + $0xa50] sm:$0xff]
        %v592 = vld [vmem:[%s221 + $0xa58] sm:$0xff]
        %v593 = vld [vmem:[%s221 + $0xa60] sm:$0xff]
        %v594 = vld [vmem:[%s221 + $0xa68] sm:$0xff]
        %v595 = vld [vmem:[%s221 + $0xa70] sm:$0xff]
        %v596 = vld [vmem:[%s221 + $0xa78] sm:$0xff]
        %v597 = vld [vmem:[%s221 + $0xa80] sm:$0xff]
        %v598 = vld [vmem:[%s221 + $0xa88] sm:$0xff]
        %v599 = vld [vmem:[%s221 + $0xa90] sm:$0xff]
        %v600 = vld [vmem:[%s221 + $0xa98] sm:$0xff]
        %v601 = vld [vmem:[%s221 + $0xaa0] sm:$0xff]
        %v602 = vld [vmem:[%s221 + $0xaa8] sm:$0xff]
        %v603 = vld [vmem:[%s221 + $0xab0] sm:$0xff]
        %v604 = vld [vmem:[%s221 + $0xab8] sm:$0xff]
        %v605 = vld [vmem:[%s221 + $0xac0] sm:$0xff]
        %v606 = vld [vmem:[%s221 + $0xac8] sm:$0xff]
        %v607 = vld [vmem:[%s221 + $0xad0] sm:$0xff]
        %v608 = vld [vmem:[%s221 + $0xad8] sm:$0xff]
        %v609 = vld [vmem:[%s221 + $0xae0] sm:$0xff]
        %v610 = vld [vmem:[%s221 + $0xae8] sm:$0xff]
        %v611 = vld [vmem:[%s221 + $0xaf0] sm:$0xff]
        %v612 = vld [vmem:[%s221 + $0xaf8] sm:$0xff]
        %v613 = vld [vmem:[%s221 + $0xb00] sm:$0xff]
        %v614 = vld [vmem:[%s221 + $0xb08] sm:$0xff]
        %v615 = vld [vmem:[%s221 + $0xb10] sm:$0xff]
        %v616 = vld [vmem:[%s221 + $0xb18] sm:$0xff]
        %v617 = vld [vmem:[%s221 + $0xb20] sm:$0xff]
        %v618 = vld [vmem:[%s221 + $0xb28] sm:$0xff]
        %v619 = vld [vmem:[%s221 + $0xb30] sm:$0xff]
        %v620 = vld [vmem:[%s221 + $0xb38] sm:$0xff]
        %v621 = vld [vmem:[%s221 + $0xb40] sm:$0xff]
        %v622 = vld [vmem:[%s221 + $0xb48] sm:$0xff]
        %v623 = vld [vmem:[%s221 + $0xb50] sm:$0xff]
        %v624 = vld [vmem:[%s221 + $0xb58] sm:$0xff]
        %v625 = vld [vmem:[%s221 + $0xb60] sm:$0xff]
        %v626 = vld [vmem:[%s221 + $0xb68] sm:$0xff]
        %v627 = vld [vmem:[%s221 + $0xb70] sm:$0xff]
        %v628 = vld [vmem:[%s221 + $0xb78] sm:$0xff]
        %v629 = vld [vmem:[%s221 + $0xb80] sm:$0xff]
        %v630 = vld [vmem:[%s221 + $0xb88] sm:$0xff]
        %v631 = vld [vmem:[%s221 + $0xb90] sm:$0xff]
        %v632 = vld [vmem:[%s221 + $0xb98] sm:$0xff]
        %v633 = vld [vmem:[%s221 + $0xba0] sm:$0xff]
        %v634 = vld [vmem:[%s221 + $0xba8] sm:$0xff]
        %v635 = vld [vmem:[%s221 + $0xbb0] sm:$0xff]
        %v636 = vld [vmem:[%s221 + $0xbb8] sm:$0xff]
        %v637 = vld [vmem:[%s221 + $0xbc0] sm:$0xff]
        %v638 = vld [vmem:[%s221 + $0xbc8] sm:$0xff]
        %v639 = vld [vmem:[%s221 + $0xbd0] sm:$0xff]
        %v640 = vld [vmem:[%s221 + $0xbd8] sm:$0xff]
        %v641 = vld [vmem:[%s221 + $0xbe0] sm:$0xff]
        %v642 = vld [vmem:[%s221 + $0xbe8] sm:$0xff]
        %v643 = vld [vmem:[%s221 + $0xbf0] sm:$0xff]
        %v644 = vld [vmem:[%s221 + $0xbf8] sm:$0xff]
        %v645 = vld [vmem:[%s221 + $0xc00] sm:$0xff]
        %v646 = vld [vmem:[%s221 + $0xc08] sm:$0xff]
        %v647 = vld [vmem:[%s221 + $0xc10] sm:$0xff]
        %v648 = vld [vmem:[%s221 + $0xc18] sm:$0xff]
        %v649 = vld [vmem:[%s221 + $0xc20] sm:$0xff]
        %v650 = vld [vmem:[%s221 + $0xc28] sm:$0xff]
        %v651 = vld [vmem:[%s221 + $0xc30] sm:$0xff]
        %v652 = vld [vmem:[%s221 + $0xc38] sm:$0xff]
        %v653 = vld [vmem:[%s221 + $0xc40] sm:$0xff]
        %v654 = vld [vmem:[%s221 + $0xc48] sm:$0xff]
        %v655 = vld [vmem:[%s221 + $0xc50] sm:$0xff]
        %v656 = vld [vmem:[%s221 + $0xc58] sm:$0xff]
        %v657 = vld [vmem:[%s221 + $0xc60] sm:$0xff]
        %v658 = vld [vmem:[%s221 + $0xc68] sm:$0xff]
        %v659 = vld [vmem:[%s221 + $0xc70] sm:$0xff]
        %v660 = vld [vmem:[%s221 + $0xc78] sm:$0xff]
        %v661 = vld [vmem:[%s221 + $0xc80] sm:$0xff]
        %v662 = vld [vmem:[%s221 + $0xc88] sm:$0xff]
        %v663 = vld [vmem:[%s221 + $0xc90] sm:$0xff]
        %v664 = vld [vmem:[%s221 + $0xc98] sm:$0xff]
        %v665 = vld [vmem:[%s221 + $0xca0] sm:$0xff]
        %v666 = vld [vmem:[%s221 + $0xca8] sm:$0xff]
        %v667 = vld [vmem:[%s221 + $0xcb0] sm:$0xff]
        %v668 = vld [vmem:[%s221 + $0xcb8] sm:$0xff]
        %v669 = vld [vmem:[%s221 + $0xcc0] sm:$0xff]
        %v670 = vld [vmem:[%s221 + $0xcc8] sm:$0xff]
        %v671 = vld [vmem:[%s221 + $0xcd0] sm:$0xff]
        %v672 = vld [vmem:[%s221 + $0xcd8] sm:$0xff]
        %v673 = vld [vmem:[%s221 + $0xce0] sm:$0xff]
        %v674 = vld [vmem:[%s221 + $0xce8] sm:$0xff]
        %v675 = vld [vmem:[%s221 + $0xcf0] sm:$0xff]
        %v676 = vld [vmem:[%s221 + $0xcf8] sm:$0xff]
        %v677 = vld [vmem:[%s221 + $0xd00] sm:$0xff]
        %v678 = vld [vmem:[%s221 + $0xd08] sm:$0xff]
        %v679 = vld [vmem:[%s221 + $0xd10] sm:$0xff]
        %v680 = vld [vmem:[%s221 + $0xd18] sm:$0xff]
        %v681 = vld [vmem:[%s221 + $0xd20] sm:$0xff]
        %v682 = vld [vmem:[%s221 + $0xd28] sm:$0xff]
        %v683 = vld [vmem:[%s221 + $0xd30] sm:$0xff]
        %v684 = vld [vmem:[%s221 + $0xd38] sm:$0xff]
        %v685 = vld [vmem:[%s221 + $0xd40] sm:$0xff]
        %v686 = vld [vmem:[%s221 + $0xd48] sm:$0xff]
        %v687 = vld [vmem:[%s221 + $0xd50] sm:$0xff]
        %v688 = vld [vmem:[%s221 + $0xd58] sm:$0xff]
        %v689 = vld [vmem:[%s221 + $0xd60] sm:$0xff]
        %v690 = vld [vmem:[%s221 + $0xd68] sm:$0xff]
        %v691 = vld [vmem:[%s221 + $0xd70] sm:$0xff]
        %v692 = vld [vmem:[%s221 + $0xd78] sm:$0xff]
        %v693 = vld [vmem:[%s221 + $0xd80] sm:$0xff]
        %v694 = vld [vmem:[%s221 + $0xd88] sm:$0xff]
        %v695 = vld [vmem:[%s221 + $0xd90] sm:$0xff]
        %v696 = vld [vmem:[%s221 + $0xd98] sm:$0xff]
        %v697 = vld [vmem:[%s221 + $0xda0] sm:$0xff]
        %v698 = vld [vmem:[%s221 + $0xda8] sm:$0xff]
        %v699 = vld [vmem:[%s221 + $0xdb0] sm:$0xff]
        %v700 = vld [vmem:[%s221 + $0xdb8] sm:$0xff]
        %v701 = vld [vmem:[%s221 + $0xdc0] sm:$0xff]
        %v702 = vld [vmem:[%s221 + $0xdc8] sm:$0xff]
        %v703 = vld [vmem:[%s221 + $0xdd0] sm:$0xff]
        %v704 = vld [vmem:[%s221 + $0xdd8] sm:$0xff]
        %v705 = vld [vmem:[%s221 + $0xde0] sm:$0xff]
        %v706 = vld [vmem:[%s221 + $0xde8] sm:$0xff]
        %v707 = vld [vmem:[%s221 + $0xdf0] sm:$0xff]
        %v708 = vld [vmem:[%s221 + $0xdf8] sm:$0xff]
        %v709 = vld [vmem:[%s221 + $0xe00] sm:$0xff]
        %v710 = vld [vmem:[%s221 + $0xe08] sm:$0xff]
        %v711 = vld [vmem:[%s221 + $0xe10] sm:$0xff]
        %v712 = vld [vmem:[%s221 + $0xe18] sm:$0xff]
        %v713 = vld [vmem:[%s221 + $0xe20] sm:$0xff]
        %v714 = vld [vmem:[%s221 + $0xe28] sm:$0xff]
        %v715 = vld [vmem:[%s221 + $0xe30] sm:$0xff]
        %v716 = vld [vmem:[%s221 + $0xe38] sm:$0xff]
        %v717 = vld [vmem:[%s221 + $0xe40] sm:$0xff]
        %v718 = vld [vmem:[%s221 + $0xe48] sm:$0xff]
        %v719 = vld [vmem:[%s221 + $0xe50] sm:$0xff]
        %v720 = vld [vmem:[%s221 + $0xe58] sm:$0xff]
        %v721 = vld [vmem:[%s221 + $0xe60] sm:$0xff]
        %v722 = vld [vmem:[%s221 + $0xe68] sm:$0xff]
        %v723 = vld [vmem:[%s221 + $0xe70] sm:$0xff]
        %v724 = vld [vmem:[%s221 + $0xe78] sm:$0xff]
        %v725 = vld [vmem:[%s221 + $0xe80] sm:$0xff]
        %v726 = vld [vmem:[%s221 + $0xe88] sm:$0xff]
        %v727 = vld [vmem:[%s221 + $0xe90] sm:$0xff]
        %v728 = vld [vmem:[%s221 + $0xe98] sm:$0xff]
        %v729 = vld [vmem:[%s221 + $0xea0] sm:$0xff]
        %v730 = vld [vmem:[%s221 + $0xea8] sm:$0xff]
        %v731 = vld [vmem:[%s221 + $0xeb0] sm:$0xff]
        %v732 = vld [vmem:[%s221 + $0xeb8] sm:$0xff]
        %v733 = vld [vmem:[%s221 + $0xec0] sm:$0xff]
        %v734 = vld [vmem:[%s221 + $0xec8] sm:$0xff]
        %v735 = vld [vmem:[%s221 + $0xed0] sm:$0xff]
        %v736 = vld [vmem:[%s221 + $0xed8] sm:$0xff]
        %v737 = vld [vmem:[%s221 + $0xee0] sm:$0xff]
        %v738 = vld [vmem:[%s221 + $0xee8] sm:$0xff]
        %v739 = vld [vmem:[%s221 + $0xef0] sm:$0xff]
        %v740 = vld [vmem:[%s221 + $0xef8] sm:$0xff]
        %v741 = vld [vmem:[%s221 + $0xf00] sm:$0xff]
        %v742 = vld [vmem:[%s221 + $0xf08] sm:$0xff]
        %v743 = vld [vmem:[%s221 + $0xf10] sm:$0xff]
        %v744 = vld [vmem:[%s221 + $0xf18] sm:$0xff]
        %v745 = vld [vmem:[%s221 + $0xf20] sm:$0xff]
        %v746 = vld [vmem:[%s221 + $0xf28] sm:$0xff]
        %v747 = vld [vmem:[%s221 + $0xf30] sm:$0xff]
        %v748 = vld [vmem:[%s221 + $0xf38] sm:$0xff]
        %v749 = vld [vmem:[%s221 + $0xf40] sm:$0xff]
        %v750 = vld [vmem:[%s221 + $0xf48] sm:$0xff]
        %v751 = vld [vmem:[%s221 + $0xf50] sm:$0xff]
        %v752 = vld [vmem:[%s221 + $0xf58] sm:$0xff]
        %v753 = vld [vmem:[%s221 + $0xf60] sm:$0xff]
        %v754 = vld [vmem:[%s221 + $0xf68] sm:$0xff]
        %v755 = vld [vmem:[%s221 + $0xf70] sm:$0xff]
        %v756 = vld [vmem:[%s221 + $0xf78] sm:$0xff]
        %v757 = vld [vmem:[%s221 + $0xf80] sm:$0xff]
        %v758 = vld [vmem:[%s221 + $0xf88] sm:$0xff]
        %v759 = vld [vmem:[%s221 + $0xf90] sm:$0xff]
        %v760 = vld [vmem:[%s221 + $0xf98] sm:$0xff]
        %v761 = vld [vmem:[%s221 + $0xfa0] sm:$0xff]
        %v762 = vld [vmem:[%s221 + $0xfa8] sm:$0xff]
        %v763 = vld [vmem:[%s221 + $0xfb0] sm:$0xff]
        %v764 = vld [vmem:[%s221 + $0xfb8] sm:$0xff]
        %v765 = vld [vmem:[%s221 + $0xfc0] sm:$0xff]
        %v766 = vld [vmem:[%s221 + $0xfc8] sm:$0xff]
        %v767 = vld [vmem:[%s221 + $0xfd0] sm:$0xff]
        %v768 = vld [vmem:[%s221 + $0xfd8] sm:$0xff]
        %v769 = vld [vmem:[%s221 + $0xfe0] sm:$0xff]
        %v770 = vld [vmem:[%s221 + $0xfe8] sm:$0xff]
        %v771 = vld [vmem:[%s221 + $0xff0] sm:$0xff]
        %v772 = vld [vmem:[%s221 + $0xff8] sm:$0xff]
        %v775 = vcombine.high %v259, %v259
        %v777 = vunpack.c.l.s4 1966171168
        %v778 = vunpack.c.0.s8 %v777
        %v779 = vlaneseq
        %v780 = vshrl.u32 %v779, 7
        %v781 = vsub.s32 %v778, %v780
        %v782 = vrot.slane %v259, %v781
        %v784 = vunpack.c.l.s4 1966171168
        %v785 = vunpack.c.0.s8 %v784
        %v786 = vlaneseq
        %v787 = vshrl.u32 %v786, 7
        %v788 = vsub.s32 %v785, %v787
        %v789 = vrot.slane %v775, %v788
        %v790 = vcombine.high %v782, %v782
        %v791 = vcombine.high %v789, %v789
        %v793 = vunpack.c.l.s4 1966171168
        %v794 = vunpack.c.0.s8 %v793
        %v795 = vlaneseq
        %v796 = vshrl.u32 %v795, 7
        %v797 = vsub.s32 %v794, %v796
        %v798 = vrot.slane %v782, %v797
        %v800 = vunpack.c.l.s4 1966171168
        %v801 = vunpack.c.0.s8 %v800
        %v802 = vlaneseq
        %v803 = vshrl.u32 %v802, 7
        %v804 = vsub.s32 %v801, %v803
        %v805 = vrot.slane %v789, %v804
        %v807 = vunpack.c.l.s4 1966171168
        %v808 = vunpack.c.0.s8 %v807
        %v809 = vlaneseq
        %v810 = vshrl.u32 %v809, 7
        %v811 = vsub.s32 %v808, %v810
        %v812 = vrot.slane %v790, %v811
        %v814 = vunpack.c.l.s4 1966171168
        %v815 = vunpack.c.0.s8 %v814
        %v816 = vlaneseq
        %v817 = vshrl.u32 %v816, 7
        %v818 = vsub.s32 %v815, %v817
        %v819 = vrot.slane %v791, %v818
        %v820 = vcombine.high %v798, %v798
        %v821 = vcombine.high %v805, %v805
        %v822 = vcombine.high %v812, %v812
        %v823 = vcombine.high %v819, %v819
        %v824 = vcombine.high %v260, %v260
        %v826 = vunpack.c.l.s4 1966171168
        %v827 = vunpack.c.0.s8 %v826
        %v828 = vlaneseq
        %v829 = vshrl.u32 %v828, 7
        %v830 = vsub.s32 %v827, %v829
        %v831 = vrot.slane %v260, %v830
        %v833 = vunpack.c.l.s4 1966171168
        %v834 = vunpack.c.0.s8 %v833
        %v835 = vlaneseq
        %v836 = vshrl.u32 %v835, 7
        %v837 = vsub.s32 %v834, %v836
        %v838 = vrot.slane %v824, %v837
        %v839 = vcombine.high %v831, %v831
        %v840 = vcombine.high %v838, %v838
        %v842 = vunpack.c.l.s4 1966171168
        %v843 = vunpack.c.0.s8 %v842
        %v844 = vlaneseq
        %v845 = vshrl.u32 %v844, 7
        %v846 = vsub.s32 %v843, %v845
        %v847 = vrot.slane %v831, %v846
        %v849 = vunpack.c.l.s4 1966171168
        %v850 = vunpack.c.0.s8 %v849
        %v851 = vlaneseq
        %v852 = vshrl.u32 %v851, 7
        %v853 = vsub.s32 %v850, %v852
        %v854 = vrot.slane %v838, %v853
        %v856 = vunpack.c.l.s4 1966171168
        %v857 = vunpack.c.0.s8 %v856
        %v858 = vlaneseq
        %v859 = vshrl.u32 %v858, 7
        %v860 = vsub.s32 %v857, %v859
        %v861 = vrot.slane %v839, %v860
        %v863 = vunpack.c.l.s4 1966171168
        %v864 = vunpack.c.0.s8 %v863
        %v865 = vlaneseq
        %v866 = vshrl.u32 %v865, 7
        %v867 = vsub.s32 %v864, %v866
        %v868 = vrot.slane %v840, %v867
        %v869 = vcombine.high %v847, %v847
        %v870 = vcombine.high %v854, %v854
        %v871 = vcombine.high %v861, %v861
        %v872 = vcombine.high %v868, %v868
        %v1401 = vunpack.c.l.b16 %v261
        %v1402 = vunpack.c.h.b16 %v261
        %v1403 = vunpack.c.l.b16 %v262
        %v1404 = vunpack.c.h.b16 %v262
        %v1405 = vunpack.c.l.b16 %v263
        %v1406 = vunpack.c.h.b16 %v263
        %v1407 = vunpack.c.l.b16 %v264
        %v1408 = vunpack.c.h.b16 %v264
        %v1409 = vunpack.c.l.b16 %v265
        %v1410 = vunpack.c.h.b16 %v265
        %v1411 = vunpack.c.l.b16 %v266
        %v1412 = vunpack.c.h.b16 %v266
        %v1413 = vunpack.c.l.b16 %v267
        %v1414 = vunpack.c.h.b16 %v267
        %v1415 = vunpack.c.l.b16 %v268
        %v1416 = vunpack.c.h.b16 %v268
        %v1417 = vunpack.c.l.b16 %v269
        %v1418 = vunpack.c.h.b16 %v269
        %v1419 = vunpack.c.l.b16 %v270
        %v1420 = vunpack.c.h.b16 %v270
        %v1421 = vunpack.c.l.b16 %v271
        %v1422 = vunpack.c.h.b16 %v271
        %v1423 = vunpack.c.l.b16 %v272
        %v1424 = vunpack.c.h.b16 %v272
        %v1425 = vunpack.c.l.b16 %v273
        %v1426 = vunpack.c.h.b16 %v273
        %v1427 = vunpack.c.l.b16 %v274
        %v1428 = vunpack.c.h.b16 %v274
        %v1429 = vunpack.c.l.b16 %v275
        %v1430 = vunpack.c.h.b16 %v275
        %v1431 = vunpack.c.l.b16 %v276
        %v1432 = vunpack.c.h.b16 %v276
        %v1433 = vunpack.c.l.b16 %v277
        %v1434 = vunpack.c.h.b16 %v277
        %v1435 = vunpack.c.l.b16 %v278
        %v1436 = vunpack.c.h.b16 %v278
        %v1437 = vunpack.c.l.b16 %v279
        %v1438 = vunpack.c.h.b16 %v279
        %v1439 = vunpack.c.l.b16 %v280
        %v1440 = vunpack.c.h.b16 %v280
        %v1441 = vunpack.c.l.b16 %v281
        %v1442 = vunpack.c.h.b16 %v281
        %v1443 = vunpack.c.l.b16 %v282
        %v1444 = vunpack.c.h.b16 %v282
        %v1445 = vunpack.c.l.b16 %v283
        %v1446 = vunpack.c.h.b16 %v283
        %v1447 = vunpack.c.l.b16 %v284
        %v1448 = vunpack.c.h.b16 %v284
        %v1449 = vunpack.c.l.b16 %v285
        %v1450 = vunpack.c.h.b16 %v285
        %v1451 = vunpack.c.l.b16 %v286
        %v1452 = vunpack.c.h.b16 %v286
        %v1453 = vunpack.c.l.b16 %v287
        %v1454 = vunpack.c.h.b16 %v287
        %v1455 = vunpack.c.l.b16 %v288
        %v1456 = vunpack.c.h.b16 %v288
        %v1457 = vunpack.c.l.b16 %v289
        %v1458 = vunpack.c.h.b16 %v289
        %v1459 = vunpack.c.l.b16 %v290
        %v1460 = vunpack.c.h.b16 %v290
        %v1461 = vunpack.c.l.b16 %v291
        %v1462 = vunpack.c.h.b16 %v291
        %v1463 = vunpack.c.l.b16 %v292
        %v1464 = vunpack.c.h.b16 %v292
        %v1465 = vunpack.c.l.b16 %v293
        %v1466 = vunpack.c.h.b16 %v293
        %v1467 = vunpack.c.l.b16 %v294
        %v1468 = vunpack.c.h.b16 %v294
        %v1469 = vunpack.c.l.b16 %v295
        %v1470 = vunpack.c.h.b16 %v295
        %v1471 = vunpack.c.l.b16 %v296
        %v1472 = vunpack.c.h.b16 %v296
        %v1473 = vunpack.c.l.b16 %v297
        %v1474 = vunpack.c.h.b16 %v297
        %v1475 = vunpack.c.l.b16 %v298
        %v1476 = vunpack.c.h.b16 %v298
        %v1477 = vunpack.c.l.b16 %v299
        %v1478 = vunpack.c.h.b16 %v299
        %v1479 = vunpack.c.l.b16 %v300
        %v1480 = vunpack.c.h.b16 %v300
        %v1481 = vunpack.c.l.b16 %v301
        %v1482 = vunpack.c.h.b16 %v301
        %v1483 = vunpack.c.l.b16 %v302
        %v1484 = vunpack.c.h.b16 %v302
        %v1485 = vunpack.c.l.b16 %v303
        %v1486 = vunpack.c.h.b16 %v303
        %v1487 = vunpack.c.l.b16 %v304
        %v1488 = vunpack.c.h.b16 %v304
        %v1489 = vunpack.c.l.b16 %v305
        %v1490 = vunpack.c.h.b16 %v305
        %v1491 = vunpack.c.l.b16 %v306
        %v1492 = vunpack.c.h.b16 %v306
        %v1493 = vunpack.c.l.b16 %v307
        %v1494 = vunpack.c.h.b16 %v307
        %v1495 = vunpack.c.l.b16 %v308
        %v1496 = vunpack.c.h.b16 %v308
        %v1497 = vunpack.c.l.b16 %v309
        %v1498 = vunpack.c.h.b16 %v309
        %v1499 = vunpack.c.l.b16 %v310
        %v1500 = vunpack.c.h.b16 %v310
        %v1501 = vunpack.c.l.b16 %v311
        %v1502 = vunpack.c.h.b16 %v311
        %v1503 = vunpack.c.l.b16 %v312
        %v1504 = vunpack.c.h.b16 %v312
        %v1505 = vunpack.c.l.b16 %v313
        %v1506 = vunpack.c.h.b16 %v313
        %v1507 = vunpack.c.l.b16 %v314
        %v1508 = vunpack.c.h.b16 %v314
        %v1509 = vunpack.c.l.b16 %v315
        %v1510 = vunpack.c.h.b16 %v315
        %v1511 = vunpack.c.l.b16 %v316
        %v1512 = vunpack.c.h.b16 %v316
        %v1513 = vunpack.c.l.b16 %v317
        %v1514 = vunpack.c.h.b16 %v317
        %v1515 = vunpack.c.l.b16 %v318
        %v1516 = vunpack.c.h.b16 %v318
        %v1517 = vunpack.c.l.b16 %v319
        %v1518 = vunpack.c.h.b16 %v319
        %v1519 = vunpack.c.l.b16 %v320
        %v1520 = vunpack.c.h.b16 %v320
        %v1521 = vunpack.c.l.b16 %v321
        %v1522 = vunpack.c.h.b16 %v321
        %v1523 = vunpack.c.l.b16 %v322
        %v1524 = vunpack.c.h.b16 %v322
        %v1525 = vunpack.c.l.b16 %v323
        %v1526 = vunpack.c.h.b16 %v323
        %v1527 = vunpack.c.l.b16 %v324
        %v1528 = vunpack.c.h.b16 %v324
        %v1529 = vunpack.c.l.b16 %v325
        %v1530 = vunpack.c.h.b16 %v325
        %v1531 = vunpack.c.l.b16 %v326
        %v1532 = vunpack.c.h.b16 %v326
        %v1533 = vunpack.c.l.b16 %v327
        %v1534 = vunpack.c.h.b16 %v327
        %v1535 = vunpack.c.l.b16 %v328
        %v1536 = vunpack.c.h.b16 %v328
        %v1537 = vunpack.c.l.b16 %v329
        %v1538 = vunpack.c.h.b16 %v329
        %v1539 = vunpack.c.l.b16 %v330
        %v1540 = vunpack.c.h.b16 %v330
        %v1541 = vunpack.c.l.b16 %v331
        %v1542 = vunpack.c.h.b16 %v331
        %v1543 = vunpack.c.l.b16 %v332
        %v1544 = vunpack.c.h.b16 %v332
        %v1545 = vunpack.c.l.b16 %v333
        %v1546 = vunpack.c.h.b16 %v333
        %v1547 = vunpack.c.l.b16 %v334
        %v1548 = vunpack.c.h.b16 %v334
        %v1549 = vunpack.c.l.b16 %v335
        %v1550 = vunpack.c.h.b16 %v335
        %v1551 = vunpack.c.l.b16 %v336
        %v1552 = vunpack.c.h.b16 %v336
        %v1553 = vunpack.c.l.b16 %v337
        %v1554 = vunpack.c.h.b16 %v337
        %v1555 = vunpack.c.l.b16 %v338
        %v1556 = vunpack.c.h.b16 %v338
        %v1557 = vunpack.c.l.b16 %v339
        %v1558 = vunpack.c.h.b16 %v339
        %v1559 = vunpack.c.l.b16 %v340
        %v1560 = vunpack.c.h.b16 %v340
        %v1561 = vunpack.c.l.b16 %v341
        %v1562 = vunpack.c.h.b16 %v341
        %v1563 = vunpack.c.l.b16 %v342
        %v1564 = vunpack.c.h.b16 %v342
        %v1565 = vunpack.c.l.b16 %v343
        %v1566 = vunpack.c.h.b16 %v343
        %v1567 = vunpack.c.l.b16 %v344
        %v1568 = vunpack.c.h.b16 %v344
        %v1569 = vunpack.c.l.b16 %v345
        %v1570 = vunpack.c.h.b16 %v345
        %v1571 = vunpack.c.l.b16 %v346
        %v1572 = vunpack.c.h.b16 %v346
        %v1573 = vunpack.c.l.b16 %v347
        %v1574 = vunpack.c.h.b16 %v347
        %v1575 = vunpack.c.l.b16 %v348
        %v1576 = vunpack.c.h.b16 %v348
        %v1577 = vunpack.c.l.b16 %v349
        %v1578 = vunpack.c.h.b16 %v349
        %v1579 = vunpack.c.l.b16 %v350
        %v1580 = vunpack.c.h.b16 %v350
        %v1581 = vunpack.c.l.b16 %v351
        %v1582 = vunpack.c.h.b16 %v351
        %v1583 = vunpack.c.l.b16 %v352
        %v1584 = vunpack.c.h.b16 %v352
        %v1585 = vunpack.c.l.b16 %v353
        %v1586 = vunpack.c.h.b16 %v353
        %v1587 = vunpack.c.l.b16 %v354
        %v1588 = vunpack.c.h.b16 %v354
        %v1589 = vunpack.c.l.b16 %v355
        %v1590 = vunpack.c.h.b16 %v355
        %v1591 = vunpack.c.l.b16 %v356
        %v1592 = vunpack.c.h.b16 %v356
        %v1593 = vunpack.c.l.b16 %v357
        %v1594 = vunpack.c.h.b16 %v357
        %v1595 = vunpack.c.l.b16 %v358
        %v1596 = vunpack.c.h.b16 %v358
        %v1597 = vunpack.c.l.b16 %v359
        %v1598 = vunpack.c.h.b16 %v359
        %v1599 = vunpack.c.l.b16 %v360
        %v1600 = vunpack.c.h.b16 %v360
        %v1601 = vunpack.c.l.b16 %v361
        %v1602 = vunpack.c.h.b16 %v361
        %v1603 = vunpack.c.l.b16 %v362
        %v1604 = vunpack.c.h.b16 %v362
        %v1605 = vunpack.c.l.b16 %v363
        %v1606 = vunpack.c.h.b16 %v363
        %v1607 = vunpack.c.l.b16 %v364
        %v1608 = vunpack.c.h.b16 %v364
        %v1609 = vunpack.c.l.b16 %v365
        %v1610 = vunpack.c.h.b16 %v365
        %v1611 = vunpack.c.l.b16 %v366
        %v1612 = vunpack.c.h.b16 %v366
        %v1613 = vunpack.c.l.b16 %v367
        %v1614 = vunpack.c.h.b16 %v367
        %v1615 = vunpack.c.l.b16 %v368
        %v1616 = vunpack.c.h.b16 %v368
        %v1617 = vunpack.c.l.b16 %v369
        %v1618 = vunpack.c.h.b16 %v369
        %v1619 = vunpack.c.l.b16 %v370
        %v1620 = vunpack.c.h.b16 %v370
        %v1621 = vunpack.c.l.b16 %v371
        %v1622 = vunpack.c.h.b16 %v371
        %v1623 = vunpack.c.l.b16 %v372
        %v1624 = vunpack.c.h.b16 %v372
        %v1625 = vunpack.c.l.b16 %v373
        %v1626 = vunpack.c.h.b16 %v373
        %v1627 = vunpack.c.l.b16 %v374
        %v1628 = vunpack.c.h.b16 %v374
        %v1629 = vunpack.c.l.b16 %v375
        %v1630 = vunpack.c.h.b16 %v375
        %v1631 = vunpack.c.l.b16 %v376
        %v1632 = vunpack.c.h.b16 %v376
        %v1633 = vunpack.c.l.b16 %v377
        %v1634 = vunpack.c.h.b16 %v377
        %v1635 = vunpack.c.l.b16 %v378
        %v1636 = vunpack.c.h.b16 %v378
        %v1637 = vunpack.c.l.b16 %v379
        %v1638 = vunpack.c.h.b16 %v379
        %v1639 = vunpack.c.l.b16 %v380
        %v1640 = vunpack.c.h.b16 %v380
        %v1641 = vunpack.c.l.b16 %v381
        %v1642 = vunpack.c.h.b16 %v381
        %v1643 = vunpack.c.l.b16 %v382
        %v1644 = vunpack.c.h.b16 %v382
        %v1645 = vunpack.c.l.b16 %v383
        %v1646 = vunpack.c.h.b16 %v383
        %v1647 = vunpack.c.l.b16 %v384
        %v1648 = vunpack.c.h.b16 %v384
        %v1649 = vunpack.c.l.b16 %v385
        %v1650 = vunpack.c.h.b16 %v385
        %v1651 = vunpack.c.l.b16 %v386
        %v1652 = vunpack.c.h.b16 %v386
        %v1653 = vunpack.c.l.b16 %v387
        %v1654 = vunpack.c.h.b16 %v387
        %v1655 = vunpack.c.l.b16 %v388
        %v1656 = vunpack.c.h.b16 %v388
        %v1657 = vunpack.c.l.b16 %v389
        %v1658 = vunpack.c.h.b16 %v389
        %v1659 = vunpack.c.l.b16 %v390
        %v1660 = vunpack.c.h.b16 %v390
        %v1661 = vunpack.c.l.b16 %v391
        %v1662 = vunpack.c.h.b16 %v391
        %v1663 = vunpack.c.l.b16 %v392
        %v1664 = vunpack.c.h.b16 %v392
        %v1665 = vunpack.c.l.b16 %v393
        %v1666 = vunpack.c.h.b16 %v393
        %v1667 = vunpack.c.l.b16 %v394
        %v1668 = vunpack.c.h.b16 %v394
        %v1669 = vunpack.c.l.b16 %v395
        %v1670 = vunpack.c.h.b16 %v395
        %v1671 = vunpack.c.l.b16 %v396
        %v1672 = vunpack.c.h.b16 %v396
        %v1673 = vunpack.c.l.b16 %v397
        %v1674 = vunpack.c.h.b16 %v397
        %v1675 = vunpack.c.l.b16 %v398
        %v1676 = vunpack.c.h.b16 %v398
        %v1677 = vunpack.c.l.b16 %v399
        %v1678 = vunpack.c.h.b16 %v399
        %v1679 = vunpack.c.l.b16 %v400
        %v1680 = vunpack.c.h.b16 %v400
        %v1681 = vunpack.c.l.b16 %v401
        %v1682 = vunpack.c.h.b16 %v401
        %v1683 = vunpack.c.l.b16 %v402
        %v1684 = vunpack.c.h.b16 %v402
        %v1685 = vunpack.c.l.b16 %v403
        %v1686 = vunpack.c.h.b16 %v403
        %v1687 = vunpack.c.l.b16 %v404
        %v1688 = vunpack.c.h.b16 %v404
        %v1689 = vunpack.c.l.b16 %v405
        %v1690 = vunpack.c.h.b16 %v405
        %v1691 = vunpack.c.l.b16 %v406
        %v1692 = vunpack.c.h.b16 %v406
        %v1693 = vunpack.c.l.b16 %v407
        %v1694 = vunpack.c.h.b16 %v407
        %v1695 = vunpack.c.l.b16 %v408
        %v1696 = vunpack.c.h.b16 %v408
        %v1697 = vunpack.c.l.b16 %v409
        %v1698 = vunpack.c.h.b16 %v409
        %v1699 = vunpack.c.l.b16 %v410
        %v1700 = vunpack.c.h.b16 %v410
        %v1701 = vunpack.c.l.b16 %v411
        %v1702 = vunpack.c.h.b16 %v411
        %v1703 = vunpack.c.l.b16 %v412
        %v1704 = vunpack.c.h.b16 %v412
        %v1705 = vunpack.c.l.b16 %v413
        %v1706 = vunpack.c.h.b16 %v413
        %v1707 = vunpack.c.l.b16 %v414
        %v1708 = vunpack.c.h.b16 %v414
        %v1709 = vunpack.c.l.b16 %v415
        %v1710 = vunpack.c.h.b16 %v415
        %v1711 = vunpack.c.l.b16 %v416
        %v1712 = vunpack.c.h.b16 %v416
        %v1713 = vunpack.c.l.b16 %v417
        %v1714 = vunpack.c.h.b16 %v417
        %v1715 = vunpack.c.l.b16 %v418
        %v1716 = vunpack.c.h.b16 %v418
        %v1717 = vunpack.c.l.b16 %v419
        %v1718 = vunpack.c.h.b16 %v419
        %v1719 = vunpack.c.l.b16 %v420
        %v1720 = vunpack.c.h.b16 %v420
        %v1721 = vunpack.c.l.b16 %v421
        %v1722 = vunpack.c.h.b16 %v421
        %v1723 = vunpack.c.l.b16 %v422
        %v1724 = vunpack.c.h.b16 %v422
        %v1725 = vunpack.c.l.b16 %v423
        %v1726 = vunpack.c.h.b16 %v423
        %v1727 = vunpack.c.l.b16 %v424
        %v1728 = vunpack.c.h.b16 %v424
        %v1729 = vunpack.c.l.b16 %v425
        %v1730 = vunpack.c.h.b16 %v425
        %v1731 = vunpack.c.l.b16 %v426
        %v1732 = vunpack.c.h.b16 %v426
        %v1733 = vunpack.c.l.b16 %v427
        %v1734 = vunpack.c.h.b16 %v427
        %v1735 = vunpack.c.l.b16 %v428
        %v1736 = vunpack.c.h.b16 %v428
        %v1737 = vunpack.c.l.b16 %v429
        %v1738 = vunpack.c.h.b16 %v429
        %v1739 = vunpack.c.l.b16 %v430
        %v1740 = vunpack.c.h.b16 %v430
        %v1741 = vunpack.c.l.b16 %v431
        %v1742 = vunpack.c.h.b16 %v431
        %v1743 = vunpack.c.l.b16 %v432
        %v1744 = vunpack.c.h.b16 %v432
        %v1745 = vunpack.c.l.b16 %v433
        %v1746 = vunpack.c.h.b16 %v433
        %v1747 = vunpack.c.l.b16 %v434
        %v1748 = vunpack.c.h.b16 %v434
        %v1749 = vunpack.c.l.b16 %v435
        %v1750 = vunpack.c.h.b16 %v435
        %v1751 = vunpack.c.l.b16 %v436
        %v1752 = vunpack.c.h.b16 %v436
        %v1753 = vunpack.c.l.b16 %v437
        %v1754 = vunpack.c.h.b16 %v437
        %v1755 = vunpack.c.l.b16 %v438
        %v1756 = vunpack.c.h.b16 %v438
        %v1757 = vunpack.c.l.b16 %v439
        %v1758 = vunpack.c.h.b16 %v439
        %v1759 = vunpack.c.l.b16 %v440
        %v1760 = vunpack.c.h.b16 %v440
        %v1761 = vunpack.c.l.b16 %v441
        %v1762 = vunpack.c.h.b16 %v441
        %v1763 = vunpack.c.l.b16 %v442
        %v1764 = vunpack.c.h.b16 %v442
        %v1765 = vunpack.c.l.b16 %v443
        %v1766 = vunpack.c.h.b16 %v443
        %v1767 = vunpack.c.l.b16 %v444
        %v1768 = vunpack.c.h.b16 %v444
        %v1769 = vunpack.c.l.b16 %v445
        %v1770 = vunpack.c.h.b16 %v445
        %v1771 = vunpack.c.l.b16 %v446
        %v1772 = vunpack.c.h.b16 %v446
        %v1773 = vunpack.c.l.b16 %v447
        %v1774 = vunpack.c.h.b16 %v447
        %v1775 = vunpack.c.l.b16 %v448
        %v1776 = vunpack.c.h.b16 %v448
        %v1777 = vunpack.c.l.b16 %v449
        %v1778 = vunpack.c.h.b16 %v449
        %v1779 = vunpack.c.l.b16 %v450
        %v1780 = vunpack.c.h.b16 %v450
        %v1781 = vunpack.c.l.b16 %v451
        %v1782 = vunpack.c.h.b16 %v451
        %v1783 = vunpack.c.l.b16 %v452
        %v1784 = vunpack.c.h.b16 %v452
        %v1785 = vunpack.c.l.b16 %v453
        %v1786 = vunpack.c.h.b16 %v453
        %v1787 = vunpack.c.l.b16 %v454
        %v1788 = vunpack.c.h.b16 %v454
        %v1789 = vunpack.c.l.b16 %v455
        %v1790 = vunpack.c.h.b16 %v455
        %v1791 = vunpack.c.l.b16 %v456
        %v1792 = vunpack.c.h.b16 %v456
        %v1793 = vunpack.c.l.b16 %v457
        %v1794 = vunpack.c.h.b16 %v457
        %v1795 = vunpack.c.l.b16 %v458
        %v1796 = vunpack.c.h.b16 %v458
        %v1797 = vunpack.c.l.b16 %v459
        %v1798 = vunpack.c.h.b16 %v459
        %v1799 = vunpack.c.l.b16 %v460
        %v1800 = vunpack.c.h.b16 %v460
        %v1801 = vunpack.c.l.b16 %v461
        %v1802 = vunpack.c.h.b16 %v461
        %v1803 = vunpack.c.l.b16 %v462
        %v1804 = vunpack.c.h.b16 %v462
        %v1805 = vunpack.c.l.b16 %v463
        %v1806 = vunpack.c.h.b16 %v463
        %v1807 = vunpack.c.l.b16 %v464
        %v1808 = vunpack.c.h.b16 %v464
        %v1809 = vunpack.c.l.b16 %v465
        %v1810 = vunpack.c.h.b16 %v465
        %v1811 = vunpack.c.l.b16 %v466
        %v1812 = vunpack.c.h.b16 %v466
        %v1813 = vunpack.c.l.b16 %v467
        %v1814 = vunpack.c.h.b16 %v467
        %v1815 = vunpack.c.l.b16 %v468
        %v1816 = vunpack.c.h.b16 %v468
        %v1817 = vunpack.c.l.b16 %v469
        %v1818 = vunpack.c.h.b16 %v469
        %v1819 = vunpack.c.l.b16 %v470
        %v1820 = vunpack.c.h.b16 %v470
        %v1821 = vunpack.c.l.b16 %v471
        %v1822 = vunpack.c.h.b16 %v471
        %v1823 = vunpack.c.l.b16 %v472
        %v1824 = vunpack.c.h.b16 %v472
        %v1825 = vunpack.c.l.b16 %v473
        %v1826 = vunpack.c.h.b16 %v473
        %v1827 = vunpack.c.l.b16 %v474
        %v1828 = vunpack.c.h.b16 %v474
        %v1829 = vunpack.c.l.b16 %v475
        %v1830 = vunpack.c.h.b16 %v475
        %v1831 = vunpack.c.l.b16 %v476
        %v1832 = vunpack.c.h.b16 %v476
        %v1833 = vunpack.c.l.b16 %v477
        %v1834 = vunpack.c.h.b16 %v477
        %v1835 = vunpack.c.l.b16 %v478
        %v1836 = vunpack.c.h.b16 %v478
        %v1837 = vunpack.c.l.b16 %v479
        %v1838 = vunpack.c.h.b16 %v479
        %v1839 = vunpack.c.l.b16 %v480
        %v1840 = vunpack.c.h.b16 %v480
        %v1841 = vunpack.c.l.b16 %v481
        %v1842 = vunpack.c.h.b16 %v481
        %v1843 = vunpack.c.l.b16 %v482
        %v1844 = vunpack.c.h.b16 %v482
        %v1845 = vunpack.c.l.b16 %v483
        %v1846 = vunpack.c.h.b16 %v483
        %v1847 = vunpack.c.l.b16 %v484
        %v1848 = vunpack.c.h.b16 %v484
        %v1849 = vunpack.c.l.b16 %v485
        %v1850 = vunpack.c.h.b16 %v485
        %v1851 = vunpack.c.l.b16 %v486
        %v1852 = vunpack.c.h.b16 %v486
        %v1853 = vunpack.c.l.b16 %v487
        %v1854 = vunpack.c.h.b16 %v487
        %v1855 = vunpack.c.l.b16 %v488
        %v1856 = vunpack.c.h.b16 %v488
        %v1857 = vunpack.c.l.b16 %v489
        %v1858 = vunpack.c.h.b16 %v489
        %v1859 = vunpack.c.l.b16 %v490
        %v1860 = vunpack.c.h.b16 %v490
        %v1861 = vunpack.c.l.b16 %v491
        %v1862 = vunpack.c.h.b16 %v491
        %v1863 = vunpack.c.l.b16 %v492
        %v1864 = vunpack.c.h.b16 %v492
        %v1865 = vunpack.c.l.b16 %v493
        %v1866 = vunpack.c.h.b16 %v493
        %v1867 = vunpack.c.l.b16 %v494
        %v1868 = vunpack.c.h.b16 %v494
        %v1869 = vunpack.c.l.b16 %v495
        %v1870 = vunpack.c.h.b16 %v495
        %v1871 = vunpack.c.l.b16 %v496
        %v1872 = vunpack.c.h.b16 %v496
        %v1873 = vunpack.c.l.b16 %v497
        %v1874 = vunpack.c.h.b16 %v497
        %v1875 = vunpack.c.l.b16 %v498
        %v1876 = vunpack.c.h.b16 %v498
        %v1877 = vunpack.c.l.b16 %v499
        %v1878 = vunpack.c.h.b16 %v499
        %v1879 = vunpack.c.l.b16 %v500
        %v1880 = vunpack.c.h.b16 %v500
        %v1881 = vunpack.c.l.b16 %v501
        %v1882 = vunpack.c.h.b16 %v501
        %v1883 = vunpack.c.l.b16 %v502
        %v1884 = vunpack.c.h.b16 %v502
        %v1885 = vunpack.c.l.b16 %v503
        %v1886 = vunpack.c.h.b16 %v503
        %v1887 = vunpack.c.l.b16 %v504
        %v1888 = vunpack.c.h.b16 %v504
        %v1889 = vunpack.c.l.b16 %v505
        %v1890 = vunpack.c.h.b16 %v505
        %v1891 = vunpack.c.l.b16 %v506
        %v1892 = vunpack.c.h.b16 %v506
        %v1893 = vunpack.c.l.b16 %v507
        %v1894 = vunpack.c.h.b16 %v507
        %v1895 = vunpack.c.l.b16 %v508
        %v1896 = vunpack.c.h.b16 %v508
        %v1897 = vunpack.c.l.b16 %v509
        %v1898 = vunpack.c.h.b16 %v509
        %v1899 = vunpack.c.l.b16 %v510
        %v1900 = vunpack.c.h.b16 %v510
        %v1901 = vunpack.c.l.b16 %v511
        %v1902 = vunpack.c.h.b16 %v511
        %v1903 = vunpack.c.l.b16 %v512
        %v1904 = vunpack.c.h.b16 %v512
        %v1905 = vunpack.c.l.b16 %v513
        %v1906 = vunpack.c.h.b16 %v513
        %v1907 = vunpack.c.l.b16 %v514
        %v1908 = vunpack.c.h.b16 %v514
        %v1909 = vunpack.c.l.b16 %v515
        %v1910 = vunpack.c.h.b16 %v515
        %v1911 = vunpack.c.l.b16 %v516
        %v1912 = vunpack.c.h.b16 %v516
        %v1913 = vunpack.c.l.b16 %v517
        %v1914 = vunpack.c.h.b16 %v517
        %v1915 = vunpack.c.l.b16 %v518
        %v1916 = vunpack.c.h.b16 %v518
        %v1917 = vunpack.c.l.b16 %v519
        %v1918 = vunpack.c.h.b16 %v519
        %v1919 = vunpack.c.l.b16 %v520
        %v1920 = vunpack.c.h.b16 %v520
        %v1921 = vunpack.c.l.b16 %v521
        %v1922 = vunpack.c.h.b16 %v521
        %v1923 = vunpack.c.l.b16 %v522
        %v1924 = vunpack.c.h.b16 %v522
        %v1925 = vunpack.c.l.b16 %v523
        %v1926 = vunpack.c.h.b16 %v523
        %v1927 = vunpack.c.l.b16 %v524
        %v1928 = vunpack.c.h.b16 %v524
        %v1929 = vunpack.c.l.b16 %v525
        %v1930 = vunpack.c.h.b16 %v525
        %v1931 = vunpack.c.l.b16 %v526
        %v1932 = vunpack.c.h.b16 %v526
        %v1933 = vunpack.c.l.b16 %v527
        %v1934 = vunpack.c.h.b16 %v527
        %v1935 = vunpack.c.l.b16 %v528
        %v1936 = vunpack.c.h.b16 %v528
        %v1937 = vunpack.c.l.b16 %v529
        %v1938 = vunpack.c.h.b16 %v529
        %v1939 = vunpack.c.l.b16 %v530
        %v1940 = vunpack.c.h.b16 %v530
        %v1941 = vunpack.c.l.b16 %v531
        %v1942 = vunpack.c.h.b16 %v531
        %v1943 = vunpack.c.l.b16 %v532
        %v1944 = vunpack.c.h.b16 %v532
        %v1945 = vunpack.c.l.b16 %v533
        %v1946 = vunpack.c.h.b16 %v533
        %v1947 = vunpack.c.l.b16 %v534
        %v1948 = vunpack.c.h.b16 %v534
        %v1949 = vunpack.c.l.b16 %v535
        %v1950 = vunpack.c.h.b16 %v535
        %v1951 = vunpack.c.l.b16 %v536
        %v1952 = vunpack.c.h.b16 %v536
        %v1953 = vunpack.c.l.b16 %v537
        %v1954 = vunpack.c.h.b16 %v537
        %v1955 = vunpack.c.l.b16 %v538
        %v1956 = vunpack.c.h.b16 %v538
        %v1957 = vunpack.c.l.b16 %v539
        %v1958 = vunpack.c.h.b16 %v539
        %v1959 = vunpack.c.l.b16 %v540
        %v1960 = vunpack.c.h.b16 %v540
        %v1961 = vunpack.c.l.b16 %v541
        %v1962 = vunpack.c.h.b16 %v541
        %v1963 = vunpack.c.l.b16 %v542
        %v1964 = vunpack.c.h.b16 %v542
        %v1965 = vunpack.c.l.b16 %v543
        %v1966 = vunpack.c.h.b16 %v543
        %v1967 = vunpack.c.l.b16 %v544
        %v1968 = vunpack.c.h.b16 %v544
        %v1969 = vunpack.c.l.b16 %v545
        %v1970 = vunpack.c.h.b16 %v545
        %v1971 = vunpack.c.l.b16 %v546
        %v1972 = vunpack.c.h.b16 %v546
        %v1973 = vunpack.c.l.b16 %v547
        %v1974 = vunpack.c.h.b16 %v547
        %v1975 = vunpack.c.l.b16 %v548
        %v1976 = vunpack.c.h.b16 %v548
        %v1977 = vunpack.c.l.b16 %v549
        %v1978 = vunpack.c.h.b16 %v549
        %v1979 = vunpack.c.l.b16 %v550
        %v1980 = vunpack.c.h.b16 %v550
        %v1981 = vunpack.c.l.b16 %v551
        %v1982 = vunpack.c.h.b16 %v551
        %v1983 = vunpack.c.l.b16 %v552
        %v1984 = vunpack.c.h.b16 %v552
        %v1985 = vunpack.c.l.b16 %v553
        %v1986 = vunpack.c.h.b16 %v553
        %v1987 = vunpack.c.l.b16 %v554
        %v1988 = vunpack.c.h.b16 %v554
        %v1989 = vunpack.c.l.b16 %v555
        %v1990 = vunpack.c.h.b16 %v555
        %v1991 = vunpack.c.l.b16 %v556
        %v1992 = vunpack.c.h.b16 %v556
        %v1993 = vunpack.c.l.b16 %v557
        %v1994 = vunpack.c.h.b16 %v557
        %v1995 = vunpack.c.l.b16 %v558
        %v1996 = vunpack.c.h.b16 %v558
        %v1997 = vunpack.c.l.b16 %v559
        %v1998 = vunpack.c.h.b16 %v559
        %v1999 = vunpack.c.l.b16 %v560
        %v2000 = vunpack.c.h.b16 %v560
        %v2001 = vunpack.c.l.b16 %v561
        %v2002 = vunpack.c.h.b16 %v561
        %v2003 = vunpack.c.l.b16 %v562
        %v2004 = vunpack.c.h.b16 %v562
        %v2005 = vunpack.c.l.b16 %v563
        %v2006 = vunpack.c.h.b16 %v563
        %v2007 = vunpack.c.l.b16 %v564
        %v2008 = vunpack.c.h.b16 %v564
        %v2009 = vunpack.c.l.b16 %v565
        %v2010 = vunpack.c.h.b16 %v565
        %v2011 = vunpack.c.l.b16 %v566
        %v2012 = vunpack.c.h.b16 %v566
        %v2013 = vunpack.c.l.b16 %v567
        %v2014 = vunpack.c.h.b16 %v567
        %v2015 = vunpack.c.l.b16 %v568
        %v2016 = vunpack.c.h.b16 %v568
        %v2017 = vunpack.c.l.b16 %v569
        %v2018 = vunpack.c.h.b16 %v569
        %v2019 = vunpack.c.l.b16 %v570
        %v2020 = vunpack.c.h.b16 %v570
        %v2021 = vunpack.c.l.b16 %v571
        %v2022 = vunpack.c.h.b16 %v571
        %v2023 = vunpack.c.l.b16 %v572
        %v2024 = vunpack.c.h.b16 %v572
        %v2025 = vunpack.c.l.b16 %v573
        %v2026 = vunpack.c.h.b16 %v573
        %v2027 = vunpack.c.l.b16 %v574
        %v2028 = vunpack.c.h.b16 %v574
        %v2029 = vunpack.c.l.b16 %v575
        %v2030 = vunpack.c.h.b16 %v575
        %v2031 = vunpack.c.l.b16 %v576
        %v2032 = vunpack.c.h.b16 %v576
        %v2033 = vunpack.c.l.b16 %v577
        %v2034 = vunpack.c.h.b16 %v577
        %v2035 = vunpack.c.l.b16 %v578
        %v2036 = vunpack.c.h.b16 %v578
        %v2037 = vunpack.c.l.b16 %v579
        %v2038 = vunpack.c.h.b16 %v579
        %v2039 = vunpack.c.l.b16 %v580
        %v2040 = vunpack.c.h.b16 %v580
        %v2041 = vunpack.c.l.b16 %v581
        %v2042 = vunpack.c.h.b16 %v581
        %v2043 = vunpack.c.l.b16 %v582
        %v2044 = vunpack.c.h.b16 %v582
        %v2045 = vunpack.c.l.b16 %v583
        %v2046 = vunpack.c.h.b16 %v583
        %v2047 = vunpack.c.l.b16 %v584
        %v2048 = vunpack.c.h.b16 %v584
        %v2049 = vunpack.c.l.b16 %v585
        %v2050 = vunpack.c.h.b16 %v585
        %v2051 = vunpack.c.l.b16 %v586
        %v2052 = vunpack.c.h.b16 %v586
        %v2053 = vunpack.c.l.b16 %v587
        %v2054 = vunpack.c.h.b16 %v587
        %v2055 = vunpack.c.l.b16 %v588
        %v2056 = vunpack.c.h.b16 %v588
        %v2057 = vunpack.c.l.b16 %v589
        %v2058 = vunpack.c.h.b16 %v589
        %v2059 = vunpack.c.l.b16 %v590
        %v2060 = vunpack.c.h.b16 %v590
        %v2061 = vunpack.c.l.b16 %v591
        %v2062 = vunpack.c.h.b16 %v591
        %v2063 = vunpack.c.l.b16 %v592
        %v2064 = vunpack.c.h.b16 %v592
        %v2065 = vunpack.c.l.b16 %v593
        %v2066 = vunpack.c.h.b16 %v593
        %v2067 = vunpack.c.l.b16 %v594
        %v2068 = vunpack.c.h.b16 %v594
        %v2069 = vunpack.c.l.b16 %v595
        %v2070 = vunpack.c.h.b16 %v595
        %v2071 = vunpack.c.l.b16 %v596
        %v2072 = vunpack.c.h.b16 %v596
        %v2073 = vunpack.c.l.b16 %v597
        %v2074 = vunpack.c.h.b16 %v597
        %v2075 = vunpack.c.l.b16 %v598
        %v2076 = vunpack.c.h.b16 %v598
        %v2077 = vunpack.c.l.b16 %v599
        %v2078 = vunpack.c.h.b16 %v599
        %v2079 = vunpack.c.l.b16 %v600
        %v2080 = vunpack.c.h.b16 %v600
        %v2081 = vunpack.c.l.b16 %v601
        %v2082 = vunpack.c.h.b16 %v601
        %v2083 = vunpack.c.l.b16 %v602
        %v2084 = vunpack.c.h.b16 %v602
        %v2085 = vunpack.c.l.b16 %v603
        %v2086 = vunpack.c.h.b16 %v603
        %v2087 = vunpack.c.l.b16 %v604
        %v2088 = vunpack.c.h.b16 %v604
        %v2089 = vunpack.c.l.b16 %v605
        %v2090 = vunpack.c.h.b16 %v605
        %v2091 = vunpack.c.l.b16 %v606
        %v2092 = vunpack.c.h.b16 %v606
        %v2093 = vunpack.c.l.b16 %v607
        %v2094 = vunpack.c.h.b16 %v607
        %v2095 = vunpack.c.l.b16 %v608
        %v2096 = vunpack.c.h.b16 %v608
        %v2097 = vunpack.c.l.b16 %v609
        %v2098 = vunpack.c.h.b16 %v609
        %v2099 = vunpack.c.l.b16 %v610
        %v2100 = vunpack.c.h.b16 %v610
        %v2101 = vunpack.c.l.b16 %v611
        %v2102 = vunpack.c.h.b16 %v611
        %v2103 = vunpack.c.l.b16 %v612
        %v2104 = vunpack.c.h.b16 %v612
        %v2105 = vunpack.c.l.b16 %v613
        %v2106 = vunpack.c.h.b16 %v613
        %v2107 = vunpack.c.l.b16 %v614
        %v2108 = vunpack.c.h.b16 %v614
        %v2109 = vunpack.c.l.b16 %v615
        %v2110 = vunpack.c.h.b16 %v615
        %v2111 = vunpack.c.l.b16 %v616
        %v2112 = vunpack.c.h.b16 %v616
        %v2113 = vunpack.c.l.b16 %v617
        %v2114 = vunpack.c.h.b16 %v617
        %v2115 = vunpack.c.l.b16 %v618
        %v2116 = vunpack.c.h.b16 %v618
        %v2117 = vunpack.c.l.b16 %v619
        %v2118 = vunpack.c.h.b16 %v619
        %v2119 = vunpack.c.l.b16 %v620
        %v2120 = vunpack.c.h.b16 %v620
        %v2121 = vunpack.c.l.b16 %v621
        %v2122 = vunpack.c.h.b16 %v621
        %v2123 = vunpack.c.l.b16 %v622
        %v2124 = vunpack.c.h.b16 %v622
        %v2125 = vunpack.c.l.b16 %v623
        %v2126 = vunpack.c.h.b16 %v623
        %v2127 = vunpack.c.l.b16 %v624
        %v2128 = vunpack.c.h.b16 %v624
        %v2129 = vunpack.c.l.b16 %v625
        %v2130 = vunpack.c.h.b16 %v625
        %v2131 = vunpack.c.l.b16 %v626
        %v2132 = vunpack.c.h.b16 %v626
        %v2133 = vunpack.c.l.b16 %v627
        %v2134 = vunpack.c.h.b16 %v627
        %v2135 = vunpack.c.l.b16 %v628
        %v2136 = vunpack.c.h.b16 %v628
        %v2137 = vunpack.c.l.b16 %v629
        %v2138 = vunpack.c.h.b16 %v629
        %v2139 = vunpack.c.l.b16 %v630
        %v2140 = vunpack.c.h.b16 %v630
        %v2141 = vunpack.c.l.b16 %v631
        %v2142 = vunpack.c.h.b16 %v631
        %v2143 = vunpack.c.l.b16 %v632
        %v2144 = vunpack.c.h.b16 %v632
        %v2145 = vunpack.c.l.b16 %v633
        %v2146 = vunpack.c.h.b16 %v633
        %v2147 = vunpack.c.l.b16 %v634
        %v2148 = vunpack.c.h.b16 %v634
        %v2149 = vunpack.c.l.b16 %v635
        %v2150 = vunpack.c.h.b16 %v635
        %v2151 = vunpack.c.l.b16 %v636
        %v2152 = vunpack.c.h.b16 %v636
        %v2153 = vunpack.c.l.b16 %v637
        %v2154 = vunpack.c.h.b16 %v637
        %v2155 = vunpack.c.l.b16 %v638
        %v2156 = vunpack.c.h.b16 %v638
        %v2157 = vunpack.c.l.b16 %v639
        %v2158 = vunpack.c.h.b16 %v639
        %v2159 = vunpack.c.l.b16 %v640
        %v2160 = vunpack.c.h.b16 %v640
        %v2161 = vunpack.c.l.b16 %v641
        %v2162 = vunpack.c.h.b16 %v641
        %v2163 = vunpack.c.l.b16 %v642
        %v2164 = vunpack.c.h.b16 %v642
        %v2165 = vunpack.c.l.b16 %v643
        %v2166 = vunpack.c.h.b16 %v643
        %v2167 = vunpack.c.l.b16 %v644
        %v2168 = vunpack.c.h.b16 %v644
        %v2169 = vunpack.c.l.b16 %v645
        %v2170 = vunpack.c.h.b16 %v645
        %v2171 = vunpack.c.l.b16 %v646
        %v2172 = vunpack.c.h.b16 %v646
        %v2173 = vunpack.c.l.b16 %v647
        %v2174 = vunpack.c.h.b16 %v647
        %v2175 = vunpack.c.l.b16 %v648
        %v2176 = vunpack.c.h.b16 %v648
        %v2177 = vunpack.c.l.b16 %v649
        %v2178 = vunpack.c.h.b16 %v649
        %v2179 = vunpack.c.l.b16 %v650
        %v2180 = vunpack.c.h.b16 %v650
        %v2181 = vunpack.c.l.b16 %v651
        %v2182 = vunpack.c.h.b16 %v651
        %v2183 = vunpack.c.l.b16 %v652
        %v2184 = vunpack.c.h.b16 %v652
        %v2185 = vunpack.c.l.b16 %v653
        %v2186 = vunpack.c.h.b16 %v653
        %v2187 = vunpack.c.l.b16 %v654
        %v2188 = vunpack.c.h.b16 %v654
        %v2189 = vunpack.c.l.b16 %v655
        %v2190 = vunpack.c.h.b16 %v655
        %v2191 = vunpack.c.l.b16 %v656
        %v2192 = vunpack.c.h.b16 %v656
        %v2193 = vunpack.c.l.b16 %v657
        %v2194 = vunpack.c.h.b16 %v657
        %v2195 = vunpack.c.l.b16 %v658
        %v2196 = vunpack.c.h.b16 %v658
        %v2197 = vunpack.c.l.b16 %v659
        %v2198 = vunpack.c.h.b16 %v659
        %v2199 = vunpack.c.l.b16 %v660
        %v2200 = vunpack.c.h.b16 %v660
        %v2201 = vunpack.c.l.b16 %v661
        %v2202 = vunpack.c.h.b16 %v661
        %v2203 = vunpack.c.l.b16 %v662
        %v2204 = vunpack.c.h.b16 %v662
        %v2205 = vunpack.c.l.b16 %v663
        %v2206 = vunpack.c.h.b16 %v663
        %v2207 = vunpack.c.l.b16 %v664
        %v2208 = vunpack.c.h.b16 %v664
        %v2209 = vunpack.c.l.b16 %v665
        %v2210 = vunpack.c.h.b16 %v665
        %v2211 = vunpack.c.l.b16 %v666
        %v2212 = vunpack.c.h.b16 %v666
        %v2213 = vunpack.c.l.b16 %v667
        %v2214 = vunpack.c.h.b16 %v667
        %v2215 = vunpack.c.l.b16 %v668
        %v2216 = vunpack.c.h.b16 %v668
        %v2217 = vunpack.c.l.b16 %v669
        %v2218 = vunpack.c.h.b16 %v669
        %v2219 = vunpack.c.l.b16 %v670
        %v2220 = vunpack.c.h.b16 %v670
        %v2221 = vunpack.c.l.b16 %v671
        %v2222 = vunpack.c.h.b16 %v671
        %v2223 = vunpack.c.l.b16 %v672
        %v2224 = vunpack.c.h.b16 %v672
        %v2225 = vunpack.c.l.b16 %v673
        %v2226 = vunpack.c.h.b16 %v673
        %v2227 = vunpack.c.l.b16 %v674
        %v2228 = vunpack.c.h.b16 %v674
        %v2229 = vunpack.c.l.b16 %v675
        %v2230 = vunpack.c.h.b16 %v675
        %v2231 = vunpack.c.l.b16 %v676
        %v2232 = vunpack.c.h.b16 %v676
        %v2233 = vunpack.c.l.b16 %v677
        %v2234 = vunpack.c.h.b16 %v677
        %v2235 = vunpack.c.l.b16 %v678
        %v2236 = vunpack.c.h.b16 %v678
        %v2237 = vunpack.c.l.b16 %v679
        %v2238 = vunpack.c.h.b16 %v679
        %v2239 = vunpack.c.l.b16 %v680
        %v2240 = vunpack.c.h.b16 %v680
        %v2241 = vunpack.c.l.b16 %v681
        %v2242 = vunpack.c.h.b16 %v681
        %v2243 = vunpack.c.l.b16 %v682
        %v2244 = vunpack.c.h.b16 %v682
        %v2245 = vunpack.c.l.b16 %v683
        %v2246 = vunpack.c.h.b16 %v683
        %v2247 = vunpack.c.l.b16 %v684
        %v2248 = vunpack.c.h.b16 %v684
        %v2249 = vunpack.c.l.b16 %v685
        %v2250 = vunpack.c.h.b16 %v685
        %v2251 = vunpack.c.l.b16 %v686
        %v2252 = vunpack.c.h.b16 %v686
        %v2253 = vunpack.c.l.b16 %v687
        %v2254 = vunpack.c.h.b16 %v687
        %v2255 = vunpack.c.l.b16 %v688
        %v2256 = vunpack.c.h.b16 %v688
        %v2257 = vunpack.c.l.b16 %v689
        %v2258 = vunpack.c.h.b16 %v689
        %v2259 = vunpack.c.l.b16 %v690
        %v2260 = vunpack.c.h.b16 %v690
        %v2261 = vunpack.c.l.b16 %v691
        %v2262 = vunpack.c.h.b16 %v691
        %v2263 = vunpack.c.l.b16 %v692
        %v2264 = vunpack.c.h.b16 %v692
        %v2265 = vunpack.c.l.b16 %v693
        %v2266 = vunpack.c.h.b16 %v693
        %v2267 = vunpack.c.l.b16 %v694
        %v2268 = vunpack.c.h.b16 %v694
        %v2269 = vunpack.c.l.b16 %v695
        %v2270 = vunpack.c.h.b16 %v695
        %v2271 = vunpack.c.l.b16 %v696
        %v2272 = vunpack.c.h.b16 %v696
        %v2273 = vunpack.c.l.b16 %v697
        %v2274 = vunpack.c.h.b16 %v697
        %v2275 = vunpack.c.l.b16 %v698
        %v2276 = vunpack.c.h.b16 %v698
        %v2277 = vunpack.c.l.b16 %v699
        %v2278 = vunpack.c.h.b16 %v699
        %v2279 = vunpack.c.l.b16 %v700
        %v2280 = vunpack.c.h.b16 %v700
        %v2281 = vunpack.c.l.b16 %v701
        %v2282 = vunpack.c.h.b16 %v701
        %v2283 = vunpack.c.l.b16 %v702
        %v2284 = vunpack.c.h.b16 %v702
        %v2285 = vunpack.c.l.b16 %v703
        %v2286 = vunpack.c.h.b16 %v703
        %v2287 = vunpack.c.l.b16 %v704
        %v2288 = vunpack.c.h.b16 %v704
        %v2289 = vunpack.c.l.b16 %v705
        %v2290 = vunpack.c.h.b16 %v705
        %v2291 = vunpack.c.l.b16 %v706
        %v2292 = vunpack.c.h.b16 %v706
        %v2293 = vunpack.c.l.b16 %v707
        %v2294 = vunpack.c.h.b16 %v707
        %v2295 = vunpack.c.l.b16 %v708
        %v2296 = vunpack.c.h.b16 %v708
        %v2297 = vunpack.c.l.b16 %v709
        %v2298 = vunpack.c.h.b16 %v709
        %v2299 = vunpack.c.l.b16 %v710
        %v2300 = vunpack.c.h.b16 %v710
        %v2301 = vunpack.c.l.b16 %v711
        %v2302 = vunpack.c.h.b16 %v711
        %v2303 = vunpack.c.l.b16 %v712
        %v2304 = vunpack.c.h.b16 %v712
        %v2305 = vunpack.c.l.b16 %v713
        %v2306 = vunpack.c.h.b16 %v713
        %v2307 = vunpack.c.l.b16 %v714
        %v2308 = vunpack.c.h.b16 %v714
        %v2309 = vunpack.c.l.b16 %v715
        %v2310 = vunpack.c.h.b16 %v715
        %v2311 = vunpack.c.l.b16 %v716
        %v2312 = vunpack.c.h.b16 %v716
        %v2313 = vunpack.c.l.b16 %v717
        %v2314 = vunpack.c.h.b16 %v717
        %v2315 = vunpack.c.l.b16 %v718
        %v2316 = vunpack.c.h.b16 %v718
        %v2317 = vunpack.c.l.b16 %v719
        %v2318 = vunpack.c.h.b16 %v719
        %v2319 = vunpack.c.l.b16 %v720
        %v2320 = vunpack.c.h.b16 %v720
        %v2321 = vunpack.c.l.b16 %v721
        %v2322 = vunpack.c.h.b16 %v721
        %v2323 = vunpack.c.l.b16 %v722
        %v2324 = vunpack.c.h.b16 %v722
        %v2325 = vunpack.c.l.b16 %v723
        %v2326 = vunpack.c.h.b16 %v723
        %v2327 = vunpack.c.l.b16 %v724
        %v2328 = vunpack.c.h.b16 %v724
        %v2329 = vunpack.c.l.b16 %v725
        %v2330 = vunpack.c.h.b16 %v725
        %v2331 = vunpack.c.l.b16 %v726
        %v2332 = vunpack.c.h.b16 %v726
        %v2333 = vunpack.c.l.b16 %v727
        %v2334 = vunpack.c.h.b16 %v727
        %v2335 = vunpack.c.l.b16 %v728
        %v2336 = vunpack.c.h.b16 %v728
        %v2337 = vunpack.c.l.b16 %v729
        %v2338 = vunpack.c.h.b16 %v729
        %v2339 = vunpack.c.l.b16 %v730
        %v2340 = vunpack.c.h.b16 %v730
        %v2341 = vunpack.c.l.b16 %v731
        %v2342 = vunpack.c.h.b16 %v731
        %v2343 = vunpack.c.l.b16 %v732
        %v2344 = vunpack.c.h.b16 %v732
        %v2345 = vunpack.c.l.b16 %v733
        %v2346 = vunpack.c.h.b16 %v733
        %v2347 = vunpack.c.l.b16 %v734
        %v2348 = vunpack.c.h.b16 %v734
        %v2349 = vunpack.c.l.b16 %v735
        %v2350 = vunpack.c.h.b16 %v735
        %v2351 = vunpack.c.l.b16 %v736
        %v2352 = vunpack.c.h.b16 %v736
        %v2353 = vunpack.c.l.b16 %v737
        %v2354 = vunpack.c.h.b16 %v737
        %v2355 = vunpack.c.l.b16 %v738
        %v2356 = vunpack.c.h.b16 %v738
        %v2357 = vunpack.c.l.b16 %v739
        %v2358 = vunpack.c.h.b16 %v739
        %v2359 = vunpack.c.l.b16 %v740
        %v2360 = vunpack.c.h.b16 %v740
        %v2361 = vunpack.c.l.b16 %v741
        %v2362 = vunpack.c.h.b16 %v741
        %v2363 = vunpack.c.l.b16 %v742
        %v2364 = vunpack.c.h.b16 %v742
        %v2365 = vunpack.c.l.b16 %v743
        %v2366 = vunpack.c.h.b16 %v743
        %v2367 = vunpack.c.l.b16 %v744
        %v2368 = vunpack.c.h.b16 %v744
        %v2369 = vunpack.c.l.b16 %v745
        %v2370 = vunpack.c.h.b16 %v745
        %v2371 = vunpack.c.l.b16 %v746
        %v2372 = vunpack.c.h.b16 %v746
        %v2373 = vunpack.c.l.b16 %v747
        %v2374 = vunpack.c.h.b16 %v747
        %v2375 = vunpack.c.l.b16 %v748
        %v2376 = vunpack.c.h.b16 %v748
        %v2377 = vunpack.c.l.b16 %v749
        %v2378 = vunpack.c.h.b16 %v749
        %v2379 = vunpack.c.l.b16 %v750
        %v2380 = vunpack.c.h.b16 %v750
        %v2381 = vunpack.c.l.b16 %v751
        %v2382 = vunpack.c.h.b16 %v751
        %v2383 = vunpack.c.l.b16 %v752
        %v2384 = vunpack.c.h.b16 %v752
        %v2385 = vunpack.c.l.b16 %v753
        %v2386 = vunpack.c.h.b16 %v753
        %v2387 = vunpack.c.l.b16 %v754
        %v2388 = vunpack.c.h.b16 %v754
        %v2389 = vunpack.c.l.b16 %v755
        %v2390 = vunpack.c.h.b16 %v755
        %v2391 = vunpack.c.l.b16 %v756
        %v2392 = vunpack.c.h.b16 %v756
        %v2393 = vunpack.c.l.b16 %v757
        %v2394 = vunpack.c.h.b16 %v757
        %v2395 = vunpack.c.l.b16 %v758
        %v2396 = vunpack.c.h.b16 %v758
        %v2397 = vunpack.c.l.b16 %v759
        %v2398 = vunpack.c.h.b16 %v759
        %v2399 = vunpack.c.l.b16 %v760
        %v2400 = vunpack.c.h.b16 %v760
        %v2401 = vunpack.c.l.b16 %v761
        %v2402 = vunpack.c.h.b16 %v761
        %v2403 = vunpack.c.l.b16 %v762
        %v2404 = vunpack.c.h.b16 %v762
        %v2405 = vunpack.c.l.b16 %v763
        %v2406 = vunpack.c.h.b16 %v763
        %v2407 = vunpack.c.l.b16 %v764
        %v2408 = vunpack.c.h.b16 %v764
        %v2409 = vunpack.c.l.b16 %v765
        %v2410 = vunpack.c.h.b16 %v765
        %v2411 = vunpack.c.l.b16 %v766
        %v2412 = vunpack.c.h.b16 %v766
        %v2413 = vunpack.c.l.b16 %v767
        %v2414 = vunpack.c.h.b16 %v767
        %v2415 = vunpack.c.l.b16 %v768
        %v2416 = vunpack.c.h.b16 %v768
        %v2417 = vunpack.c.l.b16 %v769
        %v2418 = vunpack.c.h.b16 %v769
        %v2419 = vunpack.c.l.b16 %v770
        %v2420 = vunpack.c.h.b16 %v770
        %v2421 = vunpack.c.l.b16 %v771
        %v2422 = vunpack.c.h.b16 %v771
        %v2423 = vunpack.c.l.b16 %v772
        %v2424 = vunpack.c.h.b16 %v772
        %v2425 = vpack.c.b16 %v1405, %v1401
        %v2426 = vpack.c.b16 %v1406, %v1402
        %v2427 = vpack.c.b16 %v1407, %v1403
        %v2428 = vpack.c.b16 %v1408, %v1404
        %v2429 = vpack.c.b16 %v1413, %v1409
        %v2430 = vpack.c.b16 %v1414, %v1410
        %v2431 = vpack.c.b16 %v1415, %v1411
        %v2432 = vpack.c.b16 %v1416, %v1412
        %v2433 = vpack.c.b16 %v1421, %v1417
        %v2434 = vpack.c.b16 %v1422, %v1418
        %v2435 = vpack.c.b16 %v1423, %v1419
        %v2436 = vpack.c.b16 %v1424, %v1420
        %v2437 = vpack.c.b16 %v1429, %v1425
        %v2438 = vpack.c.b16 %v1430, %v1426
        %v2439 = vpack.c.b16 %v1431, %v1427
        %v2440 = vpack.c.b16 %v1432, %v1428
        %v2441 = vpack.c.b16 %v1437, %v1433
        %v2442 = vpack.c.b16 %v1438, %v1434
        %v2443 = vpack.c.b16 %v1439, %v1435
        %v2444 = vpack.c.b16 %v1440, %v1436
        %v2445 = vpack.c.b16 %v1445, %v1441
        %v2446 = vpack.c.b16 %v1446, %v1442
        %v2447 = vpack.c.b16 %v1447, %v1443
        %v2448 = vpack.c.b16 %v1448, %v1444
        %v2449 = vpack.c.b16 %v1453, %v1449
        %v2450 = vpack.c.b16 %v1454, %v1450
        %v2451 = vpack.c.b16 %v1455, %v1451
        %v2452 = vpack.c.b16 %v1456, %v1452
        %v2453 = vpack.c.b16 %v1461, %v1457
        %v2454 = vpack.c.b16 %v1462, %v1458
        %v2455 = vpack.c.b16 %v1463, %v1459
        %v2456 = vpack.c.b16 %v1464, %v1460
        %v2457 = vpack.c.b16 %v1469, %v1465
        %v2458 = vpack.c.b16 %v1470, %v1466
        %v2459 = vpack.c.b16 %v1471, %v1467
        %v2460 = vpack.c.b16 %v1472, %v1468
        %v2461 = vpack.c.b16 %v1477, %v1473
        %v2462 = vpack.c.b16 %v1478, %v1474
        %v2463 = vpack.c.b16 %v1479, %v1475
        %v2464 = vpack.c.b16 %v1480, %v1476
        %v2465 = vpack.c.b16 %v1485, %v1481
        %v2466 = vpack.c.b16 %v1486, %v1482
        %v2467 = vpack.c.b16 %v1487, %v1483
        %v2468 = vpack.c.b16 %v1488, %v1484
        %v2469 = vpack.c.b16 %v1493, %v1489
        %v2470 = vpack.c.b16 %v1494, %v1490
        %v2471 = vpack.c.b16 %v1495, %v1491
        %v2472 = vpack.c.b16 %v1496, %v1492
        %v2473 = vpack.c.b16 %v1501, %v1497
        %v2474 = vpack.c.b16 %v1502, %v1498
        %v2475 = vpack.c.b16 %v1503, %v1499
        %v2476 = vpack.c.b16 %v1504, %v1500
        %v2477 = vpack.c.b16 %v1509, %v1505
        %v2478 = vpack.c.b16 %v1510, %v1506
        %v2479 = vpack.c.b16 %v1511, %v1507
        %v2480 = vpack.c.b16 %v1512, %v1508
        %v2481 = vpack.c.b16 %v1517, %v1513
        %v2482 = vpack.c.b16 %v1518, %v1514
        %v2483 = vpack.c.b16 %v1519, %v1515
        %v2484 = vpack.c.b16 %v1520, %v1516
        %v2485 = vpack.c.b16 %v1525, %v1521
        %v2486 = vpack.c.b16 %v1526, %v1522
        %v2487 = vpack.c.b16 %v1527, %v1523
        %v2488 = vpack.c.b16 %v1528, %v1524
        %v2489 = vpack.c.b16 %v1533, %v1529
        %v2490 = vpack.c.b16 %v1534, %v1530
        %v2491 = vpack.c.b16 %v1535, %v1531
        %v2492 = vpack.c.b16 %v1536, %v1532
        %v2493 = vpack.c.b16 %v1541, %v1537
        %v2494 = vpack.c.b16 %v1542, %v1538
        %v2495 = vpack.c.b16 %v1543, %v1539
        %v2496 = vpack.c.b16 %v1544, %v1540
        %v2497 = vpack.c.b16 %v1549, %v1545
        %v2498 = vpack.c.b16 %v1550, %v1546
        %v2499 = vpack.c.b16 %v1551, %v1547
        %v2500 = vpack.c.b16 %v1552, %v1548
        %v2501 = vpack.c.b16 %v1557, %v1553
        %v2502 = vpack.c.b16 %v1558, %v1554
        %v2503 = vpack.c.b16 %v1559, %v1555
        %v2504 = vpack.c.b16 %v1560, %v1556
        %v2505 = vpack.c.b16 %v1565, %v1561
        %v2506 = vpack.c.b16 %v1566, %v1562
        %v2507 = vpack.c.b16 %v1567, %v1563
        %v2508 = vpack.c.b16 %v1568, %v1564
        %v2509 = vpack.c.b16 %v1573, %v1569
        %v2510 = vpack.c.b16 %v1574, %v1570
        %v2511 = vpack.c.b16 %v1575, %v1571
        %v2512 = vpack.c.b16 %v1576, %v1572
        %v2513 = vpack.c.b16 %v1581, %v1577
        %v2514 = vpack.c.b16 %v1582, %v1578
        %v2515 = vpack.c.b16 %v1583, %v1579
        %v2516 = vpack.c.b16 %v1584, %v1580
        %v2517 = vpack.c.b16 %v1589, %v1585
        %v2518 = vpack.c.b16 %v1590, %v1586
        %v2519 = vpack.c.b16 %v1591, %v1587
        %v2520 = vpack.c.b16 %v1592, %v1588
        %v2521 = vpack.c.b16 %v1597, %v1593
        %v2522 = vpack.c.b16 %v1598, %v1594
        %v2523 = vpack.c.b16 %v1599, %v1595
        %v2524 = vpack.c.b16 %v1600, %v1596
        %v2525 = vpack.c.b16 %v1605, %v1601
        %v2526 = vpack.c.b16 %v1606, %v1602
        %v2527 = vpack.c.b16 %v1607, %v1603
        %v2528 = vpack.c.b16 %v1608, %v1604
        %v2529 = vpack.c.b16 %v1613, %v1609
        %v2530 = vpack.c.b16 %v1614, %v1610
        %v2531 = vpack.c.b16 %v1615, %v1611
        %v2532 = vpack.c.b16 %v1616, %v1612
        %v2533 = vpack.c.b16 %v1621, %v1617
        %v2534 = vpack.c.b16 %v1622, %v1618
        %v2535 = vpack.c.b16 %v1623, %v1619
        %v2536 = vpack.c.b16 %v1624, %v1620
        %v2537 = vpack.c.b16 %v1629, %v1625
        %v2538 = vpack.c.b16 %v1630, %v1626
        %v2539 = vpack.c.b16 %v1631, %v1627
        %v2540 = vpack.c.b16 %v1632, %v1628
        %v2541 = vpack.c.b16 %v1637, %v1633
        %v2542 = vpack.c.b16 %v1638, %v1634
        %v2543 = vpack.c.b16 %v1639, %v1635
        %v2544 = vpack.c.b16 %v1640, %v1636
        %v2545 = vpack.c.b16 %v1645, %v1641
        %v2546 = vpack.c.b16 %v1646, %v1642
        %v2547 = vpack.c.b16 %v1647, %v1643
        %v2548 = vpack.c.b16 %v1648, %v1644
        %v2549 = vpack.c.b16 %v1653, %v1649
        %v2550 = vpack.c.b16 %v1654, %v1650
        %v2551 = vpack.c.b16 %v1655, %v1651
        %v2552 = vpack.c.b16 %v1656, %v1652
        %v2553 = vpack.c.b16 %v1661, %v1657
        %v2554 = vpack.c.b16 %v1662, %v1658
        %v2555 = vpack.c.b16 %v1663, %v1659
        %v2556 = vpack.c.b16 %v1664, %v1660
        %v2557 = vpack.c.b16 %v1669, %v1665
        %v2558 = vpack.c.b16 %v1670, %v1666
        %v2559 = vpack.c.b16 %v1671, %v1667
        %v2560 = vpack.c.b16 %v1672, %v1668
        %v2561 = vpack.c.b16 %v1677, %v1673
        %v2562 = vpack.c.b16 %v1678, %v1674
        %v2563 = vpack.c.b16 %v1679, %v1675
        %v2564 = vpack.c.b16 %v1680, %v1676
        %v2565 = vpack.c.b16 %v1685, %v1681
        %v2566 = vpack.c.b16 %v1686, %v1682
        %v2567 = vpack.c.b16 %v1687, %v1683
        %v2568 = vpack.c.b16 %v1688, %v1684
        %v2569 = vpack.c.b16 %v1693, %v1689
        %v2570 = vpack.c.b16 %v1694, %v1690
        %v2571 = vpack.c.b16 %v1695, %v1691
        %v2572 = vpack.c.b16 %v1696, %v1692
        %v2573 = vpack.c.b16 %v1701, %v1697
        %v2574 = vpack.c.b16 %v1702, %v1698
        %v2575 = vpack.c.b16 %v1703, %v1699
        %v2576 = vpack.c.b16 %v1704, %v1700
        %v2577 = vpack.c.b16 %v1709, %v1705
        %v2578 = vpack.c.b16 %v1710, %v1706
        %v2579 = vpack.c.b16 %v1711, %v1707
        %v2580 = vpack.c.b16 %v1712, %v1708
        %v2581 = vpack.c.b16 %v1717, %v1713
        %v2582 = vpack.c.b16 %v1718, %v1714
        %v2583 = vpack.c.b16 %v1719, %v1715
        %v2584 = vpack.c.b16 %v1720, %v1716
        %v2585 = vpack.c.b16 %v1725, %v1721
        %v2586 = vpack.c.b16 %v1726, %v1722
        %v2587 = vpack.c.b16 %v1727, %v1723
        %v2588 = vpack.c.b16 %v1728, %v1724
        %v2589 = vpack.c.b16 %v1733, %v1729
        %v2590 = vpack.c.b16 %v1734, %v1730
        %v2591 = vpack.c.b16 %v1735, %v1731
        %v2592 = vpack.c.b16 %v1736, %v1732
        %v2593 = vpack.c.b16 %v1741, %v1737
        %v2594 = vpack.c.b16 %v1742, %v1738
        %v2595 = vpack.c.b16 %v1743, %v1739
        %v2596 = vpack.c.b16 %v1744, %v1740
        %v2597 = vpack.c.b16 %v1749, %v1745
        %v2598 = vpack.c.b16 %v1750, %v1746
        %v2599 = vpack.c.b16 %v1751, %v1747
        %v2600 = vpack.c.b16 %v1752, %v1748
        %v2601 = vpack.c.b16 %v1757, %v1753
        %v2602 = vpack.c.b16 %v1758, %v1754
        %v2603 = vpack.c.b16 %v1759, %v1755
        %v2604 = vpack.c.b16 %v1760, %v1756
        %v2605 = vpack.c.b16 %v1765, %v1761
        %v2606 = vpack.c.b16 %v1766, %v1762
        %v2607 = vpack.c.b16 %v1767, %v1763
        %v2608 = vpack.c.b16 %v1768, %v1764
        %v2609 = vpack.c.b16 %v1773, %v1769
        %v2610 = vpack.c.b16 %v1774, %v1770
        %v2611 = vpack.c.b16 %v1775, %v1771
        %v2612 = vpack.c.b16 %v1776, %v1772
        %v2613 = vpack.c.b16 %v1781, %v1777
        %v2614 = vpack.c.b16 %v1782, %v1778
        %v2615 = vpack.c.b16 %v1783, %v1779
        %v2616 = vpack.c.b16 %v1784, %v1780
        %v2617 = vpack.c.b16 %v1789, %v1785
        %v2618 = vpack.c.b16 %v1790, %v1786
        %v2619 = vpack.c.b16 %v1791, %v1787
        %v2620 = vpack.c.b16 %v1792, %v1788
        %v2621 = vpack.c.b16 %v1797, %v1793
        %v2622 = vpack.c.b16 %v1798, %v1794
        %v2623 = vpack.c.b16 %v1799, %v1795
        %v2624 = vpack.c.b16 %v1800, %v1796
        %v2625 = vpack.c.b16 %v1805, %v1801
        %v2626 = vpack.c.b16 %v1806, %v1802
        %v2627 = vpack.c.b16 %v1807, %v1803
        %v2628 = vpack.c.b16 %v1808, %v1804
        %v2629 = vpack.c.b16 %v1813, %v1809
        %v2630 = vpack.c.b16 %v1814, %v1810
        %v2631 = vpack.c.b16 %v1815, %v1811
        %v2632 = vpack.c.b16 %v1816, %v1812
        %v2633 = vpack.c.b16 %v1821, %v1817
        %v2634 = vpack.c.b16 %v1822, %v1818
        %v2635 = vpack.c.b16 %v1823, %v1819
        %v2636 = vpack.c.b16 %v1824, %v1820
        %v2637 = vpack.c.b16 %v1829, %v1825
        %v2638 = vpack.c.b16 %v1830, %v1826
        %v2639 = vpack.c.b16 %v1831, %v1827
        %v2640 = vpack.c.b16 %v1832, %v1828
        %v2641 = vpack.c.b16 %v1837, %v1833
        %v2642 = vpack.c.b16 %v1838, %v1834
        %v2643 = vpack.c.b16 %v1839, %v1835
        %v2644 = vpack.c.b16 %v1840, %v1836
        %v2645 = vpack.c.b16 %v1845, %v1841
        %v2646 = vpack.c.b16 %v1846, %v1842
        %v2647 = vpack.c.b16 %v1847, %v1843
        %v2648 = vpack.c.b16 %v1848, %v1844
        %v2649 = vpack.c.b16 %v1853, %v1849
        %v2650 = vpack.c.b16 %v1854, %v1850
        %v2651 = vpack.c.b16 %v1855, %v1851
        %v2652 = vpack.c.b16 %v1856, %v1852
        %v2653 = vpack.c.b16 %v1861, %v1857
        %v2654 = vpack.c.b16 %v1862, %v1858
        %v2655 = vpack.c.b16 %v1863, %v1859
        %v2656 = vpack.c.b16 %v1864, %v1860
        %v2657 = vpack.c.b16 %v1869, %v1865
        %v2658 = vpack.c.b16 %v1870, %v1866
        %v2659 = vpack.c.b16 %v1871, %v1867
        %v2660 = vpack.c.b16 %v1872, %v1868
        %v2661 = vpack.c.b16 %v1877, %v1873
        %v2662 = vpack.c.b16 %v1878, %v1874
        %v2663 = vpack.c.b16 %v1879, %v1875
        %v2664 = vpack.c.b16 %v1880, %v1876
        %v2665 = vpack.c.b16 %v1885, %v1881
        %v2666 = vpack.c.b16 %v1886, %v1882
        %v2667 = vpack.c.b16 %v1887, %v1883
        %v2668 = vpack.c.b16 %v1888, %v1884
        %v2669 = vpack.c.b16 %v1893, %v1889
        %v2670 = vpack.c.b16 %v1894, %v1890
        %v2671 = vpack.c.b16 %v1895, %v1891
        %v2672 = vpack.c.b16 %v1896, %v1892
        %v2673 = vpack.c.b16 %v1901, %v1897
        %v2674 = vpack.c.b16 %v1902, %v1898
        %v2675 = vpack.c.b16 %v1903, %v1899
        %v2676 = vpack.c.b16 %v1904, %v1900
        %v2677 = vpack.c.b16 %v1909, %v1905
        %v2678 = vpack.c.b16 %v1910, %v1906
        %v2679 = vpack.c.b16 %v1911, %v1907
        %v2680 = vpack.c.b16 %v1912, %v1908
        %v2681 = vpack.c.b16 %v1917, %v1913
        %v2682 = vpack.c.b16 %v1918, %v1914
        %v2683 = vpack.c.b16 %v1919, %v1915
        %v2684 = vpack.c.b16 %v1920, %v1916
        %v2685 = vpack.c.b16 %v1925, %v1921
        %v2686 = vpack.c.b16 %v1926, %v1922
        %v2687 = vpack.c.b16 %v1927, %v1923
        %v2688 = vpack.c.b16 %v1928, %v1924
        %v2689 = vpack.c.b16 %v1933, %v1929
        %v2690 = vpack.c.b16 %v1934, %v1930
        %v2691 = vpack.c.b16 %v1935, %v1931
        %v2692 = vpack.c.b16 %v1936, %v1932
        %v2693 = vpack.c.b16 %v1941, %v1937
        %v2694 = vpack.c.b16 %v1942, %v1938
        %v2695 = vpack.c.b16 %v1943, %v1939
        %v2696 = vpack.c.b16 %v1944, %v1940
        %v2697 = vpack.c.b16 %v1949, %v1945
        %v2698 = vpack.c.b16 %v1950, %v1946
        %v2699 = vpack.c.b16 %v1951, %v1947
        %v2700 = vpack.c.b16 %v1952, %v1948
        %v2701 = vpack.c.b16 %v1957, %v1953
        %v2702 = vpack.c.b16 %v1958, %v1954
        %v2703 = vpack.c.b16 %v1959, %v1955
        %v2704 = vpack.c.b16 %v1960, %v1956
        %v2705 = vpack.c.b16 %v1965, %v1961
        %v2706 = vpack.c.b16 %v1966, %v1962
        %v2707 = vpack.c.b16 %v1967, %v1963
        %v2708 = vpack.c.b16 %v1968, %v1964
        %v2709 = vpack.c.b16 %v1973, %v1969
        %v2710 = vpack.c.b16 %v1974, %v1970
        %v2711 = vpack.c.b16 %v1975, %v1971
        %v2712 = vpack.c.b16 %v1976, %v1972
        %v2713 = vpack.c.b16 %v1981, %v1977
        %v2714 = vpack.c.b16 %v1982, %v1978
        %v2715 = vpack.c.b16 %v1983, %v1979
        %v2716 = vpack.c.b16 %v1984, %v1980
        %v2717 = vpack.c.b16 %v1989, %v1985
        %v2718 = vpack.c.b16 %v1990, %v1986
        %v2719 = vpack.c.b16 %v1991, %v1987
        %v2720 = vpack.c.b16 %v1992, %v1988
        %v2721 = vpack.c.b16 %v1997, %v1993
        %v2722 = vpack.c.b16 %v1998, %v1994
        %v2723 = vpack.c.b16 %v1999, %v1995
        %v2724 = vpack.c.b16 %v2000, %v1996
        %v2725 = vpack.c.b16 %v2005, %v2001
        %v2726 = vpack.c.b16 %v2006, %v2002
        %v2727 = vpack.c.b16 %v2007, %v2003
        %v2728 = vpack.c.b16 %v2008, %v2004
        %v2729 = vpack.c.b16 %v2013, %v2009
        %v2730 = vpack.c.b16 %v2014, %v2010
        %v2731 = vpack.c.b16 %v2015, %v2011
        %v2732 = vpack.c.b16 %v2016, %v2012
        %v2733 = vpack.c.b16 %v2021, %v2017
        %v2734 = vpack.c.b16 %v2022, %v2018
        %v2735 = vpack.c.b16 %v2023, %v2019
        %v2736 = vpack.c.b16 %v2024, %v2020
        %v2737 = vpack.c.b16 %v2029, %v2025
        %v2738 = vpack.c.b16 %v2030, %v2026
        %v2739 = vpack.c.b16 %v2031, %v2027
        %v2740 = vpack.c.b16 %v2032, %v2028
        %v2741 = vpack.c.b16 %v2037, %v2033
        %v2742 = vpack.c.b16 %v2038, %v2034
        %v2743 = vpack.c.b16 %v2039, %v2035
        %v2744 = vpack.c.b16 %v2040, %v2036
        %v2745 = vpack.c.b16 %v2045, %v2041
        %v2746 = vpack.c.b16 %v2046, %v2042
        %v2747 = vpack.c.b16 %v2047, %v2043
        %v2748 = vpack.c.b16 %v2048, %v2044
        %v2749 = vpack.c.b16 %v2053, %v2049
        %v2750 = vpack.c.b16 %v2054, %v2050
        %v2751 = vpack.c.b16 %v2055, %v2051
        %v2752 = vpack.c.b16 %v2056, %v2052
        %v2753 = vpack.c.b16 %v2061, %v2057
        %v2754 = vpack.c.b16 %v2062, %v2058
        %v2755 = vpack.c.b16 %v2063, %v2059
        %v2756 = vpack.c.b16 %v2064, %v2060
        %v2757 = vpack.c.b16 %v2069, %v2065
        %v2758 = vpack.c.b16 %v2070, %v2066
        %v2759 = vpack.c.b16 %v2071, %v2067
        %v2760 = vpack.c.b16 %v2072, %v2068
        %v2761 = vpack.c.b16 %v2077, %v2073
        %v2762 = vpack.c.b16 %v2078, %v2074
        %v2763 = vpack.c.b16 %v2079, %v2075
        %v2764 = vpack.c.b16 %v2080, %v2076
        %v2765 = vpack.c.b16 %v2085, %v2081
        %v2766 = vpack.c.b16 %v2086, %v2082
        %v2767 = vpack.c.b16 %v2087, %v2083
        %v2768 = vpack.c.b16 %v2088, %v2084
        %v2769 = vpack.c.b16 %v2093, %v2089
        %v2770 = vpack.c.b16 %v2094, %v2090
        %v2771 = vpack.c.b16 %v2095, %v2091
        %v2772 = vpack.c.b16 %v2096, %v2092
        %v2773 = vpack.c.b16 %v2101, %v2097
        %v2774 = vpack.c.b16 %v2102, %v2098
        %v2775 = vpack.c.b16 %v2103, %v2099
        %v2776 = vpack.c.b16 %v2104, %v2100
        %v2777 = vpack.c.b16 %v2109, %v2105
        %v2778 = vpack.c.b16 %v2110, %v2106
        %v2779 = vpack.c.b16 %v2111, %v2107
        %v2780 = vpack.c.b16 %v2112, %v2108
        %v2781 = vpack.c.b16 %v2117, %v2113
        %v2782 = vpack.c.b16 %v2118, %v2114
        %v2783 = vpack.c.b16 %v2119, %v2115
        %v2784 = vpack.c.b16 %v2120, %v2116
        %v2785 = vpack.c.b16 %v2125, %v2121
        %v2786 = vpack.c.b16 %v2126, %v2122
        %v2787 = vpack.c.b16 %v2127, %v2123
        %v2788 = vpack.c.b16 %v2128, %v2124
        %v2789 = vpack.c.b16 %v2133, %v2129
        %v2790 = vpack.c.b16 %v2134, %v2130
        %v2791 = vpack.c.b16 %v2135, %v2131
        %v2792 = vpack.c.b16 %v2136, %v2132
        %v2793 = vpack.c.b16 %v2141, %v2137
        %v2794 = vpack.c.b16 %v2142, %v2138
        %v2795 = vpack.c.b16 %v2143, %v2139
        %v2796 = vpack.c.b16 %v2144, %v2140
        %v2797 = vpack.c.b16 %v2149, %v2145
        %v2798 = vpack.c.b16 %v2150, %v2146
        %v2799 = vpack.c.b16 %v2151, %v2147
        %v2800 = vpack.c.b16 %v2152, %v2148
        %v2801 = vpack.c.b16 %v2157, %v2153
        %v2802 = vpack.c.b16 %v2158, %v2154
        %v2803 = vpack.c.b16 %v2159, %v2155
        %v2804 = vpack.c.b16 %v2160, %v2156
        %v2805 = vpack.c.b16 %v2165, %v2161
        %v2806 = vpack.c.b16 %v2166, %v2162
        %v2807 = vpack.c.b16 %v2167, %v2163
        %v2808 = vpack.c.b16 %v2168, %v2164
        %v2809 = vpack.c.b16 %v2173, %v2169
        %v2810 = vpack.c.b16 %v2174, %v2170
        %v2811 = vpack.c.b16 %v2175, %v2171
        %v2812 = vpack.c.b16 %v2176, %v2172
        %v2813 = vpack.c.b16 %v2181, %v2177
        %v2814 = vpack.c.b16 %v2182, %v2178
        %v2815 = vpack.c.b16 %v2183, %v2179
        %v2816 = vpack.c.b16 %v2184, %v2180
        %v2817 = vpack.c.b16 %v2189, %v2185
        %v2818 = vpack.c.b16 %v2190, %v2186
        %v2819 = vpack.c.b16 %v2191, %v2187
        %v2820 = vpack.c.b16 %v2192, %v2188
        %v2821 = vpack.c.b16 %v2197, %v2193
        %v2822 = vpack.c.b16 %v2198, %v2194
        %v2823 = vpack.c.b16 %v2199, %v2195
        %v2824 = vpack.c.b16 %v2200, %v2196
        %v2825 = vpack.c.b16 %v2205, %v2201
        %v2826 = vpack.c.b16 %v2206, %v2202
        %v2827 = vpack.c.b16 %v2207, %v2203
        %v2828 = vpack.c.b16 %v2208, %v2204
        %v2829 = vpack.c.b16 %v2213, %v2209
        %v2830 = vpack.c.b16 %v2214, %v2210
        %v2831 = vpack.c.b16 %v2215, %v2211
        %v2832 = vpack.c.b16 %v2216, %v2212
        %v2833 = vpack.c.b16 %v2221, %v2217
        %v2834 = vpack.c.b16 %v2222, %v2218
        %v2835 = vpack.c.b16 %v2223, %v2219
        %v2836 = vpack.c.b16 %v2224, %v2220
        %v2837 = vpack.c.b16 %v2229, %v2225
        %v2838 = vpack.c.b16 %v2230, %v2226
        %v2839 = vpack.c.b16 %v2231, %v2227
        %v2840 = vpack.c.b16 %v2232, %v2228
        %v2841 = vpack.c.b16 %v2237, %v2233
        %v2842 = vpack.c.b16 %v2238, %v2234
        %v2843 = vpack.c.b16 %v2239, %v2235
        %v2844 = vpack.c.b16 %v2240, %v2236
        %v2845 = vpack.c.b16 %v2245, %v2241
        %v2846 = vpack.c.b16 %v2246, %v2242
        %v2847 = vpack.c.b16 %v2247, %v2243
        %v2848 = vpack.c.b16 %v2248, %v2244
        %v2849 = vpack.c.b16 %v2253, %v2249
        %v2850 = vpack.c.b16 %v2254, %v2250
        %v2851 = vpack.c.b16 %v2255, %v2251
        %v2852 = vpack.c.b16 %v2256, %v2252
        %v2853 = vpack.c.b16 %v2261, %v2257
        %v2854 = vpack.c.b16 %v2262, %v2258
        %v2855 = vpack.c.b16 %v2263, %v2259
        %v2856 = vpack.c.b16 %v2264, %v2260
        %v2857 = vpack.c.b16 %v2269, %v2265
        %v2858 = vpack.c.b16 %v2270, %v2266
        %v2859 = vpack.c.b16 %v2271, %v2267
        %v2860 = vpack.c.b16 %v2272, %v2268
        %v2861 = vpack.c.b16 %v2277, %v2273
        %v2862 = vpack.c.b16 %v2278, %v2274
        %v2863 = vpack.c.b16 %v2279, %v2275
        %v2864 = vpack.c.b16 %v2280, %v2276
        %v2865 = vpack.c.b16 %v2285, %v2281
        %v2866 = vpack.c.b16 %v2286, %v2282
        %v2867 = vpack.c.b16 %v2287, %v2283
        %v2868 = vpack.c.b16 %v2288, %v2284
        %v2869 = vpack.c.b16 %v2293, %v2289
        %v2870 = vpack.c.b16 %v2294, %v2290
        %v2871 = vpack.c.b16 %v2295, %v2291
        %v2872 = vpack.c.b16 %v2296, %v2292
        %v2873 = vpack.c.b16 %v2301, %v2297
        %v2874 = vpack.c.b16 %v2302, %v2298
        %v2875 = vpack.c.b16 %v2303, %v2299
        %v2876 = vpack.c.b16 %v2304, %v2300
        %v2877 = vpack.c.b16 %v2309, %v2305
        %v2878 = vpack.c.b16 %v2310, %v2306
        %v2879 = vpack.c.b16 %v2311, %v2307
        %v2880 = vpack.c.b16 %v2312, %v2308
        %v2881 = vpack.c.b16 %v2317, %v2313
        %v2882 = vpack.c.b16 %v2318, %v2314
        %v2883 = vpack.c.b16 %v2319, %v2315
        %v2884 = vpack.c.b16 %v2320, %v2316
        %v2885 = vpack.c.b16 %v2325, %v2321
        %v2886 = vpack.c.b16 %v2326, %v2322
        %v2887 = vpack.c.b16 %v2327, %v2323
        %v2888 = vpack.c.b16 %v2328, %v2324
        %v2889 = vpack.c.b16 %v2333, %v2329
        %v2890 = vpack.c.b16 %v2334, %v2330
        %v2891 = vpack.c.b16 %v2335, %v2331
        %v2892 = vpack.c.b16 %v2336, %v2332
        %v2893 = vpack.c.b16 %v2341, %v2337
        %v2894 = vpack.c.b16 %v2342, %v2338
        %v2895 = vpack.c.b16 %v2343, %v2339
        %v2896 = vpack.c.b16 %v2344, %v2340
        %v2897 = vpack.c.b16 %v2349, %v2345
        %v2898 = vpack.c.b16 %v2350, %v2346
        %v2899 = vpack.c.b16 %v2351, %v2347
        %v2900 = vpack.c.b16 %v2352, %v2348
        %v2901 = vpack.c.b16 %v2357, %v2353
        %v2902 = vpack.c.b16 %v2358, %v2354
        %v2903 = vpack.c.b16 %v2359, %v2355
        %v2904 = vpack.c.b16 %v2360, %v2356
        %v2905 = vpack.c.b16 %v2365, %v2361
        %v2906 = vpack.c.b16 %v2366, %v2362
        %v2907 = vpack.c.b16 %v2367, %v2363
        %v2908 = vpack.c.b16 %v2368, %v2364
        %v2909 = vpack.c.b16 %v2373, %v2369
        %v2910 = vpack.c.b16 %v2374, %v2370
        %v2911 = vpack.c.b16 %v2375, %v2371
        %v2912 = vpack.c.b16 %v2376, %v2372
        %v2913 = vpack.c.b16 %v2381, %v2377
        %v2914 = vpack.c.b16 %v2382, %v2378
        %v2915 = vpack.c.b16 %v2383, %v2379
        %v2916 = vpack.c.b16 %v2384, %v2380
        %v2917 = vpack.c.b16 %v2389, %v2385
        %v2918 = vpack.c.b16 %v2390, %v2386
        %v2919 = vpack.c.b16 %v2391, %v2387
        %v2920 = vpack.c.b16 %v2392, %v2388
        %v2921 = vpack.c.b16 %v2397, %v2393
        %v2922 = vpack.c.b16 %v2398, %v2394
        %v2923 = vpack.c.b16 %v2399, %v2395
        %v2924 = vpack.c.b16 %v2400, %v2396
        %v2925 = vpack.c.b16 %v2405, %v2401
        %v2926 = vpack.c.b16 %v2406, %v2402
        %v2927 = vpack.c.b16 %v2407, %v2403
        %v2928 = vpack.c.b16 %v2408, %v2404
        %v2929 = vpack.c.b16 %v2413, %v2409
        %v2930 = vpack.c.b16 %v2414, %v2410
        %v2931 = vpack.c.b16 %v2415, %v2411
        %v2932 = vpack.c.b16 %v2416, %v2412
        %v2933 = vpack.c.b16 %v2421, %v2417
        %v2934 = vpack.c.b16 %v2422, %v2418
        %v2935 = vpack.c.b16 %v2423, %v2419
        %v2936 = vpack.c.b16 %v2424, %v2420
        %3449 = vmatprep.subr.bf16.mxu0 %v2426
        %3450 = vmatpush1.bf16.msra.mxu0 %v2425
        %3451 = vmatprep.subr.bf16.mxu0 %v2430
        %3452 = vmatpush1.bf16.msra.mxu0 %v2429
        %3453 = vmatprep.subr.bf16.mxu0 %v2434
        %3454 = vmatpush1.bf16.msra.mxu0 %v2433
        %3455 = vmatprep.subr.bf16.mxu0 %v2438
        %3456 = vmatpush1.bf16.msra.mxu0 %v2437
        %3457 = vmatprep.subr.bf16.mxu0 %v2442
        %3458 = vmatpush1.bf16.msra.mxu0 %v2441
        %3459 = vmatprep.subr.bf16.mxu0 %v2446
        %3460 = vmatpush1.bf16.msra.mxu0 %v2445
        %3461 = vmatprep.subr.bf16.mxu0 %v2450
        %3462 = vmatpush1.bf16.msra.mxu0 %v2449
        %3463 = vmatprep.subr.bf16.mxu0 %v2454
        %3464 = vmatpush1.bf16.msra.mxu0 %v2453
        %3465 = vmatprep.subr.bf16.mxu0 %v2458
        %3466 = vmatpush1.bf16.msra.mxu0 %v2457
        %3467 = vmatprep.subr.bf16.mxu0 %v2462
        %3468 = vmatpush1.bf16.msra.mxu0 %v2461
        %3469 = vmatprep.subr.bf16.mxu0 %v2466
        %3470 = vmatpush1.bf16.msra.mxu0 %v2465
        %3471 = vmatprep.subr.bf16.mxu0 %v2470
        %3472 = vmatpush1.bf16.msra.mxu0 %v2469
        %3473 = vmatprep.subr.bf16.mxu0 %v2474
        %3474 = vmatpush1.bf16.msra.mxu0 %v2473
        %3475 = vmatprep.subr.bf16.mxu0 %v2478
        %3476 = vmatpush1.bf16.msra.mxu0 %v2477
        %3477 = vmatprep.subr.bf16.mxu0 %v2482
        %3478 = vmatpush1.bf16.msra.mxu0 %v2481
        %3479 = vmatprep.subr.bf16.mxu0 %v2486
        %3480 = vmatpush1.bf16.msra.mxu0 %v2485
        %3481 = vmatprep.mubr.bf16.mxu0 %v812
        %3482 = vmatmul.mubr.bf16.gmra.mrb[0].mxu0 %v798
        %v3483 = vpop.f32.mrb[0].mxu0
        %v3484 = vadd.f32 0.0, %v3483
        %v3485 = vpop.f32.mrb[0].mxu0
        %v3486 = vadd.f32 0.0, %v3485
        %v3487 = vpop.f32.mrb[0].mxu0
        %v3488 = vpop.f32.mrb[0].mxu0
        %3489 = vdwg.mxu0
        %3490 = vmatprep.subr.bf16.mxu0 %v2490
        %3491 = vmatpush1.bf16.msra.mxu0 %v2489
        %3492 = vmatprep.subr.bf16.mxu0 %v2494
        %3493 = vmatpush1.bf16.msra.mxu0 %v2493
        %3494 = vmatprep.subr.bf16.mxu0 %v2498
        %3495 = vmatpush1.bf16.msra.mxu0 %v2497
        %3496 = vmatprep.subr.bf16.mxu0 %v2502
        %3497 = vmatpush1.bf16.msra.mxu0 %v2501
        %3498 = vmatprep.subr.bf16.mxu0 %v2506
        %3499 = vmatpush1.bf16.msra.mxu0 %v2505
        %3500 = vmatprep.subr.bf16.mxu0 %v2510
        %3501 = vmatpush1.bf16.msra.mxu0 %v2509
        %3502 = vmatprep.subr.bf16.mxu0 %v2514
        %3503 = vmatpush1.bf16.msra.mxu0 %v2513
        %3504 = vmatprep.subr.bf16.mxu0 %v2518
        %3505 = vmatpush1.bf16.msra.mxu0 %v2517
        %3506 = vmatprep.subr.bf16.mxu0 %v2522
        %3507 = vmatpush1.bf16.msra.mxu0 %v2521
        %3508 = vmatprep.subr.bf16.mxu0 %v2526
        %3509 = vmatpush1.bf16.msra.mxu0 %v2525
        %3510 = vmatprep.subr.bf16.mxu0 %v2530
        %3511 = vmatpush1.bf16.msra.mxu0 %v2529
        %3512 = vmatprep.subr.bf16.mxu0 %v2534
        %3513 = vmatpush1.bf16.msra.mxu0 %v2533
        %3514 = vmatprep.subr.bf16.mxu0 %v2538
        %3515 = vmatpush1.bf16.msra.mxu0 %v2537
        %3516 = vmatprep.subr.bf16.mxu0 %v2542
        %3517 = vmatpush1.bf16.msra.mxu0 %v2541
        %3518 = vmatprep.subr.bf16.mxu0 %v2546
        %3519 = vmatpush1.bf16.msra.mxu0 %v2545
        %3520 = vmatprep.subr.bf16.mxu0 %v2550
        %3521 = vmatpush1.bf16.msra.mxu0 %v2549
        %3522 = vmatprep.mubr.bf16.mxu0 %v822
        %3523 = vmatmul.mubr.bf16.gmra.mrb[0].mxu0 %v820
        %v3524 = vpop.f32.mrb[0].mxu0
        %v3525 = vadd.f32 %v3484, %v3524
        %v3526 = vpop.f32.mrb[0].mxu0
        %v3527 = vadd.f32 %v3486, %v3526
        %v3528 = vpop.f32.mrb[0].mxu0
        %v3529 = vpop.f32.mrb[0].mxu0
        %3530 = vdwg.mxu0
        %3531 = vmatprep.subr.bf16.mxu0 %v2554
        %3532 = vmatpush1.bf16.msra.mxu0 %v2553
        %3533 = vmatprep.subr.bf16.mxu0 %v2558
        %3534 = vmatpush1.bf16.msra.mxu0 %v2557
        %3535 = vmatprep.subr.bf16.mxu0 %v2562
        %3536 = vmatpush1.bf16.msra.mxu0 %v2561
        %3537 = vmatprep.subr.bf16.mxu0 %v2566
        %3538 = vmatpush1.bf16.msra.mxu0 %v2565
        %3539 = vmatprep.subr.bf16.mxu0 %v2570
        %3540 = vmatpush1.bf16.msra.mxu0 %v2569
        %3541 = vmatprep.subr.bf16.mxu0 %v2574
        %3542 = vmatpush1.bf16.msra.mxu0 %v2573
        %3543 = vmatprep.subr.bf16.mxu0 %v2578
        %3544 = vmatpush1.bf16.msra.mxu0 %v2577
        %3545 = vmatprep.subr.bf16.mxu0 %v2582
        %3546 = vmatpush1.bf16.msra.mxu0 %v2581
        %3547 = vmatprep.subr.bf16.mxu0 %v2586
        %3548 = vmatpush1.bf16.msra.mxu0 %v2585
        %3549 = vmatprep.subr.bf16.mxu0 %v2590
        %3550 = vmatpush1.bf16.msra.mxu0 %v2589
        %3551 = vmatprep.subr.bf16.mxu0 %v2594
        %3552 = vmatpush1.bf16.msra.mxu0 %v2593
        %3553 = vmatprep.subr.bf16.mxu0 %v2598
        %3554 = vmatpush1.bf16.msra.mxu0 %v2597
        %3555 = vmatprep.subr.bf16.mxu0 %v2602
        %3556 = vmatpush1.bf16.msra.mxu0 %v2601
        %3557 = vmatprep.subr.bf16.mxu0 %v2606
        %3558 = vmatpush1.bf16.msra.mxu0 %v2605
        %3559 = vmatprep.subr.bf16.mxu0 %v2610
        %3560 = vmatpush1.bf16.msra.mxu0 %v2609
        %3561 = vmatprep.subr.bf16.mxu0 %v2614
        %3562 = vmatpush1.bf16.msra.mxu0 %v2613
        %3563 = vmatprep.mubr.bf16.mxu0 %v819
        %3564 = vmatmul.mubr.bf16.gmra.mrb[0].mxu0 %v805
        %v3565 = vpop.f32.mrb[0].mxu0
        %v3566 = vadd.f32 %v3525, %v3565
        %v3567 = vpop.f32.mrb[0].mxu0
        %v3568 = vadd.f32 %v3527, %v3567
        %v3569 = vpop.f32.mrb[0].mxu0
        %v3570 = vpop.f32.mrb[0].mxu0
        %3571 = vdwg.mxu0
        %3572 = vmatprep.subr.bf16.mxu0 %v2618
        %3573 = vmatpush1.bf16.msra.mxu0 %v2617
        %3574 = vmatprep.subr.bf16.mxu0 %v2622
        %3575 = vmatpush1.bf16.msra.mxu0 %v2621
        %3576 = vmatprep.subr.bf16.mxu0 %v2626
        %3577 = vmatpush1.bf16.msra.mxu0 %v2625
        %3578 = vmatprep.subr.bf16.mxu0 %v2630
        %3579 = vmatpush1.bf16.msra.mxu0 %v2629
        %3580 = vmatprep.subr.bf16.mxu0 %v2634
        %3581 = vmatpush1.bf16.msra.mxu0 %v2633
        %3582 = vmatprep.subr.bf16.mxu0 %v2638
        %3583 = vmatpush1.bf16.msra.mxu0 %v2637
        %3584 = vmatprep.subr.bf16.mxu0 %v2642
        %3585 = vmatpush1.bf16.msra.mxu0 %v2641
        %3586 = vmatprep.subr.bf16.mxu0 %v2646
        %3587 = vmatpush1.bf16.msra.mxu0 %v2645
        %3588 = vmatprep.subr.bf16.mxu0 %v2650
        %3589 = vmatpush1.bf16.msra.mxu0 %v2649
        %3590 = vmatprep.subr.bf16.mxu0 %v2654
        %3591 = vmatpush1.bf16.msra.mxu0 %v2653
        %3592 = vmatprep.subr.bf16.mxu0 %v2658
        %3593 = vmatpush1.bf16.msra.mxu0 %v2657
        %3594 = vmatprep.subr.bf16.mxu0 %v2662
        %3595 = vmatpush1.bf16.msra.mxu0 %v2661
        %3596 = vmatprep.subr.bf16.mxu0 %v2666
        %3597 = vmatpush1.bf16.msra.mxu0 %v2665
        %3598 = vmatprep.subr.bf16.mxu0 %v2670
        %3599 = vmatpush1.bf16.msra.mxu0 %v2669
        %3600 = vmatprep.subr.bf16.mxu0 %v2674
        %3601 = vmatpush1.bf16.msra.mxu0 %v2673
        %3602 = vmatprep.subr.bf16.mxu0 %v2678
        %3603 = vmatpush1.bf16.msra.mxu0 %v2677
        %3604 = vmatprep.mubr.bf16.mxu0 %v823
        %3605 = vmatmul.mubr.bf16.gmra.mrb[0].mxu0 %v821
        %v3606 = vpop.f32.mrb[0].mxu0
        %v3607 = vadd.f32 %v3566, %v3606
        %v3608 = vpop.f32.mrb[0].mxu0
        %v3609 = vadd.f32 %v3568, %v3608
        %v3610 = vpop.f32.mrb[0].mxu0
        %v3611 = vpop.f32.mrb[0].mxu0
        %3612 = vdwg.mxu0
        %3613 = vmatprep.subr.bf16.mxu0 %v2682
        %3614 = vmatpush1.bf16.msra.mxu0 %v2681
        %3615 = vmatprep.subr.bf16.mxu0 %v2686
        %3616 = vmatpush1.bf16.msra.mxu0 %v2685
        %3617 = vmatprep.subr.bf16.mxu0 %v2690
        %3618 = vmatpush1.bf16.msra.mxu0 %v2689
        %3619 = vmatprep.subr.bf16.mxu0 %v2694
        %3620 = vmatpush1.bf16.msra.mxu0 %v2693
        %3621 = vmatprep.subr.bf16.mxu0 %v2698
        %3622 = vmatpush1.bf16.msra.mxu0 %v2697
        %3623 = vmatprep.subr.bf16.mxu0 %v2702
        %3624 = vmatpush1.bf16.msra.mxu0 %v2701
        %3625 = vmatprep.subr.bf16.mxu0 %v2706
        %3626 = vmatpush1.bf16.msra.mxu0 %v2705
        %3627 = vmatprep.subr.bf16.mxu0 %v2710
        %3628 = vmatpush1.bf16.msra.mxu0 %v2709
        %3629 = vmatprep.subr.bf16.mxu0 %v2714
        %3630 = vmatpush1.bf16.msra.mxu0 %v2713
        %3631 = vmatprep.subr.bf16.mxu0 %v2718
        %3632 = vmatpush1.bf16.msra.mxu0 %v2717
        %3633 = vmatprep.subr.bf16.mxu0 %v2722
        %3634 = vmatpush1.bf16.msra.mxu0 %v2721
        %3635 = vmatprep.subr.bf16.mxu0 %v2726
        %3636 = vmatpush1.bf16.msra.mxu0 %v2725
        %3637 = vmatprep.subr.bf16.mxu0 %v2730
        %3638 = vmatpush1.bf16.msra.mxu0 %v2729
        %3639 = vmatprep.subr.bf16.mxu0 %v2734
        %3640 = vmatpush1.bf16.msra.mxu0 %v2733
        %3641 = vmatprep.subr.bf16.mxu0 %v2738
        %3642 = vmatpush1.bf16.msra.mxu0 %v2737
        %3643 = vmatprep.subr.bf16.mxu0 %v2742
        %3644 = vmatpush1.bf16.msra.mxu0 %v2741
        %3645 = vmatprep.mubr.bf16.mxu0 %v861
        %3646 = vmatmul.mubr.bf16.gmra.mrb[0].mxu0 %v847
        %v3647 = vpop.f32.mrb[0].mxu0
        %v3648 = vadd.f32 %v3607, %v3647
        %v3649 = vpop.f32.mrb[0].mxu0
        %v3650 = vadd.f32 %v3609, %v3649
        %v3651 = vpop.f32.mrb[0].mxu0
        %v3652 = vpop.f32.mrb[0].mxu0
        %3653 = vdwg.mxu0
        %3654 = vmatprep.subr.bf16.mxu0 %v2746
        %3655 = vmatpush1.bf16.msra.mxu0 %v2745
        %3656 = vmatprep.subr.bf16.mxu0 %v2750
        %3657 = vmatpush1.bf16.msra.mxu0 %v2749
        %3658 = vmatprep.subr.bf16.mxu0 %v2754
        %3659 = vmatpush1.bf16.msra.mxu0 %v2753
        %3660 = vmatprep.subr.bf16.mxu0 %v2758
        %3661 = vmatpush1.bf16.msra.mxu0 %v2757
        %3662 = vmatprep.subr.bf16.mxu0 %v2762
        %3663 = vmatpush1.bf16.msra.mxu0 %v2761
        %3664 = vmatprep.subr.bf16.mxu0 %v2766
        %3665 = vmatpush1.bf16.msra.mxu0 %v2765
        %3666 = vmatprep.subr.bf16.mxu0 %v2770
        %3667 = vmatpush1.bf16.msra.mxu0 %v2769
        %3668 = vmatprep.subr.bf16.mxu0 %v2774
        %3669 = vmatpush1.bf16.msra.mxu0 %v2773
        %3670 = vmatprep.subr.bf16.mxu0 %v2778
        %3671 = vmatpush1.bf16.msra.mxu0 %v2777
        %3672 = vmatprep.subr.bf16.mxu0 %v2782
        %3673 = vmatpush1.bf16.msra.mxu0 %v2781
        %3674 = vmatprep.subr.bf16.mxu0 %v2786
        %3675 = vmatpush1.bf16.msra.mxu0 %v2785
        %3676 = vmatprep.subr.bf16.mxu0 %v2790
        %3677 = vmatpush1.bf16.msra.mxu0 %v2789
        %3678 = vmatprep.subr.bf16.mxu0 %v2794
        %3679 = vmatpush1.bf16.msra.mxu0 %v2793
        %3680 = vmatprep.subr.bf16.mxu0 %v2798
        %3681 = vmatpush1.bf16.msra.mxu0 %v2797
        %3682 = vmatprep.subr.bf16.mxu0 %v2802
        %3683 = vmatpush1.bf16.msra.mxu0 %v2801
        %3684 = vmatprep.subr.bf16.mxu0 %v2806
        %3685 = vmatpush1.bf16.msra.mxu0 %v2805
        %3686 = vmatprep.mubr.bf16.mxu0 %v871
        %3687 = vmatmul.mubr.bf16.gmra.mrb[0].mxu0 %v869
        %v3688 = vpop.f32.mrb[0].mxu0
        %v3689 = vadd.f32 %v3648, %v3688
        %v3690 = vpop.f32.mrb[0].mxu0
        %v3691 = vadd.f32 %v3650, %v3690
        %v3692 = vpop.f32.mrb[0].mxu0
        %v3693 = vpop.f32.mrb[0].mxu0
        %3694 = vdwg.mxu0
        %3695 = vmatprep.subr.bf16.mxu0 %v2810
        %3696 = vmatpush1.bf16.msra.mxu0 %v2809
        %3697 = vmatprep.subr.bf16.mxu0 %v2814
        %3698 = vmatpush1.bf16.msra.mxu0 %v2813
        %3699 = vmatprep.subr.bf16.mxu0 %v2818
        %3700 = vmatpush1.bf16.msra.mxu0 %v2817
        %3701 = vmatprep.subr.bf16.mxu0 %v2822
        %3702 = vmatpush1.bf16.msra.mxu0 %v2821
        %3703 = vmatprep.subr.bf16.mxu0 %v2826
        %3704 = vmatpush1.bf16.msra.mxu0 %v2825
        %3705 = vmatprep.subr.bf16.mxu0 %v2830
        %3706 = vmatpush1.bf16.msra.mxu0 %v2829
        %3707 = vmatprep.subr.bf16.mxu0 %v2834
        %3708 = vmatpush1.bf16.msra.mxu0 %v2833
        %3709 = vmatprep.subr.bf16.mxu0 %v2838
        %3710 = vmatpush1.bf16.msra.mxu0 %v2837
        %3711 = vmatprep.subr.bf16.mxu0 %v2842
        %3712 = vmatpush1.bf16.msra.mxu0 %v2841
        %3713 = vmatprep.subr.bf16.mxu0 %v2846
        %3714 = vmatpush1.bf16.msra.mxu0 %v2845
        %3715 = vmatprep.subr.bf16.mxu0 %v2850
        %3716 = vmatpush1.bf16.msra.mxu0 %v2849
        %3717 = vmatprep.subr.bf16.mxu0 %v2854
        %3718 = vmatpush1.bf16.msra.mxu0 %v2853
        %3719 = vmatprep.subr.bf16.mxu0 %v2858
        %3720 = vmatpush1.bf16.msra.mxu0 %v2857
        %3721 = vmatprep.subr.bf16.mxu0 %v2862
        %3722 = vmatpush1.bf16.msra.mxu0 %v2861
        %3723 = vmatprep.subr.bf16.mxu0 %v2866
        %3724 = vmatpush1.bf16.msra.mxu0 %v2865
        %3725 = vmatprep.subr.bf16.mxu0 %v2870
        %3726 = vmatpush1.bf16.msra.mxu0 %v2869
        %3727 = vmatprep.mubr.bf16.mxu0 %v868
        %3728 = vmatmul.mubr.bf16.gmra.mrb[0].mxu0 %v854
        %v3729 = vpop.f32.mrb[0].mxu0
        %v3730 = vadd.f32 %v3689, %v3729
        %v3731 = vpop.f32.mrb[0].mxu0
        %v3732 = vadd.f32 %v3691, %v3731
        %v3733 = vpop.f32.mrb[0].mxu0
        %v3734 = vpop.f32.mrb[0].mxu0
        %3735 = vdwg.mxu0
        %3736 = vmatprep.subr.bf16.mxu0 %v2874
        %3737 = vmatpush1.bf16.msra.mxu0 %v2873
        %3738 = vmatprep.subr.bf16.mxu0 %v2878
        %3739 = vmatpush1.bf16.msra.mxu0 %v2877
        %3740 = vmatprep.subr.bf16.mxu0 %v2882
        %3741 = vmatpush1.bf16.msra.mxu0 %v2881
        %3742 = vmatprep.subr.bf16.mxu0 %v2886
        %3743 = vmatpush1.bf16.msra.mxu0 %v2885
        %3744 = vmatprep.subr.bf16.mxu0 %v2890
        %3745 = vmatpush1.bf16.msra.mxu0 %v2889
        %3746 = vmatprep.subr.bf16.mxu0 %v2894
        %3747 = vmatpush1.bf16.msra.mxu0 %v2893
        %3748 = vmatprep.subr.bf16.mxu0 %v2898
        %3749 = vmatpush1.bf16.msra.mxu0 %v2897
        %3750 = vmatprep.subr.bf16.mxu0 %v2902
        %3751 = vmatpush1.bf16.msra.mxu0 %v2901
        %3752 = vmatprep.subr.bf16.mxu0 %v2906
        %3753 = vmatpush1.bf16.msra.mxu0 %v2905
        %3754 = vmatprep.subr.bf16.mxu0 %v2910
        %3755 = vmatpush1.bf16.msra.mxu0 %v2909
        %3756 = vmatprep.subr.bf16.mxu0 %v2914
        %3757 = vmatpush1.bf16.msra.mxu0 %v2913
        %3758 = vmatprep.subr.bf16.mxu0 %v2918
        %3759 = vmatpush1.bf16.msra.mxu0 %v2917
        %3760 = vmatprep.subr.bf16.mxu0 %v2922
        %3761 = vmatpush1.bf16.msra.mxu0 %v2921
        %3762 = vmatprep.subr.bf16.mxu0 %v2926
        %3763 = vmatpush1.bf16.msra.mxu0 %v2925
        %3764 = vmatprep.subr.bf16.mxu0 %v2930
        %3765 = vmatpush1.bf16.msra.mxu0 %v2929
        %3766 = vmatprep.subr.bf16.mxu0 %v2934
        %3767 = vmatpush1.bf16.msra.mxu0 %v2933
        %3768 = vmatprep.mubr.bf16.mxu0 %v872
        %3769 = vmatmul.mubr.bf16.gmra.mrb[0].mxu0 %v870
        %v3770 = vpop.f32.mrb[0].mxu0
        %v3771 = vadd.f32 %v3730, %v3770
        %v3772 = vpop.f32.mrb[0].mxu0
        %v3773 = vadd.f32 %v3732, %v3772
        %v3774 = vpop.f32.mrb[0].mxu0
        %v3775 = vpop.f32.mrb[0].mxu0
        %3776 = vdwg.mxu0
        %3777 = vmatprep.subr.bf16.mxu0 %v2428
        %3778 = vmatpush1.bf16.msra.mxu0 %v2427
        %3779 = vmatprep.subr.bf16.mxu0 %v2432
        %3780 = vmatpush1.bf16.msra.mxu0 %v2431
        %3781 = vmatprep.subr.bf16.mxu0 %v2436
        %3782 = vmatpush1.bf16.msra.mxu0 %v2435
        %3783 = vmatprep.subr.bf16.mxu0 %v2440
        %3784 = vmatpush1.bf16.msra.mxu0 %v2439
        %3785 = vmatprep.subr.bf16.mxu0 %v2444
        %3786 = vmatpush1.bf16.msra.mxu0 %v2443
        %3787 = vmatprep.subr.bf16.mxu0 %v2448
        %3788 = vmatpush1.bf16.msra.mxu0 %v2447
        %3789 = vmatprep.subr.bf16.mxu0 %v2452
        %3790 = vmatpush1.bf16.msra.mxu0 %v2451
        %3791 = vmatprep.subr.bf16.mxu0 %v2456
        %3792 = vmatpush1.bf16.msra.mxu0 %v2455
        %3793 = vmatprep.subr.bf16.mxu0 %v2460
        %3794 = vmatpush1.bf16.msra.mxu0 %v2459
        %3795 = vmatprep.subr.bf16.mxu0 %v2464
        %3796 = vmatpush1.bf16.msra.mxu0 %v2463
        %3797 = vmatprep.subr.bf16.mxu0 %v2468
        %3798 = vmatpush1.bf16.msra.mxu0 %v2467
        %3799 = vmatprep.subr.bf16.mxu0 %v2472
        %3800 = vmatpush1.bf16.msra.mxu0 %v2471
        %3801 = vmatprep.subr.bf16.mxu0 %v2476
        %3802 = vmatpush1.bf16.msra.mxu0 %v2475
        %3803 = vmatprep.subr.bf16.mxu0 %v2480
        %3804 = vmatpush1.bf16.msra.mxu0 %v2479
        %3805 = vmatprep.subr.bf16.mxu0 %v2484
        %3806 = vmatpush1.bf16.msra.mxu0 %v2483
        %3807 = vmatprep.subr.bf16.mxu0 %v2488
        %3808 = vmatpush1.bf16.msra.mxu0 %v2487
        %3809 = vmatprep.mubr.bf16.mxu0 %v812
        %3810 = vmatmul.mubr.bf16.gmra.mrb[0].mxu0 %v798
        %v3811 = vpop.f32.mrb[0].mxu0
        %v3812 = vadd.f32 0.0, %v3811
        %v3813 = vpop.f32.mrb[0].mxu0
        %v3814 = vadd.f32 0.0, %v3813
        %v3815 = vpop.f32.mrb[0].mxu0
        %v3816 = vpop.f32.mrb[0].mxu0
        %3817 = vdwg.mxu0
        %3818 = vmatprep.subr.bf16.mxu0 %v2492
        %3819 = vmatpush1.bf16.msra.mxu0 %v2491
        %3820 = vmatprep.subr.bf16.mxu0 %v2496
        %3821 = vmatpush1.bf16.msra.mxu0 %v2495
        %3822 = vmatprep.subr.bf16.mxu0 %v2500
        %3823 = vmatpush1.bf16.msra.mxu0 %v2499
        %3824 = vmatprep.subr.bf16.mxu0 %v2504
        %3825 = vmatpush1.bf16.msra.mxu0 %v2503
        %3826 = vmatprep.subr.bf16.mxu0 %v2508
        %3827 = vmatpush1.bf16.msra.mxu0 %v2507
        %3828 = vmatprep.subr.bf16.mxu0 %v2512
        %3829 = vmatpush1.bf16.msra.mxu0 %v2511
        %3830 = vmatprep.subr.bf16.mxu0 %v2516
        %3831 = vmatpush1.bf16.msra.mxu0 %v2515
        %3832 = vmatprep.subr.bf16.mxu0 %v2520
        %3833 = vmatpush1.bf16.msra.mxu0 %v2519
        %3834 = vmatprep.subr.bf16.mxu0 %v2524
        %3835 = vmatpush1.bf16.msra.mxu0 %v2523
        %3836 = vmatprep.subr.bf16.mxu0 %v2528
        %3837 = vmatpush1.bf16.msra.mxu0 %v2527
        %3838 = vmatprep.subr.bf16.mxu0 %v2532
        %3839 = vmatpush1.bf16.msra.mxu0 %v2531
        %3840 = vmatprep.subr.bf16.mxu0 %v2536
        %3841 = vmatpush1.bf16.msra.mxu0 %v2535
        %3842 = vmatprep.subr.bf16.mxu0 %v2540
        %3843 = vmatpush1.bf16.msra.mxu0 %v2539
        %3844 = vmatprep.subr.bf16.mxu0 %v2544
        %3845 = vmatpush1.bf16.msra.mxu0 %v2543
        %3846 = vmatprep.subr.bf16.mxu0 %v2548
        %3847 = vmatpush1.bf16.msra.mxu0 %v2547
        %3848 = vmatprep.subr.bf16.mxu0 %v2552
        %3849 = vmatpush1.bf16.msra.mxu0 %v2551
        %3850 = vmatprep.mubr.bf16.mxu0 %v822
        %3851 = vmatmul.mubr.bf16.gmra.mrb[0].mxu0 %v820
        %v3852 = vpop.f32.mrb[0].mxu0
        %v3853 = vadd.f32 %v3812, %v3852
        %v3854 = vpop.f32.mrb[0].mxu0
        %v3855 = vadd.f32 %v3814, %v3854
        %v3856 = vpop.f32.mrb[0].mxu0
        %v3857 = vpop.f32.mrb[0].mxu0
        %3858 = vdwg.mxu0
        %3859 = vmatprep.subr.bf16.mxu0 %v2556
        %3860 = vmatpush1.bf16.msra.mxu0 %v2555
        %3861 = vmatprep.subr.bf16.mxu0 %v2560
        %3862 = vmatpush1.bf16.msra.mxu0 %v2559
        %3863 = vmatprep.subr.bf16.mxu0 %v2564
        %3864 = vmatpush1.bf16.msra.mxu0 %v2563
        %3865 = vmatprep.subr.bf16.mxu0 %v2568
        %3866 = vmatpush1.bf16.msra.mxu0 %v2567
        %3867 = vmatprep.subr.bf16.mxu0 %v2572
        %3868 = vmatpush1.bf16.msra.mxu0 %v2571
        %3869 = vmatprep.subr.bf16.mxu0 %v2576
        %3870 = vmatpush1.bf16.msra.mxu0 %v2575
        %3871 = vmatprep.subr.bf16.mxu0 %v2580
        %3872 = vmatpush1.bf16.msra.mxu0 %v2579
        %3873 = vmatprep.subr.bf16.mxu0 %v2584
        %3874 = vmatpush1.bf16.msra.mxu0 %v2583
        %3875 = vmatprep.subr.bf16.mxu0 %v2588
        %3876 = vmatpush1.bf16.msra.mxu0 %v2587
        %3877 = vmatprep.subr.bf16.mxu0 %v2592
        %3878 = vmatpush1.bf16.msra.mxu0 %v2591
        %3879 = vmatprep.subr.bf16.mxu0 %v2596
        %3880 = vmatpush1.bf16.msra.mxu0 %v2595
        %3881 = vmatprep.subr.bf16.mxu0 %v2600
        %3882 = vmatpush1.bf16.msra.mxu0 %v2599
        %3883 = vmatprep.subr.bf16.mxu0 %v2604
        %3884 = vmatpush1.bf16.msra.mxu0 %v2603
        %3885 = vmatprep.subr.bf16.mxu0 %v2608
        %3886 = vmatpush1.bf16.msra.mxu0 %v2607
        %3887 = vmatprep.subr.bf16.mxu0 %v2612
        %3888 = vmatpush1.bf16.msra.mxu0 %v2611
        %3889 = vmatprep.subr.bf16.mxu0 %v2616
        %3890 = vmatpush1.bf16.msra.mxu0 %v2615
        %3891 = vmatprep.mubr.bf16.mxu0 %v819
        %3892 = vmatmul.mubr.bf16.gmra.mrb[0].mxu0 %v805
        %v3893 = vpop.f32.mrb[0].mxu0
        %v3894 = vadd.f32 %v3853, %v3893
        %v3895 = vpop.f32.mrb[0].mxu0
        %v3896 = vadd.f32 %v3855, %v3895
        %v3897 = vpop.f32.mrb[0].mxu0
        %v3898 = vpop.f32.mrb[0].mxu0
        %3899 = vdwg.mxu0
        %3900 = vmatprep.subr.bf16.mxu0 %v2620
        %3901 = vmatpush1.bf16.msra.mxu0 %v2619
        %3902 = vmatprep.subr.bf16.mxu0 %v2624
        %3903 = vmatpush1.bf16.msra.mxu0 %v2623
        %3904 = vmatprep.subr.bf16.mxu0 %v2628
        %3905 = vmatpush1.bf16.msra.mxu0 %v2627
        %3906 = vmatprep.subr.bf16.mxu0 %v2632
        %3907 = vmatpush1.bf16.msra.mxu0 %v2631
        %3908 = vmatprep.subr.bf16.mxu0 %v2636
        %3909 = vmatpush1.bf16.msra.mxu0 %v2635
        %3910 = vmatprep.subr.bf16.mxu0 %v2640
        %3911 = vmatpush1.bf16.msra.mxu0 %v2639
        %3912 = vmatprep.subr.bf16.mxu0 %v2644
        %3913 = vmatpush1.bf16.msra.mxu0 %v2643
        %3914 = vmatprep.subr.bf16.mxu0 %v2648
        %3915 = vmatpush1.bf16.msra.mxu0 %v2647
        %3916 = vmatprep.subr.bf16.mxu0 %v2652
        %3917 = vmatpush1.bf16.msra.mxu0 %v2651
        %3918 = vmatprep.subr.bf16.mxu0 %v2656
        %3919 = vmatpush1.bf16.msra.mxu0 %v2655
        %3920 = vmatprep.subr.bf16.mxu0 %v2660
        %3921 = vmatpush1.bf16.msra.mxu0 %v2659
        %3922 = vmatprep.subr.bf16.mxu0 %v2664
        %3923 = vmatpush1.bf16.msra.mxu0 %v2663
        %3924 = vmatprep.subr.bf16.mxu0 %v2668
        %3925 = vmatpush1.bf16.msra.mxu0 %v2667
        %3926 = vmatprep.subr.bf16.mxu0 %v2672
        %3927 = vmatpush1.bf16.msra.mxu0 %v2671
        %3928 = vmatprep.subr.bf16.mxu0 %v2676
        %3929 = vmatpush1.bf16.msra.mxu0 %v2675
        %3930 = vmatprep.subr.bf16.mxu0 %v2680
        %3931 = vmatpush1.bf16.msra.mxu0 %v2679
        %3932 = vmatprep.mubr.bf16.mxu0 %v823
        %3933 = vmatmul.mubr.bf16.gmra.mrb[0].mxu0 %v821
        %v3934 = vpop.f32.mrb[0].mxu0
        %v3935 = vadd.f32 %v3894, %v3934
        %v3936 = vpop.f32.mrb[0].mxu0
        %v3937 = vadd.f32 %v3896, %v3936
        %v3938 = vpop.f32.mrb[0].mxu0
        %v3939 = vpop.f32.mrb[0].mxu0
        %3940 = vdwg.mxu0
        %3941 = vmatprep.subr.bf16.mxu0 %v2684
        %3942 = vmatpush1.bf16.msra.mxu0 %v2683
        %3943 = vmatprep.subr.bf16.mxu0 %v2688
        %3944 = vmatpush1.bf16.msra.mxu0 %v2687
        %3945 = vmatprep.subr.bf16.mxu0 %v2692
        %3946 = vmatpush1.bf16.msra.mxu0 %v2691
        %3947 = vmatprep.subr.bf16.mxu0 %v2696
        %3948 = vmatpush1.bf16.msra.mxu0 %v2695
        %3949 = vmatprep.subr.bf16.mxu0 %v2700
        %3950 = vmatpush1.bf16.msra.mxu0 %v2699
        %3951 = vmatprep.subr.bf16.mxu0 %v2704
        %3952 = vmatpush1.bf16.msra.mxu0 %v2703
        %3953 = vmatprep.subr.bf16.mxu0 %v2708
        %3954 = vmatpush1.bf16.msra.mxu0 %v2707
        %3955 = vmatprep.subr.bf16.mxu0 %v2712
        %3956 = vmatpush1.bf16.msra.mxu0 %v2711
        %3957 = vmatprep.subr.bf16.mxu0 %v2716
        %3958 = vmatpush1.bf16.msra.mxu0 %v2715
        %3959 = vmatprep.subr.bf16.mxu0 %v2720
        %3960 = vmatpush1.bf16.msra.mxu0 %v2719
        %3961 = vmatprep.subr.bf16.mxu0 %v2724
        %3962 = vmatpush1.bf16.msra.mxu0 %v2723
        %3963 = vmatprep.subr.bf16.mxu0 %v2728
        %3964 = vmatpush1.bf16.msra.mxu0 %v2727
        %3965 = vmatprep.subr.bf16.mxu0 %v2732
        %3966 = vmatpush1.bf16.msra.mxu0 %v2731
        %3967 = vmatprep.subr.bf16.mxu0 %v2736
        %3968 = vmatpush1.bf16.msra.mxu0 %v2735
        %3969 = vmatprep.subr.bf16.mxu0 %v2740
        %3970 = vmatpush1.bf16.msra.mxu0 %v2739
        %3971 = vmatprep.subr.bf16.mxu0 %v2744
        %3972 = vmatpush1.bf16.msra.mxu0 %v2743
        %3973 = vmatprep.mubr.bf16.mxu0 %v861
        %3974 = vmatmul.mubr.bf16.gmra.mrb[0].mxu0 %v847
        %v3975 = vpop.f32.mrb[0].mxu0
        %v3976 = vadd.f32 %v3935, %v3975
        %v3977 = vpop.f32.mrb[0].mxu0
        %v3978 = vadd.f32 %v3937, %v3977
        %v3979 = vpop.f32.mrb[0].mxu0
        %v3980 = vpop.f32.mrb[0].mxu0
        %3981 = vdwg.mxu0
        %3982 = vmatprep.subr.bf16.mxu0 %v2748
        %3983 = vmatpush1.bf16.msra.mxu0 %v2747
        %3984 = vmatprep.subr.bf16.mxu0 %v2752
        %3985 = vmatpush1.bf16.msra.mxu0 %v2751
        %3986 = vmatprep.subr.bf16.mxu0 %v2756
        %3987 = vmatpush1.bf16.msra.mxu0 %v2755
        %3988 = vmatprep.subr.bf16.mxu0 %v2760
        %3989 = vmatpush1.bf16.msra.mxu0 %v2759
        %3990 = vmatprep.subr.bf16.mxu0 %v2764
        %3991 = vmatpush1.bf16.msra.mxu0 %v2763
        %3992 = vmatprep.subr.bf16.mxu0 %v2768
        %3993 = vmatpush1.bf16.msra.mxu0 %v2767
        %3994 = vmatprep.subr.bf16.mxu0 %v2772
        %3995 = vmatpush1.bf16.msra.mxu0 %v2771
        %3996 = vmatprep.subr.bf16.mxu0 %v2776
        %3997 = vmatpush1.bf16.msra.mxu0 %v2775
        %3998 = vmatprep.subr.bf16.mxu0 %v2780
        %3999 = vmatpush1.bf16.msra.mxu0 %v2779
        %4000 = vmatprep.subr.bf16.mxu0 %v2784
        %4001 = vmatpush1.bf16.msra.mxu0 %v2783
        %4002 = vmatprep.subr.bf16.mxu0 %v2788
        %4003 = vmatpush1.bf16.msra.mxu0 %v2787
        %4004 = vmatprep.subr.bf16.mxu0 %v2792
        %4005 = vmatpush1.bf16.msra.mxu0 %v2791
        %4006 = vmatprep.subr.bf16.mxu0 %v2796
        %4007 = vmatpush1.bf16.msra.mxu0 %v2795
        %4008 = vmatprep.subr.bf16.mxu0 %v2800
        %4009 = vmatpush1.bf16.msra.mxu0 %v2799
        %4010 = vmatprep.subr.bf16.mxu0 %v2804
        %4011 = vmatpush1.bf16.msra.mxu0 %v2803
        %4012 = vmatprep.subr.bf16.mxu0 %v2808
        %4013 = vmatpush1.bf16.msra.mxu0 %v2807
        %4014 = vmatprep.mubr.bf16.mxu0 %v871
        %4015 = vmatmul.mubr.bf16.gmra.mrb[0].mxu0 %v869
        %v4016 = vpop.f32.mrb[0].mxu0
        %v4017 = vadd.f32 %v3976, %v4016
        %v4018 = vpop.f32.mrb[0].mxu0
        %v4019 = vadd.f32 %v3978, %v4018
        %v4020 = vpop.f32.mrb[0].mxu0
        %v4021 = vpop.f32.mrb[0].mxu0
        %4022 = vdwg.mxu0
        %4023 = vmatprep.subr.bf16.mxu0 %v2812
        %4024 = vmatpush1.bf16.msra.mxu0 %v2811
        %4025 = vmatprep.subr.bf16.mxu0 %v2816
        %4026 = vmatpush1.bf16.msra.mxu0 %v2815
        %4027 = vmatprep.subr.bf16.mxu0 %v2820
        %4028 = vmatpush1.bf16.msra.mxu0 %v2819
        %4029 = vmatprep.subr.bf16.mxu0 %v2824
        %4030 = vmatpush1.bf16.msra.mxu0 %v2823
        %4031 = vmatprep.subr.bf16.mxu0 %v2828
        %4032 = vmatpush1.bf16.msra.mxu0 %v2827
        %4033 = vmatprep.subr.bf16.mxu0 %v2832
        %4034 = vmatpush1.bf16.msra.mxu0 %v2831
        %4035 = vmatprep.subr.bf16.mxu0 %v2836
        %4036 = vmatpush1.bf16.msra.mxu0 %v2835
        %4037 = vmatprep.subr.bf16.mxu0 %v2840
        %4038 = vmatpush1.bf16.msra.mxu0 %v2839
        %4039 = vmatprep.subr.bf16.mxu0 %v2844
        %4040 = vmatpush1.bf16.msra.mxu0 %v2843
        %4041 = vmatprep.subr.bf16.mxu0 %v2848
        %4042 = vmatpush1.bf16.msra.mxu0 %v2847
        %4043 = vmatprep.subr.bf16.mxu0 %v2852
        %4044 = vmatpush1.bf16.msra.mxu0 %v2851
        %4045 = vmatprep.subr.bf16.mxu0 %v2856
        %4046 = vmatpush1.bf16.msra.mxu0 %v2855
        %4047 = vmatprep.subr.bf16.mxu0 %v2860
        %4048 = vmatpush1.bf16.msra.mxu0 %v2859
        %4049 = vmatprep.subr.bf16.mxu0 %v2864
        %4050 = vmatpush1.bf16.msra.mxu0 %v2863
        %4051 = vmatprep.subr.bf16.mxu0 %v2868
        %4052 = vmatpush1.bf16.msra.mxu0 %v2867
        %4053 = vmatprep.subr.bf16.mxu0 %v2872
        %4054 = vmatpush1.bf16.msra.mxu0 %v2871
        %4055 = vmatprep.mubr.bf16.mxu0 %v868
        %4056 = vmatmul.mubr.bf16.gmra.mrb[0].mxu0 %v854
        %v4057 = vpop.f32.mrb[0].mxu0
        %v4058 = vadd.f32 %v4017, %v4057
        %v4059 = vpop.f32.mrb[0].mxu0
        %v4060 = vadd.f32 %v4019, %v4059
        %v4061 = vpop.f32.mrb[0].mxu0
        %v4062 = vpop.f32.mrb[0].mxu0
        %4063 = vdwg.mxu0
        %4064 = vmatprep.subr.bf16.mxu0 %v2876
        %4065 = vmatpush1.bf16.msra.mxu0 %v2875
        %4066 = vmatprep.subr.bf16.mxu0 %v2880
        %4067 = vmatpush1.bf16.msra.mxu0 %v2879
        %4068 = vmatprep.subr.bf16.mxu0 %v2884
        %4069 = vmatpush1.bf16.msra.mxu0 %v2883
        %4070 = vmatprep.subr.bf16.mxu0 %v2888
        %4071 = vmatpush1.bf16.msra.mxu0 %v2887
        %4072 = vmatprep.subr.bf16.mxu0 %v2892
        %4073 = vmatpush1.bf16.msra.mxu0 %v2891
        %4074 = vmatprep.subr.bf16.mxu0 %v2896
        %4075 = vmatpush1.bf16.msra.mxu0 %v2895
        %4076 = vmatprep.subr.bf16.mxu0 %v2900
        %4077 = vmatpush1.bf16.msra.mxu0 %v2899
        %4078 = vmatprep.subr.bf16.mxu0 %v2904
        %4079 = vmatpush1.bf16.msra.mxu0 %v2903
        %4080 = vmatprep.subr.bf16.mxu0 %v2908
        %4081 = vmatpush1.bf16.msra.mxu0 %v2907
        %4082 = vmatprep.subr.bf16.mxu0 %v2912
        %4083 = vmatpush1.bf16.msra.mxu0 %v2911
        %4084 = vmatprep.subr.bf16.mxu0 %v2916
        %4085 = vmatpush1.bf16.msra.mxu0 %v2915
        %4086 = vmatprep.subr.bf16.mxu0 %v2920
        %4087 = vmatpush1.bf16.msra.mxu0 %v2919
        %4088 = vmatprep.subr.bf16.mxu0 %v2924
        %4089 = vmatpush1.bf16.msra.mxu0 %v2923
        %4090 = vmatprep.subr.bf16.mxu0 %v2928
        %4091 = vmatpush1.bf16.msra.mxu0 %v2927
        %4092 = vmatprep.subr.bf16.mxu0 %v2932
        %4093 = vmatpush1.bf16.msra.mxu0 %v2931
        %4094 = vmatprep.subr.bf16.mxu0 %v2936
        %4095 = vmatpush1.bf16.msra.mxu0 %v2935
        %4096 = vmatprep.mubr.bf16.mxu0 %v872
        %4097 = vmatmul.mubr.bf16.gmra.mrb[0].mxu0 %v870
        %v4098 = vpop.f32.mrb[0].mxu0
        %v4099 = vadd.f32 %v4058, %v4098
        %v4100 = vpop.f32.mrb[0].mxu0
        %v4101 = vadd.f32 %v4060, %v4100
        %v4102 = vpop.f32.mrb[0].mxu0
        %v4103 = vpop.f32.mrb[0].mxu0
        %4104 = vdwg.mxu0
        %v4109 = vcombine.low %v3771, %v3773
        %v4110 = vcombine.low %v4099, %v4101
        %v4112 = vunpack.c.l.s4 1983009808
        %v4113 = vunpack.c.0.s8 %v4112
        %v4114 = vlaneseq
        %v4115 = vshrl.u32 %v4114, 7
        %v4116 = vsub.s32 %v4113, %v4115
        %v4117 = vrot.slane %v4109, %v4116
        %v4119 = vunpack.c.l.s4 1983009808
        %v4120 = vunpack.c.0.s8 %v4119
        %v4121 = vlaneseq
        %v4122 = vshrl.u32 %v4121, 7
        %v4123 = vsub.s32 %v4120, %v4122
        %v4124 = vrot.slane %v4110, %v4123
        %v4125 = vcombine.low %v4117, %v4124
        %v4127 = vadd.f32 %v258, %v4125
        %4128 = vst [vmem:[#allocation2] sm:$0xff] %v4127
        %p4129 = scmp.eq.s32.totalorder %s21, 5
        // Predicated region
        $region49: #{discriminator_forward.7} parent=39 // pred_check
          %p4130 = pneg %p4129
        $region50: #{discriminator_forward.7} parent=39 // pred_check_branch
          %4132 = sbr.rel (%p4130) target = $region52
        $region51: #{discriminator_forward.7} parent=39 // pred_region
          %v4133 = vld [vmem:[#allocation2] sm:$0xff]
          %v4134 = vld [vmem:[%s2] sm:$0xf]
          %v4136 = vlaneseq
          %v4137 = vshrl.u32 %v4136, 7
          %v4138 = vsub.s32 0, %v4137
          %v4139 = vrot.slane %v4134, %v4138
          %v4140 = vlaneseq
          %v4141 = vshrl.u32 %v4140, 7
          %v4142 = vsub.s32 1, %v4141
          %v4143 = vrot.slane %v4134, %v4142
          %v4144 = vlaneseq
          %v4145 = vshrl.u32 %v4144, 7
          %v4146 = vsub.s32 2, %v4145
          %v4147 = vrot.slane %v4134, %v4146
          %v4148 = vlaneseq
          %v4149 = vshrl.u32 %v4148, 7
          %v4150 = vsub.s32 3, %v4149
          %v4151 = vrot.slane %v4134, %v4150
          %v4152 = vcombine.low %v4139, %v4143
          %v4153 = vcombine.low %v4147, %v4151
          %v4155 = vunpack.c.l.s4 1983009808
          %v4156 = vunpack.c.0.s8 %v4155
          %v4157 = vlaneseq
          %v4158 = vshrl.u32 %v4157, 7
          %v4159 = vsub.s32 %v4156, %v4158
          %v4160 = vrot.slane %v4152, %v4159
          %v4162 = vunpack.c.l.s4 1983009808
          %v4163 = vunpack.c.0.s8 %v4162
          %v4164 = vlaneseq
          %v4165 = vshrl.u32 %v4164, 7
          %v4166 = vsub.s32 %v4163, %v4165
          %v4167 = vrot.slane %v4153, %v4166
          %v4168 = vcombine.low %v4160, %v4167
          %v4170 = vadd.f32 %v4133, %v4168
          %v4171 = vld [vmem:[%s3] sm:$0xf]
          %v4173 = vlaneseq
          %v4174 = vshrl.u32 %v4173, 7
          %v4175 = vsub.s32 0, %v4174
          %v4176 = vrot.slane %v4171, %v4175
          %v4177 = vlaneseq
          %v4178 = vshrl.u32 %v4177, 7
          %v4179 = vsub.s32 1, %v4178
          %v4180 = vrot.slane %v4171, %v4179
          %v4181 = vlaneseq
          %v4182 = vshrl.u32 %v4181, 7
          %v4183 = vsub.s32 2, %v4182
          %v4184 = vrot.slane %v4171, %v4183
          %v4185 = vlaneseq
          %v4186 = vshrl.u32 %v4185, 7
          %v4187 = vsub.s32 3, %v4186
          %v4188 = vrot.slane %v4171, %v4187
          %v4189 = vcombine.low %v4176, %v4180
          %v4190 = vcombine.low %v4184, %v4188
          %v4192 = vunpack.c.l.s4 1983009808
          %v4193 = vunpack.c.0.s8 %v4192
          %v4194 = vlaneseq
          %v4195 = vshrl.u32 %v4194, 7
          %v4196 = vsub.s32 %v4193, %v4195
          %v4197 = vrot.slane %v4189, %v4196
          %v4199 = vunpack.c.l.s4 1983009808
          %v4200 = vunpack.c.0.s8 %v4199
          %v4201 = vlaneseq
          %v4202 = vshrl.u32 %v4201, 7
          %v4203 = vsub.s32 %v4200, %v4202
          %v4204 = vrot.slane %v4190, %v4203
          %v4205 = vcombine.low %v4197, %v4204
          %v4207 = vmul.f32 %v4170, %v4205
          %v4209 = vcombine.high %v4207, %v4207
          %v4211 = vunpack.c.l.s4 1983009808
          %v4212 = vunpack.c.0.s8 %v4211
          %v4213 = vlaneseq
          %v4214 = vshrl.u32 %v4213, 7
          %v4215 = vsub.s32 %v4212, %v4214
          %v4216 = vrot.slane %v4207, %v4215
          %v4218 = vunpack.c.l.s4 1983009808
          %v4219 = vunpack.c.0.s8 %v4218
          %v4220 = vlaneseq
          %v4221 = vshrl.u32 %v4220, 7
          %v4222 = vsub.s32 %v4219, %v4221
          %v4223 = vrot.slane %v4209, %v4222
          %v4224 = vcombine.high %v4216, %v4216
          %v4225 = vcombine.high %v4223, %v4223
          %vm4230 = vcmask 1041408
          %v4231 = vsel %vm4230, %v4216, 0.0
          %v4232 = vsel %vm4230, %v4224, 0.0
          %v4233 = vadd.f32 %v4231, %v4232
          %v4234 = vsel %vm4230, %v4223, 0.0
          %v4235 = vadd.f32 %v4233, %v4234
          %v4236 = vsel %vm4230, %v4225, 0.0
          %v4237 = vadd.f32 %v4235, %v4236
          %4238 = vadd.xlane.f32.xlu0 %v4237
          %v4239 = vpop.xlane.xlu0 %4238
          %v4240 = vld [vmem:[#allocation3] sm:$0x1]
          %v4242 = vlaneseq
          %v4243 = vshrl.u32 %v4242, 7
          %v4244 = vsub.s32 0, %v4243
          %v4245 = vrot.slane %v4240, %v4244
          %v4247 = vadd.f32 %v4239, %v4245
          %v4248 = vmul.f32 %v4247, 0.5
          %v4249 = vtanh.pop %v4248
          %v4250 = vadd.f32 %v4249, 1.0
          %v4251 = vmul.f32 %v4250, 0.5
          %vm4252 = vcmask 1024
          %4253 = vst.msk [vmem:[%s5] sm:$0x3] %vm4252, %v4251
        $region52: #{discriminator_forward.7} parent=39 // pred_fallthru
          _
        // Predicated region
        $region53: #{discriminator_forward.7} parent=39 // pred_check
          %p4254 = pneg %p149
        $region54: #{discriminator_forward.7} parent=39 // pred_check_branch
          %4256 = sbr.rel (%p4254) target = $region56
        $region55: #{discriminator_forward.7} parent=39 // pred_region
          _
        $region56: #{discriminator_forward.7} parent=39 // pred_fallthru
          _
        // Predicated region
        $region57: #{discriminator_forward.7} parent=39 // pred_check
          %p4257 = pneg %p149
        $region58: #{discriminator_forward.7} parent=39 // pred_check_branch
          %4259 = sbr.rel (%p4257) target = $region60
        $region59: #{discriminator_forward.7} parent=39 // pred_region
          _
        $region60: #{discriminator_forward.7} parent=39 // pred_fallthru
          _
      $region40: #{discriminator_forward.7} parent=5 // pred_fallthru
        _
      %p4260 = scmp.le.s32.totalorder 2, %s16
      // Predicated region
      $region61: #{discriminator_forward.7} parent=5 // pred_check
        %p4261 = pneg %p4260
      $region62: #{discriminator_forward.7} parent=5 // pred_check_branch
        %4263 = sbr.rel (%p4261) target = $region64
      $region63: #{discriminator_forward.7} parent=5 // pred_region
        %s4264 = ssub.s32 %s16, 2
      $region64: #{discriminator_forward.7} parent=5 // pred_fallthru
        _
    $region6: #{discriminator_forward.7} parent=1 // loop_footer
      %s20 = sadd.s32 1, %s16
    $region7: #{discriminator_forward.7} parent=1 // loop_footer_branch
      %15 = sbr.rel target = $region3
    $region8: #{discriminator_forward.7} parent=1 // loop_exit
      _
    %4265 = vsyncpa [#allocation5], 1
    %s4266 = scalar_lea.sflag [#allocation5], 1
    %4267 = vsyncpa %s4266, 1

// kernel: discriminator_forward.6
$region0: #{discriminator_forward.6}
  #allocation0 [shape = 'u32[]', space=smem, size = 0x4, offset = 0x4, fixed_abs, tag = 'smem constant byte address 0x4 - core index']
  #allocation1 [shape = 'u32[144,128]{1,0:T(1,128)}', space=vmem, size = 0x12000, scoped, tag = 'internal scratch']
  %s0 = inlined_call_operand.vmem [shape: bf16[24,2560], index: 0, kind: input, shape index: {}]
  %s1 = inlined_call_operand.hbm [shape: bf16[2560,1024], index: 1, kind: input, shape index: {}]
  %s2 = inlined_call_operand.hbm [shape: f32[1,1024], index: 2, kind: input, shape index: {}]
  %s3 = inlined_call_operand.vmem [shape: bf16[24,1024], index: 3, kind: output, shape index: {}]
  %s4 = sld [smem:[#allocation0]]
  $region72: #{discriminator_forward.6} parent=0
    _
  %s6 = ssub.s32 1, %s4
  %s7 = scalar_select 0, %s6, %s4
  $region1: #{discriminator_forward.6} parent=0
    #allocation2 [shape = 'u8[5242880]{0}', space=vmem, size = 0x500000, scoped, tag = 'input window, operand 1']
    #allocation3 [shape = 's32[2]{0}', space=sflag, size = 0x8, scoped, tag = 'scoped memory for discriminator_forward.6']
    #allocation4 [shape = 'u8[4096]{0}', space=vmem, size = 0x1000, scoped, tag = 'input window, operand 2']
    #allocation5 [shape = 's32[2]{0}', space=sflag, size = 0x8, scoped, tag = 'scoped memory for discriminator_forward.6']
    #allocation6 [shape = 'u8[49152]{0}', space=vmem, size = 0xc000, scoped, tag = 'output window, operand 0']
    %8 = vsyncpa [#allocation3], 0
    %s9 = scalar_lea.sflag [#allocation3], 1
    %10 = vsyncpa %s9, 0
    %11 = vsyncpa [#allocation5], 0
    %s12 = scalar_lea.sflag [#allocation5], 1
    %13 = vsyncpa %s12, 0
    loop: start=0, step=1, limit=4
    $region2: #{discriminator_forward.6} parent=1 // loop_pre_header
      _
    $region3: #{discriminator_forward.6} parent=1 // loop_header
      %s15 = sphi 0, %s19
      %p16 = scmp.ge.s32.totalorder %s15, 4
      %s23 = sphi 0, %s23
      %s25 = sphi 0, %s23
      %s26 = sphi 0, %s25
      %s40 = sphi 0, %s26
      %s46 = sphi 0, %s48
      %s49 = sphi 0, %s46
      %s50 = sphi 0, %s49
      %s66 = sphi 0, %s50
      %s72 = sphi 0, %s74
      %s75 = sphi 0, %s72
      %s76 = sphi 0, %s75
      %s92 = sphi 0, %s76
      %s98 = sphi 0, %s100
      %s101 = sphi 0, %s98
      %s102 = sphi 0, %s101
      %s118 = sphi 0, %s102
    $region4: #{discriminator_forward.6} parent=1 // loop_header_branch
      %18 = sbr.rel (%p16) target = $region8
    $region5: #{discriminator_forward.6} parent=1 // loop_body
      %s20 = ssub.s32 %s15, 1
      %s21 = ssub.s32 %s15, 2
      %s22 = sadd.s32 %s15, 1
      %s24 = sadd.s32 %s23, 1
      %p27 = scmp.eq.s32.totalorder %s15, 1
      %p28 = scmp.ne.s32.totalorder %s23, %s25
      %p29 = scmp.eq.s32.totalorder %s15, 0
      %p30 = por %p28, %p29
      %p31 = scmp.ne.s32.totalorder %s23, %s25
      %p32 = scmp.eq.s32.totalorder %s20, 1
      %p33 = por %p31, %p32
      %p34 = scmp.ne.s32.totalorder %s25, %s26
      %p35 = scmp.eq.s32.totalorder %s20, 0
      %p36 = por %p34, %p35
      %p37 = scmp.ne.s32.totalorder %s25, %s26
      %p38 = scmp.eq.s32.totalorder %s21, 1
      %p39 = por %p37, %p38
      %p41 = scmp.ne.s32.totalorder %s26, %s40
      %p42 = scmp.eq.s32.totalorder %s21, 0
      %p43 = por %p41, %p42
      %s44 = ssub.s32 %s15, %s22
      %p45 = scmp.eq.s32.totalorder %s44, 0
      %s47 = sadd.s32 %s46, 1
      %s48 = scalar_select %p45, %s46, %s47
      %p51 = pneg %p45
      %p52 = scmp.eq.s32.totalorder %s15, 1
      %p53 = por %p51, %p52
      %p54 = scmp.ne.s32.totalorder %s46, %s49
      %p55 = scmp.eq.s32.totalorder %s15, 0
      %p56 = por %p54, %p55
      %p57 = scmp.ne.s32.totalorder %s46, %s49
      %p58 = scmp.eq.s32.totalorder %s20, 1
      %p59 = por %p57, %p58
      %p60 = scmp.ne.s32.totalorder %s49, %s50
      %p61 = scmp.eq.s32.totalorder %s20, 0
      %p62 = por %p60, %p61
      %p63 = scmp.ne.s32.totalorder %s49, %s50
      %p64 = scmp.eq.s32.totalorder %s21, 1
      %p65 = por %p63, %p64
      %p67 = scmp.ne.s32.totalorder %s50, %s66
      %p68 = scmp.eq.s32.totalorder %s21, 0
      %p69 = por %p67, %p68
      %s70 = ssub.s32 %s15, %s22
      %p71 = scmp.eq.s32.totalorder %s70, 0
      %s73 = sadd.s32 %s72, 1
      %s74 = scalar_select %p71, %s72, %s73
      %p77 = pneg %p71
      %p78 = scmp.eq.s32.totalorder %s15, 1
      %p79 = por %p77, %p78
      %p80 = scmp.ne.s32.totalorder %s72, %s75
      %p81 = scmp.eq.s32.totalorder %s15, 0
      %p82 = por %p80, %p81
      %p83 = scmp.ne.s32.totalorder %s72, %s75
      %p84 = scmp.eq.s32.totalorder %s20, 1
      %p85 = por %p83, %p84
      %p86 = scmp.ne.s32.totalorder %s75, %s76
      %p87 = scmp.eq.s32.totalorder %s20, 0
      %p88 = por %p86, %p87
      %p89 = scmp.ne.s32.totalorder %s75, %s76
      %p90 = scmp.eq.s32.totalorder %s21, 1
      %p91 = por %p89, %p90
      %p93 = scmp.ne.s32.totalorder %s76, %s92
      %p94 = scmp.eq.s32.totalorder %s21, 0
      %p95 = por %p93, %p94
      %s96 = ssub.s32 %s15, %s22
      %p97 = scmp.eq.s32.totalorder %s96, 0
      %s99 = sadd.s32 %s98, 1
      %s100 = scalar_select %p97, %s98, %s99
      %p103 = pneg %p97
      %p104 = scmp.eq.s32.totalorder %s15, 1
      %p105 = por %p103, %p104
      %p106 = scmp.ne.s32.totalorder %s98, %s101
      %p107 = scmp.eq.s32.totalorder %s15, 0
      %p108 = por %p106, %p107
      %p109 = scmp.ne.s32.totalorder %s98, %s101
      %p110 = scmp.eq.s32.totalorder %s20, 1
      %p111 = por %p109, %p110
      %p112 = scmp.ne.s32.totalorder %s101, %s102
      %p113 = scmp.eq.s32.totalorder %s20, 0
      %p114 = por %p112, %p113
      %p115 = scmp.ne.s32.totalorder %s101, %s102
      %p116 = scmp.eq.s32.totalorder %s21, 1
      %p117 = por %p115, %p116
      %p119 = scmp.ne.s32.totalorder %s102, %s118
      %p120 = scmp.eq.s32.totalorder %s21, 0
      %p121 = por %p119, %p120
      %p122 = scmp.le.s32.totalorder 1, %s15
      %p123 = scmp.lt.s32.totalorder %s15, 3
      %p124 = pnand %p122, %p123
      %p125 = pneg %p124
      // Predicated region
      $region9: #{discriminator_forward.6} parent=5 // pred_check
        _
      $region10: #{discriminator_forward.6} parent=5 // pred_check_branch
        %127 = sbr.rel (%p124) target = $region12
      $region11: #{discriminator_forward.6} parent=5 // pred_region
        %s128 = ssub.s32 %s15, 1
        // Predicated region
        $region13: #{discriminator_forward.6} parent=11 // pred_check
          %p129 = pneg %p36
        $region14: #{discriminator_forward.6} parent=11 // pred_check_branch
          %131 = sbr.rel (%p129) target = $region16
        $region15: #{discriminator_forward.6} parent=11 // pred_region
          _
        $region16: #{discriminator_forward.6} parent=11 // pred_fallthru
          _
      $region12: #{discriminator_forward.6} parent=5 // pred_fallthru
        _
      %p132 = scmp.lt.s32.totalorder %s15, 2
      // Predicated region
      $region17: #{discriminator_forward.6} parent=5 // pred_check
        %p133 = pneg %p132
      $region18: #{discriminator_forward.6} parent=5 // pred_check_branch
        %135 = sbr.rel (%p133) target = $region20
      $region19: #{discriminator_forward.6} parent=5 // pred_region
        // Predicated region
        $region21: #{discriminator_forward.6} parent=19 // pred_check
          %p136 = pneg %p56
        $region22: #{discriminator_forward.6} parent=19 // pred_check_branch
          %138 = sbr.rel (%p136) target = $region24
        $region23: #{discriminator_forward.6} parent=19 // pred_region
          %s139 = sand.u32 %s46, 1
          %s140 = scalar_lea.sflag [#allocation3], %s139
          %s141 = sand.u32 %s46, 1
          %s142 = smul.addr %s141, 5120
          %s143 = scalar_lea.vmem [#allocation2], %s142
          %s144 = smul.u32 4, %s15
          %s146 = ssub.s32 81920, 81920
          %147 = vsyncadd %s140, %s146
          %s148 = smul.addr %s144, 64
          %s149 = scalar_lea.hbm %s1, %s148
          %s150 = sshll.u32 %s143, 4
          %s151 = int_to_ptr.vmem [resolvable:$true] %s150
          %156 = dma.hbm_to_vmem [thread:$0]  %s149, 81920, %s151, %s140, 512, 256, 16
        $region24: #{discriminator_forward.6} parent=19 // pred_fallthru
          _
        // Predicated region
        $region25: #{discriminator_forward.6} parent=19 // pred_check
          %p157 = pneg %p82
        $region26: #{discriminator_forward.6} parent=19 // pred_check_branch
          %159 = sbr.rel (%p157) target = $region28
        $region27: #{discriminator_forward.6} parent=19 // pred_region
          %s160 = sand.u32 %s72, 1
          %s161 = scalar_lea.sflag [#allocation5], %s160
          %s162 = sand.u32 %s72, 1
          %s163 = smul.addr %s162, 4
          %s164 = scalar_lea.vmem [#allocation4], %s163
          %s165 = smul.u32 4, %s15
          %s167 = ssub.s32 64, 64
          %168 = vsyncadd %s161, %s167
          %s169 = smul.addr %s165, 16
          %s170 = scalar_lea.hbm %s2, %s169
          %s172 = sshll.u32 %s164, 4
          %s173 = int_to_ptr.vmem [resolvable:$true] %s172
          %175 = dma.hbm_to_vmem [thread:$0]  %s170, 64, %s173, %s161
        $region28: #{discriminator_forward.6} parent=19 // pred_fallthru
          _
      $region20: #{discriminator_forward.6} parent=5 // pred_fallthru
        _
      %p176 = scmp.le.s32.totalorder 1, %s15
      %p177 = scmp.lt.s32.totalorder %s15, 3
      %p178 = pnand %p176, %p177
      %p179 = pneg %p178
      // Predicated region
      $region29: #{discriminator_forward.6} parent=5 // pred_check
        _
      $region30: #{discriminator_forward.6} parent=5 // pred_check_branch
        %181 = sbr.rel (%p178) target = $region32
      $region31: #{discriminator_forward.6} parent=5 // pred_region
        %s182 = ssub.s32 %s15, 1
        %s183 = sand.u32 %s49, 1
        %s184 = scalar_lea.sflag [#allocation3], %s183
        %s185 = sand.u32 %s49, 1
        %s186 = smul.addr %s185, 5120
        %s187 = scalar_lea.vmem [#allocation2], %s186
        // Predicated region
        $region33: #{discriminator_forward.6} parent=31 // pred_check
          %p188 = pneg %p62
        $region34: #{discriminator_forward.6} parent=31 // pred_check_branch
          %190 = sbr.rel (%p188) target = $region36
        $region35: #{discriminator_forward.6} parent=31 // pred_region
          %191 = dma.done %s184, 81920
        $region36: #{discriminator_forward.6} parent=31 // pred_fallthru
          _
        %s192 = sand.u32 %s75, 1
        %s193 = scalar_lea.sflag [#allocation5], %s192
        %s194 = sand.u32 %s75, 1
        %s195 = smul.addr %s194, 4
        %s196 = scalar_lea.vmem [#allocation4], %s195
        // Predicated region
        $region37: #{discriminator_forward.6} parent=31 // pred_check
          %p197 = pneg %p88
        $region38: #{discriminator_forward.6} parent=31 // pred_check_branch
          %199 = sbr.rel (%p197) target = $region40
        $region39: #{discriminator_forward.6} parent=31 // pred_region
          %200 = dma.done %s193, 64
        $region40: #{discriminator_forward.6} parent=31 // pred_fallthru
          _
        %p201 = pneg %p36
        %p202 = pneg %p33
        %s203 = sand.u32 %s49, 1
        %s204 = scalar_lea.sflag [#allocation3], %s203
        %s205 = sand.u32 %s49, 1
        %s206 = smul.addr %s205, 5120
        %s207 = scalar_lea.vmem [#allocation2], %s206
        %p208 = pneg %p62
        %p209 = pneg %p59
        %s210 = sand.u32 %s75, 1
        %s211 = scalar_lea.sflag [#allocation5], %s210
        %s212 = sand.u32 %s75, 1
        %s213 = smul.addr %s212, 4
        %s214 = scalar_lea.vmem [#allocation4], %s213
        %p215 = pneg %p88
        %p216 = pneg %p85
        %p217 = pneg %p114
        %p218 = pneg %p111
        %s219 = sand.u32 %s101, 1
        %s220 = sand.u32 %s101, 1
        %s221 = smul.addr %s220, 48
        %s222 = scalar_lea.vmem [#allocation6], %s221
        %s223 = smul.u32 4, %s20
        %s224 = smul.u32 4, %s20
        %s225 = smul.u32 4, %s20
        %v226 = vld [vmem:[%s0] sm:$0xff]
        %v227 = vld [vmem:[%s0 + $0x8] sm:$0xff]
        %v228 = vld [vmem:[%s0 + $0x10] sm:$0xff]
        %v229 = vld [vmem:[%s0 + $0x18] sm:$0xff]
        %v230 = vld [vmem:[%s0 + $0x20] sm:$0xff]
        %v231 = vld [vmem:[%s0 + $0x28] sm:$0xff]
        %v232 = vld [vmem:[%s0 + $0x30] sm:$0xff]
        %v233 = vld [vmem:[%s0 + $0x38] sm:$0xff]
        %v234 = vld [vmem:[%s0 + $0x40] sm:$0xff]
        %v235 = vld [vmem:[%s0 + $0x48] sm:$0xff]
        %v236 = vld [vmem:[%s0 + $0x50] sm:$0xff]
        %v237 = vld [vmem:[%s0 + $0x58] sm:$0xff]
        %v238 = vld [vmem:[%s0 + $0x60] sm:$0xff]
        %v239 = vld [vmem:[%s0 + $0x68] sm:$0xff]
        %v240 = vld [vmem:[%s0 + $0x70] sm:$0xff]
        %v241 = vld [vmem:[%s0 + $0x78] sm:$0xff]
        %v242 = vld [vmem:[%s0 + $0x80] sm:$0xff]
        %v243 = vld [vmem:[%s0 + $0x88] sm:$0xff]
        %v244 = vld [vmem:[%s0 + $0x90] sm:$0xff]
        %v245 = vld [vmem:[%s0 + $0x98] sm:$0xff]
        %v246 = vld [vmem:[%s0 + $0xa0] sm:$0xff]
        %v247 = vld [vmem:[%s0 + $0xa8] sm:$0xff]
        %v248 = vld [vmem:[%s0 + $0xb0] sm:$0xff]
        %v249 = vld [vmem:[%s0 + $0xb8] sm:$0xff]
        %v250 = vld [vmem:[%s0 + $0xc0] sm:$0xff]
        %v251 = vld [vmem:[%s0 + $0xc8] sm:$0xff]
        %v252 = vld [vmem:[%s0 + $0xd0] sm:$0xff]
        %v253 = vld [vmem:[%s0 + $0xd8] sm:$0xff]
        %v254 = vld [vmem:[%s0 + $0xe0] sm:$0xff]
        %v255 = vld [vmem:[%s0 + $0xe8] sm:$0xff]
        %v256 = vld [vmem:[%s187] sm:$0xff]
        %v257 = vld [vmem:[%s187 + $0x8] sm:$0xff]
        %v258 = vld [vmem:[%s187 + $0x10] sm:$0xff]
        %v259 = vld [vmem:[%s187 + $0x18] sm:$0xff]
        %v260 = vld [vmem:[%s187 + $0x20] sm:$0xff]
        %v261 = vld [vmem:[%s187 + $0x28] sm:$0xff]
        %v262 = vld [vmem:[%s187 + $0x30] sm:$0xff]
        %v263 = vld [vmem:[%s187 + $0x38] sm:$0xff]
        %v264 = vld [vmem:[%s187 + $0x40] sm:$0xff]
        %v265 = vld [vmem:[%s187 + $0x48] sm:$0xff]
        %v266 = vld [vmem:[%s187 + $0x50] sm:$0xff]
        %v267 = vld [vmem:[%s187 + $0x58] sm:$0xff]
        %v268 = vld [vmem:[%s187 + $0x60] sm:$0xff]
        %v269 = vld [vmem:[%s187 + $0x68] sm:$0xff]
        %v270 = vld [vmem:[%s187 + $0x70] sm:$0xff]
        %v271 = vld [vmem:[%s187 + $0x78] sm:$0xff]
        %v272 = vld [vmem:[%s187 + $0x80] sm:$0xff]
        %v273 = vld [vmem:[%s187 + $0x88] sm:$0xff]
        %v274 = vld [vmem:[%s187 + $0x90] sm:$0xff]
        %v275 = vld [vmem:[%s187 + $0x98] sm:$0xff]
        %v276 = vld [vmem:[%s187 + $0xa0] sm:$0xff]
        %v277 = vld [vmem:[%s187 + $0xa8] sm:$0xff]
        %v278 = vld [vmem:[%s187 + $0xb0] sm:$0xff]
        %v279 = vld [vmem:[%s187 + $0xb8] sm:$0xff]
        %v280 = vld [vmem:[%s187 + $0xc0] sm:$0xff]
        %v281 = vld [vmem:[%s187 + $0xc8] sm:$0xff]
        %v282 = vld [vmem:[%s187 + $0xd0] sm:$0xff]
        %v283 = vld [vmem:[%s187 + $0xd8] sm:$0xff]
        %v284 = vld [vmem:[%s187 + $0xe0] sm:$0xff]
        %v285 = vld [vmem:[%s187 + $0xe8] sm:$0xff]
        %v286 = vld [vmem:[%s187 + $0xf0] sm:$0xff]
        %v287 = vld [vmem:[%s187 + $0xf8] sm:$0xff]
        %v288 = vld [vmem:[%s187 + $0x100] sm:$0xff]
        %v289 = vld [vmem:[%s187 + $0x108] sm:$0xff]
        %v290 = vld [vmem:[%s187 + $0x110] sm:$0xff]
        %v291 = vld [vmem:[%s187 + $0x118] sm:$0xff]
        %v292 = vld [vmem:[%s187 + $0x120] sm:$0xff]
        %v293 = vld [vmem:[%s187 + $0x128] sm:$0xff]
        %v294 = vld [vmem:[%s187 + $0x130] sm:$0xff]
        %v295 = vld [vmem:[%s187 + $0x138] sm:$0xff]
        %v296 = vld [vmem:[%s187 + $0x140] sm:$0xff]
        %v297 = vld [vmem:[%s187 + $0x148] sm:$0xff]
        %v298 = vld [vmem:[%s187 + $0x150] sm:$0xff]
        %v299 = vld [vmem:[%s187 + $0x158] sm:$0xff]
        %v300 = vld [vmem:[%s187 + $0x160] sm:$0xff]
        %v301 = vld [vmem:[%s187 + $0x168] sm:$0xff]
        %v302 = vld [vmem:[%s187 + $0x170] sm:$0xff]
        %v303 = vld [vmem:[%s187 + $0x178] sm:$0xff]
        %v304 = vld [vmem:[%s187 + $0x180] sm:$0xff]
        %v305 = vld [vmem:[%s187 + $0x188] sm:$0xff]
        %v306 = vld [vmem:[%s187 + $0x190] sm:$0xff]
        %v307 = vld [vmem:[%s187 + $0x198] sm:$0xff]
        %v308 = vld [vmem:[%s187 + $0x1a0] sm:$0xff]
        %v309 = vld [vmem:[%s187 + $0x1a8] sm:$0xff]
        %v310 = vld [vmem:[%s187 + $0x1b0] sm:$0xff]
        %v311 = vld [vmem:[%s187 + $0x1b8] sm:$0xff]
        %v312 = vld [vmem:[%s187 + $0x1c0] sm:$0xff]
        %v313 = vld [vmem:[%s187 + $0x1c8] sm:$0xff]
        %v314 = vld [vmem:[%s187 + $0x1d0] sm:$0xff]
        %v315 = vld [vmem:[%s187 + $0x1d8] sm:$0xff]
        %v316 = vld [vmem:[%s187 + $0x1e0] sm:$0xff]
        %v317 = vld [vmem:[%s187 + $0x1e8] sm:$0xff]
        %v318 = vld [vmem:[%s187 + $0x1f0] sm:$0xff]
        %v319 = vld [vmem:[%s187 + $0x1f8] sm:$0xff]
        %v320 = vld [vmem:[%s187 + $0x200] sm:$0xff]
        %v321 = vld [vmem:[%s187 + $0x208] sm:$0xff]
        %v322 = vld [vmem:[%s187 + $0x210] sm:$0xff]
        %v323 = vld [vmem:[%s187 + $0x218] sm:$0xff]
        %v324 = vld [vmem:[%s187 + $0x220] sm:$0xff]
        %v325 = vld [vmem:[%s187 + $0x228] sm:$0xff]
        %v326 = vld [vmem:[%s187 + $0x230] sm:$0xff]
        %v327 = vld [vmem:[%s187 + $0x238] sm:$0xff]
        %v328 = vld [vmem:[%s187 + $0x240] sm:$0xff]
        %v329 = vld [vmem:[%s187 + $0x248] sm:$0xff]
        %v330 = vld [vmem:[%s187 + $0x250] sm:$0xff]
        %v331 = vld [vmem:[%s187 + $0x258] sm:$0xff]
        %v332 = vld [vmem:[%s187 + $0x260] sm:$0xff]
        %v333 = vld [vmem:[%s187 + $0x268] sm:$0xff]
        %v334 = vld [vmem:[%s187 + $0x270] sm:$0xff]
        %v335 = vld [vmem:[%s187 + $0x278] sm:$0xff]
        %v336 = vld [vmem:[%s187 + $0x280] sm:$0xff]
        %v337 = vld [vmem:[%s187 + $0x288] sm:$0xff]
        %v338 = vld [vmem:[%s187 + $0x290] sm:$0xff]
        %v339 = vld [vmem:[%s187 + $0x298] sm:$0xff]
        %v340 = vld [vmem:[%s187 + $0x2a0] sm:$0xff]
        %v341 = vld [vmem:[%s187 + $0x2a8] sm:$0xff]
        %v342 = vld [vmem:[%s187 + $0x2b0] sm:$0xff]
        %v343 = vld [vmem:[%s187 + $0x2b8] sm:$0xff]
        %v344 = vld [vmem:[%s187 + $0x2c0] sm:$0xff]
        %v345 = vld [vmem:[%s187 + $0x2c8] sm:$0xff]
        %v346 = vld [vmem:[%s187 + $0x2d0] sm:$0xff]
        %v347 = vld [vmem:[%s187 + $0x2d8] sm:$0xff]
        %v348 = vld [vmem:[%s187 + $0x2e0] sm:$0xff]
        %v349 = vld [vmem:[%s187 + $0x2e8] sm:$0xff]
        %v350 = vld [vmem:[%s187 + $0x2f0] sm:$0xff]
        %v351 = vld [vmem:[%s187 + $0x2f8] sm:$0xff]
        %v352 = vld [vmem:[%s187 + $0x300] sm:$0xff]
        %v353 = vld [vmem:[%s187 + $0x308] sm:$0xff]
        %v354 = vld [vmem:[%s187 + $0x310] sm:$0xff]
        %v355 = vld [vmem:[%s187 + $0x318] sm:$0xff]
        %v356 = vld [vmem:[%s187 + $0x320] sm:$0xff]
        %v357 = vld [vmem:[%s187 + $0x328] sm:$0xff]
        %v358 = vld [vmem:[%s187 + $0x330] sm:$0xff]
        %v359 = vld [vmem:[%s187 + $0x338] sm:$0xff]
        %v360 = vld [vmem:[%s187 + $0x340] sm:$0xff]
        %v361 = vld [vmem:[%s187 + $0x348] sm:$0xff]
        %v362 = vld [vmem:[%s187 + $0x350] sm:$0xff]
        %v363 = vld [vmem:[%s187 + $0x358] sm:$0xff]
        %v364 = vld [vmem:[%s187 + $0x360] sm:$0xff]
        %v365 = vld [vmem:[%s187 + $0x368] sm:$0xff]
        %v366 = vld [vmem:[%s187 + $0x370] sm:$0xff]
        %v367 = vld [vmem:[%s187 + $0x378] sm:$0xff]
        %v368 = vld [vmem:[%s187 + $0x380] sm:$0xff]
        %v369 = vld [vmem:[%s187 + $0x388] sm:$0xff]
        %v370 = vld [vmem:[%s187 + $0x390] sm:$0xff]
        %v371 = vld [vmem:[%s187 + $0x398] sm:$0xff]
        %v372 = vld [vmem:[%s187 + $0x3a0] sm:$0xff]
        %v373 = vld [vmem:[%s187 + $0x3a8] sm:$0xff]
        %v374 = vld [vmem:[%s187 + $0x3b0] sm:$0xff]
        %v375 = vld [vmem:[%s187 + $0x3b8] sm:$0xff]
        %v376 = vld [vmem:[%s187 + $0x3c0] sm:$0xff]
        %v377 = vld [vmem:[%s187 + $0x3c8] sm:$0xff]
        %v378 = vld [vmem:[%s187 + $0x3d0] sm:$0xff]
        %v379 = vld [vmem:[%s187 + $0x3d8] sm:$0xff]
        %v380 = vld [vmem:[%s187 + $0x3e0] sm:$0xff]
        %v381 = vld [vmem:[%s187 + $0x3e8] sm:$0xff]
        %v382 = vld [vmem:[%s187 + $0x3f0] sm:$0xff]
        %v383 = vld [vmem:[%s187 + $0x3f8] sm:$0xff]
        %v384 = vld [vmem:[%s187 + $0x400] sm:$0xff]
        %v385 = vld [vmem:[%s187 + $0x408] sm:$0xff]
        %v386 = vld [vmem:[%s187 + $0x410] sm:$0xff]
        %v387 = vld [vmem:[%s187 + $0x418] sm:$0xff]
        %v388 = vld [vmem:[%s187 + $0x420] sm:$0xff]
        %v389 = vld [vmem:[%s187 + $0x428] sm:$0xff]
        %v390 = vld [vmem:[%s187 + $0x430] sm:$0xff]
        %v391 = vld [vmem:[%s187 + $0x438] sm:$0xff]
        %v392 = vld [vmem:[%s187 + $0x440] sm:$0xff]
        %v393 = vld [vmem:[%s187 + $0x448] sm:$0xff]
        %v394 = vld [vmem:[%s187 + $0x450] sm:$0xff]
        %v395 = vld [vmem:[%s187 + $0x458] sm:$0xff]
        %v396 = vld [vmem:[%s187 + $0x460] sm:$0xff]
        %v397 = vld [vmem:[%s187 + $0x468] sm:$0xff]
        %v398 = vld [vmem:[%s187 + $0x470] sm:$0xff]
        %v399 = vld [vmem:[%s187 + $0x478] sm:$0xff]
        %v400 = vld [vmem:[%s187 + $0x480] sm:$0xff]
        %v401 = vld [vmem:[%s187 + $0x488] sm:$0xff]
        %v402 = vld [vmem:[%s187 + $0x490] sm:$0xff]
        %v403 = vld [vmem:[%s187 + $0x498] sm:$0xff]
        %v404 = vld [vmem:[%s187 + $0x4a0] sm:$0xff]
        %v405 = vld [vmem:[%s187 + $0x4a8] sm:$0xff]
        %v406 = vld [vmem:[%s187 + $0x4b0] sm:$0xff]
        %v407 = vld [vmem:[%s187 + $0x4b8] sm:$0xff]
        %v408 = vld [vmem:[%s187 + $0x4c0] sm:$0xff]
        %v409 = vld [vmem:[%s187 + $0x4c8] sm:$0xff]
        %v410 = vld [vmem:[%s187 + $0x4d0] sm:$0xff]
        %v411 = vld [vmem:[%s187 + $0x4d8] sm:$0xff]
        %v412 = vld [vmem:[%s187 + $0x4e0] sm:$0xff]
        %v413 = vld [vmem:[%s187 + $0x4e8] sm:$0xff]
        %v414 = vld [vmem:[%s187 + $0x4f0] sm:$0xff]
        %v415 = vld [vmem:[%s187 + $0x4f8] sm:$0xff]
        %v416 = vld [vmem:[%s187 + $0x500] sm:$0xff]
        %v417 = vld [vmem:[%s187 + $0x508] sm:$0xff]
        %v418 = vld [vmem:[%s187 + $0x510] sm:$0xff]
        %v419 = vld [vmem:[%s187 + $0x518] sm:$0xff]
        %v420 = vld [vmem:[%s187 + $0x520] sm:$0xff]
        %v421 = vld [vmem:[%s187 + $0x528] sm:$0xff]
        %v422 = vld [vmem:[%s187 + $0x530] sm:$0xff]
        %v423 = vld [vmem:[%s187 + $0x538] sm:$0xff]
        %v424 = vld [vmem:[%s187 + $0x540] sm:$0xff]
        %v425 = vld [vmem:[%s187 + $0x548] sm:$0xff]
        %v426 = vld [vmem:[%s187 + $0x550] sm:$0xff]
        %v427 = vld [vmem:[%s187 + $0x558] sm:$0xff]
        %v428 = vld [vmem:[%s187 + $0x560] sm:$0xff]
        %v429 = vld [vmem:[%s187 + $0x568] sm:$0xff]
        %v430 = vld [vmem:[%s187 + $0x570] sm:$0xff]
        %v431 = vld [vmem:[%s187 + $0x578] sm:$0xff]
        %v432 = vld [vmem:[%s187 + $0x580] sm:$0xff]
        %v433 = vld [vmem:[%s187 + $0x588] sm:$0xff]
        %v434 = vld [vmem:[%s187 + $0x590] sm:$0xff]
        %v435 = vld [vmem:[%s187 + $0x598] sm:$0xff]
        %v436 = vld [vmem:[%s187 + $0x5a0] sm:$0xff]
        %v437 = vld [vmem:[%s187 + $0x5a8] sm:$0xff]
        %v438 = vld [vmem:[%s187 + $0x5b0] sm:$0xff]
        %v439 = vld [vmem:[%s187 + $0x5b8] sm:$0xff]
        %v440 = vld [vmem:[%s187 + $0x5c0] sm:$0xff]
        %v441 = vld [vmem:[%s187 + $0x5c8] sm:$0xff]
        %v442 = vld [vmem:[%s187 + $0x5d0] sm:$0xff]
        %v443 = vld [vmem:[%s187 + $0x5d8] sm:$0xff]
        %v444 = vld [vmem:[%s187 + $0x5e0] sm:$0xff]
        %v445 = vld [vmem:[%s187 + $0x5e8] sm:$0xff]
        %v446 = vld [vmem:[%s187 + $0x5f0] sm:$0xff]
        %v447 = vld [vmem:[%s187 + $0x5f8] sm:$0xff]
        %v448 = vld [vmem:[%s187 + $0x600] sm:$0xff]
        %v449 = vld [vmem:[%s187 + $0x608] sm:$0xff]
        %v450 = vld [vmem:[%s187 + $0x610] sm:$0xff]
        %v451 = vld [vmem:[%s187 + $0x618] sm:$0xff]
        %v452 = vld [vmem:[%s187 + $0x620] sm:$0xff]
        %v453 = vld [vmem:[%s187 + $0x628] sm:$0xff]
        %v454 = vld [vmem:[%s187 + $0x630] sm:$0xff]
        %v455 = vld [vmem:[%s187 + $0x638] sm:$0xff]
        %v456 = vld [vmem:[%s187 + $0x640] sm:$0xff]
        %v457 = vld [vmem:[%s187 + $0x648] sm:$0xff]
        %v458 = vld [vmem:[%s187 + $0x650] sm:$0xff]
        %v459 = vld [vmem:[%s187 + $0x658] sm:$0xff]
        %v460 = vld [vmem:[%s187 + $0x660] sm:$0xff]
        %v461 = vld [vmem:[%s187 + $0x668] sm:$0xff]
        %v462 = vld [vmem:[%s187 + $0x670] sm:$0xff]
        %v463 = vld [vmem:[%s187 + $0x678] sm:$0xff]
        %v464 = vld [vmem:[%s187 + $0x680] sm:$0xff]
        %v465 = vld [vmem:[%s187 + $0x688] sm:$0xff]
        %v466 = vld [vmem:[%s187 + $0x690] sm:$0xff]
        %v467 = vld [vmem:[%s187 + $0x698] sm:$0xff]
        %v468 = vld [vmem:[%s187 + $0x6a0] sm:$0xff]
        %v469 = vld [vmem:[%s187 + $0x6a8] sm:$0xff]
        %v470 = vld [vmem:[%s187 + $0x6b0] sm:$0xff]
        %v471 = vld [vmem:[%s187 + $0x6b8] sm:$0xff]
        %v472 = vld [vmem:[%s187 + $0x6c0] sm:$0xff]
        %v473 = vld [vmem:[%s187 + $0x6c8] sm:$0xff]
        %v474 = vld [vmem:[%s187 + $0x6d0] sm:$0xff]
        %v475 = vld [vmem:[%s187 + $0x6d8] sm:$0xff]
        %v476 = vld [vmem:[%s187 + $0x6e0] sm:$0xff]
        %v477 = vld [vmem:[%s187 + $0x6e8] sm:$0xff]
        %v478 = vld [vmem:[%s187 + $0x6f0] sm:$0xff]
        %v479 = vld [vmem:[%s187 + $0x6f8] sm:$0xff]
        %v480 = vld [vmem:[%s187 + $0x700] sm:$0xff]
        %v481 = vld [vmem:[%s187 + $0x708] sm:$0xff]
        %v482 = vld [vmem:[%s187 + $0x710] sm:$0xff]
        %v483 = vld [vmem:[%s187 + $0x718] sm:$0xff]
        %v484 = vld [vmem:[%s187 + $0x720] sm:$0xff]
        %v485 = vld [vmem:[%s187 + $0x728] sm:$0xff]
        %v486 = vld [vmem:[%s187 + $0x730] sm:$0xff]
        %v487 = vld [vmem:[%s187 + $0x738] sm:$0xff]
        %v488 = vld [vmem:[%s187 + $0x740] sm:$0xff]
        %v489 = vld [vmem:[%s187 + $0x748] sm:$0xff]
        %v490 = vld [vmem:[%s187 + $0x750] sm:$0xff]
        %v491 = vld [vmem:[%s187 + $0x758] sm:$0xff]
        %v492 = vld [vmem:[%s187 + $0x760] sm:$0xff]
        %v493 = vld [vmem:[%s187 + $0x768] sm:$0xff]
        %v494 = vld [vmem:[%s187 + $0x770] sm:$0xff]
        %v495 = vld [vmem:[%s187 + $0x778] sm:$0xff]
        %v496 = vld [vmem:[%s187 + $0x780] sm:$0xff]
        %v497 = vld [vmem:[%s187 + $0x788] sm:$0xff]
        %v498 = vld [vmem:[%s187 + $0x790] sm:$0xff]
        %v499 = vld [vmem:[%s187 + $0x798] sm:$0xff]
        %v500 = vld [vmem:[%s187 + $0x7a0] sm:$0xff]
        %v501 = vld [vmem:[%s187 + $0x7a8] sm:$0xff]
        %v502 = vld [vmem:[%s187 + $0x7b0] sm:$0xff]
        %v503 = vld [vmem:[%s187 + $0x7b8] sm:$0xff]
        %v504 = vld [vmem:[%s187 + $0x7c0] sm:$0xff]
        %v505 = vld [vmem:[%s187 + $0x7c8] sm:$0xff]
        %v506 = vld [vmem:[%s187 + $0x7d0] sm:$0xff]
        %v507 = vld [vmem:[%s187 + $0x7d8] sm:$0xff]
        %v508 = vld [vmem:[%s187 + $0x7e0] sm:$0xff]
        %v509 = vld [vmem:[%s187 + $0x7e8] sm:$0xff]
        %v510 = vld [vmem:[%s187 + $0x7f0] sm:$0xff]
        %v511 = vld [vmem:[%s187 + $0x7f8] sm:$0xff]
        %v512 = vld [vmem:[%s187 + $0x800] sm:$0xff]
        %v513 = vld [vmem:[%s187 + $0x808] sm:$0xff]
        %v514 = vld [vmem:[%s187 + $0x810] sm:$0xff]
        %v515 = vld [vmem:[%s187 + $0x818] sm:$0xff]
        %v516 = vld [vmem:[%s187 + $0x820] sm:$0xff]
        %v517 = vld [vmem:[%s187 + $0x828] sm:$0xff]
        %v518 = vld [vmem:[%s187 + $0x830] sm:$0xff]
        %v519 = vld [vmem:[%s187 + $0x838] sm:$0xff]
        %v520 = vld [vmem:[%s187 + $0x840] sm:$0xff]
        %v521 = vld [vmem:[%s187 + $0x848] sm:$0xff]
        %v522 = vld [vmem:[%s187 + $0x850] sm:$0xff]
        %v523 = vld [vmem:[%s187 + $0x858] sm:$0xff]
        %v524 = vld [vmem:[%s187 + $0x860] sm:$0xff]
        %v525 = vld [vmem:[%s187 + $0x868] sm:$0xff]
        %v526 = vld [vmem:[%s187 + $0x870] sm:$0xff]
        %v527 = vld [vmem:[%s187 + $0x878] sm:$0xff]
        %v528 = vld [vmem:[%s187 + $0x880] sm:$0xff]
        %v529 = vld [vmem:[%s187 + $0x888] sm:$0xff]
        %v530 = vld [vmem:[%s187 + $0x890] sm:$0xff]
        %v531 = vld [vmem:[%s187 + $0x898] sm:$0xff]
        %v532 = vld [vmem:[%s187 + $0x8a0] sm:$0xff]
        %v533 = vld [vmem:[%s187 + $0x8a8] sm:$0xff]
        %v534 = vld [vmem:[%s187 + $0x8b0] sm:$0xff]
        %v535 = vld [vmem:[%s187 + $0x8b8] sm:$0xff]
        %v536 = vld [vmem:[%s187 + $0x8c0] sm:$0xff]
        %v537 = vld [vmem:[%s187 + $0x8c8] sm:$0xff]
        %v538 = vld [vmem:[%s187 + $0x8d0] sm:$0xff]
        %v539 = vld [vmem:[%s187 + $0x8d8] sm:$0xff]
        %v540 = vld [vmem:[%s187 + $0x8e0] sm:$0xff]
        %v541 = vld [vmem:[%s187 + $0x8e8] sm:$0xff]
        %v542 = vld [vmem:[%s187 + $0x8f0] sm:$0xff]
        %v543 = vld [vmem:[%s187 + $0x8f8] sm:$0xff]
        %v544 = vld [vmem:[%s187 + $0x900] sm:$0xff]
        %v545 = vld [vmem:[%s187 + $0x908] sm:$0xff]
        %v546 = vld [vmem:[%s187 + $0x910] sm:$0xff]
        %v547 = vld [vmem:[%s187 + $0x918] sm:$0xff]
        %v548 = vld [vmem:[%s187 + $0x920] sm:$0xff]
        %v549 = vld [vmem:[%s187 + $0x928] sm:$0xff]
        %v550 = vld [vmem:[%s187 + $0x930] sm:$0xff]
        %v551 = vld [vmem:[%s187 + $0x938] sm:$0xff]
        %v552 = vld [vmem:[%s187 + $0x940] sm:$0xff]
        %v553 = vld [vmem:[%s187 + $0x948] sm:$0xff]
        %v554 = vld [vmem:[%s187 + $0x950] sm:$0xff]
        %v555 = vld [vmem:[%s187 + $0x958] sm:$0xff]
        %v556 = vld [vmem:[%s187 + $0x960] sm:$0xff]
        %v557 = vld [vmem:[%s187 + $0x968] sm:$0xff]
        %v558 = vld [vmem:[%s187 + $0x970] sm:$0xff]
        %v559 = vld [vmem:[%s187 + $0x978] sm:$0xff]
        %v560 = vld [vmem:[%s187 + $0x980] sm:$0xff]
        %v561 = vld [vmem:[%s187 + $0x988] sm:$0xff]
        %v562 = vld [vmem:[%s187 + $0x990] sm:$0xff]
        %v563 = vld [vmem:[%s187 + $0x998] sm:$0xff]
        %v564 = vld [vmem:[%s187 + $0x9a0] sm:$0xff]
        %v565 = vld [vmem:[%s187 + $0x9a8] sm:$0xff]
        %v566 = vld [vmem:[%s187 + $0x9b0] sm:$0xff]
        %v567 = vld [vmem:[%s187 + $0x9b8] sm:$0xff]
        %v568 = vld [vmem:[%s187 + $0x9c0] sm:$0xff]
        %v569 = vld [vmem:[%s187 + $0x9c8] sm:$0xff]
        %v570 = vld [vmem:[%s187 + $0x9d0] sm:$0xff]
        %v571 = vld [vmem:[%s187 + $0x9d8] sm:$0xff]
        %v572 = vld [vmem:[%s187 + $0x9e0] sm:$0xff]
        %v573 = vld [vmem:[%s187 + $0x9e8] sm:$0xff]
        %v574 = vld [vmem:[%s187 + $0x9f0] sm:$0xff]
        %v575 = vld [vmem:[%s187 + $0x9f8] sm:$0xff]
        %v576 = vld [vmem:[%s187 + $0xa00] sm:$0xff]
        %v577 = vld [vmem:[%s187 + $0xa08] sm:$0xff]
        %v578 = vld [vmem:[%s187 + $0xa10] sm:$0xff]
        %v579 = vld [vmem:[%s187 + $0xa18] sm:$0xff]
        %v580 = vld [vmem:[%s187 + $0xa20] sm:$0xff]
        %v581 = vld [vmem:[%s187 + $0xa28] sm:$0xff]
        %v582 = vld [vmem:[%s187 + $0xa30] sm:$0xff]
        %v583 = vld [vmem:[%s187 + $0xa38] sm:$0xff]
        %v584 = vld [vmem:[%s187 + $0xa40] sm:$0xff]
        %v585 = vld [vmem:[%s187 + $0xa48] sm:$0xff]
        %v586 = vld [vmem:[%s187 + $0xa50] sm:$0xff]
        %v587 = vld [vmem:[%s187 + $0xa58] sm:$0xff]
        %v588 = vld [vmem:[%s187 + $0xa60] sm:$0xff]
        %v589 = vld [vmem:[%s187 + $0xa68] sm:$0xff]
        %v590 = vld [vmem:[%s187 + $0xa70] sm:$0xff]
        %v591 = vld [vmem:[%s187 + $0xa78] sm:$0xff]
        %v592 = vld [vmem:[%s187 + $0xa80] sm:$0xff]
        %v593 = vld [vmem:[%s187 + $0xa88] sm:$0xff]
        %v594 = vld [vmem:[%s187 + $0xa90] sm:$0xff]
        %v595 = vld [vmem:[%s187 + $0xa98] sm:$0xff]
        %v596 = vld [vmem:[%s187 + $0xaa0] sm:$0xff]
        %v597 = vld [vmem:[%s187 + $0xaa8] sm:$0xff]
        %v598 = vld [vmem:[%s187 + $0xab0] sm:$0xff]
        %v599 = vld [vmem:[%s187 + $0xab8] sm:$0xff]
        %v600 = vld [vmem:[%s187 + $0xac0] sm:$0xff]
        %v601 = vld [vmem:[%s187 + $0xac8] sm:$0xff]
        %v602 = vld [vmem:[%s187 + $0xad0] sm:$0xff]
        %v603 = vld [vmem:[%s187 + $0xad8] sm:$0xff]
        %v604 = vld [vmem:[%s187 + $0xae0] sm:$0xff]
        %v605 = vld [vmem:[%s187 + $0xae8] sm:$0xff]
        %v606 = vld [vmem:[%s187 + $0xaf0] sm:$0xff]
        %v607 = vld [vmem:[%s187 + $0xaf8] sm:$0xff]
        %v608 = vld [vmem:[%s187 + $0xb00] sm:$0xff]
        %v609 = vld [vmem:[%s187 + $0xb08] sm:$0xff]
        %v610 = vld [vmem:[%s187 + $0xb10] sm:$0xff]
        %v611 = vld [vmem:[%s187 + $0xb18] sm:$0xff]
        %v612 = vld [vmem:[%s187 + $0xb20] sm:$0xff]
        %v613 = vld [vmem:[%s187 + $0xb28] sm:$0xff]
        %v614 = vld [vmem:[%s187 + $0xb30] sm:$0xff]
        %v615 = vld [vmem:[%s187 + $0xb38] sm:$0xff]
        %v616 = vld [vmem:[%s187 + $0xb40] sm:$0xff]
        %v617 = vld [vmem:[%s187 + $0xb48] sm:$0xff]
        %v618 = vld [vmem:[%s187 + $0xb50] sm:$0xff]
        %v619 = vld [vmem:[%s187 + $0xb58] sm:$0xff]
        %v620 = vld [vmem:[%s187 + $0xb60] sm:$0xff]
        %v621 = vld [vmem:[%s187 + $0xb68] sm:$0xff]
        %v622 = vld [vmem:[%s187 + $0xb70] sm:$0xff]
        %v623 = vld [vmem:[%s187 + $0xb78] sm:$0xff]
        %v624 = vld [vmem:[%s187 + $0xb80] sm:$0xff]
        %v625 = vld [vmem:[%s187 + $0xb88] sm:$0xff]
        %v626 = vld [vmem:[%s187 + $0xb90] sm:$0xff]
        %v627 = vld [vmem:[%s187 + $0xb98] sm:$0xff]
        %v628 = vld [vmem:[%s187 + $0xba0] sm:$0xff]
        %v629 = vld [vmem:[%s187 + $0xba8] sm:$0xff]
        %v630 = vld [vmem:[%s187 + $0xbb0] sm:$0xff]
        %v631 = vld [vmem:[%s187 + $0xbb8] sm:$0xff]
        %v632 = vld [vmem:[%s187 + $0xbc0] sm:$0xff]
        %v633 = vld [vmem:[%s187 + $0xbc8] sm:$0xff]
        %v634 = vld [vmem:[%s187 + $0xbd0] sm:$0xff]
        %v635 = vld [vmem:[%s187 + $0xbd8] sm:$0xff]
        %v636 = vld [vmem:[%s187 + $0xbe0] sm:$0xff]
        %v637 = vld [vmem:[%s187 + $0xbe8] sm:$0xff]
        %v638 = vld [vmem:[%s187 + $0xbf0] sm:$0xff]
        %v639 = vld [vmem:[%s187 + $0xbf8] sm:$0xff]
        %v640 = vld [vmem:[%s187 + $0xc00] sm:$0xff]
        %v641 = vld [vmem:[%s187 + $0xc08] sm:$0xff]
        %v642 = vld [vmem:[%s187 + $0xc10] sm:$0xff]
        %v643 = vld [vmem:[%s187 + $0xc18] sm:$0xff]
        %v644 = vld [vmem:[%s187 + $0xc20] sm:$0xff]
        %v645 = vld [vmem:[%s187 + $0xc28] sm:$0xff]
        %v646 = vld [vmem:[%s187 + $0xc30] sm:$0xff]
        %v647 = vld [vmem:[%s187 + $0xc38] sm:$0xff]
        %v648 = vld [vmem:[%s187 + $0xc40] sm:$0xff]
        %v649 = vld [vmem:[%s187 + $0xc48] sm:$0xff]
        %v650 = vld [vmem:[%s187 + $0xc50] sm:$0xff]
        %v651 = vld [vmem:[%s187 + $0xc58] sm:$0xff]
        %v652 = vld [vmem:[%s187 + $0xc60] sm:$0xff]
        %v653 = vld [vmem:[%s187 + $0xc68] sm:$0xff]
        %v654 = vld [vmem:[%s187 + $0xc70] sm:$0xff]
        %v655 = vld [vmem:[%s187 + $0xc78] sm:$0xff]
        %v656 = vld [vmem:[%s187 + $0xc80] sm:$0xff]
        %v657 = vld [vmem:[%s187 + $0xc88] sm:$0xff]
        %v658 = vld [vmem:[%s187 + $0xc90] sm:$0xff]
        %v659 = vld [vmem:[%s187 + $0xc98] sm:$0xff]
        %v660 = vld [vmem:[%s187 + $0xca0] sm:$0xff]
        %v661 = vld [vmem:[%s187 + $0xca8] sm:$0xff]
        %v662 = vld [vmem:[%s187 + $0xcb0] sm:$0xff]
        %v663 = vld [vmem:[%s187 + $0xcb8] sm:$0xff]
        %v664 = vld [vmem:[%s187 + $0xcc0] sm:$0xff]
        %v665 = vld [vmem:[%s187 + $0xcc8] sm:$0xff]
        %v666 = vld [vmem:[%s187 + $0xcd0] sm:$0xff]
        %v667 = vld [vmem:[%s187 + $0xcd8] sm:$0xff]
        %v668 = vld [vmem:[%s187 + $0xce0] sm:$0xff]
        %v669 = vld [vmem:[%s187 + $0xce8] sm:$0xff]
        %v670 = vld [vmem:[%s187 + $0xcf0] sm:$0xff]
        %v671 = vld [vmem:[%s187 + $0xcf8] sm:$0xff]
        %v672 = vld [vmem:[%s187 + $0xd00] sm:$0xff]
        %v673 = vld [vmem:[%s187 + $0xd08] sm:$0xff]
        %v674 = vld [vmem:[%s187 + $0xd10] sm:$0xff]
        %v675 = vld [vmem:[%s187 + $0xd18] sm:$0xff]
        %v676 = vld [vmem:[%s187 + $0xd20] sm:$0xff]
        %v677 = vld [vmem:[%s187 + $0xd28] sm:$0xff]
        %v678 = vld [vmem:[%s187 + $0xd30] sm:$0xff]
        %v679 = vld [vmem:[%s187 + $0xd38] sm:$0xff]
        %v680 = vld [vmem:[%s187 + $0xd40] sm:$0xff]
        %v681 = vld [vmem:[%s187 + $0xd48] sm:$0xff]
        %v682 = vld [vmem:[%s187 + $0xd50] sm:$0xff]
        %v683 = vld [vmem:[%s187 + $0xd58] sm:$0xff]
        %v684 = vld [vmem:[%s187 + $0xd60] sm:$0xff]
        %v685 = vld [vmem:[%s187 + $0xd68] sm:$0xff]
        %v686 = vld [vmem:[%s187 + $0xd70] sm:$0xff]
        %v687 = vld [vmem:[%s187 + $0xd78] sm:$0xff]
        %v688 = vld [vmem:[%s187 + $0xd80] sm:$0xff]
        %v689 = vld [vmem:[%s187 + $0xd88] sm:$0xff]
        %v690 = vld [vmem:[%s187 + $0xd90] sm:$0xff]
        %v691 = vld [vmem:[%s187 + $0xd98] sm:$0xff]
        %v692 = vld [vmem:[%s187 + $0xda0] sm:$0xff]
        %v693 = vld [vmem:[%s187 + $0xda8] sm:$0xff]
        %v694 = vld [vmem:[%s187 + $0xdb0] sm:$0xff]
        %v695 = vld [vmem:[%s187 + $0xdb8] sm:$0xff]
        %v696 = vld [vmem:[%s187 + $0xdc0] sm:$0xff]
        %v697 = vld [vmem:[%s187 + $0xdc8] sm:$0xff]
        %v698 = vld [vmem:[%s187 + $0xdd0] sm:$0xff]
        %v699 = vld [vmem:[%s187 + $0xdd8] sm:$0xff]
        %v700 = vld [vmem:[%s187 + $0xde0] sm:$0xff]
        %v701 = vld [vmem:[%s187 + $0xde8] sm:$0xff]
        %v702 = vld [vmem:[%s187 + $0xdf0] sm:$0xff]
        %v703 = vld [vmem:[%s187 + $0xdf8] sm:$0xff]
        %v704 = vld [vmem:[%s187 + $0xe00] sm:$0xff]
        %v705 = vld [vmem:[%s187 + $0xe08] sm:$0xff]
        %v706 = vld [vmem:[%s187 + $0xe10] sm:$0xff]
        %v707 = vld [vmem:[%s187 + $0xe18] sm:$0xff]
        %v708 = vld [vmem:[%s187 + $0xe20] sm:$0xff]
        %v709 = vld [vmem:[%s187 + $0xe28] sm:$0xff]
        %v710 = vld [vmem:[%s187 + $0xe30] sm:$0xff]
        %v711 = vld [vmem:[%s187 + $0xe38] sm:$0xff]
        %v712 = vld [vmem:[%s187 + $0xe40] sm:$0xff]
        %v713 = vld [vmem:[%s187 + $0xe48] sm:$0xff]
        %v714 = vld [vmem:[%s187 + $0xe50] sm:$0xff]
        %v715 = vld [vmem:[%s187 + $0xe58] sm:$0xff]
        %v716 = vld [vmem:[%s187 + $0xe60] sm:$0xff]
        %v717 = vld [vmem:[%s187 + $0xe68] sm:$0xff]
        %v718 = vld [vmem:[%s187 + $0xe70] sm:$0xff]
        %v719 = vld [vmem:[%s187 + $0xe78] sm:$0xff]
        %v720 = vld [vmem:[%s187 + $0xe80] sm:$0xff]
        %v721 = vld [vmem:[%s187 + $0xe88] sm:$0xff]
        %v722 = vld [vmem:[%s187 + $0xe90] sm:$0xff]
        %v723 = vld [vmem:[%s187 + $0xe98] sm:$0xff]
        %v724 = vld [vmem:[%s187 + $0xea0] sm:$0xff]
        %v725 = vld [vmem:[%s187 + $0xea8] sm:$0xff]
        %v726 = vld [vmem:[%s187 + $0xeb0] sm:$0xff]
        %v727 = vld [vmem:[%s187 + $0xeb8] sm:$0xff]
        %v728 = vld [vmem:[%s187 + $0xec0] sm:$0xff]
        %v729 = vld [vmem:[%s187 + $0xec8] sm:$0xff]
        %v730 = vld [vmem:[%s187 + $0xed0] sm:$0xff]
        %v731 = vld [vmem:[%s187 + $0xed8] sm:$0xff]
        %v732 = vld [vmem:[%s187 + $0xee0] sm:$0xff]
        %v733 = vld [vmem:[%s187 + $0xee8] sm:$0xff]
        %v734 = vld [vmem:[%s187 + $0xef0] sm:$0xff]
        %v735 = vld [vmem:[%s187 + $0xef8] sm:$0xff]
        %v736 = vld [vmem:[%s187 + $0xf00] sm:$0xff]
        %v737 = vld [vmem:[%s187 + $0xf08] sm:$0xff]
        %v738 = vld [vmem:[%s187 + $0xf10] sm:$0xff]
        %v739 = vld [vmem:[%s187 + $0xf18] sm:$0xff]
        %v740 = vld [vmem:[%s187 + $0xf20] sm:$0xff]
        %v741 = vld [vmem:[%s187 + $0xf28] sm:$0xff]
        %v742 = vld [vmem:[%s187 + $0xf30] sm:$0xff]
        %v743 = vld [vmem:[%s187 + $0xf38] sm:$0xff]
        %v744 = vld [vmem:[%s187 + $0xf40] sm:$0xff]
        %v745 = vld [vmem:[%s187 + $0xf48] sm:$0xff]
        %v746 = vld [vmem:[%s187 + $0xf50] sm:$0xff]
        %v747 = vld [vmem:[%s187 + $0xf58] sm:$0xff]
        %v748 = vld [vmem:[%s187 + $0xf60] sm:$0xff]
        %v749 = vld [vmem:[%s187 + $0xf68] sm:$0xff]
        %v750 = vld [vmem:[%s187 + $0xf70] sm:$0xff]
        %v751 = vld [vmem:[%s187 + $0xf78] sm:$0xff]
        %v752 = vld [vmem:[%s187 + $0xf80] sm:$0xff]
        %v753 = vld [vmem:[%s187 + $0xf88] sm:$0xff]
        %v754 = vld [vmem:[%s187 + $0xf90] sm:$0xff]
        %v755 = vld [vmem:[%s187 + $0xf98] sm:$0xff]
        %v756 = vld [vmem:[%s187 + $0xfa0] sm:$0xff]
        %v757 = vld [vmem:[%s187 + $0xfa8] sm:$0xff]
        %v758 = vld [vmem:[%s187 + $0xfb0] sm:$0xff]
        %v759 = vld [vmem:[%s187 + $0xfb8] sm:$0xff]
        %v760 = vld [vmem:[%s187 + $0xfc0] sm:$0xff]
        %v761 = vld [vmem:[%s187 + $0xfc8] sm:$0xff]
        %v762 = vld [vmem:[%s187 + $0xfd0] sm:$0xff]
        %v763 = vld [vmem:[%s187 + $0xfd8] sm:$0xff]
        %v764 = vld [vmem:[%s187 + $0xfe0] sm:$0xff]
        %v765 = vld [vmem:[%s187 + $0xfe8] sm:$0xff]
        %v766 = vld [vmem:[%s187 + $0xff0] sm:$0xff]
        %v767 = vld [vmem:[%s187 + $0xff8] sm:$0xff]
        %v768 = vld [vmem:[%s187 + $0x1000] sm:$0xff]
        %v769 = vld [vmem:[%s187 + $0x1008] sm:$0xff]
        %v770 = vld [vmem:[%s187 + $0x1010] sm:$0xff]
        %v771 = vld [vmem:[%s187 + $0x1018] sm:$0xff]
        %v772 = vld [vmem:[%s187 + $0x1020] sm:$0xff]
        %v773 = vld [vmem:[%s187 + $0x1028] sm:$0xff]
        %v774 = vld [vmem:[%s187 + $0x1030] sm:$0xff]
        %v775 = vld [vmem:[%s187 + $0x1038] sm:$0xff]
        %v776 = vld [vmem:[%s187 + $0x1040] sm:$0xff]
        %v777 = vld [vmem:[%s187 + $0x1048] sm:$0xff]
        %v778 = vld [vmem:[%s187 + $0x1050] sm:$0xff]
        %v779 = vld [vmem:[%s187 + $0x1058] sm:$0xff]
        %v780 = vld [vmem:[%s187 + $0x1060] sm:$0xff]
        %v781 = vld [vmem:[%s187 + $0x1068] sm:$0xff]
        %v782 = vld [vmem:[%s187 + $0x1070] sm:$0xff]
        %v783 = vld [vmem:[%s187 + $0x1078] sm:$0xff]
        %v784 = vld [vmem:[%s187 + $0x1080] sm:$0xff]
        %v785 = vld [vmem:[%s187 + $0x1088] sm:$0xff]
        %v786 = vld [vmem:[%s187 + $0x1090] sm:$0xff]
        %v787 = vld [vmem:[%s187 + $0x1098] sm:$0xff]
        %v788 = vld [vmem:[%s187 + $0x10a0] sm:$0xff]
        %v789 = vld [vmem:[%s187 + $0x10a8] sm:$0xff]
        %v790 = vld [vmem:[%s187 + $0x10b0] sm:$0xff]
        %v791 = vld [vmem:[%s187 + $0x10b8] sm:$0xff]
        %v792 = vld [vmem:[%s187 + $0x10c0] sm:$0xff]
        %v793 = vld [vmem:[%s187 + $0x10c8] sm:$0xff]
        %v794 = vld [vmem:[%s187 + $0x10d0] sm:$0xff]
        %v795 = vld [vmem:[%s187 + $0x10d8] sm:$0xff]
        %v796 = vld [vmem:[%s187 + $0x10e0] sm:$0xff]
        %v797 = vld [vmem:[%s187 + $0x10e8] sm:$0xff]
        %v798 = vld [vmem:[%s187 + $0x10f0] sm:$0xff]
        %v799 = vld [vmem:[%s187 + $0x10f8] sm:$0xff]
        %v800 = vld [vmem:[%s187 + $0x1100] sm:$0xff]
        %v801 = vld [vmem:[%s187 + $0x1108] sm:$0xff]
        %v802 = vld [vmem:[%s187 + $0x1110] sm:$0xff]
        %v803 = vld [vmem:[%s187 + $0x1118] sm:$0xff]
        %v804 = vld [vmem:[%s187 + $0x1120] sm:$0xff]
        %v805 = vld [vmem:[%s187 + $0x1128] sm:$0xff]
        %v806 = vld [vmem:[%s187 + $0x1130] sm:$0xff]
        %v807 = vld [vmem:[%s187 + $0x1138] sm:$0xff]
        %v808 = vld [vmem:[%s187 + $0x1140] sm:$0xff]
        %v809 = vld [vmem:[%s187 + $0x1148] sm:$0xff]
        %v810 = vld [vmem:[%s187 + $0x1150] sm:$0xff]
        %v811 = vld [vmem:[%s187 + $0x1158] sm:$0xff]
        %v812 = vld [vmem:[%s187 + $0x1160] sm:$0xff]
        %v813 = vld [vmem:[%s187 + $0x1168] sm:$0xff]
        %v814 = vld [vmem:[%s187 + $0x1170] sm:$0xff]
        %v815 = vld [vmem:[%s187 + $0x1178] sm:$0xff]
        %v816 = vld [vmem:[%s187 + $0x1180] sm:$0xff]
        %v817 = vld [vmem:[%s187 + $0x1188] sm:$0xff]
        %v818 = vld [vmem:[%s187 + $0x1190] sm:$0xff]
        %v819 = vld [vmem:[%s187 + $0x1198] sm:$0xff]
        %v820 = vld [vmem:[%s187 + $0x11a0] sm:$0xff]
        %v821 = vld [vmem:[%s187 + $0x11a8] sm:$0xff]
        %v822 = vld [vmem:[%s187 + $0x11b0] sm:$0xff]
        %v823 = vld [vmem:[%s187 + $0x11b8] sm:$0xff]
        %v824 = vld [vmem:[%s187 + $0x11c0] sm:$0xff]
        %v825 = vld [vmem:[%s187 + $0x11c8] sm:$0xff]
        %v826 = vld [vmem:[%s187 + $0x11d0] sm:$0xff]
        %v827 = vld [vmem:[%s187 + $0x11d8] sm:$0xff]
        %v828 = vld [vmem:[%s187 + $0x11e0] sm:$0xff]
        %v829 = vld [vmem:[%s187 + $0x11e8] sm:$0xff]
        %v830 = vld [vmem:[%s187 + $0x11f0] sm:$0xff]
        %v831 = vld [vmem:[%s187 + $0x11f8] sm:$0xff]
        %v832 = vld [vmem:[%s187 + $0x1200] sm:$0xff]
        %v833 = vld [vmem:[%s187 + $0x1208] sm:$0xff]
        %v834 = vld [vmem:[%s187 + $0x1210] sm:$0xff]
        %v835 = vld [vmem:[%s187 + $0x1218] sm:$0xff]
        %v836 = vld [vmem:[%s187 + $0x1220] sm:$0xff]
        %v837 = vld [vmem:[%s187 + $0x1228] sm:$0xff]
        %v838 = vld [vmem:[%s187 + $0x1230] sm:$0xff]
        %v839 = vld [vmem:[%s187 + $0x1238] sm:$0xff]
        %v840 = vld [vmem:[%s187 + $0x1240] sm:$0xff]
        %v841 = vld [vmem:[%s187 + $0x1248] sm:$0xff]
        %v842 = vld [vmem:[%s187 + $0x1250] sm:$0xff]
        %v843 = vld [vmem:[%s187 + $0x1258] sm:$0xff]
        %v844 = vld [vmem:[%s187 + $0x1260] sm:$0xff]
        %v845 = vld [vmem:[%s187 + $0x1268] sm:$0xff]
        %v846 = vld [vmem:[%s187 + $0x1270] sm:$0xff]
        %v847 = vld [vmem:[%s187 + $0x1278] sm:$0xff]
        %v848 = vld [vmem:[%s187 + $0x1280] sm:$0xff]
        %v849 = vld [vmem:[%s187 + $0x1288] sm:$0xff]
        %v850 = vld [vmem:[%s187 + $0x1290] sm:$0xff]
        %v851 = vld [vmem:[%s187 + $0x1298] sm:$0xff]
        %v852 = vld [vmem:[%s187 + $0x12a0] sm:$0xff]
        %v853 = vld [vmem:[%s187 + $0x12a8] sm:$0xff]
        %v854 = vld [vmem:[%s187 + $0x12b0] sm:$0xff]
        %v855 = vld [vmem:[%s187 + $0x12b8] sm:$0xff]
        %v856 = vld [vmem:[%s187 + $0x12c0] sm:$0xff]
        %v857 = vld [vmem:[%s187 + $0x12c8] sm:$0xff]
        %v858 = vld [vmem:[%s187 + $0x12d0] sm:$0xff]
        %v859 = vld [vmem:[%s187 + $0x12d8] sm:$0xff]
        %v860 = vld [vmem:[%s187 + $0x12e0] sm:$0xff]
        %v861 = vld [vmem:[%s187 + $0x12e8] sm:$0xff]
        %v862 = vld [vmem:[%s187 + $0x12f0] sm:$0xff]
        %v863 = vld [vmem:[%s187 + $0x12f8] sm:$0xff]
        %v864 = vld [vmem:[%s187 + $0x1300] sm:$0xff]
        %v865 = vld [vmem:[%s187 + $0x1308] sm:$0xff]
        %v866 = vld [vmem:[%s187 + $0x1310] sm:$0xff]
        %v867 = vld [vmem:[%s187 + $0x1318] sm:$0xff]
        %v868 = vld [vmem:[%s187 + $0x1320] sm:$0xff]
        %v869 = vld [vmem:[%s187 + $0x1328] sm:$0xff]
        %v870 = vld [vmem:[%s187 + $0x1330] sm:$0xff]
        %v871 = vld [vmem:[%s187 + $0x1338] sm:$0xff]
        %v872 = vld [vmem:[%s187 + $0x1340] sm:$0xff]
        %v873 = vld [vmem:[%s187 + $0x1348] sm:$0xff]
        %v874 = vld [vmem:[%s187 + $0x1350] sm:$0xff]
        %v875 = vld [vmem:[%s187 + $0x1358] sm:$0xff]
        %v876 = vld [vmem:[%s187 + $0x1360] sm:$0xff]
        %v877 = vld [vmem:[%s187 + $0x1368] sm:$0xff]
        %v878 = vld [vmem:[%s187 + $0x1370] sm:$0xff]
        %v879 = vld [vmem:[%s187 + $0x1378] sm:$0xff]
        %v880 = vld [vmem:[%s187 + $0x1380] sm:$0xff]
        %v881 = vld [vmem:[%s187 + $0x1388] sm:$0xff]
        %v882 = vld [vmem:[%s187 + $0x1390] sm:$0xff]
        %v883 = vld [vmem:[%s187 + $0x1398] sm:$0xff]
        %v884 = vld [vmem:[%s187 + $0x13a0] sm:$0xff]
        %v885 = vld [vmem:[%s187 + $0x13a8] sm:$0xff]
        %v886 = vld [vmem:[%s187 + $0x13b0] sm:$0xff]
        %v887 = vld [vmem:[%s187 + $0x13b8] sm:$0xff]
        %v888 = vld [vmem:[%s187 + $0x13c0] sm:$0xff]
        %v889 = vld [vmem:[%s187 + $0x13c8] sm:$0xff]
        %v890 = vld [vmem:[%s187 + $0x13d0] sm:$0xff]
        %v891 = vld [vmem:[%s187 + $0x13d8] sm:$0xff]
        %v892 = vld [vmem:[%s187 + $0x13e0] sm:$0xff]
        %v893 = vld [vmem:[%s187 + $0x13e8] sm:$0xff]
        %v894 = vld [vmem:[%s187 + $0x13f0] sm:$0xff]
        %v895 = vld [vmem:[%s187 + $0x13f8] sm:$0xff]
        %v896 = vld [vmem:[%s196] sm:$0xf]
        %v898 = vlaneseq
        %v899 = vshrl.u32 %v898, 7
        %v900 = vsub.s32 0, %v899
        %v901 = vrot.slane %v896, %v900
        %v902 = vlaneseq
        %v903 = vshrl.u32 %v902, 7
        %v904 = vsub.s32 1, %v903
        %v905 = vrot.slane %v896, %v904
        %v906 = vlaneseq
        %v907 = vshrl.u32 %v906, 7
        %v908 = vsub.s32 2, %v907
        %v909 = vrot.slane %v896, %v908
        %v910 = vlaneseq
        %v911 = vshrl.u32 %v910, 7
        %v912 = vsub.s32 3, %v911
        %v913 = vrot.slane %v896, %v912
        %v948 = vunpack.c.l.b16 %v226
        %v949 = vunpack.c.h.b16 %v226
        %v950 = vunpack.c.l.b16 %v227
        %v951 = vunpack.c.h.b16 %v227
        %v952 = vunpack.c.l.b16 %v228
        %v953 = vunpack.c.h.b16 %v228
        %v954 = vunpack.c.l.b16 %v229
        %v955 = vunpack.c.h.b16 %v229
        %v956 = vunpack.c.l.b16 %v230
        %v957 = vunpack.c.h.b16 %v230
        %v958 = vunpack.c.l.b16 %v231
        %v959 = vunpack.c.h.b16 %v231
        %v960 = vunpack.c.l.b16 %v232
        %v961 = vunpack.c.h.b16 %v232
        %v962 = vunpack.c.l.b16 %v233
        %v963 = vunpack.c.h.b16 %v233
        %v964 = vunpack.c.l.b16 %v234
        %v965 = vunpack.c.h.b16 %v234
        %v966 = vunpack.c.l.b16 %v235
        %v967 = vunpack.c.h.b16 %v235
        %v968 = vunpack.c.l.b16 %v236
        %v969 = vunpack.c.h.b16 %v236
        %v970 = vunpack.c.l.b16 %v237
        %v971 = vunpack.c.h.b16 %v237
        %v972 = vunpack.c.l.b16 %v238
        %v973 = vunpack.c.h.b16 %v238
        %v974 = vunpack.c.l.b16 %v239
        %v975 = vunpack.c.h.b16 %v239
        %v976 = vunpack.c.l.b16 %v240
        %v977 = vunpack.c.h.b16 %v240
        %v978 = vunpack.c.l.b16 %v241
        %v979 = vunpack.c.h.b16 %v241
        %v980 = vunpack.c.l.b16 %v242
        %v981 = vunpack.c.h.b16 %v242
        %v982 = vunpack.c.l.b16 %v243
        %v983 = vunpack.c.h.b16 %v243
        %v984 = vunpack.c.l.b16 %v244
        %v985 = vunpack.c.h.b16 %v244
        %v986 = vunpack.c.l.b16 %v245
        %v987 = vunpack.c.h.b16 %v245
        %v988 = vunpack.c.l.b16 %v246
        %v989 = vunpack.c.h.b16 %v246
        %v990 = vunpack.c.l.b16 %v247
        %v991 = vunpack.c.h.b16 %v247
        %v992 = vunpack.c.l.b16 %v248
        %v993 = vunpack.c.h.b16 %v248
        %v994 = vunpack.c.l.b16 %v249
        %v995 = vunpack.c.h.b16 %v249
        %v996 = vunpack.c.l.b16 %v250
        %v997 = vunpack.c.h.b16 %v250
        %v998 = vunpack.c.l.b16 %v251
        %v999 = vunpack.c.h.b16 %v251
        %v1000 = vunpack.c.l.b16 %v252
        %v1001 = vunpack.c.h.b16 %v252
        %v1002 = vunpack.c.l.b16 %v253
        %v1003 = vunpack.c.h.b16 %v253
        %v1004 = vunpack.c.l.b16 %v254
        %v1005 = vunpack.c.h.b16 %v254
        %v1006 = vunpack.c.l.b16 %v255
        %v1007 = vunpack.c.h.b16 %v255
        %v1008 = vpack.c.b16 %v968, %v948
        %v1009 = vpack.c.b16 %v969, %v949
        %v1010 = vpack.c.b16 %v970, %v950
        %v1011 = vpack.c.b16 %v971, %v951
        %v1012 = vpack.c.b16 %v972, %v952
        %v1013 = vpack.c.b16 %v973, %v953
        %v1014 = vpack.c.b16 %v974, %v954
        %v1015 = vpack.c.b16 %v975, %v955
        %v1016 = vpack.c.b16 %v976, %v956
        %v1017 = vpack.c.b16 %v977, %v957
        %v1018 = vpack.c.b16 %v978, %v958
        %v1019 = vpack.c.b16 %v979, %v959
        %v1020 = vpack.c.b16 %v980, %v960
        %v1021 = vpack.c.b16 %v981, %v961
        %v1022 = vpack.c.b16 %v982, %v962
        %v1023 = vpack.c.b16 %v983, %v963
        %v1024 = vpack.c.b16 %v984, %v964
        %v1025 = vpack.c.b16 %v985, %v965
        %v1026 = vpack.c.b16 %v986, %v966
        %v1027 = vpack.c.b16 %v987, %v967
        %v1028 = vpack.c.b16 %v988, %v988
        %v1029 = vpack.c.b16 %v989, %v989
        %v1030 = vpack.c.b16 %v990, %v990
        %v1031 = vpack.c.b16 %v991, %v991
        %v1032 = vpack.c.b16 %v992, %v992
        %v1033 = vpack.c.b16 %v993, %v993
        %v1034 = vpack.c.b16 %v994, %v994
        %v1035 = vpack.c.b16 %v995, %v995
        %v1036 = vpack.c.b16 %v996, %v996
        %v1037 = vpack.c.b16 %v997, %v997
        %v1038 = vpack.c.b16 %v998, %v998
        %v1039 = vpack.c.b16 %v999, %v999
        %v1040 = vpack.c.b16 %v1000, %v1000
        %v1041 = vpack.c.b16 %v1001, %v1001
        %v1042 = vpack.c.b16 %v1002, %v1002
        %v1043 = vpack.c.b16 %v1003, %v1003
        %v1044 = vpack.c.b16 %v1004, %v1004
        %v1045 = vpack.c.b16 %v1005, %v1005
        %v1046 = vpack.c.b16 %v1006, %v1006
        %v1047 = vpack.c.b16 %v1007, %v1007
        %v1728 = vunpack.c.l.b16 %v256
        %v1729 = vunpack.c.h.b16 %v256
        %v1730 = vunpack.c.l.b16 %v257
        %v1731 = vunpack.c.h.b16 %v257
        %v1732 = vunpack.c.l.b16 %v258
        %v1733 = vunpack.c.h.b16 %v258
        %v1734 = vunpack.c.l.b16 %v259
        %v1735 = vunpack.c.h.b16 %v259
        %v1736 = vunpack.c.l.b16 %v260
        %v1737 = vunpack.c.h.b16 %v260
        %v1738 = vunpack.c.l.b16 %v261
        %v1739 = vunpack.c.h.b16 %v261
        %v1740 = vunpack.c.l.b16 %v262
        %v1741 = vunpack.c.h.b16 %v262
        %v1742 = vunpack.c.l.b16 %v263
        %v1743 = vunpack.c.h.b16 %v263
        %v1744 = vunpack.c.l.b16 %v264
        %v1745 = vunpack.c.h.b16 %v264
        %v1746 = vunpack.c.l.b16 %v265
        %v1747 = vunpack.c.h.b16 %v265
        %v1748 = vunpack.c.l.b16 %v266
        %v1749 = vunpack.c.h.b16 %v266
        %v1750 = vunpack.c.l.b16 %v267
        %v1751 = vunpack.c.h.b16 %v267
        %v1752 = vunpack.c.l.b16 %v268
        %v1753 = vunpack.c.h.b16 %v268
        %v1754 = vunpack.c.l.b16 %v269
        %v1755 = vunpack.c.h.b16 %v269
        %v1756 = vunpack.c.l.b16 %v270
        %v1757 = vunpack.c.h.b16 %v270
        %v1758 = vunpack.c.l.b16 %v271
        %v1759 = vunpack.c.h.b16 %v271
        %v1760 = vunpack.c.l.b16 %v272
        %v1761 = vunpack.c.h.b16 %v272
        %v1762 = vunpack.c.l.b16 %v273
        %v1763 = vunpack.c.h.b16 %v273
        %v1764 = vunpack.c.l.b16 %v274
        %v1765 = vunpack.c.h.b16 %v274
        %v1766 = vunpack.c.l.b16 %v275
        %v1767 = vunpack.c.h.b16 %v275
        %v1768 = vunpack.c.l.b16 %v276
        %v1769 = vunpack.c.h.b16 %v276
        %v1770 = vunpack.c.l.b16 %v277
        %v1771 = vunpack.c.h.b16 %v277
        %v1772 = vunpack.c.l.b16 %v278
        %v1773 = vunpack.c.h.b16 %v278
        %v1774 = vunpack.c.l.b16 %v279
        %v1775 = vunpack.c.h.b16 %v279
        %v1776 = vunpack.c.l.b16 %v280
        %v1777 = vunpack.c.h.b16 %v280
        %v1778 = vunpack.c.l.b16 %v281
        %v1779 = vunpack.c.h.b16 %v281
        %v1780 = vunpack.c.l.b16 %v282
        %v1781 = vunpack.c.h.b16 %v282
        %v1782 = vunpack.c.l.b16 %v283
        %v1783 = vunpack.c.h.b16 %v283
        %v1784 = vunpack.c.l.b16 %v284
        %v1785 = vunpack.c.h.b16 %v284
        %v1786 = vunpack.c.l.b16 %v285
        %v1787 = vunpack.c.h.b16 %v285
        %v1788 = vunpack.c.l.b16 %v286
        %v1789 = vunpack.c.h.b16 %v286
        %v1790 = vunpack.c.l.b16 %v287
        %v1791 = vunpack.c.h.b16 %v287
        %v1792 = vunpack.c.l.b16 %v288
        %v1793 = vunpack.c.h.b16 %v288
        %v1794 = vunpack.c.l.b16 %v289
        %v1795 = vunpack.c.h.b16 %v289
        %v1796 = vunpack.c.l.b16 %v290
        %v1797 = vunpack.c.h.b16 %v290
        %v1798 = vunpack.c.l.b16 %v291
        %v1799 = vunpack.c.h.b16 %v291
        %v1800 = vunpack.c.l.b16 %v292
        %v1801 = vunpack.c.h.b16 %v292
        %v1802 = vunpack.c.l.b16 %v293
        %v1803 = vunpack.c.h.b16 %v293
        %v1804 = vunpack.c.l.b16 %v294
        %v1805 = vunpack.c.h.b16 %v294
        %v1806 = vunpack.c.l.b16 %v295
        %v1807 = vunpack.c.h.b16 %v295
        %v1808 = vunpack.c.l.b16 %v296
        %v1809 = vunpack.c.h.b16 %v296
        %v1810 = vunpack.c.l.b16 %v297
        %v1811 = vunpack.c.h.b16 %v297
        %v1812 = vunpack.c.l.b16 %v298
        %v1813 = vunpack.c.h.b16 %v298
        %v1814 = vunpack.c.l.b16 %v299
        %v1815 = vunpack.c.h.b16 %v299
        %v1816 = vunpack.c.l.b16 %v300
        %v1817 = vunpack.c.h.b16 %v300
        %v1818 = vunpack.c.l.b16 %v301
        %v1819 = vunpack.c.h.b16 %v301
        %v1820 = vunpack.c.l.b16 %v302
        %v1821 = vunpack.c.h.b16 %v302
        %v1822 = vunpack.c.l.b16 %v303
        %v1823 = vunpack.c.h.b16 %v303
        %v1824 = vunpack.c.l.b16 %v304
        %v1825 = vunpack.c.h.b16 %v304
        %v1826 = vunpack.c.l.b16 %v305
        %v1827 = vunpack.c.h.b16 %v305
        %v1828 = vunpack.c.l.b16 %v306
        %v1829 = vunpack.c.h.b16 %v306
        %v1830 = vunpack.c.l.b16 %v307
        %v1831 = vunpack.c.h.b16 %v307
        %v1832 = vunpack.c.l.b16 %v308
        %v1833 = vunpack.c.h.b16 %v308
        %v1834 = vunpack.c.l.b16 %v309
        %v1835 = vunpack.c.h.b16 %v309
        %v1836 = vunpack.c.l.b16 %v310
        %v1837 = vunpack.c.h.b16 %v310
        %v1838 = vunpack.c.l.b16 %v311
        %v1839 = vunpack.c.h.b16 %v311
        %v1840 = vunpack.c.l.b16 %v312
        %v1841 = vunpack.c.h.b16 %v312
        %v1842 = vunpack.c.l.b16 %v313
        %v1843 = vunpack.c.h.b16 %v313
        %v1844 = vunpack.c.l.b16 %v314
        %v1845 = vunpack.c.h.b16 %v314
        %v1846 = vunpack.c.l.b16 %v315
        %v1847 = vunpack.c.h.b16 %v315
        %v1848 = vunpack.c.l.b16 %v316
        %v1849 = vunpack.c.h.b16 %v316
        %v1850 = vunpack.c.l.b16 %v317
        %v1851 = vunpack.c.h.b16 %v317
        %v1852 = vunpack.c.l.b16 %v318
        %v1853 = vunpack.c.h.b16 %v318
        %v1854 = vunpack.c.l.b16 %v319
        %v1855 = vunpack.c.h.b16 %v319
        %v1856 = vunpack.c.l.b16 %v320
        %v1857 = vunpack.c.h.b16 %v320
        %v1858 = vunpack.c.l.b16 %v321
        %v1859 = vunpack.c.h.b16 %v321
        %v1860 = vunpack.c.l.b16 %v322
        %v1861 = vunpack.c.h.b16 %v322
        %v1862 = vunpack.c.l.b16 %v323
        %v1863 = vunpack.c.h.b16 %v323
        %v1864 = vunpack.c.l.b16 %v324
        %v1865 = vunpack.c.h.b16 %v324
        %v1866 = vunpack.c.l.b16 %v325
        %v1867 = vunpack.c.h.b16 %v325
        %v1868 = vunpack.c.l.b16 %v326
        %v1869 = vunpack.c.h.b16 %v326
        %v1870 = vunpack.c.l.b16 %v327
        %v1871 = vunpack.c.h.b16 %v327
        %v1872 = vunpack.c.l.b16 %v328
        %v1873 = vunpack.c.h.b16 %v328
        %v1874 = vunpack.c.l.b16 %v329
        %v1875 = vunpack.c.h.b16 %v329
        %v1876 = vunpack.c.l.b16 %v330
        %v1877 = vunpack.c.h.b16 %v330
        %v1878 = vunpack.c.l.b16 %v331
        %v1879 = vunpack.c.h.b16 %v331
        %v1880 = vunpack.c.l.b16 %v332
        %v1881 = vunpack.c.h.b16 %v332
        %v1882 = vunpack.c.l.b16 %v333
        %v1883 = vunpack.c.h.b16 %v333
        %v1884 = vunpack.c.l.b16 %v334
        %v1885 = vunpack.c.h.b16 %v334
        %v1886 = vunpack.c.l.b16 %v335
        %v1887 = vunpack.c.h.b16 %v335
        %v1888 = vunpack.c.l.b16 %v336
        %v1889 = vunpack.c.h.b16 %v336
        %v1890 = vunpack.c.l.b16 %v337
        %v1891 = vunpack.c.h.b16 %v337
        %v1892 = vunpack.c.l.b16 %v338
        %v1893 = vunpack.c.h.b16 %v338
        %v1894 = vunpack.c.l.b16 %v339
        %v1895 = vunpack.c.h.b16 %v339
        %v1896 = vunpack.c.l.b16 %v340
        %v1897 = vunpack.c.h.b16 %v340
        %v1898 = vunpack.c.l.b16 %v341
        %v1899 = vunpack.c.h.b16 %v341
        %v1900 = vunpack.c.l.b16 %v342
        %v1901 = vunpack.c.h.b16 %v342
        %v1902 = vunpack.c.l.b16 %v343
        %v1903 = vunpack.c.h.b16 %v343
        %v1904 = vunpack.c.l.b16 %v344
        %v1905 = vunpack.c.h.b16 %v344
        %v1906 = vunpack.c.l.b16 %v345
        %v1907 = vunpack.c.h.b16 %v345
        %v1908 = vunpack.c.l.b16 %v346
        %v1909 = vunpack.c.h.b16 %v346
        %v1910 = vunpack.c.l.b16 %v347
        %v1911 = vunpack.c.h.b16 %v347
        %v1912 = vunpack.c.l.b16 %v348
        %v1913 = vunpack.c.h.b16 %v348
        %v1914 = vunpack.c.l.b16 %v349
        %v1915 = vunpack.c.h.b16 %v349
        %v1916 = vunpack.c.l.b16 %v350
        %v1917 = vunpack.c.h.b16 %v350
        %v1918 = vunpack.c.l.b16 %v351
        %v1919 = vunpack.c.h.b16 %v351
        %v1920 = vunpack.c.l.b16 %v352
        %v1921 = vunpack.c.h.b16 %v352
        %v1922 = vunpack.c.l.b16 %v353
        %v1923 = vunpack.c.h.b16 %v353
        %v1924 = vunpack.c.l.b16 %v354
        %v1925 = vunpack.c.h.b16 %v354
        %v1926 = vunpack.c.l.b16 %v355
        %v1927 = vunpack.c.h.b16 %v355
        %v1928 = vunpack.c.l.b16 %v356
        %v1929 = vunpack.c.h.b16 %v356
        %v1930 = vunpack.c.l.b16 %v357
        %v1931 = vunpack.c.h.b16 %v357
        %v1932 = vunpack.c.l.b16 %v358
        %v1933 = vunpack.c.h.b16 %v358
        %v1934 = vunpack.c.l.b16 %v359
        %v1935 = vunpack.c.h.b16 %v359
        %v1936 = vunpack.c.l.b16 %v360
        %v1937 = vunpack.c.h.b16 %v360
        %v1938 = vunpack.c.l.b16 %v361
        %v1939 = vunpack.c.h.b16 %v361
        %v1940 = vunpack.c.l.b16 %v362
        %v1941 = vunpack.c.h.b16 %v362
        %v1942 = vunpack.c.l.b16 %v363
        %v1943 = vunpack.c.h.b16 %v363
        %v1944 = vunpack.c.l.b16 %v364
        %v1945 = vunpack.c.h.b16 %v364
        %v1946 = vunpack.c.l.b16 %v365
        %v1947 = vunpack.c.h.b16 %v365
        %v1948 = vunpack.c.l.b16 %v366
        %v1949 = vunpack.c.h.b16 %v366
        %v1950 = vunpack.c.l.b16 %v367
        %v1951 = vunpack.c.h.b16 %v367
        %v1952 = vunpack.c.l.b16 %v368
        %v1953 = vunpack.c.h.b16 %v368
        %v1954 = vunpack.c.l.b16 %v369
        %v1955 = vunpack.c.h.b16 %v369
        %v1956 = vunpack.c.l.b16 %v370
        %v1957 = vunpack.c.h.b16 %v370
        %v1958 = vunpack.c.l.b16 %v371
        %v1959 = vunpack.c.h.b16 %v371
        %v1960 = vunpack.c.l.b16 %v372
        %v1961 = vunpack.c.h.b16 %v372
        %v1962 = vunpack.c.l.b16 %v373
        %v1963 = vunpack.c.h.b16 %v373
        %v1964 = vunpack.c.l.b16 %v374
        %v1965 = vunpack.c.h.b16 %v374
        %v1966 = vunpack.c.l.b16 %v375
        %v1967 = vunpack.c.h.b16 %v375
        %v1968 = vunpack.c.l.b16 %v376
        %v1969 = vunpack.c.h.b16 %v376
        %v1970 = vunpack.c.l.b16 %v377
        %v1971 = vunpack.c.h.b16 %v377
        %v1972 = vunpack.c.l.b16 %v378
        %v1973 = vunpack.c.h.b16 %v378
        %v1974 = vunpack.c.l.b16 %v379
        %v1975 = vunpack.c.h.b16 %v379
        %v1976 = vunpack.c.l.b16 %v380
        %v1977 = vunpack.c.h.b16 %v380
        %v1978 = vunpack.c.l.b16 %v381
        %v1979 = vunpack.c.h.b16 %v381
        %v1980 = vunpack.c.l.b16 %v382
        %v1981 = vunpack.c.h.b16 %v382
        %v1982 = vunpack.c.l.b16 %v383
        %v1983 = vunpack.c.h.b16 %v383
        %v1984 = vunpack.c.l.b16 %v384
        %v1985 = vunpack.c.h.b16 %v384
        %v1986 = vunpack.c.l.b16 %v385
        %v1987 = vunpack.c.h.b16 %v385
        %v1988 = vunpack.c.l.b16 %v386
        %v1989 = vunpack.c.h.b16 %v386
        %v1990 = vunpack.c.l.b16 %v387
        %v1991 = vunpack.c.h.b16 %v387
        %v1992 = vunpack.c.l.b16 %v388
        %v1993 = vunpack.c.h.b16 %v388
        %v1994 = vunpack.c.l.b16 %v389
        %v1995 = vunpack.c.h.b16 %v389
        %v1996 = vunpack.c.l.b16 %v390
        %v1997 = vunpack.c.h.b16 %v390
        %v1998 = vunpack.c.l.b16 %v391
        %v1999 = vunpack.c.h.b16 %v391
        %v2000 = vunpack.c.l.b16 %v392
        %v2001 = vunpack.c.h.b16 %v392
        %v2002 = vunpack.c.l.b16 %v393
        %v2003 = vunpack.c.h.b16 %v393
        %v2004 = vunpack.c.l.b16 %v394
        %v2005 = vunpack.c.h.b16 %v394
        %v2006 = vunpack.c.l.b16 %v395
        %v2007 = vunpack.c.h.b16 %v395
        %v2008 = vunpack.c.l.b16 %v396
        %v2009 = vunpack.c.h.b16 %v396
        %v2010 = vunpack.c.l.b16 %v397
        %v2011 = vunpack.c.h.b16 %v397
        %v2012 = vunpack.c.l.b16 %v398
        %v2013 = vunpack.c.h.b16 %v398
        %v2014 = vunpack.c.l.b16 %v399
        %v2015 = vunpack.c.h.b16 %v399
        %v2016 = vunpack.c.l.b16 %v400
        %v2017 = vunpack.c.h.b16 %v400
        %v2018 = vunpack.c.l.b16 %v401
        %v2019 = vunpack.c.h.b16 %v401
        %v2020 = vunpack.c.l.b16 %v402
        %v2021 = vunpack.c.h.b16 %v402
        %v2022 = vunpack.c.l.b16 %v403
        %v2023 = vunpack.c.h.b16 %v403
        %v2024 = vunpack.c.l.b16 %v404
        %v2025 = vunpack.c.h.b16 %v404
        %v2026 = vunpack.c.l.b16 %v405
        %v2027 = vunpack.c.h.b16 %v405
        %v2028 = vunpack.c.l.b16 %v406
        %v2029 = vunpack.c.h.b16 %v406
        %v2030 = vunpack.c.l.b16 %v407
        %v2031 = vunpack.c.h.b16 %v407
        %v2032 = vunpack.c.l.b16 %v408
        %v2033 = vunpack.c.h.b16 %v408
        %v2034 = vunpack.c.l.b16 %v409
        %v2035 = vunpack.c.h.b16 %v409
        %v2036 = vunpack.c.l.b16 %v410
        %v2037 = vunpack.c.h.b16 %v410
        %v2038 = vunpack.c.l.b16 %v411
        %v2039 = vunpack.c.h.b16 %v411
        %v2040 = vunpack.c.l.b16 %v412
        %v2041 = vunpack.c.h.b16 %v412
        %v2042 = vunpack.c.l.b16 %v413
        %v2043 = vunpack.c.h.b16 %v413
        %v2044 = vunpack.c.l.b16 %v414
        %v2045 = vunpack.c.h.b16 %v414
        %v2046 = vunpack.c.l.b16 %v415
        %v2047 = vunpack.c.h.b16 %v415
        %v2048 = vunpack.c.l.b16 %v416
        %v2049 = vunpack.c.h.b16 %v416
        %v2050 = vunpack.c.l.b16 %v417
        %v2051 = vunpack.c.h.b16 %v417
        %v2052 = vunpack.c.l.b16 %v418
        %v2053 = vunpack.c.h.b16 %v418
        %v2054 = vunpack.c.l.b16 %v419
        %v2055 = vunpack.c.h.b16 %v419
        %v2056 = vunpack.c.l.b16 %v420
        %v2057 = vunpack.c.h.b16 %v420
        %v2058 = vunpack.c.l.b16 %v421
        %v2059 = vunpack.c.h.b16 %v421
        %v2060 = vunpack.c.l.b16 %v422
        %v2061 = vunpack.c.h.b16 %v422
        %v2062 = vunpack.c.l.b16 %v423
        %v2063 = vunpack.c.h.b16 %v423
        %v2064 = vunpack.c.l.b16 %v424
        %v2065 = vunpack.c.h.b16 %v424
        %v2066 = vunpack.c.l.b16 %v425
        %v2067 = vunpack.c.h.b16 %v425
        %v2068 = vunpack.c.l.b16 %v426
        %v2069 = vunpack.c.h.b16 %v426
        %v2070 = vunpack.c.l.b16 %v427
        %v2071 = vunpack.c.h.b16 %v427
        %v2072 = vunpack.c.l.b16 %v428
        %v2073 = vunpack.c.h.b16 %v428
        %v2074 = vunpack.c.l.b16 %v429
        %v2075 = vunpack.c.h.b16 %v429
        %v2076 = vunpack.c.l.b16 %v430
        %v2077 = vunpack.c.h.b16 %v430
        %v2078 = vunpack.c.l.b16 %v431
        %v2079 = vunpack.c.h.b16 %v431
        %v2080 = vunpack.c.l.b16 %v432
        %v2081 = vunpack.c.h.b16 %v432
        %v2082 = vunpack.c.l.b16 %v433
        %v2083 = vunpack.c.h.b16 %v433
        %v2084 = vunpack.c.l.b16 %v434
        %v2085 = vunpack.c.h.b16 %v434
        %v2086 = vunpack.c.l.b16 %v435
        %v2087 = vunpack.c.h.b16 %v435
        %v2088 = vunpack.c.l.b16 %v436
        %v2089 = vunpack.c.h.b16 %v436
        %v2090 = vunpack.c.l.b16 %v437
        %v2091 = vunpack.c.h.b16 %v437
        %v2092 = vunpack.c.l.b16 %v438
        %v2093 = vunpack.c.h.b16 %v438
        %v2094 = vunpack.c.l.b16 %v439
        %v2095 = vunpack.c.h.b16 %v439
        %v2096 = vunpack.c.l.b16 %v440
        %v2097 = vunpack.c.h.b16 %v440
        %v2098 = vunpack.c.l.b16 %v441
        %v2099 = vunpack.c.h.b16 %v441
        %v2100 = vunpack.c.l.b16 %v442
        %v2101 = vunpack.c.h.b16 %v442
        %v2102 = vunpack.c.l.b16 %v443
        %v2103 = vunpack.c.h.b16 %v443
        %v2104 = vunpack.c.l.b16 %v444
        %v2105 = vunpack.c.h.b16 %v444
        %v2106 = vunpack.c.l.b16 %v445
        %v2107 = vunpack.c.h.b16 %v445
        %v2108 = vunpack.c.l.b16 %v446
        %v2109 = vunpack.c.h.b16 %v446
        %v2110 = vunpack.c.l.b16 %v447
        %v2111 = vunpack.c.h.b16 %v447
        %v2112 = vunpack.c.l.b16 %v448
        %v2113 = vunpack.c.h.b16 %v448
        %v2114 = vunpack.c.l.b16 %v449
        %v2115 = vunpack.c.h.b16 %v449
        %v2116 = vunpack.c.l.b16 %v450
        %v2117 = vunpack.c.h.b16 %v450
        %v2118 = vunpack.c.l.b16 %v451
        %v2119 = vunpack.c.h.b16 %v451
        %v2120 = vunpack.c.l.b16 %v452
        %v2121 = vunpack.c.h.b16 %v452
        %v2122 = vunpack.c.l.b16 %v453
        %v2123 = vunpack.c.h.b16 %v453
        %v2124 = vunpack.c.l.b16 %v454
        %v2125 = vunpack.c.h.b16 %v454
        %v2126 = vunpack.c.l.b16 %v455
        %v2127 = vunpack.c.h.b16 %v455
        %v2128 = vunpack.c.l.b16 %v456
        %v2129 = vunpack.c.h.b16 %v456
        %v2130 = vunpack.c.l.b16 %v457
        %v2131 = vunpack.c.h.b16 %v457
        %v2132 = vunpack.c.l.b16 %v458
        %v2133 = vunpack.c.h.b16 %v458
        %v2134 = vunpack.c.l.b16 %v459
        %v2135 = vunpack.c.h.b16 %v459
        %v2136 = vunpack.c.l.b16 %v460
        %v2137 = vunpack.c.h.b16 %v460
        %v2138 = vunpack.c.l.b16 %v461
        %v2139 = vunpack.c.h.b16 %v461
        %v2140 = vunpack.c.l.b16 %v462
        %v2141 = vunpack.c.h.b16 %v462
        %v2142 = vunpack.c.l.b16 %v463
        %v2143 = vunpack.c.h.b16 %v463
        %v2144 = vunpack.c.l.b16 %v464
        %v2145 = vunpack.c.h.b16 %v464
        %v2146 = vunpack.c.l.b16 %v465
        %v2147 = vunpack.c.h.b16 %v465
        %v2148 = vunpack.c.l.b16 %v466
        %v2149 = vunpack.c.h.b16 %v466
        %v2150 = vunpack.c.l.b16 %v467
        %v2151 = vunpack.c.h.b16 %v467
        %v2152 = vunpack.c.l.b16 %v468
        %v2153 = vunpack.c.h.b16 %v468
        %v2154 = vunpack.c.l.b16 %v469
        %v2155 = vunpack.c.h.b16 %v469
        %v2156 = vunpack.c.l.b16 %v470
        %v2157 = vunpack.c.h.b16 %v470
        %v2158 = vunpack.c.l.b16 %v471
        %v2159 = vunpack.c.h.b16 %v471
        %v2160 = vunpack.c.l.b16 %v472
        %v2161 = vunpack.c.h.b16 %v472
        %v2162 = vunpack.c.l.b16 %v473
        %v2163 = vunpack.c.h.b16 %v473
        %v2164 = vunpack.c.l.b16 %v474
        %v2165 = vunpack.c.h.b16 %v474
        %v2166 = vunpack.c.l.b16 %v475
        %v2167 = vunpack.c.h.b16 %v475
        %v2168 = vunpack.c.l.b16 %v476
        %v2169 = vunpack.c.h.b16 %v476
        %v2170 = vunpack.c.l.b16 %v477
        %v2171 = vunpack.c.h.b16 %v477
        %v2172 = vunpack.c.l.b16 %v478
        %v2173 = vunpack.c.h.b16 %v478
        %v2174 = vunpack.c.l.b16 %v479
        %v2175 = vunpack.c.h.b16 %v479
        %v2176 = vunpack.c.l.b16 %v480
        %v2177 = vunpack.c.h.b16 %v480
        %v2178 = vunpack.c.l.b16 %v481
        %v2179 = vunpack.c.h.b16 %v481
        %v2180 = vunpack.c.l.b16 %v482
        %v2181 = vunpack.c.h.b16 %v482
        %v2182 = vunpack.c.l.b16 %v483
        %v2183 = vunpack.c.h.b16 %v483
        %v2184 = vunpack.c.l.b16 %v484
        %v2185 = vunpack.c.h.b16 %v484
        %v2186 = vunpack.c.l.b16 %v485
        %v2187 = vunpack.c.h.b16 %v485
        %v2188 = vunpack.c.l.b16 %v486
        %v2189 = vunpack.c.h.b16 %v486
        %v2190 = vunpack.c.l.b16 %v487
        %v2191 = vunpack.c.h.b16 %v487
        %v2192 = vunpack.c.l.b16 %v488
        %v2193 = vunpack.c.h.b16 %v488
        %v2194 = vunpack.c.l.b16 %v489
        %v2195 = vunpack.c.h.b16 %v489
        %v2196 = vunpack.c.l.b16 %v490
        %v2197 = vunpack.c.h.b16 %v490
        %v2198 = vunpack.c.l.b16 %v491
        %v2199 = vunpack.c.h.b16 %v491
        %v2200 = vunpack.c.l.b16 %v492
        %v2201 = vunpack.c.h.b16 %v492
        %v2202 = vunpack.c.l.b16 %v493
        %v2203 = vunpack.c.h.b16 %v493
        %v2204 = vunpack.c.l.b16 %v494
        %v2205 = vunpack.c.h.b16 %v494
        %v2206 = vunpack.c.l.b16 %v495
        %v2207 = vunpack.c.h.b16 %v495
        %v2208 = vunpack.c.l.b16 %v496
        %v2209 = vunpack.c.h.b16 %v496
        %v2210 = vunpack.c.l.b16 %v497
        %v2211 = vunpack.c.h.b16 %v497
        %v2212 = vunpack.c.l.b16 %v498
        %v2213 = vunpack.c.h.b16 %v498
        %v2214 = vunpack.c.l.b16 %v499
        %v2215 = vunpack.c.h.b16 %v499
        %v2216 = vunpack.c.l.b16 %v500
        %v2217 = vunpack.c.h.b16 %v500
        %v2218 = vunpack.c.l.b16 %v501
        %v2219 = vunpack.c.h.b16 %v501
        %v2220 = vunpack.c.l.b16 %v502
        %v2221 = vunpack.c.h.b16 %v502
        %v2222 = vunpack.c.l.b16 %v503
        %v2223 = vunpack.c.h.b16 %v503
        %v2224 = vunpack.c.l.b16 %v504
        %v2225 = vunpack.c.h.b16 %v504
        %v2226 = vunpack.c.l.b16 %v505
        %v2227 = vunpack.c.h.b16 %v505
        %v2228 = vunpack.c.l.b16 %v506
        %v2229 = vunpack.c.h.b16 %v506
        %v2230 = vunpack.c.l.b16 %v507
        %v2231 = vunpack.c.h.b16 %v507
        %v2232 = vunpack.c.l.b16 %v508
        %v2233 = vunpack.c.h.b16 %v508
        %v2234 = vunpack.c.l.b16 %v509
        %v2235 = vunpack.c.h.b16 %v509
        %v2236 = vunpack.c.l.b16 %v510
        %v2237 = vunpack.c.h.b16 %v510
        %v2238 = vunpack.c.l.b16 %v511
        %v2239 = vunpack.c.h.b16 %v511
        %v2240 = vunpack.c.l.b16 %v512
        %v2241 = vunpack.c.h.b16 %v512
        %v2242 = vunpack.c.l.b16 %v513
        %v2243 = vunpack.c.h.b16 %v513
        %v2244 = vunpack.c.l.b16 %v514
        %v2245 = vunpack.c.h.b16 %v514
        %v2246 = vunpack.c.l.b16 %v515
        %v2247 = vunpack.c.h.b16 %v515
        %v2248 = vunpack.c.l.b16 %v516
        %v2249 = vunpack.c.h.b16 %v516
        %v2250 = vunpack.c.l.b16 %v517
        %v2251 = vunpack.c.h.b16 %v517
        %v2252 = vunpack.c.l.b16 %v518
        %v2253 = vunpack.c.h.b16 %v518
        %v2254 = vunpack.c.l.b16 %v519
        %v2255 = vunpack.c.h.b16 %v519
        %v2256 = vunpack.c.l.b16 %v520
        %v2257 = vunpack.c.h.b16 %v520
        %v2258 = vunpack.c.l.b16 %v521
        %v2259 = vunpack.c.h.b16 %v521
        %v2260 = vunpack.c.l.b16 %v522
        %v2261 = vunpack.c.h.b16 %v522
        %v2262 = vunpack.c.l.b16 %v523
        %v2263 = vunpack.c.h.b16 %v523
        %v2264 = vunpack.c.l.b16 %v524
        %v2265 = vunpack.c.h.b16 %v524
        %v2266 = vunpack.c.l.b16 %v525
        %v2267 = vunpack.c.h.b16 %v525
        %v2268 = vunpack.c.l.b16 %v526
        %v2269 = vunpack.c.h.b16 %v526
        %v2270 = vunpack.c.l.b16 %v527
        %v2271 = vunpack.c.h.b16 %v527
        %v2272 = vunpack.c.l.b16 %v528
        %v2273 = vunpack.c.h.b16 %v528
        %v2274 = vunpack.c.l.b16 %v529
        %v2275 = vunpack.c.h.b16 %v529
        %v2276 = vunpack.c.l.b16 %v530
        %v2277 = vunpack.c.h.b16 %v530
        %v2278 = vunpack.c.l.b16 %v531
        %v2279 = vunpack.c.h.b16 %v531
        %v2280 = vunpack.c.l.b16 %v532
        %v2281 = vunpack.c.h.b16 %v532
        %v2282 = vunpack.c.l.b16 %v533
        %v2283 = vunpack.c.h.b16 %v533
        %v2284 = vunpack.c.l.b16 %v534
        %v2285 = vunpack.c.h.b16 %v534
        %v2286 = vunpack.c.l.b16 %v535
        %v2287 = vunpack.c.h.b16 %v535
        %v2288 = vunpack.c.l.b16 %v536
        %v2289 = vunpack.c.h.b16 %v536
        %v2290 = vunpack.c.l.b16 %v537
        %v2291 = vunpack.c.h.b16 %v537
        %v2292 = vunpack.c.l.b16 %v538
        %v2293 = vunpack.c.h.b16 %v538
        %v2294 = vunpack.c.l.b16 %v539
        %v2295 = vunpack.c.h.b16 %v539
        %v2296 = vunpack.c.l.b16 %v540
        %v2297 = vunpack.c.h.b16 %v540
        %v2298 = vunpack.c.l.b16 %v541
        %v2299 = vunpack.c.h.b16 %v541
        %v2300 = vunpack.c.l.b16 %v542
        %v2301 = vunpack.c.h.b16 %v542
        %v2302 = vunpack.c.l.b16 %v543
        %v2303 = vunpack.c.h.b16 %v543
        %v2304 = vunpack.c.l.b16 %v544
        %v2305 = vunpack.c.h.b16 %v544
        %v2306 = vunpack.c.l.b16 %v545
        %v2307 = vunpack.c.h.b16 %v545
        %v2308 = vunpack.c.l.b16 %v546
        %v2309 = vunpack.c.h.b16 %v546
        %v2310 = vunpack.c.l.b16 %v547
        %v2311 = vunpack.c.h.b16 %v547
        %v2312 = vunpack.c.l.b16 %v548
        %v2313 = vunpack.c.h.b16 %v548
        %v2314 = vunpack.c.l.b16 %v549
        %v2315 = vunpack.c.h.b16 %v549
        %v2316 = vunpack.c.l.b16 %v550
        %v2317 = vunpack.c.h.b16 %v550
        %v2318 = vunpack.c.l.b16 %v551
        %v2319 = vunpack.c.h.b16 %v551
        %v2320 = vunpack.c.l.b16 %v552
        %v2321 = vunpack.c.h.b16 %v552
        %v2322 = vunpack.c.l.b16 %v553
        %v2323 = vunpack.c.h.b16 %v553
        %v2324 = vunpack.c.l.b16 %v554
        %v2325 = vunpack.c.h.b16 %v554
        %v2326 = vunpack.c.l.b16 %v555
        %v2327 = vunpack.c.h.b16 %v555
        %v2328 = vunpack.c.l.b16 %v556
        %v2329 = vunpack.c.h.b16 %v556
        %v2330 = vunpack.c.l.b16 %v557
        %v2331 = vunpack.c.h.b16 %v557
        %v2332 = vunpack.c.l.b16 %v558
        %v2333 = vunpack.c.h.b16 %v558
        %v2334 = vunpack.c.l.b16 %v559
        %v2335 = vunpack.c.h.b16 %v559
        %v2336 = vunpack.c.l.b16 %v560
        %v2337 = vunpack.c.h.b16 %v560
        %v2338 = vunpack.c.l.b16 %v561
        %v2339 = vunpack.c.h.b16 %v561
        %v2340 = vunpack.c.l.b16 %v562
        %v2341 = vunpack.c.h.b16 %v562
        %v2342 = vunpack.c.l.b16 %v563
        %v2343 = vunpack.c.h.b16 %v563
        %v2344 = vunpack.c.l.b16 %v564
        %v2345 = vunpack.c.h.b16 %v564
        %v2346 = vunpack.c.l.b16 %v565
        %v2347 = vunpack.c.h.b16 %v565
        %v2348 = vunpack.c.l.b16 %v566
        %v2349 = vunpack.c.h.b16 %v566
        %v2350 = vunpack.c.l.b16 %v567
        %v2351 = vunpack.c.h.b16 %v567
        %v2352 = vunpack.c.l.b16 %v568
        %v2353 = vunpack.c.h.b16 %v568
        %v2354 = vunpack.c.l.b16 %v569
        %v2355 = vunpack.c.h.b16 %v569
        %v2356 = vunpack.c.l.b16 %v570
        %v2357 = vunpack.c.h.b16 %v570
        %v2358 = vunpack.c.l.b16 %v571
        %v2359 = vunpack.c.h.b16 %v571
        %v2360 = vunpack.c.l.b16 %v572
        %v2361 = vunpack.c.h.b16 %v572
        %v2362 = vunpack.c.l.b16 %v573
        %v2363 = vunpack.c.h.b16 %v573
        %v2364 = vunpack.c.l.b16 %v574
        %v2365 = vunpack.c.h.b16 %v574
        %v2366 = vunpack.c.l.b16 %v575
        %v2367 = vunpack.c.h.b16 %v575
        %v2368 = vunpack.c.l.b16 %v576
        %v2369 = vunpack.c.h.b16 %v576
        %v2370 = vunpack.c.l.b16 %v577
        %v2371 = vunpack.c.h.b16 %v577
        %v2372 = vunpack.c.l.b16 %v578
        %v2373 = vunpack.c.h.b16 %v578
        %v2374 = vunpack.c.l.b16 %v579
        %v2375 = vunpack.c.h.b16 %v579
        %v2376 = vunpack.c.l.b16 %v580
        %v2377 = vunpack.c.h.b16 %v580
        %v2378 = vunpack.c.l.b16 %v581
        %v2379 = vunpack.c.h.b16 %v581
        %v2380 = vunpack.c.l.b16 %v582
        %v2381 = vunpack.c.h.b16 %v582
        %v2382 = vunpack.c.l.b16 %v583
        %v2383 = vunpack.c.h.b16 %v583
        %v2384 = vunpack.c.l.b16 %v584
        %v2385 = vunpack.c.h.b16 %v584
        %v2386 = vunpack.c.l.b16 %v585
        %v2387 = vunpack.c.h.b16 %v585
        %v2388 = vunpack.c.l.b16 %v586
        %v2389 = vunpack.c.h.b16 %v586
        %v2390 = vunpack.c.l.b16 %v587
        %v2391 = vunpack.c.h.b16 %v587
        %v2392 = vunpack.c.l.b16 %v588
        %v2393 = vunpack.c.h.b16 %v588
        %v2394 = vunpack.c.l.b16 %v589
        %v2395 = vunpack.c.h.b16 %v589
        %v2396 = vunpack.c.l.b16 %v590
        %v2397 = vunpack.c.h.b16 %v590
        %v2398 = vunpack.c.l.b16 %v591
        %v2399 = vunpack.c.h.b16 %v591
        %v2400 = vunpack.c.l.b16 %v592
        %v2401 = vunpack.c.h.b16 %v592
        %v2402 = vunpack.c.l.b16 %v593
        %v2403 = vunpack.c.h.b16 %v593
        %v2404 = vunpack.c.l.b16 %v594
        %v2405 = vunpack.c.h.b16 %v594
        %v2406 = vunpack.c.l.b16 %v595
        %v2407 = vunpack.c.h.b16 %v595
        %v2408 = vunpack.c.l.b16 %v596
        %v2409 = vunpack.c.h.b16 %v596
        %v2410 = vunpack.c.l.b16 %v597
        %v2411 = vunpack.c.h.b16 %v597
        %v2412 = vunpack.c.l.b16 %v598
        %v2413 = vunpack.c.h.b16 %v598
        %v2414 = vunpack.c.l.b16 %v599
        %v2415 = vunpack.c.h.b16 %v599
        %v2416 = vunpack.c.l.b16 %v600
        %v2417 = vunpack.c.h.b16 %v600
        %v2418 = vunpack.c.l.b16 %v601
        %v2419 = vunpack.c.h.b16 %v601
        %v2420 = vunpack.c.l.b16 %v602
        %v2421 = vunpack.c.h.b16 %v602
        %v2422 = vunpack.c.l.b16 %v603
        %v2423 = vunpack.c.h.b16 %v603
        %v2424 = vunpack.c.l.b16 %v604
        %v2425 = vunpack.c.h.b16 %v604
        %v2426 = vunpack.c.l.b16 %v605
        %v2427 = vunpack.c.h.b16 %v605
        %v2428 = vunpack.c.l.b16 %v606
        %v2429 = vunpack.c.h.b16 %v606
        %v2430 = vunpack.c.l.b16 %v607
        %v2431 = vunpack.c.h.b16 %v607
        %v2432 = vunpack.c.l.b16 %v608
        %v2433 = vunpack.c.h.b16 %v608
        %v2434 = vunpack.c.l.b16 %v609
        %v2435 = vunpack.c.h.b16 %v609
        %v2436 = vunpack.c.l.b16 %v610
        %v2437 = vunpack.c.h.b16 %v610
        %v2438 = vunpack.c.l.b16 %v611
        %v2439 = vunpack.c.h.b16 %v611
        %v2440 = vunpack.c.l.b16 %v612
        %v2441 = vunpack.c.h.b16 %v612
        %v2442 = vunpack.c.l.b16 %v613
        %v2443 = vunpack.c.h.b16 %v613
        %v2444 = vunpack.c.l.b16 %v614
        %v2445 = vunpack.c.h.b16 %v614
        %v2446 = vunpack.c.l.b16 %v615
        %v2447 = vunpack.c.h.b16 %v615
        %v2448 = vunpack.c.l.b16 %v616
        %v2449 = vunpack.c.h.b16 %v616
        %v2450 = vunpack.c.l.b16 %v617
        %v2451 = vunpack.c.h.b16 %v617
        %v2452 = vunpack.c.l.b16 %v618
        %v2453 = vunpack.c.h.b16 %v618
        %v2454 = vunpack.c.l.b16 %v619
        %v2455 = vunpack.c.h.b16 %v619
        %v2456 = vunpack.c.l.b16 %v620
        %v2457 = vunpack.c.h.b16 %v620
        %v2458 = vunpack.c.l.b16 %v621
        %v2459 = vunpack.c.h.b16 %v621
        %v2460 = vunpack.c.l.b16 %v622
        %v2461 = vunpack.c.h.b16 %v622
        %v2462 = vunpack.c.l.b16 %v623
        %v2463 = vunpack.c.h.b16 %v623
        %v2464 = vunpack.c.l.b16 %v624
        %v2465 = vunpack.c.h.b16 %v624
        %v2466 = vunpack.c.l.b16 %v625
        %v2467 = vunpack.c.h.b16 %v625
        %v2468 = vunpack.c.l.b16 %v626
        %v2469 = vunpack.c.h.b16 %v626
        %v2470 = vunpack.c.l.b16 %v627
        %v2471 = vunpack.c.h.b16 %v627
        %v2472 = vunpack.c.l.b16 %v628
        %v2473 = vunpack.c.h.b16 %v628
        %v2474 = vunpack.c.l.b16 %v629
        %v2475 = vunpack.c.h.b16 %v629
        %v2476 = vunpack.c.l.b16 %v630
        %v2477 = vunpack.c.h.b16 %v630
        %v2478 = vunpack.c.l.b16 %v631
        %v2479 = vunpack.c.h.b16 %v631
        %v2480 = vunpack.c.l.b16 %v632
        %v2481 = vunpack.c.h.b16 %v632
        %v2482 = vunpack.c.l.b16 %v633
        %v2483 = vunpack.c.h.b16 %v633
        %v2484 = vunpack.c.l.b16 %v634
        %v2485 = vunpack.c.h.b16 %v634
        %v2486 = vunpack.c.l.b16 %v635
        %v2487 = vunpack.c.h.b16 %v635
        %v2488 = vunpack.c.l.b16 %v636
        %v2489 = vunpack.c.h.b16 %v636
        %v2490 = vunpack.c.l.b16 %v637
        %v2491 = vunpack.c.h.b16 %v637
        %v2492 = vunpack.c.l.b16 %v638
        %v2493 = vunpack.c.h.b16 %v638
        %v2494 = vunpack.c.l.b16 %v639
        %v2495 = vunpack.c.h.b16 %v639
        %v2496 = vunpack.c.l.b16 %v640
        %v2497 = vunpack.c.h.b16 %v640
        %v2498 = vunpack.c.l.b16 %v641
        %v2499 = vunpack.c.h.b16 %v641
        %v2500 = vunpack.c.l.b16 %v642
        %v2501 = vunpack.c.h.b16 %v642
        %v2502 = vunpack.c.l.b16 %v643
        %v2503 = vunpack.c.h.b16 %v643
        %v2504 = vunpack.c.l.b16 %v644
        %v2505 = vunpack.c.h.b16 %v644
        %v2506 = vunpack.c.l.b16 %v645
        %v2507 = vunpack.c.h.b16 %v645
        %v2508 = vunpack.c.l.b16 %v646
        %v2509 = vunpack.c.h.b16 %v646
        %v2510 = vunpack.c.l.b16 %v647
        %v2511 = vunpack.c.h.b16 %v647
        %v2512 = vunpack.c.l.b16 %v648
        %v2513 = vunpack.c.h.b16 %v648
        %v2514 = vunpack.c.l.b16 %v649
        %v2515 = vunpack.c.h.b16 %v649
        %v2516 = vunpack.c.l.b16 %v650
        %v2517 = vunpack.c.h.b16 %v650
        %v2518 = vunpack.c.l.b16 %v651
        %v2519 = vunpack.c.h.b16 %v651
        %v2520 = vunpack.c.l.b16 %v652
        %v2521 = vunpack.c.h.b16 %v652
        %v2522 = vunpack.c.l.b16 %v653
        %v2523 = vunpack.c.h.b16 %v653
        %v2524 = vunpack.c.l.b16 %v654
        %v2525 = vunpack.c.h.b16 %v654
        %v2526 = vunpack.c.l.b16 %v655
        %v2527 = vunpack.c.h.b16 %v655
        %v2528 = vunpack.c.l.b16 %v656
        %v2529 = vunpack.c.h.b16 %v656
        %v2530 = vunpack.c.l.b16 %v657
        %v2531 = vunpack.c.h.b16 %v657
        %v2532 = vunpack.c.l.b16 %v658
        %v2533 = vunpack.c.h.b16 %v658
        %v2534 = vunpack.c.l.b16 %v659
        %v2535 = vunpack.c.h.b16 %v659
        %v2536 = vunpack.c.l.b16 %v660
        %v2537 = vunpack.c.h.b16 %v660
        %v2538 = vunpack.c.l.b16 %v661
        %v2539 = vunpack.c.h.b16 %v661
        %v2540 = vunpack.c.l.b16 %v662
        %v2541 = vunpack.c.h.b16 %v662
        %v2542 = vunpack.c.l.b16 %v663
        %v2543 = vunpack.c.h.b16 %v663
        %v2544 = vunpack.c.l.b16 %v664
        %v2545 = vunpack.c.h.b16 %v664
        %v2546 = vunpack.c.l.b16 %v665
        %v2547 = vunpack.c.h.b16 %v665
        %v2548 = vunpack.c.l.b16 %v666
        %v2549 = vunpack.c.h.b16 %v666
        %v2550 = vunpack.c.l.b16 %v667
        %v2551 = vunpack.c.h.b16 %v667
        %v2552 = vunpack.c.l.b16 %v668
        %v2553 = vunpack.c.h.b16 %v668
        %v2554 = vunpack.c.l.b16 %v669
        %v2555 = vunpack.c.h.b16 %v669
        %v2556 = vunpack.c.l.b16 %v670
        %v2557 = vunpack.c.h.b16 %v670
        %v2558 = vunpack.c.l.b16 %v671
        %v2559 = vunpack.c.h.b16 %v671
        %v2560 = vunpack.c.l.b16 %v672
        %v2561 = vunpack.c.h.b16 %v672
        %v2562 = vunpack.c.l.b16 %v673
        %v2563 = vunpack.c.h.b16 %v673
        %v2564 = vunpack.c.l.b16 %v674
        %v2565 = vunpack.c.h.b16 %v674
        %v2566 = vunpack.c.l.b16 %v675
        %v2567 = vunpack.c.h.b16 %v675
        %v2568 = vunpack.c.l.b16 %v676
        %v2569 = vunpack.c.h.b16 %v676
        %v2570 = vunpack.c.l.b16 %v677
        %v2571 = vunpack.c.h.b16 %v677
        %v2572 = vunpack.c.l.b16 %v678
        %v2573 = vunpack.c.h.b16 %v678
        %v2574 = vunpack.c.l.b16 %v679
        %v2575 = vunpack.c.h.b16 %v679
        %v2576 = vunpack.c.l.b16 %v680
        %v2577 = vunpack.c.h.b16 %v680
        %v2578 = vunpack.c.l.b16 %v681
        %v2579 = vunpack.c.h.b16 %v681
        %v2580 = vunpack.c.l.b16 %v682
        %v2581 = vunpack.c.h.b16 %v682
        %v2582 = vunpack.c.l.b16 %v683
        %v2583 = vunpack.c.h.b16 %v683
        %v2584 = vunpack.c.l.b16 %v684
        %v2585 = vunpack.c.h.b16 %v684
        %v2586 = vunpack.c.l.b16 %v685
        %v2587 = vunpack.c.h.b16 %v685
        %v2588 = vunpack.c.l.b16 %v686
        %v2589 = vunpack.c.h.b16 %v686
        %v2590 = vunpack.c.l.b16 %v687
        %v2591 = vunpack.c.h.b16 %v687
        %v2592 = vunpack.c.l.b16 %v688
        %v2593 = vunpack.c.h.b16 %v688
        %v2594 = vunpack.c.l.b16 %v689
        %v2595 = vunpack.c.h.b16 %v689
        %v2596 = vunpack.c.l.b16 %v690
        %v2597 = vunpack.c.h.b16 %v690
        %v2598 = vunpack.c.l.b16 %v691
        %v2599 = vunpack.c.h.b16 %v691
        %v2600 = vunpack.c.l.b16 %v692
        %v2601 = vunpack.c.h.b16 %v692
        %v2602 = vunpack.c.l.b16 %v693
        %v2603 = vunpack.c.h.b16 %v693
        %v2604 = vunpack.c.l.b16 %v694
        %v2605 = vunpack.c.h.b16 %v694
        %v2606 = vunpack.c.l.b16 %v695
        %v2607 = vunpack.c.h.b16 %v695
        %v2608 = vunpack.c.l.b16 %v696
        %v2609 = vunpack.c.h.b16 %v696
        %v2610 = vunpack.c.l.b16 %v697
        %v2611 = vunpack.c.h.b16 %v697
        %v2612 = vunpack.c.l.b16 %v698
        %v2613 = vunpack.c.h.b16 %v698
        %v2614 = vunpack.c.l.b16 %v699
        %v2615 = vunpack.c.h.b16 %v699
        %v2616 = vunpack.c.l.b16 %v700
        %v2617 = vunpack.c.h.b16 %v700
        %v2618 = vunpack.c.l.b16 %v701
        %v2619 = vunpack.c.h.b16 %v701
        %v2620 = vunpack.c.l.b16 %v702
        %v2621 = vunpack.c.h.b16 %v702
        %v2622 = vunpack.c.l.b16 %v703
        %v2623 = vunpack.c.h.b16 %v703
        %v2624 = vunpack.c.l.b16 %v704
        %v2625 = vunpack.c.h.b16 %v704
        %v2626 = vunpack.c.l.b16 %v705
        %v2627 = vunpack.c.h.b16 %v705
        %v2628 = vunpack.c.l.b16 %v706
        %v2629 = vunpack.c.h.b16 %v706
        %v2630 = vunpack.c.l.b16 %v707
        %v2631 = vunpack.c.h.b16 %v707
        %v2632 = vunpack.c.l.b16 %v708
        %v2633 = vunpack.c.h.b16 %v708
        %v2634 = vunpack.c.l.b16 %v709
        %v2635 = vunpack.c.h.b16 %v709
        %v2636 = vunpack.c.l.b16 %v710
        %v2637 = vunpack.c.h.b16 %v710
        %v2638 = vunpack.c.l.b16 %v711
        %v2639 = vunpack.c.h.b16 %v711
        %v2640 = vunpack.c.l.b16 %v712
        %v2641 = vunpack.c.h.b16 %v712
        %v2642 = vunpack.c.l.b16 %v713
        %v2643 = vunpack.c.h.b16 %v713
        %v2644 = vunpack.c.l.b16 %v714
        %v2645 = vunpack.c.h.b16 %v714
        %v2646 = vunpack.c.l.b16 %v715
        %v2647 = vunpack.c.h.b16 %v715
        %v2648 = vunpack.c.l.b16 %v716
        %v2649 = vunpack.c.h.b16 %v716
        %v2650 = vunpack.c.l.b16 %v717
        %v2651 = vunpack.c.h.b16 %v717
        %v2652 = vunpack.c.l.b16 %v718
        %v2653 = vunpack.c.h.b16 %v718
        %v2654 = vunpack.c.l.b16 %v719
        %v2655 = vunpack.c.h.b16 %v719
        %v2656 = vunpack.c.l.b16 %v720
        %v2657 = vunpack.c.h.b16 %v720
        %v2658 = vunpack.c.l.b16 %v721
        %v2659 = vunpack.c.h.b16 %v721
        %v2660 = vunpack.c.l.b16 %v722
        %v2661 = vunpack.c.h.b16 %v722
        %v2662 = vunpack.c.l.b16 %v723
        %v2663 = vunpack.c.h.b16 %v723
        %v2664 = vunpack.c.l.b16 %v724
        %v2665 = vunpack.c.h.b16 %v724
        %v2666 = vunpack.c.l.b16 %v725
        %v2667 = vunpack.c.h.b16 %v725
        %v2668 = vunpack.c.l.b16 %v726
        %v2669 = vunpack.c.h.b16 %v726
        %v2670 = vunpack.c.l.b16 %v727
        %v2671 = vunpack.c.h.b16 %v727
        %v2672 = vunpack.c.l.b16 %v728
        %v2673 = vunpack.c.h.b16 %v728
        %v2674 = vunpack.c.l.b16 %v729
        %v2675 = vunpack.c.h.b16 %v729
        %v2676 = vunpack.c.l.b16 %v730
        %v2677 = vunpack.c.h.b16 %v730
        %v2678 = vunpack.c.l.b16 %v731
        %v2679 = vunpack.c.h.b16 %v731
        %v2680 = vunpack.c.l.b16 %v732
        %v2681 = vunpack.c.h.b16 %v732
        %v2682 = vunpack.c.l.b16 %v733
        %v2683 = vunpack.c.h.b16 %v733
        %v2684 = vunpack.c.l.b16 %v734
        %v2685 = vunpack.c.h.b16 %v734
        %v2686 = vunpack.c.l.b16 %v735
        %v2687 = vunpack.c.h.b16 %v735
        %v2688 = vunpack.c.l.b16 %v736
        %v2689 = vunpack.c.h.b16 %v736
        %v2690 = vunpack.c.l.b16 %v737
        %v2691 = vunpack.c.h.b16 %v737
        %v2692 = vunpack.c.l.b16 %v738
        %v2693 = vunpack.c.h.b16 %v738
        %v2694 = vunpack.c.l.b16 %v739
        %v2695 = vunpack.c.h.b16 %v739
        %v2696 = vunpack.c.l.b16 %v740
        %v2697 = vunpack.c.h.b16 %v740
        %v2698 = vunpack.c.l.b16 %v741
        %v2699 = vunpack.c.h.b16 %v741
        %v2700 = vunpack.c.l.b16 %v742
        %v2701 = vunpack.c.h.b16 %v742
        %v2702 = vunpack.c.l.b16 %v743
        %v2703 = vunpack.c.h.b16 %v743
        %v2704 = vunpack.c.l.b16 %v744
        %v2705 = vunpack.c.h.b16 %v744
        %v2706 = vunpack.c.l.b16 %v745
        %v2707 = vunpack.c.h.b16 %v745
        %v2708 = vunpack.c.l.b16 %v746
        %v2709 = vunpack.c.h.b16 %v746
        %v2710 = vunpack.c.l.b16 %v747
        %v2711 = vunpack.c.h.b16 %v747
        %v2712 = vunpack.c.l.b16 %v748
        %v2713 = vunpack.c.h.b16 %v748
        %v2714 = vunpack.c.l.b16 %v749
        %v2715 = vunpack.c.h.b16 %v749
        %v2716 = vunpack.c.l.b16 %v750
        %v2717 = vunpack.c.h.b16 %v750
        %v2718 = vunpack.c.l.b16 %v751
        %v2719 = vunpack.c.h.b16 %v751
        %v2720 = vunpack.c.l.b16 %v752
        %v2721 = vunpack.c.h.b16 %v752
        %v2722 = vunpack.c.l.b16 %v753
        %v2723 = vunpack.c.h.b16 %v753
        %v2724 = vunpack.c.l.b16 %v754
        %v2725 = vunpack.c.h.b16 %v754
        %v2726 = vunpack.c.l.b16 %v755
        %v2727 = vunpack.c.h.b16 %v755
        %v2728 = vunpack.c.l.b16 %v756
        %v2729 = vunpack.c.h.b16 %v756
        %v2730 = vunpack.c.l.b16 %v757
        %v2731 = vunpack.c.h.b16 %v757
        %v2732 = vunpack.c.l.b16 %v758
        %v2733 = vunpack.c.h.b16 %v758
        %v2734 = vunpack.c.l.b16 %v759
        %v2735 = vunpack.c.h.b16 %v759
        %v2736 = vunpack.c.l.b16 %v760
        %v2737 = vunpack.c.h.b16 %v760
        %v2738 = vunpack.c.l.b16 %v761
        %v2739 = vunpack.c.h.b16 %v761
        %v2740 = vunpack.c.l.b16 %v762
        %v2741 = vunpack.c.h.b16 %v762
        %v2742 = vunpack.c.l.b16 %v763
        %v2743 = vunpack.c.h.b16 %v763
        %v2744 = vunpack.c.l.b16 %v764
        %v2745 = vunpack.c.h.b16 %v764
        %v2746 = vunpack.c.l.b16 %v765
        %v2747 = vunpack.c.h.b16 %v765
        %v2748 = vunpack.c.l.b16 %v766
        %v2749 = vunpack.c.h.b16 %v766
        %v2750 = vunpack.c.l.b16 %v767
        %v2751 = vunpack.c.h.b16 %v767
        %v2752 = vunpack.c.l.b16 %v768
        %v2753 = vunpack.c.h.b16 %v768
        %v2754 = vunpack.c.l.b16 %v769
        %v2755 = vunpack.c.h.b16 %v769
        %v2756 = vunpack.c.l.b16 %v770
        %v2757 = vunpack.c.h.b16 %v770
        %v2758 = vunpack.c.l.b16 %v771
        %v2759 = vunpack.c.h.b16 %v771
        %v2760 = vunpack.c.l.b16 %v772
        %v2761 = vunpack.c.h.b16 %v772
        %v2762 = vunpack.c.l.b16 %v773
        %v2763 = vunpack.c.h.b16 %v773
        %v2764 = vunpack.c.l.b16 %v774
        %v2765 = vunpack.c.h.b16 %v774
        %v2766 = vunpack.c.l.b16 %v775
        %v2767 = vunpack.c.h.b16 %v775
        %v2768 = vunpack.c.l.b16 %v776
        %v2769 = vunpack.c.h.b16 %v776
        %v2770 = vunpack.c.l.b16 %v777
        %v2771 = vunpack.c.h.b16 %v777
        %v2772 = vunpack.c.l.b16 %v778
        %v2773 = vunpack.c.h.b16 %v778
        %v2774 = vunpack.c.l.b16 %v779
        %v2775 = vunpack.c.h.b16 %v779
        %v2776 = vunpack.c.l.b16 %v780
        %v2777 = vunpack.c.h.b16 %v780
        %v2778 = vunpack.c.l.b16 %v781
        %v2779 = vunpack.c.h.b16 %v781
        %v2780 = vunpack.c.l.b16 %v782
        %v2781 = vunpack.c.h.b16 %v782
        %v2782 = vunpack.c.l.b16 %v783
        %v2783 = vunpack.c.h.b16 %v783
        %v2784 = vunpack.c.l.b16 %v784
        %v2785 = vunpack.c.h.b16 %v784
        %v2786 = vunpack.c.l.b16 %v785
        %v2787 = vunpack.c.h.b16 %v785
        %v2788 = vunpack.c.l.b16 %v786
        %v2789 = vunpack.c.h.b16 %v786
        %v2790 = vunpack.c.l.b16 %v787
        %v2791 = vunpack.c.h.b16 %v787
        %v2792 = vunpack.c.l.b16 %v788
        %v2793 = vunpack.c.h.b16 %v788
        %v2794 = vunpack.c.l.b16 %v789
        %v2795 = vunpack.c.h.b16 %v789
        %v2796 = vunpack.c.l.b16 %v790
        %v2797 = vunpack.c.h.b16 %v790
        %v2798 = vunpack.c.l.b16 %v791
        %v2799 = vunpack.c.h.b16 %v791
        %v2800 = vunpack.c.l.b16 %v792
        %v2801 = vunpack.c.h.b16 %v792
        %v2802 = vunpack.c.l.b16 %v793
        %v2803 = vunpack.c.h.b16 %v793
        %v2804 = vunpack.c.l.b16 %v794
        %v2805 = vunpack.c.h.b16 %v794
        %v2806 = vunpack.c.l.b16 %v795
        %v2807 = vunpack.c.h.b16 %v795
        %v2808 = vunpack.c.l.b16 %v796
        %v2809 = vunpack.c.h.b16 %v796
        %v2810 = vunpack.c.l.b16 %v797
        %v2811 = vunpack.c.h.b16 %v797
        %v2812 = vunpack.c.l.b16 %v798
        %v2813 = vunpack.c.h.b16 %v798
        %v2814 = vunpack.c.l.b16 %v799
        %v2815 = vunpack.c.h.b16 %v799
        %v2816 = vunpack.c.l.b16 %v800
        %v2817 = vunpack.c.h.b16 %v800
        %v2818 = vunpack.c.l.b16 %v801
        %v2819 = vunpack.c.h.b16 %v801
        %v2820 = vunpack.c.l.b16 %v802
        %v2821 = vunpack.c.h.b16 %v802
        %v2822 = vunpack.c.l.b16 %v803
        %v2823 = vunpack.c.h.b16 %v803
        %v2824 = vunpack.c.l.b16 %v804
        %v2825 = vunpack.c.h.b16 %v804
        %v2826 = vunpack.c.l.b16 %v805
        %v2827 = vunpack.c.h.b16 %v805
        %v2828 = vunpack.c.l.b16 %v806
        %v2829 = vunpack.c.h.b16 %v806
        %v2830 = vunpack.c.l.b16 %v807
        %v2831 = vunpack.c.h.b16 %v807
        %v2832 = vunpack.c.l.b16 %v808
        %v2833 = vunpack.c.h.b16 %v808
        %v2834 = vunpack.c.l.b16 %v809
        %v2835 = vunpack.c.h.b16 %v809
        %v2836 = vunpack.c.l.b16 %v810
        %v2837 = vunpack.c.h.b16 %v810
        %v2838 = vunpack.c.l.b16 %v811
        %v2839 = vunpack.c.h.b16 %v811
        %v2840 = vunpack.c.l.b16 %v812
        %v2841 = vunpack.c.h.b16 %v812
        %v2842 = vunpack.c.l.b16 %v813
        %v2843 = vunpack.c.h.b16 %v813
        %v2844 = vunpack.c.l.b16 %v814
        %v2845 = vunpack.c.h.b16 %v814
        %v2846 = vunpack.c.l.b16 %v815
        %v2847 = vunpack.c.h.b16 %v815
        %v2848 = vunpack.c.l.b16 %v816
        %v2849 = vunpack.c.h.b16 %v816
        %v2850 = vunpack.c.l.b16 %v817
        %v2851 = vunpack.c.h.b16 %v817
        %v2852 = vunpack.c.l.b16 %v818
        %v2853 = vunpack.c.h.b16 %v818
        %v2854 = vunpack.c.l.b16 %v819
        %v2855 = vunpack.c.h.b16 %v819
        %v2856 = vunpack.c.l.b16 %v820
        %v2857 = vunpack.c.h.b16 %v820
        %v2858 = vunpack.c.l.b16 %v821
        %v2859 = vunpack.c.h.b16 %v821
        %v2860 = vunpack.c.l.b16 %v822
        %v2861 = vunpack.c.h.b16 %v822
        %v2862 = vunpack.c.l.b16 %v823
        %v2863 = vunpack.c.h.b16 %v823
        %v2864 = vunpack.c.l.b16 %v824
        %v2865 = vunpack.c.h.b16 %v824
        %v2866 = vunpack.c.l.b16 %v825
        %v2867 = vunpack.c.h.b16 %v825
        %v2868 = vunpack.c.l.b16 %v826
        %v2869 = vunpack.c.h.b16 %v826
        %v2870 = vunpack.c.l.b16 %v827
        %v2871 = vunpack.c.h.b16 %v827
        %v2872 = vunpack.c.l.b16 %v828
        %v2873 = vunpack.c.h.b16 %v828
        %v2874 = vunpack.c.l.b16 %v829
        %v2875 = vunpack.c.h.b16 %v829
        %v2876 = vunpack.c.l.b16 %v830
        %v2877 = vunpack.c.h.b16 %v830
        %v2878 = vunpack.c.l.b16 %v831
        %v2879 = vunpack.c.h.b16 %v831
        %v2880 = vunpack.c.l.b16 %v832
        %v2881 = vunpack.c.h.b16 %v832
        %v2882 = vunpack.c.l.b16 %v833
        %v2883 = vunpack.c.h.b16 %v833
        %v2884 = vunpack.c.l.b16 %v834
        %v2885 = vunpack.c.h.b16 %v834
        %v2886 = vunpack.c.l.b16 %v835
        %v2887 = vunpack.c.h.b16 %v835
        %v2888 = vunpack.c.l.b16 %v836
        %v2889 = vunpack.c.h.b16 %v836
        %v2890 = vunpack.c.l.b16 %v837
        %v2891 = vunpack.c.h.b16 %v837
        %v2892 = vunpack.c.l.b16 %v838
        %v2893 = vunpack.c.h.b16 %v838
        %v2894 = vunpack.c.l.b16 %v839
        %v2895 = vunpack.c.h.b16 %v839
        %v2896 = vunpack.c.l.b16 %v840
        %v2897 = vunpack.c.h.b16 %v840
        %v2898 = vunpack.c.l.b16 %v841
        %v2899 = vunpack.c.h.b16 %v841
        %v2900 = vunpack.c.l.b16 %v842
        %v2901 = vunpack.c.h.b16 %v842
        %v2902 = vunpack.c.l.b16 %v843
        %v2903 = vunpack.c.h.b16 %v843
        %v2904 = vunpack.c.l.b16 %v844
        %v2905 = vunpack.c.h.b16 %v844
        %v2906 = vunpack.c.l.b16 %v845
        %v2907 = vunpack.c.h.b16 %v845
        %v2908 = vunpack.c.l.b16 %v846
        %v2909 = vunpack.c.h.b16 %v846
        %v2910 = vunpack.c.l.b16 %v847
        %v2911 = vunpack.c.h.b16 %v847
        %v2912 = vunpack.c.l.b16 %v848
        %v2913 = vunpack.c.h.b16 %v848
        %v2914 = vunpack.c.l.b16 %v849
        %v2915 = vunpack.c.h.b16 %v849
        %v2916 = vunpack.c.l.b16 %v850
        %v2917 = vunpack.c.h.b16 %v850
        %v2918 = vunpack.c.l.b16 %v851
        %v2919 = vunpack.c.h.b16 %v851
        %v2920 = vunpack.c.l.b16 %v852
        %v2921 = vunpack.c.h.b16 %v852
        %v2922 = vunpack.c.l.b16 %v853
        %v2923 = vunpack.c.h.b16 %v853
        %v2924 = vunpack.c.l.b16 %v854
        %v2925 = vunpack.c.h.b16 %v854
        %v2926 = vunpack.c.l.b16 %v855
        %v2927 = vunpack.c.h.b16 %v855
        %v2928 = vunpack.c.l.b16 %v856
        %v2929 = vunpack.c.h.b16 %v856
        %v2930 = vunpack.c.l.b16 %v857
        %v2931 = vunpack.c.h.b16 %v857
        %v2932 = vunpack.c.l.b16 %v858
        %v2933 = vunpack.c.h.b16 %v858
        %v2934 = vunpack.c.l.b16 %v859
        %v2935 = vunpack.c.h.b16 %v859
        %v2936 = vunpack.c.l.b16 %v860
        %v2937 = vunpack.c.h.b16 %v860
        %v2938 = vunpack.c.l.b16 %v861
        %v2939 = vunpack.c.h.b16 %v861
        %v2940 = vunpack.c.l.b16 %v862
        %v2941 = vunpack.c.h.b16 %v862
        %v2942 = vunpack.c.l.b16 %v863
        %v2943 = vunpack.c.h.b16 %v863
        %v2944 = vunpack.c.l.b16 %v864
        %v2945 = vunpack.c.h.b16 %v864
        %v2946 = vunpack.c.l.b16 %v865
        %v2947 = vunpack.c.h.b16 %v865
        %v2948 = vunpack.c.l.b16 %v866
        %v2949 = vunpack.c.h.b16 %v866
        %v2950 = vunpack.c.l.b16 %v867
        %v2951 = vunpack.c.h.b16 %v867
        %v2952 = vunpack.c.l.b16 %v868
        %v2953 = vunpack.c.h.b16 %v868
        %v2954 = vunpack.c.l.b16 %v869
        %v2955 = vunpack.c.h.b16 %v869
        %v2956 = vunpack.c.l.b16 %v870
        %v2957 = vunpack.c.h.b16 %v870
        %v2958 = vunpack.c.l.b16 %v871
        %v2959 = vunpack.c.h.b16 %v871
        %v2960 = vunpack.c.l.b16 %v872
        %v2961 = vunpack.c.h.b16 %v872
        %v2962 = vunpack.c.l.b16 %v873
        %v2963 = vunpack.c.h.b16 %v873
        %v2964 = vunpack.c.l.b16 %v874
        %v2965 = vunpack.c.h.b16 %v874
        %v2966 = vunpack.c.l.b16 %v875
        %v2967 = vunpack.c.h.b16 %v875
        %v2968 = vunpack.c.l.b16 %v876
        %v2969 = vunpack.c.h.b16 %v876
        %v2970 = vunpack.c.l.b16 %v877
        %v2971 = vunpack.c.h.b16 %v877
        %v2972 = vunpack.c.l.b16 %v878
        %v2973 = vunpack.c.h.b16 %v878
        %v2974 = vunpack.c.l.b16 %v879
        %v2975 = vunpack.c.h.b16 %v879
        %v2976 = vunpack.c.l.b16 %v880
        %v2977 = vunpack.c.h.b16 %v880
        %v2978 = vunpack.c.l.b16 %v881
        %v2979 = vunpack.c.h.b16 %v881
        %v2980 = vunpack.c.l.b16 %v882
        %v2981 = vunpack.c.h.b16 %v882
        %v2982 = vunpack.c.l.b16 %v883
        %v2983 = vunpack.c.h.b16 %v883
        %v2984 = vunpack.c.l.b16 %v884
        %v2985 = vunpack.c.h.b16 %v884
        %v2986 = vunpack.c.l.b16 %v885
        %v2987 = vunpack.c.h.b16 %v885
        %v2988 = vunpack.c.l.b16 %v886
        %v2989 = vunpack.c.h.b16 %v886
        %v2990 = vunpack.c.l.b16 %v887
        %v2991 = vunpack.c.h.b16 %v887
        %v2992 = vunpack.c.l.b16 %v888
        %v2993 = vunpack.c.h.b16 %v888
        %v2994 = vunpack.c.l.b16 %v889
        %v2995 = vunpack.c.h.b16 %v889
        %v2996 = vunpack.c.l.b16 %v890
        %v2997 = vunpack.c.h.b16 %v890
        %v2998 = vunpack.c.l.b16 %v891
        %v2999 = vunpack.c.h.b16 %v891
        %v3000 = vunpack.c.l.b16 %v892
        %v3001 = vunpack.c.h.b16 %v892
        %v3002 = vunpack.c.l.b16 %v893
        %v3003 = vunpack.c.h.b16 %v893
        %v3004 = vunpack.c.l.b16 %v894
        %v3005 = vunpack.c.h.b16 %v894
        %v3006 = vunpack.c.l.b16 %v895
        %v3007 = vunpack.c.h.b16 %v895
        %v3008 = vpack.c.b16 %v1732, %v1728
        %v3009 = vpack.c.b16 %v1733, %v1729
        %v3010 = vpack.c.b16 %v1734, %v1730
        %v3011 = vpack.c.b16 %v1735, %v1731
        %v3012 = vpack.c.b16 %v1740, %v1736
        %v3013 = vpack.c.b16 %v1741, %v1737
        %v3014 = vpack.c.b16 %v1742, %v1738
        %v3015 = vpack.c.b16 %v1743, %v1739
        %v3016 = vpack.c.b16 %v1748, %v1744
        %v3017 = vpack.c.b16 %v1749, %v1745
        %v3018 = vpack.c.b16 %v1750, %v1746
        %v3019 = vpack.c.b16 %v1751, %v1747
        %v3020 = vpack.c.b16 %v1756, %v1752
        %v3021 = vpack.c.b16 %v1757, %v1753
        %v3022 = vpack.c.b16 %v1758, %v1754
        %v3023 = vpack.c.b16 %v1759, %v1755
        %v3024 = vpack.c.b16 %v1764, %v1760
        %v3025 = vpack.c.b16 %v1765, %v1761
        %v3026 = vpack.c.b16 %v1766, %v1762
        %v3027 = vpack.c.b16 %v1767, %v1763
        %v3028 = vpack.c.b16 %v1772, %v1768
        %v3029 = vpack.c.b16 %v1773, %v1769
        %v3030 = vpack.c.b16 %v1774, %v1770
        %v3031 = vpack.c.b16 %v1775, %v1771
        %v3032 = vpack.c.b16 %v1780, %v1776
        %v3033 = vpack.c.b16 %v1781, %v1777
        %v3034 = vpack.c.b16 %v1782, %v1778
        %v3035 = vpack.c.b16 %v1783, %v1779
        %v3036 = vpack.c.b16 %v1788, %v1784
        %v3037 = vpack.c.b16 %v1789, %v1785
        %v3038 = vpack.c.b16 %v1790, %v1786
        %v3039 = vpack.c.b16 %v1791, %v1787
        %v3040 = vpack.c.b16 %v1796, %v1792
        %v3041 = vpack.c.b16 %v1797, %v1793
        %v3042 = vpack.c.b16 %v1798, %v1794
        %v3043 = vpack.c.b16 %v1799, %v1795
        %v3044 = vpack.c.b16 %v1804, %v1800
        %v3045 = vpack.c.b16 %v1805, %v1801
        %v3046 = vpack.c.b16 %v1806, %v1802
        %v3047 = vpack.c.b16 %v1807, %v1803
        %v3048 = vpack.c.b16 %v1812, %v1808
        %v3049 = vpack.c.b16 %v1813, %v1809
        %v3050 = vpack.c.b16 %v1814, %v1810
        %v3051 = vpack.c.b16 %v1815, %v1811
        %v3052 = vpack.c.b16 %v1820, %v1816
        %v3053 = vpack.c.b16 %v1821, %v1817
        %v3054 = vpack.c.b16 %v1822, %v1818
        %v3055 = vpack.c.b16 %v1823, %v1819
        %v3056 = vpack.c.b16 %v1828, %v1824
        %v3057 = vpack.c.b16 %v1829, %v1825
        %v3058 = vpack.c.b16 %v1830, %v1826
        %v3059 = vpack.c.b16 %v1831, %v1827
        %v3060 = vpack.c.b16 %v1836, %v1832
        %v3061 = vpack.c.b16 %v1837, %v1833
        %v3062 = vpack.c.b16 %v1838, %v1834
        %v3063 = vpack.c.b16 %v1839, %v1835
        %v3064 = vpack.c.b16 %v1844, %v1840
        %v3065 = vpack.c.b16 %v1845, %v1841
        %v3066 = vpack.c.b16 %v1846, %v1842
        %v3067 = vpack.c.b16 %v1847, %v1843
        %v3068 = vpack.c.b16 %v1852, %v1848
        %v3069 = vpack.c.b16 %v1853, %v1849
        %v3070 = vpack.c.b16 %v1854, %v1850
        %v3071 = vpack.c.b16 %v1855, %v1851
        %v3072 = vpack.c.b16 %v1860, %v1856
        %v3073 = vpack.c.b16 %v1861, %v1857
        %v3074 = vpack.c.b16 %v1862, %v1858
        %v3075 = vpack.c.b16 %v1863, %v1859
        %v3076 = vpack.c.b16 %v1868, %v1864
        %v3077 = vpack.c.b16 %v1869, %v1865
        %v3078 = vpack.c.b16 %v1870, %v1866
        %v3079 = vpack.c.b16 %v1871, %v1867
        %v3080 = vpack.c.b16 %v1876, %v1872
        %v3081 = vpack.c.b16 %v1877, %v1873
        %v3082 = vpack.c.b16 %v1878, %v1874
        %v3083 = vpack.c.b16 %v1879, %v1875
        %v3084 = vpack.c.b16 %v1884, %v1880
        %v3085 = vpack.c.b16 %v1885, %v1881
        %v3086 = vpack.c.b16 %v1886, %v1882
        %v3087 = vpack.c.b16 %v1887, %v1883
        %v3088 = vpack.c.b16 %v1892, %v1888
        %v3089 = vpack.c.b16 %v1893, %v1889
        %v3090 = vpack.c.b16 %v1894, %v1890
        %v3091 = vpack.c.b16 %v1895, %v1891
        %v3092 = vpack.c.b16 %v1900, %v1896
        %v3093 = vpack.c.b16 %v1901, %v1897
        %v3094 = vpack.c.b16 %v1902, %v1898
        %v3095 = vpack.c.b16 %v1903, %v1899
        %v3096 = vpack.c.b16 %v1908, %v1904
        %v3097 = vpack.c.b16 %v1909, %v1905
        %v3098 = vpack.c.b16 %v1910, %v1906
        %v3099 = vpack.c.b16 %v1911, %v1907
        %v3100 = vpack.c.b16 %v1916, %v1912
        %v3101 = vpack.c.b16 %v1917, %v1913
        %v3102 = vpack.c.b16 %v1918, %v1914
        %v3103 = vpack.c.b16 %v1919, %v1915
        %v3104 = vpack.c.b16 %v1924, %v1920
        %v3105 = vpack.c.b16 %v1925, %v1921
        %v3106 = vpack.c.b16 %v1926, %v1922
        %v3107 = vpack.c.b16 %v1927, %v1923
        %v3108 = vpack.c.b16 %v1932, %v1928
        %v3109 = vpack.c.b16 %v1933, %v1929
        %v3110 = vpack.c.b16 %v1934, %v1930
        %v3111 = vpack.c.b16 %v1935, %v1931
        %v3112 = vpack.c.b16 %v1940, %v1936
        %v3113 = vpack.c.b16 %v1941, %v1937
        %v3114 = vpack.c.b16 %v1942, %v1938
        %v3115 = vpack.c.b16 %v1943, %v1939
        %v3116 = vpack.c.b16 %v1948, %v1944
        %v3117 = vpack.c.b16 %v1949, %v1945
        %v3118 = vpack.c.b16 %v1950, %v1946
        %v3119 = vpack.c.b16 %v1951, %v1947
        %v3120 = vpack.c.b16 %v1956, %v1952
        %v3121 = vpack.c.b16 %v1957, %v1953
        %v3122 = vpack.c.b16 %v1958, %v1954
        %v3123 = vpack.c.b16 %v1959, %v1955
        %v3124 = vpack.c.b16 %v1964, %v1960
        %v3125 = vpack.c.b16 %v1965, %v1961
        %v3126 = vpack.c.b16 %v1966, %v1962
        %v3127 = vpack.c.b16 %v1967, %v1963
        %v3128 = vpack.c.b16 %v1972, %v1968
        %v3129 = vpack.c.b16 %v1973, %v1969
        %v3130 = vpack.c.b16 %v1974, %v1970
        %v3131 = vpack.c.b16 %v1975, %v1971
        %v3132 = vpack.c.b16 %v1980, %v1976
        %v3133 = vpack.c.b16 %v1981, %v1977
        %v3134 = vpack.c.b16 %v1982, %v1978
        %v3135 = vpack.c.b16 %v1983, %v1979
        %v3136 = vpack.c.b16 %v1988, %v1984
        %v3137 = vpack.c.b16 %v1989, %v1985
        %v3138 = vpack.c.b16 %v1990, %v1986
        %v3139 = vpack.c.b16 %v1991, %v1987
        %v3140 = vpack.c.b16 %v1996, %v1992
        %v3141 = vpack.c.b16 %v1997, %v1993
        %v3142 = vpack.c.b16 %v1998, %v1994
        %v3143 = vpack.c.b16 %v1999, %v1995
        %v3144 = vpack.c.b16 %v2004, %v2000
        %v3145 = vpack.c.b16 %v2005, %v2001
        %v3146 = vpack.c.b16 %v2006, %v2002
        %v3147 = vpack.c.b16 %v2007, %v2003
        %v3148 = vpack.c.b16 %v2012, %v2008
        %v3149 = vpack.c.b16 %v2013, %v2009
        %v3150 = vpack.c.b16 %v2014, %v2010
        %v3151 = vpack.c.b16 %v2015, %v2011
        %v3152 = vpack.c.b16 %v2020, %v2016
        %v3153 = vpack.c.b16 %v2021, %v2017
        %v3154 = vpack.c.b16 %v2022, %v2018
        %v3155 = vpack.c.b16 %v2023, %v2019
        %v3156 = vpack.c.b16 %v2028, %v2024
        %v3157 = vpack.c.b16 %v2029, %v2025
        %v3158 = vpack.c.b16 %v2030, %v2026
        %v3159 = vpack.c.b16 %v2031, %v2027
        %v3160 = vpack.c.b16 %v2036, %v2032
        %v3161 = vpack.c.b16 %v2037, %v2033
        %v3162 = vpack.c.b16 %v2038, %v2034
        %v3163 = vpack.c.b16 %v2039, %v2035
        %v3164 = vpack.c.b16 %v2044, %v2040
        %v3165 = vpack.c.b16 %v2045, %v2041
        %v3166 = vpack.c.b16 %v2046, %v2042
        %v3167 = vpack.c.b16 %v2047, %v2043
        %v3168 = vpack.c.b16 %v2052, %v2048
        %v3169 = vpack.c.b16 %v2053, %v2049
        %v3170 = vpack.c.b16 %v2054, %v2050
        %v3171 = vpack.c.b16 %v2055, %v2051
        %v3172 = vpack.c.b16 %v2060, %v2056
        %v3173 = vpack.c.b16 %v2061, %v2057
        %v3174 = vpack.c.b16 %v2062, %v2058
        %v3175 = vpack.c.b16 %v2063, %v2059
        %v3176 = vpack.c.b16 %v2068, %v2064
        %v3177 = vpack.c.b16 %v2069, %v2065
        %v3178 = vpack.c.b16 %v2070, %v2066
        %v3179 = vpack.c.b16 %v2071, %v2067
        %v3180 = vpack.c.b16 %v2076, %v2072
        %v3181 = vpack.c.b16 %v2077, %v2073
        %v3182 = vpack.c.b16 %v2078, %v2074
        %v3183 = vpack.c.b16 %v2079, %v2075
        %v3184 = vpack.c.b16 %v2084, %v2080
        %v3185 = vpack.c.b16 %v2085, %v2081
        %v3186 = vpack.c.b16 %v2086, %v2082
        %v3187 = vpack.c.b16 %v2087, %v2083
        %v3188 = vpack.c.b16 %v2092, %v2088
        %v3189 = vpack.c.b16 %v2093, %v2089
        %v3190 = vpack.c.b16 %v2094, %v2090
        %v3191 = vpack.c.b16 %v2095, %v2091
        %v3192 = vpack.c.b16 %v2100, %v2096
        %v3193 = vpack.c.b16 %v2101, %v2097
        %v3194 = vpack.c.b16 %v2102, %v2098
        %v3195 = vpack.c.b16 %v2103, %v2099
        %v3196 = vpack.c.b16 %v2108, %v2104
        %v3197 = vpack.c.b16 %v2109, %v2105
        %v3198 = vpack.c.b16 %v2110, %v2106
        %v3199 = vpack.c.b16 %v2111, %v2107
        %v3200 = vpack.c.b16 %v2116, %v2112
        %v3201 = vpack.c.b16 %v2117, %v2113
        %v3202 = vpack.c.b16 %v2118, %v2114
        %v3203 = vpack.c.b16 %v2119, %v2115
        %v3204 = vpack.c.b16 %v2124, %v2120
        %v3205 = vpack.c.b16 %v2125, %v2121
        %v3206 = vpack.c.b16 %v2126, %v2122
        %v3207 = vpack.c.b16 %v2127, %v2123
        %v3208 = vpack.c.b16 %v2132, %v2128
        %v3209 = vpack.c.b16 %v2133, %v2129
        %v3210 = vpack.c.b16 %v2134, %v2130
        %v3211 = vpack.c.b16 %v2135, %v2131
        %v3212 = vpack.c.b16 %v2140, %v2136
        %v3213 = vpack.c.b16 %v2141, %v2137
        %v3214 = vpack.c.b16 %v2142, %v2138
        %v3215 = vpack.c.b16 %v2143, %v2139
        %v3216 = vpack.c.b16 %v2148, %v2144
        %v3217 = vpack.c.b16 %v2149, %v2145
        %v3218 = vpack.c.b16 %v2150, %v2146
        %v3219 = vpack.c.b16 %v2151, %v2147
        %v3220 = vpack.c.b16 %v2156, %v2152
        %v3221 = vpack.c.b16 %v2157, %v2153
        %v3222 = vpack.c.b16 %v2158, %v2154
        %v3223 = vpack.c.b16 %v2159, %v2155
        %v3224 = vpack.c.b16 %v2164, %v2160
        %v3225 = vpack.c.b16 %v2165, %v2161
        %v3226 = vpack.c.b16 %v2166, %v2162
        %v3227 = vpack.c.b16 %v2167, %v2163
        %v3228 = vpack.c.b16 %v2172, %v2168
        %v3229 = vpack.c.b16 %v2173, %v2169
        %v3230 = vpack.c.b16 %v2174, %v2170
        %v3231 = vpack.c.b16 %v2175, %v2171
        %v3232 = vpack.c.b16 %v2180, %v2176
        %v3233 = vpack.c.b16 %v2181, %v2177
        %v3234 = vpack.c.b16 %v2182, %v2178
        %v3235 = vpack.c.b16 %v2183, %v2179
        %v3236 = vpack.c.b16 %v2188, %v2184
        %v3237 = vpack.c.b16 %v2189, %v2185
        %v3238 = vpack.c.b16 %v2190, %v2186
        %v3239 = vpack.c.b16 %v2191, %v2187
        %v3240 = vpack.c.b16 %v2196, %v2192
        %v3241 = vpack.c.b16 %v2197, %v2193
        %v3242 = vpack.c.b16 %v2198, %v2194
        %v3243 = vpack.c.b16 %v2199, %v2195
        %v3244 = vpack.c.b16 %v2204, %v2200
        %v3245 = vpack.c.b16 %v2205, %v2201
        %v3246 = vpack.c.b16 %v2206, %v2202
        %v3247 = vpack.c.b16 %v2207, %v2203
        %v3248 = vpack.c.b16 %v2212, %v2208
        %v3249 = vpack.c.b16 %v2213, %v2209
        %v3250 = vpack.c.b16 %v2214, %v2210
        %v3251 = vpack.c.b16 %v2215, %v2211
        %v3252 = vpack.c.b16 %v2220, %v2216
        %v3253 = vpack.c.b16 %v2221, %v2217
        %v3254 = vpack.c.b16 %v2222, %v2218
        %v3255 = vpack.c.b16 %v2223, %v2219
        %v3256 = vpack.c.b16 %v2228, %v2224
        %v3257 = vpack.c.b16 %v2229, %v2225
        %v3258 = vpack.c.b16 %v2230, %v2226
        %v3259 = vpack.c.b16 %v2231, %v2227
        %v3260 = vpack.c.b16 %v2236, %v2232
        %v3261 = vpack.c.b16 %v2237, %v2233
        %v3262 = vpack.c.b16 %v2238, %v2234
        %v3263 = vpack.c.b16 %v2239, %v2235
        %v3264 = vpack.c.b16 %v2244, %v2240
        %v3265 = vpack.c.b16 %v2245, %v2241
        %v3266 = vpack.c.b16 %v2246, %v2242
        %v3267 = vpack.c.b16 %v2247, %v2243
        %v3268 = vpack.c.b16 %v2252, %v2248
        %v3269 = vpack.c.b16 %v2253, %v2249
        %v3270 = vpack.c.b16 %v2254, %v2250
        %v3271 = vpack.c.b16 %v2255, %v2251
        %v3272 = vpack.c.b16 %v2260, %v2256
        %v3273 = vpack.c.b16 %v2261, %v2257
        %v3274 = vpack.c.b16 %v2262, %v2258
        %v3275 = vpack.c.b16 %v2263, %v2259
        %v3276 = vpack.c.b16 %v2268, %v2264
        %v3277 = vpack.c.b16 %v2269, %v2265
        %v3278 = vpack.c.b16 %v2270, %v2266
        %v3279 = vpack.c.b16 %v2271, %v2267
        %v3280 = vpack.c.b16 %v2276, %v2272
        %v3281 = vpack.c.b16 %v2277, %v2273
        %v3282 = vpack.c.b16 %v2278, %v2274
        %v3283 = vpack.c.b16 %v2279, %v2275
        %v3284 = vpack.c.b16 %v2284, %v2280
        %v3285 = vpack.c.b16 %v2285, %v2281
        %v3286 = vpack.c.b16 %v2286, %v2282
        %v3287 = vpack.c.b16 %v2287, %v2283
        %v3288 = vpack.c.b16 %v2292, %v2288
        %v3289 = vpack.c.b16 %v2293, %v2289
        %v3290 = vpack.c.b16 %v2294, %v2290
        %v3291 = vpack.c.b16 %v2295, %v2291
        %v3292 = vpack.c.b16 %v2300, %v2296
        %v3293 = vpack.c.b16 %v2301, %v2297
        %v3294 = vpack.c.b16 %v2302, %v2298
        %v3295 = vpack.c.b16 %v2303, %v2299
        %v3296 = vpack.c.b16 %v2308, %v2304
        %v3297 = vpack.c.b16 %v2309, %v2305
        %v3298 = vpack.c.b16 %v2310, %v2306
        %v3299 = vpack.c.b16 %v2311, %v2307
        %v3300 = vpack.c.b16 %v2316, %v2312
        %v3301 = vpack.c.b16 %v2317, %v2313
        %v3302 = vpack.c.b16 %v2318, %v2314
        %v3303 = vpack.c.b16 %v2319, %v2315
        %v3304 = vpack.c.b16 %v2324, %v2320
        %v3305 = vpack.c.b16 %v2325, %v2321
        %v3306 = vpack.c.b16 %v2326, %v2322
        %v3307 = vpack.c.b16 %v2327, %v2323
        %v3308 = vpack.c.b16 %v2332, %v2328
        %v3309 = vpack.c.b16 %v2333, %v2329
        %v3310 = vpack.c.b16 %v2334, %v2330
        %v3311 = vpack.c.b16 %v2335, %v2331
        %v3312 = vpack.c.b16 %v2340, %v2336
        %v3313 = vpack.c.b16 %v2341, %v2337
        %v3314 = vpack.c.b16 %v2342, %v2338
        %v3315 = vpack.c.b16 %v2343, %v2339
        %v3316 = vpack.c.b16 %v2348, %v2344
        %v3317 = vpack.c.b16 %v2349, %v2345
        %v3318 = vpack.c.b16 %v2350, %v2346
        %v3319 = vpack.c.b16 %v2351, %v2347
        %v3320 = vpack.c.b16 %v2356, %v2352
        %v3321 = vpack.c.b16 %v2357, %v2353
        %v3322 = vpack.c.b16 %v2358, %v2354
        %v3323 = vpack.c.b16 %v2359, %v2355
        %v3324 = vpack.c.b16 %v2364, %v2360
        %v3325 = vpack.c.b16 %v2365, %v2361
        %v3326 = vpack.c.b16 %v2366, %v2362
        %v3327 = vpack.c.b16 %v2367, %v2363
        %v3328 = vpack.c.b16 %v2372, %v2368
        %v3329 = vpack.c.b16 %v2373, %v2369
        %v3330 = vpack.c.b16 %v2374, %v2370
        %v3331 = vpack.c.b16 %v2375, %v2371
        %v3332 = vpack.c.b16 %v2380, %v2376
        %v3333 = vpack.c.b16 %v2381, %v2377
        %v3334 = vpack.c.b16 %v2382, %v2378
        %v3335 = vpack.c.b16 %v2383, %v2379
        %v3336 = vpack.c.b16 %v2388, %v2384
        %v3337 = vpack.c.b16 %v2389, %v2385
        %v3338 = vpack.c.b16 %v2390, %v2386
        %v3339 = vpack.c.b16 %v2391, %v2387
        %v3340 = vpack.c.b16 %v2396, %v2392
        %v3341 = vpack.c.b16 %v2397, %v2393
        %v3342 = vpack.c.b16 %v2398, %v2394
        %v3343 = vpack.c.b16 %v2399, %v2395
        %v3344 = vpack.c.b16 %v2404, %v2400
        %v3345 = vpack.c.b16 %v2405, %v2401
        %v3346 = vpack.c.b16 %v2406, %v2402
        %v3347 = vpack.c.b16 %v2407, %v2403
        %v3348 = vpack.c.b16 %v2412, %v2408
        %v3349 = vpack.c.b16 %v2413, %v2409
        %v3350 = vpack.c.b16 %v2414, %v2410
        %v3351 = vpack.c.b16 %v2415, %v2411
        %v3352 = vpack.c.b16 %v2420, %v2416
        %v3353 = vpack.c.b16 %v2421, %v2417
        %v3354 = vpack.c.b16 %v2422, %v2418
        %v3355 = vpack.c.b16 %v2423, %v2419
        %v3356 = vpack.c.b16 %v2428, %v2424
        %v3357 = vpack.c.b16 %v2429, %v2425
        %v3358 = vpack.c.b16 %v2430, %v2426
        %v3359 = vpack.c.b16 %v2431, %v2427
        %v3360 = vpack.c.b16 %v2436, %v2432
        %v3361 = vpack.c.b16 %v2437, %v2433
        %v3362 = vpack.c.b16 %v2438, %v2434
        %v3363 = vpack.c.b16 %v2439, %v2435
        %v3364 = vpack.c.b16 %v2444, %v2440
        %v3365 = vpack.c.b16 %v2445, %v2441
        %v3366 = vpack.c.b16 %v2446, %v2442
        %v3367 = vpack.c.b16 %v2447, %v2443
        %v3368 = vpack.c.b16 %v2452, %v2448
        %v3369 = vpack.c.b16 %v2453, %v2449
        %v3370 = vpack.c.b16 %v2454, %v2450
        %v3371 = vpack.c.b16 %v2455, %v2451
        %v3372 = vpack.c.b16 %v2460, %v2456
        %v3373 = vpack.c.b16 %v2461, %v2457
        %v3374 = vpack.c.b16 %v2462, %v2458
        %v3375 = vpack.c.b16 %v2463, %v2459
        %v3376 = vpack.c.b16 %v2468, %v2464
        %v3377 = vpack.c.b16 %v2469, %v2465
        %v3378 = vpack.c.b16 %v2470, %v2466
        %v3379 = vpack.c.b16 %v2471, %v2467
        %v3380 = vpack.c.b16 %v2476, %v2472
        %v3381 = vpack.c.b16 %v2477, %v2473
        %v3382 = vpack.c.b16 %v2478, %v2474
        %v3383 = vpack.c.b16 %v2479, %v2475
        %v3384 = vpack.c.b16 %v2484, %v2480
        %v3385 = vpack.c.b16 %v2485, %v2481
        %v3386 = vpack.c.b16 %v2486, %v2482
        %v3387 = vpack.c.b16 %v2487, %v2483
        %v3388 = vpack.c.b16 %v2492, %v2488
        %v3389 = vpack.c.b16 %v2493, %v2489
        %v3390 = vpack.c.b16 %v2494, %v2490
        %v3391 = vpack.c.b16 %v2495, %v2491
        %v3392 = vpack.c.b16 %v2500, %v2496
        %v3393 = vpack.c.b16 %v2501, %v2497
        %v3394 = vpack.c.b16 %v2502, %v2498
        %v3395 = vpack.c.b16 %v2503, %v2499
        %v3396 = vpack.c.b16 %v2508, %v2504
        %v3397 = vpack.c.b16 %v2509, %v2505
        %v3398 = vpack.c.b16 %v2510, %v2506
        %v3399 = vpack.c.b16 %v2511, %v2507
        %v3400 = vpack.c.b16 %v2516, %v2512
        %v3401 = vpack.c.b16 %v2517, %v2513
        %v3402 = vpack.c.b16 %v2518, %v2514
        %v3403 = vpack.c.b16 %v2519, %v2515
        %v3404 = vpack.c.b16 %v2524, %v2520
        %v3405 = vpack.c.b16 %v2525, %v2521
        %v3406 = vpack.c.b16 %v2526, %v2522
        %v3407 = vpack.c.b16 %v2527, %v2523
        %v3408 = vpack.c.b16 %v2532, %v2528
        %v3409 = vpack.c.b16 %v2533, %v2529
        %v3410 = vpack.c.b16 %v2534, %v2530
        %v3411 = vpack.c.b16 %v2535, %v2531
        %v3412 = vpack.c.b16 %v2540, %v2536
        %v3413 = vpack.c.b16 %v2541, %v2537
        %v3414 = vpack.c.b16 %v2542, %v2538
        %v3415 = vpack.c.b16 %v2543, %v2539
        %v3416 = vpack.c.b16 %v2548, %v2544
        %v3417 = vpack.c.b16 %v2549, %v2545
        %v3418 = vpack.c.b16 %v2550, %v2546
        %v3419 = vpack.c.b16 %v2551, %v2547
        %v3420 = vpack.c.b16 %v2556, %v2552
        %v3421 = vpack.c.b16 %v2557, %v2553
        %v3422 = vpack.c.b16 %v2558, %v2554
        %v3423 = vpack.c.b16 %v2559, %v2555
        %v3424 = vpack.c.b16 %v2564, %v2560
        %v3425 = vpack.c.b16 %v2565, %v2561
        %v3426 = vpack.c.b16 %v2566, %v2562
        %v3427 = vpack.c.b16 %v2567, %v2563
        %v3428 = vpack.c.b16 %v2572, %v2568
        %v3429 = vpack.c.b16 %v2573, %v2569
        %v3430 = vpack.c.b16 %v2574, %v2570
        %v3431 = vpack.c.b16 %v2575, %v2571
        %v3432 = vpack.c.b16 %v2580, %v2576
        %v3433 = vpack.c.b16 %v2581, %v2577
        %v3434 = vpack.c.b16 %v2582, %v2578
        %v3435 = vpack.c.b16 %v2583, %v2579
        %v3436 = vpack.c.b16 %v2588, %v2584
        %v3437 = vpack.c.b16 %v2589, %v2585
        %v3438 = vpack.c.b16 %v2590, %v2586
        %v3439 = vpack.c.b16 %v2591, %v2587
        %v3440 = vpack.c.b16 %v2596, %v2592
        %v3441 = vpack.c.b16 %v2597, %v2593
        %v3442 = vpack.c.b16 %v2598, %v2594
        %v3443 = vpack.c.b16 %v2599, %v2595
        %v3444 = vpack.c.b16 %v2604, %v2600
        %v3445 = vpack.c.b16 %v2605, %v2601
        %v3446 = vpack.c.b16 %v2606, %v2602
        %v3447 = vpack.c.b16 %v2607, %v2603
        %v3448 = vpack.c.b16 %v2612, %v2608
        %v3449 = vpack.c.b16 %v2613, %v2609
        %v3450 = vpack.c.b16 %v2614, %v2610
        %v3451 = vpack.c.b16 %v2615, %v2611
        %v3452 = vpack.c.b16 %v2620, %v2616
        %v3453 = vpack.c.b16 %v2621, %v2617
        %v3454 = vpack.c.b16 %v2622, %v2618
        %v3455 = vpack.c.b16 %v2623, %v2619
        %v3456 = vpack.c.b16 %v2628, %v2624
        %v3457 = vpack.c.b16 %v2629, %v2625
        %v3458 = vpack.c.b16 %v2630, %v2626
        %v3459 = vpack.c.b16 %v2631, %v2627
        %v3460 = vpack.c.b16 %v2636, %v2632
        %v3461 = vpack.c.b16 %v2637, %v2633
        %v3462 = vpack.c.b16 %v2638, %v2634
        %v3463 = vpack.c.b16 %v2639, %v2635
        %v3464 = vpack.c.b16 %v2644, %v2640
        %v3465 = vpack.c.b16 %v2645, %v2641
        %v3466 = vpack.c.b16 %v2646, %v2642
        %v3467 = vpack.c.b16 %v2647, %v2643
        %v3468 = vpack.c.b16 %v2652, %v2648
        %v3469 = vpack.c.b16 %v2653, %v2649
        %v3470 = vpack.c.b16 %v2654, %v2650
        %v3471 = vpack.c.b16 %v2655, %v2651
        %v3472 = vpack.c.b16 %v2660, %v2656
        %v3473 = vpack.c.b16 %v2661, %v2657
        %v3474 = vpack.c.b16 %v2662, %v2658
        %v3475 = vpack.c.b16 %v2663, %v2659
        %v3476 = vpack.c.b16 %v2668, %v2664
        %v3477 = vpack.c.b16 %v2669, %v2665
        %v3478 = vpack.c.b16 %v2670, %v2666
        %v3479 = vpack.c.b16 %v2671, %v2667
        %v3480 = vpack.c.b16 %v2676, %v2672
        %v3481 = vpack.c.b16 %v2677, %v2673
        %v3482 = vpack.c.b16 %v2678, %v2674
        %v3483 = vpack.c.b16 %v2679, %v2675
        %v3484 = vpack.c.b16 %v2684, %v2680
        %v3485 = vpack.c.b16 %v2685, %v2681
        %v3486 = vpack.c.b16 %v2686, %v2682
        %v3487 = vpack.c.b16 %v2687, %v2683
        %v3488 = vpack.c.b16 %v2692, %v2688
        %v3489 = vpack.c.b16 %v2693, %v2689
        %v3490 = vpack.c.b16 %v2694, %v2690
        %v3491 = vpack.c.b16 %v2695, %v2691
        %v3492 = vpack.c.b16 %v2700, %v2696
        %v3493 = vpack.c.b16 %v2701, %v2697
        %v3494 = vpack.c.b16 %v2702, %v2698
        %v3495 = vpack.c.b16 %v2703, %v2699
        %v3496 = vpack.c.b16 %v2708, %v2704
        %v3497 = vpack.c.b16 %v2709, %v2705
        %v3498 = vpack.c.b16 %v2710, %v2706
        %v3499 = vpack.c.b16 %v2711, %v2707
        %v3500 = vpack.c.b16 %v2716, %v2712
        %v3501 = vpack.c.b16 %v2717, %v2713
        %v3502 = vpack.c.b16 %v2718, %v2714
        %v3503 = vpack.c.b16 %v2719, %v2715
        %v3504 = vpack.c.b16 %v2724, %v2720
        %v3505 = vpack.c.b16 %v2725, %v2721
        %v3506 = vpack.c.b16 %v2726, %v2722
        %v3507 = vpack.c.b16 %v2727, %v2723
        %v3508 = vpack.c.b16 %v2732, %v2728
        %v3509 = vpack.c.b16 %v2733, %v2729
        %v3510 = vpack.c.b16 %v2734, %v2730
        %v3511 = vpack.c.b16 %v2735, %v2731
        %v3512 = vpack.c.b16 %v2740, %v2736
        %v3513 = vpack.c.b16 %v2741, %v2737
        %v3514 = vpack.c.b16 %v2742, %v2738
        %v3515 = vpack.c.b16 %v2743, %v2739
        %v3516 = vpack.c.b16 %v2748, %v2744
        %v3517 = vpack.c.b16 %v2749, %v2745
        %v3518 = vpack.c.b16 %v2750, %v2746
        %v3519 = vpack.c.b16 %v2751, %v2747
        %v3520 = vpack.c.b16 %v2756, %v2752
        %v3521 = vpack.c.b16 %v2757, %v2753
        %v3522 = vpack.c.b16 %v2758, %v2754
        %v3523 = vpack.c.b16 %v2759, %v2755
        %v3524 = vpack.c.b16 %v2764, %v2760
        %v3525 = vpack.c.b16 %v2765, %v2761
        %v3526 = vpack.c.b16 %v2766, %v2762
        %v3527 = vpack.c.b16 %v2767, %v2763
        %v3528 = vpack.c.b16 %v2772, %v2768
        %v3529 = vpack.c.b16 %v2773, %v2769
        %v3530 = vpack.c.b16 %v2774, %v2770
        %v3531 = vpack.c.b16 %v2775, %v2771
        %v3532 = vpack.c.b16 %v2780, %v2776
        %v3533 = vpack.c.b16 %v2781, %v2777
        %v3534 = vpack.c.b16 %v2782, %v2778
        %v3535 = vpack.c.b16 %v2783, %v2779
        %v3536 = vpack.c.b16 %v2788, %v2784
        %v3537 = vpack.c.b16 %v2789, %v2785
        %v3538 = vpack.c.b16 %v2790, %v2786
        %v3539 = vpack.c.b16 %v2791, %v2787
        %v3540 = vpack.c.b16 %v2796, %v2792
        %v3541 = vpack.c.b16 %v2797, %v2793
        %v3542 = vpack.c.b16 %v2798, %v2794
        %v3543 = vpack.c.b16 %v2799, %v2795
        %v3544 = vpack.c.b16 %v2804, %v2800
        %v3545 = vpack.c.b16 %v2805, %v2801
        %v3546 = vpack.c.b16 %v2806, %v2802
        %v3547 = vpack.c.b16 %v2807, %v2803
        %v3548 = vpack.c.b16 %v2812, %v2808
        %v3549 = vpack.c.b16 %v2813, %v2809
        %v3550 = vpack.c.b16 %v2814, %v2810
        %v3551 = vpack.c.b16 %v2815, %v2811
        %v3552 = vpack.c.b16 %v2820, %v2816
        %v3553 = vpack.c.b16 %v2821, %v2817
        %v3554 = vpack.c.b16 %v2822, %v2818
        %v3555 = vpack.c.b16 %v2823, %v2819
        %v3556 = vpack.c.b16 %v2828, %v2824
        %v3557 = vpack.c.b16 %v2829, %v2825
        %v3558 = vpack.c.b16 %v2830, %v2826
        %v3559 = vpack.c.b16 %v2831, %v2827
        %v3560 = vpack.c.b16 %v2836, %v2832
        %v3561 = vpack.c.b16 %v2837, %v2833
        %v3562 = vpack.c.b16 %v2838, %v2834
        %v3563 = vpack.c.b16 %v2839, %v2835
        %v3564 = vpack.c.b16 %v2844, %v2840
        %v3565 = vpack.c.b16 %v2845, %v2841
        %v3566 = vpack.c.b16 %v2846, %v2842
        %v3567 = vpack.c.b16 %v2847, %v2843
        %v3568 = vpack.c.b16 %v2852, %v2848
        %v3569 = vpack.c.b16 %v2853, %v2849
        %v3570 = vpack.c.b16 %v2854, %v2850
        %v3571 = vpack.c.b16 %v2855, %v2851
        %v3572 = vpack.c.b16 %v2860, %v2856
        %v3573 = vpack.c.b16 %v2861, %v2857
        %v3574 = vpack.c.b16 %v2862, %v2858
        %v3575 = vpack.c.b16 %v2863, %v2859
        %v3576 = vpack.c.b16 %v2868, %v2864
        %v3577 = vpack.c.b16 %v2869, %v2865
        %v3578 = vpack.c.b16 %v2870, %v2866
        %v3579 = vpack.c.b16 %v2871, %v2867
        %v3580 = vpack.c.b16 %v2876, %v2872
        %v3581 = vpack.c.b16 %v2877, %v2873
        %v3582 = vpack.c.b16 %v2878, %v2874
        %v3583 = vpack.c.b16 %v2879, %v2875
        %v3584 = vpack.c.b16 %v2884, %v2880
        %v3585 = vpack.c.b16 %v2885, %v2881
        %v3586 = vpack.c.b16 %v2886, %v2882
        %v3587 = vpack.c.b16 %v2887, %v2883
        %v3588 = vpack.c.b16 %v2892, %v2888
        %v3589 = vpack.c.b16 %v2893, %v2889
        %v3590 = vpack.c.b16 %v2894, %v2890
        %v3591 = vpack.c.b16 %v2895, %v2891
        %v3592 = vpack.c.b16 %v2900, %v2896
        %v3593 = vpack.c.b16 %v2901, %v2897
        %v3594 = vpack.c.b16 %v2902, %v2898
        %v3595 = vpack.c.b16 %v2903, %v2899
        %v3596 = vpack.c.b16 %v2908, %v2904
        %v3597 = vpack.c.b16 %v2909, %v2905
        %v3598 = vpack.c.b16 %v2910, %v2906
        %v3599 = vpack.c.b16 %v2911, %v2907
        %v3600 = vpack.c.b16 %v2916, %v2912
        %v3601 = vpack.c.b16 %v2917, %v2913
        %v3602 = vpack.c.b16 %v2918, %v2914
        %v3603 = vpack.c.b16 %v2919, %v2915
        %v3604 = vpack.c.b16 %v2924, %v2920
        %v3605 = vpack.c.b16 %v2925, %v2921
        %v3606 = vpack.c.b16 %v2926, %v2922
        %v3607 = vpack.c.b16 %v2927, %v2923
        %v3608 = vpack.c.b16 %v2932, %v2928
        %v3609 = vpack.c.b16 %v2933, %v2929
        %v3610 = vpack.c.b16 %v2934, %v2930
        %v3611 = vpack.c.b16 %v2935, %v2931
        %v3612 = vpack.c.b16 %v2940, %v2936
        %v3613 = vpack.c.b16 %v2941, %v2937
        %v3614 = vpack.c.b16 %v2942, %v2938
        %v3615 = vpack.c.b16 %v2943, %v2939
        %v3616 = vpack.c.b16 %v2948, %v2944
        %v3617 = vpack.c.b16 %v2949, %v2945
        %v3618 = vpack.c.b16 %v2950, %v2946
        %v3619 = vpack.c.b16 %v2951, %v2947
        %v3620 = vpack.c.b16 %v2956, %v2952
        %v3621 = vpack.c.b16 %v2957, %v2953
        %v3622 = vpack.c.b16 %v2958, %v2954
        %v3623 = vpack.c.b16 %v2959, %v2955
        %v3624 = vpack.c.b16 %v2964, %v2960
        %v3625 = vpack.c.b16 %v2965, %v2961
        %v3626 = vpack.c.b16 %v2966, %v2962
        %v3627 = vpack.c.b16 %v2967, %v2963
        %v3628 = vpack.c.b16 %v2972, %v2968
        %v3629 = vpack.c.b16 %v2973, %v2969
        %v3630 = vpack.c.b16 %v2974, %v2970
        %v3631 = vpack.c.b16 %v2975, %v2971
        %v3632 = vpack.c.b16 %v2980, %v2976
        %v3633 = vpack.c.b16 %v2981, %v2977
        %v3634 = vpack.c.b16 %v2982, %v2978
        %v3635 = vpack.c.b16 %v2983, %v2979
        %v3636 = vpack.c.b16 %v2988, %v2984
        %v3637 = vpack.c.b16 %v2989, %v2985
        %v3638 = vpack.c.b16 %v2990, %v2986
        %v3639 = vpack.c.b16 %v2991, %v2987
        %v3640 = vpack.c.b16 %v2996, %v2992
        %v3641 = vpack.c.b16 %v2997, %v2993
        %v3642 = vpack.c.b16 %v2998, %v2994
        %v3643 = vpack.c.b16 %v2999, %v2995
        %v3644 = vpack.c.b16 %v3004, %v3000
        %v3645 = vpack.c.b16 %v3005, %v3001
        %v3646 = vpack.c.b16 %v3006, %v3002
        %v3647 = vpack.c.b16 %v3007, %v3003
        %4288 = vmatprep.subr.bf16.mxu0 %v3009
        %4289 = vmatpush1.bf16.msra.mxu0 %v3008
        %4290 = vmatprep.subr.bf16.mxu0 %v3013
        %4291 = vmatpush1.bf16.msra.mxu0 %v3012
        %4292 = vmatprep.subr.bf16.mxu0 %v3017
        %4293 = vmatpush1.bf16.msra.mxu0 %v3016
        %4294 = vmatprep.subr.bf16.mxu0 %v3021
        %4295 = vmatpush1.bf16.msra.mxu0 %v3020
        %4296 = vmatprep.subr.bf16.mxu0 %v3025
        %4297 = vmatpush1.bf16.msra.mxu0 %v3024
        %4298 = vmatprep.subr.bf16.mxu0 %v3029
        %4299 = vmatpush1.bf16.msra.mxu0 %v3028
        %4300 = vmatprep.subr.bf16.mxu0 %v3033
        %4301 = vmatpush1.bf16.msra.mxu0 %v3032
        %4302 = vmatprep.subr.bf16.mxu0 %v3037
        %4303 = vmatpush1.bf16.msra.mxu0 %v3036
        %4304 = vmatprep.subr.bf16.mxu0 %v3041
        %4305 = vmatpush1.bf16.msra.mxu0 %v3040
        %4306 = vmatprep.subr.bf16.mxu0 %v3045
        %4307 = vmatpush1.bf16.msra.mxu0 %v3044
        %4308 = vmatprep.subr.bf16.mxu0 %v3049
        %4309 = vmatpush1.bf16.msra.mxu0 %v3048
        %4310 = vmatprep.subr.bf16.mxu0 %v3053
        %4311 = vmatpush1.bf16.msra.mxu0 %v3052
        %4312 = vmatprep.subr.bf16.mxu0 %v3057
        %4313 = vmatpush1.bf16.msra.mxu0 %v3056
        %4314 = vmatprep.subr.bf16.mxu0 %v3061
        %4315 = vmatpush1.bf16.msra.mxu0 %v3060
        %4316 = vmatprep.subr.bf16.mxu0 %v3065
        %4317 = vmatpush1.bf16.msra.mxu0 %v3064
        %4318 = vmatprep.subr.bf16.mxu0 %v3069
        %4319 = vmatpush1.bf16.msra.mxu0 %v3068
        %4320 = vmatprep.mubr.bf16.mxu0 %v1009
        %4321 = vmatmul.mubr.bf16.gmra.mrb[0].mxu0 %v1008
        %v4322 = vpop.f32.mrb[0].mxu0
        %v4323 = vadd.f32 %v901, %v4322
        %v4324 = vpop.f32.mrb[0].mxu0
        %v4325 = vadd.f32 %v905, %v4324
        %v4326 = vpop.f32.mrb[0].mxu0
        %v4327 = vadd.f32 %v901, %v4326
        %v4328 = vpop.f32.mrb[0].mxu0
        %v4329 = vadd.f32 %v905, %v4328
        %4330 = vmatprep.mubr.bf16.mxu0 %v1029
        %4331 = vmatmul.mubr.bf16.gmra.mrb[0].mxu0 %v1028
        %v4332 = vpop.f32.mrb[0].mxu0
        %v4333 = vadd.f32 %v901, %v4332
        %v4334 = vpop.f32.mrb[0].mxu0
        %v4335 = vadd.f32 %v905, %v4334
        %v4336 = vpop.f32.mrb[0].mxu0
        %v4337 = vpop.f32.mrb[0].mxu0
        %4338 = vdwg.mxu0
        %4339 = vmatprep.subr.bf16.mxu0 %v3073
        %4340 = vmatpush1.bf16.msra.mxu0 %v3072
        %4341 = vmatprep.subr.bf16.mxu0 %v3077
        %4342 = vmatpush1.bf16.msra.mxu0 %v3076
        %4343 = vmatprep.subr.bf16.mxu0 %v3081
        %4344 = vmatpush1.bf16.msra.mxu0 %v3080
        %4345 = vmatprep.subr.bf16.mxu0 %v3085
        %4346 = vmatpush1.bf16.msra.mxu0 %v3084
        %4347 = vmatprep.subr.bf16.mxu0 %v3089
        %4348 = vmatpush1.bf16.msra.mxu0 %v3088
        %4349 = vmatprep.subr.bf16.mxu0 %v3093
        %4350 = vmatpush1.bf16.msra.mxu0 %v3092
        %4351 = vmatprep.subr.bf16.mxu0 %v3097
        %4352 = vmatpush1.bf16.msra.mxu0 %v3096
        %4353 = vmatprep.subr.bf16.mxu0 %v3101
        %4354 = vmatpush1.bf16.msra.mxu0 %v3100
        %4355 = vmatprep.subr.bf16.mxu0 %v3105
        %4356 = vmatpush1.bf16.msra.mxu0 %v3104
        %4357 = vmatprep.subr.bf16.mxu0 %v3109
        %4358 = vmatpush1.bf16.msra.mxu0 %v3108
        %4359 = vmatprep.subr.bf16.mxu0 %v3113
        %4360 = vmatpush1.bf16.msra.mxu0 %v3112
        %4361 = vmatprep.subr.bf16.mxu0 %v3117
        %4362 = vmatpush1.bf16.msra.mxu0 %v3116
        %4363 = vmatprep.subr.bf16.mxu0 %v3121
        %4364 = vmatpush1.bf16.msra.mxu0 %v3120
        %4365 = vmatprep.subr.bf16.mxu0 %v3125
        %4366 = vmatpush1.bf16.msra.mxu0 %v3124
        %4367 = vmatprep.subr.bf16.mxu0 %v3129
        %4368 = vmatpush1.bf16.msra.mxu0 %v3128
        %4369 = vmatprep.subr.bf16.mxu0 %v3133
        %4370 = vmatpush1.bf16.msra.mxu0 %v3132
        %4371 = vmatprep.mubr.bf16.mxu0 %v1011
        %4372 = vmatmul.mubr.bf16.gmra.mrb[0].mxu0 %v1010
        %v4373 = vpop.f32.mrb[0].mxu0
        %v4374 = vadd.f32 %v4323, %v4373
        %v4375 = vpop.f32.mrb[0].mxu0
        %v4376 = vadd.f32 %v4325, %v4375
        %v4377 = vpop.f32.mrb[0].mxu0
        %v4378 = vadd.f32 %v4327, %v4377
        %v4379 = vpop.f32.mrb[0].mxu0
        %v4380 = vadd.f32 %v4329, %v4379
        %4381 = vmatprep.mubr.bf16.mxu0 %v1031
        %4382 = vmatmul.mubr.bf16.gmra.mrb[0].mxu0 %v1030
        %v4383 = vpop.f32.mrb[0].mxu0
        %v4384 = vadd.f32 %v4333, %v4383
        %v4385 = vpop.f32.mrb[0].mxu0
        %v4386 = vadd.f32 %v4335, %v4385
        %v4387 = vpop.f32.mrb[0].mxu0
        %v4388 = vpop.f32.mrb[0].mxu0
        %4389 = vdwg.mxu0
        %4390 = vmatprep.subr.bf16.mxu0 %v3137
        %4391 = vmatpush1.bf16.msra.mxu0 %v3136
        %4392 = vmatprep.subr.bf16.mxu0 %v3141
        %4393 = vmatpush1.bf16.msra.mxu0 %v3140
        %4394 = vmatprep.subr.bf16.mxu0 %v3145
        %4395 = vmatpush1.bf16.msra.mxu0 %v3144
        %4396 = vmatprep.subr.bf16.mxu0 %v3149
        %4397 = vmatpush1.bf16.msra.mxu0 %v3148
        %4398 = vmatprep.subr.bf16.mxu0 %v3153
        %4399 = vmatpush1.bf16.msra.mxu0 %v3152
        %4400 = vmatprep.subr.bf16.mxu0 %v3157
        %4401 = vmatpush1.bf16.msra.mxu0 %v3156
        %4402 = vmatprep.subr.bf16.mxu0 %v3161
        %4403 = vmatpush1.bf16.msra.mxu0 %v3160
        %4404 = vmatprep.subr.bf16.mxu0 %v3165
        %4405 = vmatpush1.bf16.msra.mxu0 %v3164
        %4406 = vmatprep.subr.bf16.mxu0 %v3169
        %4407 = vmatpush1.bf16.msra.mxu0 %v3168
        %4408 = vmatprep.subr.bf16.mxu0 %v3173
        %4409 = vmatpush1.bf16.msra.mxu0 %v3172
        %4410 = vmatprep.subr.bf16.mxu0 %v3177
        %4411 = vmatpush1.bf16.msra.mxu0 %v3176
        %4412 = vmatprep.subr.bf16.mxu0 %v3181
        %4413 = vmatpush1.bf16.msra.mxu0 %v3180
        %4414 = vmatprep.subr.bf16.mxu0 %v3185
        %4415 = vmatpush1.bf16.msra.mxu0 %v3184
        %4416 = vmatprep.subr.bf16.mxu0 %v3189
        %4417 = vmatpush1.bf16.msra.mxu0 %v3188
        %4418 = vmatprep.subr.bf16.mxu0 %v3193
        %4419 = vmatpush1.bf16.msra.mxu0 %v3192
        %4420 = vmatprep.subr.bf16.mxu0 %v3197
        %4421 = vmatpush1.bf16.msra.mxu0 %v3196
        %4422 = vmatprep.mubr.bf16.mxu0 %v1013
        %4423 = vmatmul.mubr.bf16.gmra.mrb[0].mxu0 %v1012
        %v4424 = vpop.f32.mrb[0].mxu0
        %v4425 = vadd.f32 %v4374, %v4424
        %v4426 = vpop.f32.mrb[0].mxu0
        %v4427 = vadd.f32 %v4376, %v4426
        %v4428 = vpop.f32.mrb[0].mxu0
        %v4429 = vadd.f32 %v4378, %v4428
        %v4430 = vpop.f32.mrb[0].mxu0
        %v4431 = vadd.f32 %v4380, %v4430
        %4432 = vmatprep.mubr.bf16.mxu0 %v1033
        %4433 = vmatmul.mubr.bf16.gmra.mrb[0].mxu0 %v1032
        %v4434 = vpop.f32.mrb[0].mxu0
        %v4435 = vadd.f32 %v4384, %v4434
        %v4436 = vpop.f32.mrb[0].mxu0
        %v4437 = vadd.f32 %v4386, %v4436
        %v4438 = vpop.f32.mrb[0].mxu0
        %v4439 = vpop.f32.mrb[0].mxu0
        %4440 = vdwg.mxu0
        %4441 = vmatprep.subr.bf16.mxu0 %v3201
        %4442 = vmatpush1.bf16.msra.mxu0 %v3200
        %4443 = vmatprep.subr.bf16.mxu0 %v3205
        %4444 = vmatpush1.bf16.msra.mxu0 %v3204
        %4445 = vmatprep.subr.bf16.mxu0 %v3209
        %4446 = vmatpush1.bf16.msra.mxu0 %v3208
        %4447 = vmatprep.subr.bf16.mxu0 %v3213
        %4448 = vmatpush1.bf16.msra.mxu0 %v3212
        %4449 = vmatprep.subr.bf16.mxu0 %v3217
        %4450 = vmatpush1.bf16.msra.mxu0 %v3216
        %4451 = vmatprep.subr.bf16.mxu0 %v3221
        %4452 = vmatpush1.bf16.msra.mxu0 %v3220
        %4453 = vmatprep.subr.bf16.mxu0 %v3225
        %4454 = vmatpush1.bf16.msra.mxu0 %v3224
        %4455 = vmatprep.subr.bf16.mxu0 %v3229
        %4456 = vmatpush1.bf16.msra.mxu0 %v3228
        %4457 = vmatprep.subr.bf16.mxu0 %v3233
        %4458 = vmatpush1.bf16.msra.mxu0 %v3232
        %4459 = vmatprep.subr.bf16.mxu0 %v3237
        %4460 = vmatpush1.bf16.msra.mxu0 %v3236
        %4461 = vmatprep.subr.bf16.mxu0 %v3241
        %4462 = vmatpush1.bf16.msra.mxu0 %v3240
        %4463 = vmatprep.subr.bf16.mxu0 %v3245
        %4464 = vmatpush1.bf16.msra.mxu0 %v3244
        %4465 = vmatprep.subr.bf16.mxu0 %v3249
        %4466 = vmatpush1.bf16.msra.mxu0 %v3248
        %4467 = vmatprep.subr.bf16.mxu0 %v3253
        %4468 = vmatpush1.bf16.msra.mxu0 %v3252
        %4469 = vmatprep.subr.bf16.mxu0 %v3257
        %4470 = vmatpush1.bf16.msra.mxu0 %v3256
        %4471 = vmatprep.subr.bf16.mxu0 %v3261
        %4472 = vmatpush1.bf16.msra.mxu0 %v3260
        %4473 = vmatprep.mubr.bf16.mxu0 %v1015
        %4474 = vmatmul.mubr.bf16.gmra.mrb[0].mxu0 %v1014
        %v4475 = vpop.f32.mrb[0].mxu0
        %v4476 = vadd.f32 %v4425, %v4475
        %v4477 = vpop.f32.mrb[0].mxu0
        %v4478 = vadd.f32 %v4427, %v4477
        %v4479 = vpop.f32.mrb[0].mxu0
        %v4480 = vadd.f32 %v4429, %v4479
        %v4481 = vpop.f32.mrb[0].mxu0
        %v4482 = vadd.f32 %v4431, %v4481
        %4483 = vmatprep.mubr.bf16.mxu0 %v1035
        %4484 = vmatmul.mubr.bf16.gmra.mrb[0].mxu0 %v1034
        %v4485 = vpop.f32.mrb[0].mxu0
        %v4486 = vadd.f32 %v4435, %v4485
        %v4487 = vpop.f32.mrb[0].mxu0
        %v4488 = vadd.f32 %v4437, %v4487
        %v4489 = vpop.f32.mrb[0].mxu0
        %v4490 = vpop.f32.mrb[0].mxu0
        %4491 = vdwg.mxu0
        %4492 = vmatprep.subr.bf16.mxu0 %v3265
        %4493 = vmatpush1.bf16.msra.mxu0 %v3264
        %4494 = vmatprep.subr.bf16.mxu0 %v3269
        %4495 = vmatpush1.bf16.msra.mxu0 %v3268
        %4496 = vmatprep.subr.bf16.mxu0 %v3273
        %4497 = vmatpush1.bf16.msra.mxu0 %v3272
        %4498 = vmatprep.subr.bf16.mxu0 %v3277
        %4499 = vmatpush1.bf16.msra.mxu0 %v3276
        %4500 = vmatprep.subr.bf16.mxu0 %v3281
        %4501 = vmatpush1.bf16.msra.mxu0 %v3280
        %4502 = vmatprep.subr.bf16.mxu0 %v3285
        %4503 = vmatpush1.bf16.msra.mxu0 %v3284
        %4504 = vmatprep.subr.bf16.mxu0 %v3289
        %4505 = vmatpush1.bf16.msra.mxu0 %v3288
        %4506 = vmatprep.subr.bf16.mxu0 %v3293
        %4507 = vmatpush1.bf16.msra.mxu0 %v3292
        %4508 = vmatprep.subr.bf16.mxu0 %v3297
        %4509 = vmatpush1.bf16.msra.mxu0 %v3296
        %4510 = vmatprep.subr.bf16.mxu0 %v3301
        %4511 = vmatpush1.bf16.msra.mxu0 %v3300
        %4512 = vmatprep.subr.bf16.mxu0 %v3305
        %4513 = vmatpush1.bf16.msra.mxu0 %v3304
        %4514 = vmatprep.subr.bf16.mxu0 %v3309
        %4515 = vmatpush1.bf16.msra.mxu0 %v3308
        %4516 = vmatprep.subr.bf16.mxu0 %v3313
        %4517 = vmatpush1.bf16.msra.mxu0 %v3312
        %4518 = vmatprep.subr.bf16.mxu0 %v3317
        %4519 = vmatpush1.bf16.msra.mxu0 %v3316
        %4520 = vmatprep.subr.bf16.mxu0 %v3321
        %4521 = vmatpush1.bf16.msra.mxu0 %v3320
        %4522 = vmatprep.subr.bf16.mxu0 %v3325
        %4523 = vmatpush1.bf16.msra.mxu0 %v3324
        %4524 = vmatprep.mubr.bf16.mxu0 %v1017
        %4525 = vmatmul.mubr.bf16.gmra.mrb[0].mxu0 %v1016
        %v4526 = vpop.f32.mrb[0].mxu0
        %v4527 = vadd.f32 %v4476, %v4526
        %v4528 = vpop.f32.mrb[0].mxu0
        %v4529 = vadd.f32 %v4478, %v4528
        %v4530 = vpop.f32.mrb[0].mxu0
        %v4531 = vadd.f32 %v4480, %v4530
        %v4532 = vpop.f32.mrb[0].mxu0
        %v4533 = vadd.f32 %v4482, %v4532
        %4534 = vmatprep.mubr.bf16.mxu0 %v1037
        %4535 = vmatmul.mubr.bf16.gmra.mrb[0].mxu0 %v1036
        %v4536 = vpop.f32.mrb[0].mxu0
        %v4537 = vadd.f32 %v4486, %v4536
        %v4538 = vpop.f32.mrb[0].mxu0
        %v4539 = vadd.f32 %v4488, %v4538
        %v4540 = vpop.f32.mrb[0].mxu0
        %v4541 = vpop.f32.mrb[0].mxu0
        %4542 = vdwg.mxu0
        %4543 = vmatprep.subr.bf16.mxu0 %v3329
        %4544 = vmatpush1.bf16.msra.mxu0 %v3328
        %4545 = vmatprep.subr.bf16.mxu0 %v3333
        %4546 = vmatpush1.bf16.msra.mxu0 %v3332
        %4547 = vmatprep.subr.bf16.mxu0 %v3337
        %4548 = vmatpush1.bf16.msra.mxu0 %v3336
        %4549 = vmatprep.subr.bf16.mxu0 %v3341
        %4550 = vmatpush1.bf16.msra.mxu0 %v3340
        %4551 = vmatprep.subr.bf16.mxu0 %v3345
        %4552 = vmatpush1.bf16.msra.mxu0 %v3344
        %4553 = vmatprep.subr.bf16.mxu0 %v3349
        %4554 = vmatpush1.bf16.msra.mxu0 %v3348
        %4555 = vmatprep.subr.bf16.mxu0 %v3353
        %4556 = vmatpush1.bf16.msra.mxu0 %v3352
        %4557 = vmatprep.subr.bf16.mxu0 %v3357
        %4558 = vmatpush1.bf16.msra.mxu0 %v3356
        %4559 = vmatprep.subr.bf16.mxu0 %v3361
        %4560 = vmatpush1.bf16.msra.mxu0 %v3360
        %4561 = vmatprep.subr.bf16.mxu0 %v3365
        %4562 = vmatpush1.bf16.msra.mxu0 %v3364
        %4563 = vmatprep.subr.bf16.mxu0 %v3369
        %4564 = vmatpush1.bf16.msra.mxu0 %v3368
        %4565 = vmatprep.subr.bf16.mxu0 %v3373
        %4566 = vmatpush1.bf16.msra.mxu0 %v3372
        %4567 = vmatprep.subr.bf16.mxu0 %v3377
        %4568 = vmatpush1.bf16.msra.mxu0 %v3376
        %4569 = vmatprep.subr.bf16.mxu0 %v3381
        %4570 = vmatpush1.bf16.msra.mxu0 %v3380
        %4571 = vmatprep.subr.bf16.mxu0 %v3385
        %4572 = vmatpush1.bf16.msra.mxu0 %v3384
        %4573 = vmatprep.subr.bf16.mxu0 %v3389
        %4574 = vmatpush1.bf16.msra.mxu0 %v3388
        %4575 = vmatprep.mubr.bf16.mxu0 %v1019
        %4576 = vmatmul.mubr.bf16.gmra.mrb[0].mxu0 %v1018
        %v4577 = vpop.f32.mrb[0].mxu0
        %v4578 = vadd.f32 %v4527, %v4577
        %v4579 = vpop.f32.mrb[0].mxu0
        %v4580 = vadd.f32 %v4529, %v4579
        %v4581 = vpop.f32.mrb[0].mxu0
        %v4582 = vadd.f32 %v4531, %v4581
        %v4583 = vpop.f32.mrb[0].mxu0
        %v4584 = vadd.f32 %v4533, %v4583
        %4585 = vmatprep.mubr.bf16.mxu0 %v1039
        %4586 = vmatmul.mubr.bf16.gmra.mrb[0].mxu0 %v1038
        %v4587 = vpop.f32.mrb[0].mxu0
        %v4588 = vadd.f32 %v4537, %v4587
        %v4589 = vpop.f32.mrb[0].mxu0
        %v4590 = vadd.f32 %v4539, %v4589
        %v4591 = vpop.f32.mrb[0].mxu0
        %v4592 = vpop.f32.mrb[0].mxu0
        %4593 = vdwg.mxu0
        %4594 = vmatprep.subr.bf16.mxu0 %v3393
        %4595 = vmatpush1.bf16.msra.mxu0 %v3392
        %4596 = vmatprep.subr.bf16.mxu0 %v3397
        %4597 = vmatpush1.bf16.msra.mxu0 %v3396
        %4598 = vmatprep.subr.bf16.mxu0 %v3401
        %4599 = vmatpush1.bf16.msra.mxu0 %v3400
        %4600 = vmatprep.subr.bf16.mxu0 %v3405
        %4601 = vmatpush1.bf16.msra.mxu0 %v3404
        %4602 = vmatprep.subr.bf16.mxu0 %v3409
        %4603 = vmatpush1.bf16.msra.mxu0 %v3408
        %4604 = vmatprep.subr.bf16.mxu0 %v3413
        %4605 = vmatpush1.bf16.msra.mxu0 %v3412
        %4606 = vmatprep.subr.bf16.mxu0 %v3417
        %4607 = vmatpush1.bf16.msra.mxu0 %v3416
        %4608 = vmatprep.subr.bf16.mxu0 %v3421
        %4609 = vmatpush1.bf16.msra.mxu0 %v3420
        %4610 = vmatprep.subr.bf16.mxu0 %v3425
        %4611 = vmatpush1.bf16.msra.mxu0 %v3424
        %4612 = vmatprep.subr.bf16.mxu0 %v3429
        %4613 = vmatpush1.bf16.msra.mxu0 %v3428
        %4614 = vmatprep.subr.bf16.mxu0 %v3433
        %4615 = vmatpush1.bf16.msra.mxu0 %v3432
        %4616 = vmatprep.subr.bf16.mxu0 %v3437
        %4617 = vmatpush1.bf16.msra.mxu0 %v3436
        %4618 = vmatprep.subr.bf16.mxu0 %v3441
        %4619 = vmatpush1.bf16.msra.mxu0 %v3440
        %4620 = vmatprep.subr.bf16.mxu0 %v3445
        %4621 = vmatpush1.bf16.msra.mxu0 %v3444
        %4622 = vmatprep.subr.bf16.mxu0 %v3449
        %4623 = vmatpush1.bf16.msra.mxu0 %v3448
        %4624 = vmatprep.subr.bf16.mxu0 %v3453
        %4625 = vmatpush1.bf16.msra.mxu0 %v3452
        %4626 = vmatprep.mubr.bf16.mxu0 %v1021
        %4627 = vmatmul.mubr.bf16.gmra.mrb[0].mxu0 %v1020
        %v4628 = vpop.f32.mrb[0].mxu0
        %v4629 = vadd.f32 %v4578, %v4628
        %v4630 = vpop.f32.mrb[0].mxu0
        %v4631 = vadd.f32 %v4580, %v4630
        %v4632 = vpop.f32.mrb[0].mxu0
        %v4633 = vadd.f32 %v4582, %v4632
        %v4634 = vpop.f32.mrb[0].mxu0
        %v4635 = vadd.f32 %v4584, %v4634
        %4636 = vmatprep.mubr.bf16.mxu0 %v1041
        %4637 = vmatmul.mubr.bf16.gmra.mrb[0].mxu0 %v1040
        %v4638 = vpop.f32.mrb[0].mxu0
        %v4639 = vadd.f32 %v4588, %v4638
        %v4640 = vpop.f32.mrb[0].mxu0
        %v4641 = vadd.f32 %v4590, %v4640
        %v4642 = vpop.f32.mrb[0].mxu0
        %v4643 = vpop.f32.mrb[0].mxu0
        %4644 = vdwg.mxu0
        %4645 = vmatprep.subr.bf16.mxu0 %v3457
        %4646 = vmatpush1.bf16.msra.mxu0 %v3456
        %4647 = vmatprep.subr.bf16.mxu0 %v3461
        %4648 = vmatpush1.bf16.msra.mxu0 %v3460
        %4649 = vmatprep.subr.bf16.mxu0 %v3465
        %4650 = vmatpush1.bf16.msra.mxu0 %v3464
        %4651 = vmatprep.subr.bf16.mxu0 %v3469
        %4652 = vmatpush1.bf16.msra.mxu0 %v3468
        %4653 = vmatprep.subr.bf16.mxu0 %v3473
        %4654 = vmatpush1.bf16.msra.mxu0 %v3472
        %4655 = vmatprep.subr.bf16.mxu0 %v3477
        %4656 = vmatpush1.bf16.msra.mxu0 %v3476
        %4657 = vmatprep.subr.bf16.mxu0 %v3481
        %4658 = vmatpush1.bf16.msra.mxu0 %v3480
        %4659 = vmatprep.subr.bf16.mxu0 %v3485
        %4660 = vmatpush1.bf16.msra.mxu0 %v3484
        %4661 = vmatprep.subr.bf16.mxu0 %v3489
        %4662 = vmatpush1.bf16.msra.mxu0 %v3488
        %4663 = vmatprep.subr.bf16.mxu0 %v3493
        %4664 = vmatpush1.bf16.msra.mxu0 %v3492
        %4665 = vmatprep.subr.bf16.mxu0 %v3497
        %4666 = vmatpush1.bf16.msra.mxu0 %v3496
        %4667 = vmatprep.subr.bf16.mxu0 %v3501
        %4668 = vmatpush1.bf16.msra.mxu0 %v3500
        %4669 = vmatprep.subr.bf16.mxu0 %v3505
        %4670 = vmatpush1.bf16.msra.mxu0 %v3504
        %4671 = vmatprep.subr.bf16.mxu0 %v3509
        %4672 = vmatpush1.bf16.msra.mxu0 %v3508
        %4673 = vmatprep.subr.bf16.mxu0 %v3513
        %4674 = vmatpush1.bf16.msra.mxu0 %v3512
        %4675 = vmatprep.subr.bf16.mxu0 %v3517
        %4676 = vmatpush1.bf16.msra.mxu0 %v3516
        %4677 = vmatprep.mubr.bf16.mxu0 %v1023
        %4678 = vmatmul.mubr.bf16.gmra.mrb[0].mxu0 %v1022
        %v4679 = vpop.f32.mrb[0].mxu0
        %v4680 = vadd.f32 %v4629, %v4679
        %v4681 = vpop.f32.mrb[0].mxu0
        %v4682 = vadd.f32 %v4631, %v4681
        %v4683 = vpop.f32.mrb[0].mxu0
        %v4684 = vadd.f32 %v4633, %v4683
        %v4685 = vpop.f32.mrb[0].mxu0
        %v4686 = vadd.f32 %v4635, %v4685
        %4687 = vmatprep.mubr.bf16.mxu0 %v1043
        %4688 = vmatmul.mubr.bf16.gmra.mrb[0].mxu0 %v1042
        %v4689 = vpop.f32.mrb[0].mxu0
        %v4690 = vadd.f32 %v4639, %v4689
        %v4691 = vpop.f32.mrb[0].mxu0
        %v4692 = vadd.f32 %v4641, %v4691
        %v4693 = vpop.f32.mrb[0].mxu0
        %v4694 = vpop.f32.mrb[0].mxu0
        %4695 = vdwg.mxu0
        %4696 = vmatprep.subr.bf16.mxu0 %v3521
        %4697 = vmatpush1.bf16.msra.mxu0 %v3520
        %4698 = vmatprep.subr.bf16.mxu0 %v3525
        %4699 = vmatpush1.bf16.msra.mxu0 %v3524
        %4700 = vmatprep.subr.bf16.mxu0 %v3529
        %4701 = vmatpush1.bf16.msra.mxu0 %v3528
        %4702 = vmatprep.subr.bf16.mxu0 %v3533
        %4703 = vmatpush1.bf16.msra.mxu0 %v3532
        %4704 = vmatprep.subr.bf16.mxu0 %v3537
        %4705 = vmatpush1.bf16.msra.mxu0 %v3536
        %4706 = vmatprep.subr.bf16.mxu0 %v3541
        %4707 = vmatpush1.bf16.msra.mxu0 %v3540
        %4708 = vmatprep.subr.bf16.mxu0 %v3545
        %4709 = vmatpush1.bf16.msra.mxu0 %v3544
        %4710 = vmatprep.subr.bf16.mxu0 %v3549
        %4711 = vmatpush1.bf16.msra.mxu0 %v3548
        %4712 = vmatprep.subr.bf16.mxu0 %v3553
        %4713 = vmatpush1.bf16.msra.mxu0 %v3552
        %4714 = vmatprep.subr.bf16.mxu0 %v3557
        %4715 = vmatpush1.bf16.msra.mxu0 %v3556
        %4716 = vmatprep.subr.bf16.mxu0 %v3561
        %4717 = vmatpush1.bf16.msra.mxu0 %v3560
        %4718 = vmatprep.subr.bf16.mxu0 %v3565
        %4719 = vmatpush1.bf16.msra.mxu0 %v3564
        %4720 = vmatprep.subr.bf16.mxu0 %v3569
        %4721 = vmatpush1.bf16.msra.mxu0 %v3568
        %4722 = vmatprep.subr.bf16.mxu0 %v3573
        %4723 = vmatpush1.bf16.msra.mxu0 %v3572
        %4724 = vmatprep.subr.bf16.mxu0 %v3577
        %4725 = vmatpush1.bf16.msra.mxu0 %v3576
        %4726 = vmatprep.subr.bf16.mxu0 %v3581
        %4727 = vmatpush1.bf16.msra.mxu0 %v3580
        %4728 = vmatprep.mubr.bf16.mxu0 %v1025
        %4729 = vmatmul.mubr.bf16.gmra.mrb[0].mxu0 %v1024
        %v4730 = vpop.f32.mrb[0].mxu0
        %v4731 = vadd.f32 %v4680, %v4730
        %v4732 = vpop.f32.mrb[0].mxu0
        %v4733 = vadd.f32 %v4682, %v4732
        %v4734 = vpop.f32.mrb[0].mxu0
        %v4735 = vadd.f32 %v4684, %v4734
        %v4736 = vpop.f32.mrb[0].mxu0
        %v4737 = vadd.f32 %v4686, %v4736
        %4738 = vmatprep.mubr.bf16.mxu0 %v1045
        %4739 = vmatmul.mubr.bf16.gmra.mrb[0].mxu0 %v1044
        %v4740 = vpop.f32.mrb[0].mxu0
        %v4741 = vadd.f32 %v4690, %v4740
        %v4742 = vpop.f32.mrb[0].mxu0
        %v4743 = vadd.f32 %v4692, %v4742
        %v4744 = vpop.f32.mrb[0].mxu0
        %v4745 = vpop.f32.mrb[0].mxu0
        %4746 = vdwg.mxu0
        %4747 = vmatprep.subr.bf16.mxu0 %v3585
        %4748 = vmatpush1.bf16.msra.mxu0 %v3584
        %4749 = vmatprep.subr.bf16.mxu0 %v3589
        %4750 = vmatpush1.bf16.msra.mxu0 %v3588
        %4751 = vmatprep.subr.bf16.mxu0 %v3593
        %4752 = vmatpush1.bf16.msra.mxu0 %v3592
        %4753 = vmatprep.subr.bf16.mxu0 %v3597
        %4754 = vmatpush1.bf16.msra.mxu0 %v3596
        %4755 = vmatprep.subr.bf16.mxu0 %v3601
        %4756 = vmatpush1.bf16.msra.mxu0 %v3600
        %4757 = vmatprep.subr.bf16.mxu0 %v3605
        %4758 = vmatpush1.bf16.msra.mxu0 %v3604
        %4759 = vmatprep.subr.bf16.mxu0 %v3609
        %4760 = vmatpush1.bf16.msra.mxu0 %v3608
        %4761 = vmatprep.subr.bf16.mxu0 %v3613
        %4762 = vmatpush1.bf16.msra.mxu0 %v3612
        %4763 = vmatprep.subr.bf16.mxu0 %v3617
        %4764 = vmatpush1.bf16.msra.mxu0 %v3616
        %4765 = vmatprep.subr.bf16.mxu0 %v3621
        %4766 = vmatpush1.bf16.msra.mxu0 %v3620
        %4767 = vmatprep.subr.bf16.mxu0 %v3625
        %4768 = vmatpush1.bf16.msra.mxu0 %v3624
        %4769 = vmatprep.subr.bf16.mxu0 %v3629
        %4770 = vmatpush1.bf16.msra.mxu0 %v3628
        %4771 = vmatprep.subr.bf16.mxu0 %v3633
        %4772 = vmatpush1.bf16.msra.mxu0 %v3632
        %4773 = vmatprep.subr.bf16.mxu0 %v3637
        %4774 = vmatpush1.bf16.msra.mxu0 %v3636
        %4775 = vmatprep.subr.bf16.mxu0 %v3641
        %4776 = vmatpush1.bf16.msra.mxu0 %v3640
        %4777 = vmatprep.subr.bf16.mxu0 %v3645
        %4778 = vmatpush1.bf16.msra.mxu0 %v3644
        %4779 = vmatprep.mubr.bf16.mxu0 %v1027
        %4780 = vmatmul.mubr.bf16.gmra.mrb[0].mxu0 %v1026
        %v4781 = vpop.f32.mrb[0].mxu0
        %v4782 = vadd.f32 %v4731, %v4781
        %v4783 = vpop.f32.mrb[0].mxu0
        %v4784 = vadd.f32 %v4733, %v4783
        %v4785 = vpop.f32.mrb[0].mxu0
        %v4786 = vadd.f32 %v4735, %v4785
        %v4787 = vpop.f32.mrb[0].mxu0
        %v4788 = vadd.f32 %v4737, %v4787
        %4789 = vmatprep.mubr.bf16.mxu0 %v1047
        %4790 = vmatmul.mubr.bf16.gmra.mrb[0].mxu0 %v1046
        %v4791 = vpop.f32.mrb[0].mxu0
        %v4792 = vadd.f32 %v4741, %v4791
        %v4793 = vpop.f32.mrb[0].mxu0
        %v4794 = vadd.f32 %v4743, %v4793
        %v4795 = vpop.f32.mrb[0].mxu0
        %v4796 = vpop.f32.mrb[0].mxu0
        %4797 = vdwg.mxu0
        %4798 = vmatprep.subr.bf16.mxu0 %v3011
        %4799 = vmatpush1.bf16.msra.mxu0 %v3010
        %4800 = vmatprep.subr.bf16.mxu0 %v3015
        %4801 = vmatpush1.bf16.msra.mxu0 %v3014
        %4802 = vmatprep.subr.bf16.mxu0 %v3019
        %4803 = vmatpush1.bf16.msra.mxu0 %v3018
        %4804 = vmatprep.subr.bf16.mxu0 %v3023
        %4805 = vmatpush1.bf16.msra.mxu0 %v3022
        %4806 = vmatprep.subr.bf16.mxu0 %v3027
        %4807 = vmatpush1.bf16.msra.mxu0 %v3026
        %4808 = vmatprep.subr.bf16.mxu0 %v3031
        %4809 = vmatpush1.bf16.msra.mxu0 %v3030
        %4810 = vmatprep.subr.bf16.mxu0 %v3035
        %4811 = vmatpush1.bf16.msra.mxu0 %v3034
        %4812 = vmatprep.subr.bf16.mxu0 %v3039
        %4813 = vmatpush1.bf16.msra.mxu0 %v3038
        %4814 = vmatprep.subr.bf16.mxu0 %v3043
        %4815 = vmatpush1.bf16.msra.mxu0 %v3042
        %4816 = vmatprep.subr.bf16.mxu0 %v3047
        %4817 = vmatpush1.bf16.msra.mxu0 %v3046
        %4818 = vmatprep.subr.bf16.mxu0 %v3051
        %4819 = vmatpush1.bf16.msra.mxu0 %v3050
        %4820 = vmatprep.subr.bf16.mxu0 %v3055
        %4821 = vmatpush1.bf16.msra.mxu0 %v3054
        %4822 = vmatprep.subr.bf16.mxu0 %v3059
        %4823 = vmatpush1.bf16.msra.mxu0 %v3058
        %4824 = vmatprep.subr.bf16.mxu0 %v3063
        %4825 = vmatpush1.bf16.msra.mxu0 %v3062
        %4826 = vmatprep.subr.bf16.mxu0 %v3067
        %4827 = vmatpush1.bf16.msra.mxu0 %v3066
        %4828 = vmatprep.subr.bf16.mxu0 %v3071
        %4829 = vmatpush1.bf16.msra.mxu0 %v3070
        %4830 = vmatprep.mubr.bf16.mxu0 %v1009
        %4831 = vmatmul.mubr.bf16.gmra.mrb[0].mxu0 %v1008
        %v4832 = vpop.f32.mrb[0].mxu0
        %v4833 = vadd.f32 %v909, %v4832
        %v4834 = vpop.f32.mrb[0].mxu0
        %v4835 = vadd.f32 %v913, %v4834
        %v4836 = vpop.f32.mrb[0].mxu0
        %v4837 = vadd.f32 %v909, %v4836
        %v4838 = vpop.f32.mrb[0].mxu0
        %v4839 = vadd.f32 %v913, %v4838
        %4840 = vmatprep.mubr.bf16.mxu0 %v1029
        %4841 = vmatmul.mubr.bf16.gmra.mrb[0].mxu0 %v1028
        %v4842 = vpop.f32.mrb[0].mxu0
        %v4843 = vadd.f32 %v909, %v4842
        %v4844 = vpop.f32.mrb[0].mxu0
        %v4845 = vadd.f32 %v913, %v4844
        %v4846 = vpop.f32.mrb[0].mxu0
        %v4847 = vpop.f32.mrb[0].mxu0
        %4848 = vdwg.mxu0
        %4849 = vmatprep.subr.bf16.mxu0 %v3075
        %4850 = vmatpush1.bf16.msra.mxu0 %v3074
        %4851 = vmatprep.subr.bf16.mxu0 %v3079
        %4852 = vmatpush1.bf16.msra.mxu0 %v3078
        %4853 = vmatprep.subr.bf16.mxu0 %v3083
        %4854 = vmatpush1.bf16.msra.mxu0 %v3082
        %4855 = vmatprep.subr.bf16.mxu0 %v3087
        %4856 = vmatpush1.bf16.msra.mxu0 %v3086
        %4857 = vmatprep.subr.bf16.mxu0 %v3091
        %4858 = vmatpush1.bf16.msra.mxu0 %v3090
        %4859 = vmatprep.subr.bf16.mxu0 %v3095
        %4860 = vmatpush1.bf16.msra.mxu0 %v3094
        %4861 = vmatprep.subr.bf16.mxu0 %v3099
        %4862 = vmatpush1.bf16.msra.mxu0 %v3098
        %4863 = vmatprep.subr.bf16.mxu0 %v3103
        %4864 = vmatpush1.bf16.msra.mxu0 %v3102
        %4865 = vmatprep.subr.bf16.mxu0 %v3107
        %4866 = vmatpush1.bf16.msra.mxu0 %v3106
        %4867 = vmatprep.subr.bf16.mxu0 %v3111
        %4868 = vmatpush1.bf16.msra.mxu0 %v3110
        %4869 = vmatprep.subr.bf16.mxu0 %v3115
        %4870 = vmatpush1.bf16.msra.mxu0 %v3114
        %4871 = vmatprep.subr.bf16.mxu0 %v3119
        %4872 = vmatpush1.bf16.msra.mxu0 %v3118
        %4873 = vmatprep.subr.bf16.mxu0 %v3123
        %4874 = vmatpush1.bf16.msra.mxu0 %v3122
        %4875 = vmatprep.subr.bf16.mxu0 %v3127
        %4876 = vmatpush1.bf16.msra.mxu0 %v3126
        %4877 = vmatprep.subr.bf16.mxu0 %v3131
        %4878 = vmatpush1.bf16.msra.mxu0 %v3130
        %4879 = vmatprep.subr.bf16.mxu0 %v3135
        %4880 = vmatpush1.bf16.msra.mxu0 %v3134
        %4881 = vmatprep.mubr.bf16.mxu0 %v1011
        %4882 = vmatmul.mubr.bf16.gmra.mrb[0].mxu0 %v1010
        %v4883 = vpop.f32.mrb[0].mxu0
        %v4884 = vadd.f32 %v4833, %v4883
        %v4885 = vpop.f32.mrb[0].mxu0
        %v4886 = vadd.f32 %v4835, %v4885
        %v4887 = vpop.f32.mrb[0].mxu0
        %v4888 = vadd.f32 %v4837, %v4887
        %v4889 = vpop.f32.mrb[0].mxu0
        %v4890 = vadd.f32 %v4839, %v4889
        %4891 = vmatprep.mubr.bf16.mxu0 %v1031
        %4892 = vmatmul.mubr.bf16.gmra.mrb[0].mxu0 %v1030
        %v4893 = vpop.f32.mrb[0].mxu0
        %v4894 = vadd.f32 %v4843, %v4893
        %v4895 = vpop.f32.mrb[0].mxu0
        %v4896 = vadd.f32 %v4845, %v4895
        %v4897 = vpop.f32.mrb[0].mxu0
        %v4898 = vpop.f32.mrb[0].mxu0
        %4899 = vdwg.mxu0
        %4900 = vmatprep.subr.bf16.mxu0 %v3139
        %4901 = vmatpush1.bf16.msra.mxu0 %v3138
        %4902 = vmatprep.subr.bf16.mxu0 %v3143
        %4903 = vmatpush1.bf16.msra.mxu0 %v3142
        %4904 = vmatprep.subr.bf16.mxu0 %v3147
        %4905 = vmatpush1.bf16.msra.mxu0 %v3146
        %4906 = vmatprep.subr.bf16.mxu0 %v3151
        %4907 = vmatpush1.bf16.msra.mxu0 %v3150
        %4908 = vmatprep.subr.bf16.mxu0 %v3155
        %4909 = vmatpush1.bf16.msra.mxu0 %v3154
        %4910 = vmatprep.subr.bf16.mxu0 %v3159
        %4911 = vmatpush1.bf16.msra.mxu0 %v3158
        %4912 = vmatprep.subr.bf16.mxu0 %v3163
        %4913 = vmatpush1.bf16.msra.mxu0 %v3162
        %4914 = vmatprep.subr.bf16.mxu0 %v3167
        %4915 = vmatpush1.bf16.msra.mxu0 %v3166
        %4916 = vmatprep.subr.bf16.mxu0 %v3171
        %4917 = vmatpush1.bf16.msra.mxu0 %v3170
        %4918 = vmatprep.subr.bf16.mxu0 %v3175
        %4919 = vmatpush1.bf16.msra.mxu0 %v3174
        %4920 = vmatprep.subr.bf16.mxu0 %v3179
        %4921 = vmatpush1.bf16.msra.mxu0 %v3178
        %4922 = vmatprep.subr.bf16.mxu0 %v3183
        %4923 = vmatpush1.bf16.msra.mxu0 %v3182
        %4924 = vmatprep.subr.bf16.mxu0 %v3187
        %4925 = vmatpush1.bf16.msra.mxu0 %v3186
        %4926 = vmatprep.subr.bf16.mxu0 %v3191
        %4927 = vmatpush1.bf16.msra.mxu0 %v3190
        %4928 = vmatprep.subr.bf16.mxu0 %v3195
        %4929 = vmatpush1.bf16.msra.mxu0 %v3194
        %4930 = vmatprep.subr.bf16.mxu0 %v3199
        %4931 = vmatpush1.bf16.msra.mxu0 %v3198
        %4932 = vmatprep.mubr.bf16.mxu0 %v1013
        %4933 = vmatmul.mubr.bf16.gmra.mrb[0].mxu0 %v1012
        %v4934 = vpop.f32.mrb[0].mxu0
        %v4935 = vadd.f32 %v4884, %v4934
        %v4936 = vpop.f32.mrb[0].mxu0
        %v4937 = vadd.f32 %v4886, %v4936
        %v4938 = vpop.f32.mrb[0].mxu0
        %v4939 = vadd.f32 %v4888, %v4938
        %v4940 = vpop.f32.mrb[0].mxu0
        %v4941 = vadd.f32 %v4890, %v4940
        %4942 = vmatprep.mubr.bf16.mxu0 %v1033
        %4943 = vmatmul.mubr.bf16.gmra.mrb[0].mxu0 %v1032
        %v4944 = vpop.f32.mrb[0].mxu0
        %v4945 = vadd.f32 %v4894, %v4944
        %v4946 = vpop.f32.mrb[0].mxu0
        %v4947 = vadd.f32 %v4896, %v4946
        %v4948 = vpop.f32.mrb[0].mxu0
        %v4949 = vpop.f32.mrb[0].mxu0
        %4950 = vdwg.mxu0
        %4951 = vmatprep.subr.bf16.mxu0 %v3203
        %4952 = vmatpush1.bf16.msra.mxu0 %v3202
        %4953 = vmatprep.subr.bf16.mxu0 %v3207
        %4954 = vmatpush1.bf16.msra.mxu0 %v3206
        %4955 = vmatprep.subr.bf16.mxu0 %v3211
        %4956 = vmatpush1.bf16.msra.mxu0 %v3210
        %4957 = vmatprep.subr.bf16.mxu0 %v3215
        %4958 = vmatpush1.bf16.msra.mxu0 %v3214
        %4959 = vmatprep.subr.bf16.mxu0 %v3219
        %4960 = vmatpush1.bf16.msra.mxu0 %v3218
        %4961 = vmatprep.subr.bf16.mxu0 %v3223
        %4962 = vmatpush1.bf16.msra.mxu0 %v3222
        %4963 = vmatprep.subr.bf16.mxu0 %v3227
        %4964 = vmatpush1.bf16.msra.mxu0 %v3226
        %4965 = vmatprep.subr.bf16.mxu0 %v3231
        %4966 = vmatpush1.bf16.msra.mxu0 %v3230
        %4967 = vmatprep.subr.bf16.mxu0 %v3235
        %4968 = vmatpush1.bf16.msra.mxu0 %v3234
        %4969 = vmatprep.subr.bf16.mxu0 %v3239
        %4970 = vmatpush1.bf16.msra.mxu0 %v3238
        %4971 = vmatprep.subr.bf16.mxu0 %v3243
        %4972 = vmatpush1.bf16.msra.mxu0 %v3242
        %4973 = vmatprep.subr.bf16.mxu0 %v3247
        %4974 = vmatpush1.bf16.msra.mxu0 %v3246
        %4975 = vmatprep.subr.bf16.mxu0 %v3251
        %4976 = vmatpush1.bf16.msra.mxu0 %v3250
        %4977 = vmatprep.subr.bf16.mxu0 %v3255
        %4978 = vmatpush1.bf16.msra.mxu0 %v3254
        %4979 = vmatprep.subr.bf16.mxu0 %v3259
        %4980 = vmatpush1.bf16.msra.mxu0 %v3258
        %4981 = vmatprep.subr.bf16.mxu0 %v3263
        %4982 = vmatpush1.bf16.msra.mxu0 %v3262
        %4983 = vmatprep.mubr.bf16.mxu0 %v1015
        %4984 = vmatmul.mubr.bf16.gmra.mrb[0].mxu0 %v1014
        %v4985 = vpop.f32.mrb[0].mxu0
        %v4986 = vadd.f32 %v4935, %v4985
        %v4987 = vpop.f32.mrb[0].mxu0
        %v4988 = vadd.f32 %v4937, %v4987
        %v4989 = vpop.f32.mrb[0].mxu0
        %v4990 = vadd.f32 %v4939, %v4989
        %v4991 = vpop.f32.mrb[0].mxu0
        %v4992 = vadd.f32 %v4941, %v4991
        %4993 = vmatprep.mubr.bf16.mxu0 %v1035
        %4994 = vmatmul.mubr.bf16.gmra.mrb[0].mxu0 %v1034
        %v4995 = vpop.f32.mrb[0].mxu0
        %v4996 = vadd.f32 %v4945, %v4995
        %v4997 = vpop.f32.mrb[0].mxu0
        %v4998 = vadd.f32 %v4947, %v4997
        %v4999 = vpop.f32.mrb[0].mxu0
        %v5000 = vpop.f32.mrb[0].mxu0
        %5001 = vdwg.mxu0
        %5002 = vmatprep.subr.bf16.mxu0 %v3267
        %5003 = vmatpush1.bf16.msra.mxu0 %v3266
        %5004 = vmatprep.subr.bf16.mxu0 %v3271
        %5005 = vmatpush1.bf16.msra.mxu0 %v3270
        %5006 = vmatprep.subr.bf16.mxu0 %v3275
        %5007 = vmatpush1.bf16.msra.mxu0 %v3274
        %5008 = vmatprep.subr.bf16.mxu0 %v3279
        %5009 = vmatpush1.bf16.msra.mxu0 %v3278
        %5010 = vmatprep.subr.bf16.mxu0 %v3283
        %5011 = vmatpush1.bf16.msra.mxu0 %v3282
        %5012 = vmatprep.subr.bf16.mxu0 %v3287
        %5013 = vmatpush1.bf16.msra.mxu0 %v3286
        %5014 = vmatprep.subr.bf16.mxu0 %v3291
        %5015 = vmatpush1.bf16.msra.mxu0 %v3290
        %5016 = vmatprep.subr.bf16.mxu0 %v3295
        %5017 = vmatpush1.bf16.msra.mxu0 %v3294
        %5018 = vmatprep.subr.bf16.mxu0 %v3299
        %5019 = vmatpush1.bf16.msra.mxu0 %v3298
        %5020 = vmatprep.subr.bf16.mxu0 %v3303
        %5021 = vmatpush1.bf16.msra.mxu0 %v3302
        %5022 = vmatprep.subr.bf16.mxu0 %v3307
        %5023 = vmatpush1.bf16.msra.mxu0 %v3306
        %5024 = vmatprep.subr.bf16.mxu0 %v3311
        %5025 = vmatpush1.bf16.msra.mxu0 %v3310
        %5026 = vmatprep.subr.bf16.mxu0 %v3315
        %5027 = vmatpush1.bf16.msra.mxu0 %v3314
        %5028 = vmatprep.subr.bf16.mxu0 %v3319
        %5029 = vmatpush1.bf16.msra.mxu0 %v3318
        %5030 = vmatprep.subr.bf16.mxu0 %v3323
        %5031 = vmatpush1.bf16.msra.mxu0 %v3322
        %5032 = vmatprep.subr.bf16.mxu0 %v3327
        %5033 = vmatpush1.bf16.msra.mxu0 %v3326
        %5034 = vmatprep.mubr.bf16.mxu0 %v1017
        %5035 = vmatmul.mubr.bf16.gmra.mrb[0].mxu0 %v1016
        %v5036 = vpop.f32.mrb[0].mxu0
        %v5037 = vadd.f32 %v4986, %v5036
        %v5038 = vpop.f32.mrb[0].mxu0
        %v5039 = vadd.f32 %v4988, %v5038
        %v5040 = vpop.f32.mrb[0].mxu0
        %v5041 = vadd.f32 %v4990, %v5040
        %v5042 = vpop.f32.mrb[0].mxu0
        %v5043 = vadd.f32 %v4992, %v5042
        %5044 = vmatprep.mubr.bf16.mxu0 %v1037
        %5045 = vmatmul.mubr.bf16.gmra.mrb[0].mxu0 %v1036
        %v5046 = vpop.f32.mrb[0].mxu0
        %v5047 = vadd.f32 %v4996, %v5046
        %v5048 = vpop.f32.mrb[0].mxu0
        %v5049 = vadd.f32 %v4998, %v5048
        %v5050 = vpop.f32.mrb[0].mxu0
        %v5051 = vpop.f32.mrb[0].mxu0
        %5052 = vdwg.mxu0
        %5053 = vmatprep.subr.bf16.mxu0 %v3331
        %5054 = vmatpush1.bf16.msra.mxu0 %v3330
        %5055 = vmatprep.subr.bf16.mxu0 %v3335
        %5056 = vmatpush1.bf16.msra.mxu0 %v3334
        %5057 = vmatprep.subr.bf16.mxu0 %v3339
        %5058 = vmatpush1.bf16.msra.mxu0 %v3338
        %5059 = vmatprep.subr.bf16.mxu0 %v3343
        %5060 = vmatpush1.bf16.msra.mxu0 %v3342
        %5061 = vmatprep.subr.bf16.mxu0 %v3347
        %5062 = vmatpush1.bf16.msra.mxu0 %v3346
        %5063 = vmatprep.subr.bf16.mxu0 %v3351
        %5064 = vmatpush1.bf16.msra.mxu0 %v3350
        %5065 = vmatprep.subr.bf16.mxu0 %v3355
        %5066 = vmatpush1.bf16.msra.mxu0 %v3354
        %5067 = vmatprep.subr.bf16.mxu0 %v3359
        %5068 = vmatpush1.bf16.msra.mxu0 %v3358
        %5069 = vmatprep.subr.bf16.mxu0 %v3363
        %5070 = vmatpush1.bf16.msra.mxu0 %v3362
        %5071 = vmatprep.subr.bf16.mxu0 %v3367
        %5072 = vmatpush1.bf16.msra.mxu0 %v3366
        %5073 = vmatprep.subr.bf16.mxu0 %v3371
        %5074 = vmatpush1.bf16.msra.mxu0 %v3370
        %5075 = vmatprep.subr.bf16.mxu0 %v3375
        %5076 = vmatpush1.bf16.msra.mxu0 %v3374
        %5077 = vmatprep.subr.bf16.mxu0 %v3379
        %5078 = vmatpush1.bf16.msra.mxu0 %v3378
        %5079 = vmatprep.subr.bf16.mxu0 %v3383
        %5080 = vmatpush1.bf16.msra.mxu0 %v3382
        %5081 = vmatprep.subr.bf16.mxu0 %v3387
        %5082 = vmatpush1.bf16.msra.mxu0 %v3386
        %5083 = vmatprep.subr.bf16.mxu0 %v3391
        %5084 = vmatpush1.bf16.msra.mxu0 %v3390
        %5085 = vmatprep.mubr.bf16.mxu0 %v1019
        %5086 = vmatmul.mubr.bf16.gmra.mrb[0].mxu0 %v1018
        %v5087 = vpop.f32.mrb[0].mxu0
        %v5088 = vadd.f32 %v5037, %v5087
        %v5089 = vpop.f32.mrb[0].mxu0
        %v5090 = vadd.f32 %v5039, %v5089
        %v5091 = vpop.f32.mrb[0].mxu0
        %v5092 = vadd.f32 %v5041, %v5091
        %v5093 = vpop.f32.mrb[0].mxu0
        %v5094 = vadd.f32 %v5043, %v5093
        %5095 = vmatprep.mubr.bf16.mxu0 %v1039
        %5096 = vmatmul.mubr.bf16.gmra.mrb[0].mxu0 %v1038
        %v5097 = vpop.f32.mrb[0].mxu0
        %v5098 = vadd.f32 %v5047, %v5097
        %v5099 = vpop.f32.mrb[0].mxu0
        %v5100 = vadd.f32 %v5049, %v5099
        %v5101 = vpop.f32.mrb[0].mxu0
        %v5102 = vpop.f32.mrb[0].mxu0
        %5103 = vdwg.mxu0
        %5104 = vmatprep.subr.bf16.mxu0 %v3395
        %5105 = vmatpush1.bf16.msra.mxu0 %v3394
        %5106 = vmatprep.subr.bf16.mxu0 %v3399
        %5107 = vmatpush1.bf16.msra.mxu0 %v3398
        %5108 = vmatprep.subr.bf16.mxu0 %v3403
        %5109 = vmatpush1.bf16.msra.mxu0 %v3402
        %5110 = vmatprep.subr.bf16.mxu0 %v3407
        %5111 = vmatpush1.bf16.msra.mxu0 %v3406
        %5112 = vmatprep.subr.bf16.mxu0 %v3411
        %5113 = vmatpush1.bf16.msra.mxu0 %v3410
        %5114 = vmatprep.subr.bf16.mxu0 %v3415
        %5115 = vmatpush1.bf16.msra.mxu0 %v3414
        %5116 = vmatprep.subr.bf16.mxu0 %v3419
        %5117 = vmatpush1.bf16.msra.mxu0 %v3418
        %5118 = vmatprep.subr.bf16.mxu0 %v3423
        %5119 = vmatpush1.bf16.msra.mxu0 %v3422
        %5120 = vmatprep.subr.bf16.mxu0 %v3427
        %5121 = vmatpush1.bf16.msra.mxu0 %v3426
        %5122 = vmatprep.subr.bf16.mxu0 %v3431
        %5123 = vmatpush1.bf16.msra.mxu0 %v3430
        %5124 = vmatprep.subr.bf16.mxu0 %v3435
        %5125 = vmatpush1.bf16.msra.mxu0 %v3434
        %5126 = vmatprep.subr.bf16.mxu0 %v3439
        %5127 = vmatpush1.bf16.msra.mxu0 %v3438
        %5128 = vmatprep.subr.bf16.mxu0 %v3443
        %5129 = vmatpush1.bf16.msra.mxu0 %v3442
        %5130 = vmatprep.subr.bf16.mxu0 %v3447
        %5131 = vmatpush1.bf16.msra.mxu0 %v3446
        %5132 = vmatprep.subr.bf16.mxu0 %v3451
        %5133 = vmatpush1.bf16.msra.mxu0 %v3450
        %5134 = vmatprep.subr.bf16.mxu0 %v3455
        %5135 = vmatpush1.bf16.msra.mxu0 %v3454
        %5136 = vmatprep.mubr.bf16.mxu0 %v1021
        %5137 = vmatmul.mubr.bf16.gmra.mrb[0].mxu0 %v1020
        %v5138 = vpop.f32.mrb[0].mxu0
        %v5139 = vadd.f32 %v5088, %v5138
        %v5140 = vpop.f32.mrb[0].mxu0
        %v5141 = vadd.f32 %v5090, %v5140
        %v5142 = vpop.f32.mrb[0].mxu0
        %v5143 = vadd.f32 %v5092, %v5142
        %v5144 = vpop.f32.mrb[0].mxu0
        %v5145 = vadd.f32 %v5094, %v5144
        %5146 = vmatprep.mubr.bf16.mxu0 %v1041
        %5147 = vmatmul.mubr.bf16.gmra.mrb[0].mxu0 %v1040
        %v5148 = vpop.f32.mrb[0].mxu0
        %v5149 = vadd.f32 %v5098, %v5148
        %v5150 = vpop.f32.mrb[0].mxu0
        %v5151 = vadd.f32 %v5100, %v5150
        %v5152 = vpop.f32.mrb[0].mxu0
        %v5153 = vpop.f32.mrb[0].mxu0
        %5154 = vdwg.mxu0
        %5155 = vmatprep.subr.bf16.mxu0 %v3459
        %5156 = vmatpush1.bf16.msra.mxu0 %v3458
        %5157 = vmatprep.subr.bf16.mxu0 %v3463
        %5158 = vmatpush1.bf16.msra.mxu0 %v3462
        %5159 = vmatprep.subr.bf16.mxu0 %v3467
        %5160 = vmatpush1.bf16.msra.mxu0 %v3466
        %5161 = vmatprep.subr.bf16.mxu0 %v3471
        %5162 = vmatpush1.bf16.msra.mxu0 %v3470
        %5163 = vmatprep.subr.bf16.mxu0 %v3475
        %5164 = vmatpush1.bf16.msra.mxu0 %v3474
        %5165 = vmatprep.subr.bf16.mxu0 %v3479
        %5166 = vmatpush1.bf16.msra.mxu0 %v3478
        %5167 = vmatprep.subr.bf16.mxu0 %v3483
        %5168 = vmatpush1.bf16.msra.mxu0 %v3482
        %5169 = vmatprep.subr.bf16.mxu0 %v3487
        %5170 = vmatpush1.bf16.msra.mxu0 %v3486
        %5171 = vmatprep.subr.bf16.mxu0 %v3491
        %5172 = vmatpush1.bf16.msra.mxu0 %v3490
        %5173 = vmatprep.subr.bf16.mxu0 %v3495
        %5174 = vmatpush1.bf16.msra.mxu0 %v3494
        %5175 = vmatprep.subr.bf16.mxu0 %v3499
        %5176 = vmatpush1.bf16.msra.mxu0 %v3498
        %5177 = vmatprep.subr.bf16.mxu0 %v3503
        %5178 = vmatpush1.bf16.msra.mxu0 %v3502
        %5179 = vmatprep.subr.bf16.mxu0 %v3507
        %5180 = vmatpush1.bf16.msra.mxu0 %v3506
        %5181 = vmatprep.subr.bf16.mxu0 %v3511
        %5182 = vmatpush1.bf16.msra.mxu0 %v3510
        %5183 = vmatprep.subr.bf16.mxu0 %v3515
        %5184 = vmatpush1.bf16.msra.mxu0 %v3514
        %5185 = vmatprep.subr.bf16.mxu0 %v3519
        %5186 = vmatpush1.bf16.msra.mxu0 %v3518
        %5187 = vmatprep.mubr.bf16.mxu0 %v1023
        %5188 = vmatmul.mubr.bf16.gmra.mrb[0].mxu0 %v1022
        %v5189 = vpop.f32.mrb[0].mxu0
        %v5190 = vadd.f32 %v5139, %v5189
        %v5191 = vpop.f32.mrb[0].mxu0
        %v5192 = vadd.f32 %v5141, %v5191
        %v5193 = vpop.f32.mrb[0].mxu0
        %v5194 = vadd.f32 %v5143, %v5193
        %v5195 = vpop.f32.mrb[0].mxu0
        %v5196 = vadd.f32 %v5145, %v5195
        %5197 = vmatprep.mubr.bf16.mxu0 %v1043
        %5198 = vmatmul.mubr.bf16.gmra.mrb[0].mxu0 %v1042
        %v5199 = vpop.f32.mrb[0].mxu0
        %v5200 = vadd.f32 %v5149, %v5199
        %v5201 = vpop.f32.mrb[0].mxu0
        %v5202 = vadd.f32 %v5151, %v5201
        %v5203 = vpop.f32.mrb[0].mxu0
        %v5204 = vpop.f32.mrb[0].mxu0
        %5205 = vdwg.mxu0
        %5206 = vmatprep.subr.bf16.mxu0 %v3523
        %5207 = vmatpush1.bf16.msra.mxu0 %v3522
        %5208 = vmatprep.subr.bf16.mxu0 %v3527
        %5209 = vmatpush1.bf16.msra.mxu0 %v3526
        %5210 = vmatprep.subr.bf16.mxu0 %v3531
        %5211 = vmatpush1.bf16.msra.mxu0 %v3530
        %5212 = vmatprep.subr.bf16.mxu0 %v3535
        %5213 = vmatpush1.bf16.msra.mxu0 %v3534
        %5214 = vmatprep.subr.bf16.mxu0 %v3539
        %5215 = vmatpush1.bf16.msra.mxu0 %v3538
        %5216 = vmatprep.subr.bf16.mxu0 %v3543
        %5217 = vmatpush1.bf16.msra.mxu0 %v3542
        %5218 = vmatprep.subr.bf16.mxu0 %v3547
        %5219 = vmatpush1.bf16.msra.mxu0 %v3546
        %5220 = vmatprep.subr.bf16.mxu0 %v3551
        %5221 = vmatpush1.bf16.msra.mxu0 %v3550
        %5222 = vmatprep.subr.bf16.mxu0 %v3555
        %5223 = vmatpush1.bf16.msra.mxu0 %v3554
        %5224 = vmatprep.subr.bf16.mxu0 %v3559
        %5225 = vmatpush1.bf16.msra.mxu0 %v3558
        %5226 = vmatprep.subr.bf16.mxu0 %v3563
        %5227 = vmatpush1.bf16.msra.mxu0 %v3562
        %5228 = vmatprep.subr.bf16.mxu0 %v3567
        %5229 = vmatpush1.bf16.msra.mxu0 %v3566
        %5230 = vmatprep.subr.bf16.mxu0 %v3571
        %5231 = vmatpush1.bf16.msra.mxu0 %v3570
        %5232 = vmatprep.subr.bf16.mxu0 %v3575
        %5233 = vmatpush1.bf16.msra.mxu0 %v3574
        %5234 = vmatprep.subr.bf16.mxu0 %v3579
        %5235 = vmatpush1.bf16.msra.mxu0 %v3578
        %5236 = vmatprep.subr.bf16.mxu0 %v3583
        %5237 = vmatpush1.bf16.msra.mxu0 %v3582
        %5238 = vmatprep.mubr.bf16.mxu0 %v1025
        %5239 = vmatmul.mubr.bf16.gmra.mrb[0].mxu0 %v1024
        %v5240 = vpop.f32.mrb[0].mxu0
        %v5241 = vadd.f32 %v5190, %v5240
        %v5242 = vpop.f32.mrb[0].mxu0
        %v5243 = vadd.f32 %v5192, %v5242
        %v5244 = vpop.f32.mrb[0].mxu0
        %v5245 = vadd.f32 %v5194, %v5244
        %v5246 = vpop.f32.mrb[0].mxu0
        %v5247 = vadd.f32 %v5196, %v5246
        %5248 = vmatprep.mubr.bf16.mxu0 %v1045
        %5249 = vmatmul.mubr.bf16.gmra.mrb[0].mxu0 %v1044
        %v5250 = vpop.f32.mrb[0].mxu0
        %v5251 = vadd.f32 %v5200, %v5250
        %v5252 = vpop.f32.mrb[0].mxu0
        %v5253 = vadd.f32 %v5202, %v5252
        %v5254 = vpop.f32.mrb[0].mxu0
        %v5255 = vpop.f32.mrb[0].mxu0
        %5256 = vdwg.mxu0
        %5257 = vmatprep.subr.bf16.mxu0 %v3587
        %5258 = vmatpush1.bf16.msra.mxu0 %v3586
        %5259 = vmatprep.subr.bf16.mxu0 %v3591
        %5260 = vmatpush1.bf16.msra.mxu0 %v3590
        %5261 = vmatprep.subr.bf16.mxu0 %v3595
        %5262 = vmatpush1.bf16.msra.mxu0 %v3594
        %5263 = vmatprep.subr.bf16.mxu0 %v3599
        %5264 = vmatpush1.bf16.msra.mxu0 %v3598
        %5265 = vmatprep.subr.bf16.mxu0 %v3603
        %5266 = vmatpush1.bf16.msra.mxu0 %v3602
        %5267 = vmatprep.subr.bf16.mxu0 %v3607
        %5268 = vmatpush1.bf16.msra.mxu0 %v3606
        %5269 = vmatprep.subr.bf16.mxu0 %v3611
        %5270 = vmatpush1.bf16.msra.mxu0 %v3610
        %5271 = vmatprep.subr.bf16.mxu0 %v3615
        %5272 = vmatpush1.bf16.msra.mxu0 %v3614
        %5273 = vmatprep.subr.bf16.mxu0 %v3619
        %5274 = vmatpush1.bf16.msra.mxu0 %v3618
        %5275 = vmatprep.subr.bf16.mxu0 %v3623
        %5276 = vmatpush1.bf16.msra.mxu0 %v3622
        %5277 = vmatprep.subr.bf16.mxu0 %v3627
        %5278 = vmatpush1.bf16.msra.mxu0 %v3626
        %5279 = vmatprep.subr.bf16.mxu0 %v3631
        %5280 = vmatpush1.bf16.msra.mxu0 %v3630
        %5281 = vmatprep.subr.bf16.mxu0 %v3635
        %5282 = vmatpush1.bf16.msra.mxu0 %v3634
        %5283 = vmatprep.subr.bf16.mxu0 %v3639
        %5284 = vmatpush1.bf16.msra.mxu0 %v3638
        %5285 = vmatprep.subr.bf16.mxu0 %v3643
        %5286 = vmatpush1.bf16.msra.mxu0 %v3642
        %5287 = vmatprep.subr.bf16.mxu0 %v3647
        %5288 = vmatpush1.bf16.msra.mxu0 %v3646
        %5289 = vmatprep.mubr.bf16.mxu0 %v1027
        %5290 = vmatmul.mubr.bf16.gmra.mrb[0].mxu0 %v1026
        %v5291 = vpop.f32.mrb[0].mxu0
        %v5292 = vadd.f32 %v5241, %v5291
        %v5293 = vpop.f32.mrb[0].mxu0
        %v5294 = vadd.f32 %v5243, %v5293
        %v5295 = vpop.f32.mrb[0].mxu0
        %v5296 = vadd.f32 %v5245, %v5295
        %v5297 = vpop.f32.mrb[0].mxu0
        %v5298 = vadd.f32 %v5247, %v5297
        %5299 = vmatprep.mubr.bf16.mxu0 %v1047
        %5300 = vmatmul.mubr.bf16.gmra.mrb[0].mxu0 %v1046
        %v5301 = vpop.f32.mrb[0].mxu0
        %v5302 = vadd.f32 %v5251, %v5301
        %v5303 = vpop.f32.mrb[0].mxu0
        %v5304 = vadd.f32 %v5253, %v5303
        %v5305 = vpop.f32.mrb[0].mxu0
        %v5306 = vpop.f32.mrb[0].mxu0
        %5307 = vdwg.mxu0
        %v5308 = vmax.f32 %v4782, 0.0
        %v5309 = vmax.f32 %v4784, 0.0
        %v5310 = vmax.f32 %v5292, 0.0
        %v5311 = vmax.f32 %v5294, 0.0
        %v5312 = vmax.f32 %v4786, 0.0
        %v5313 = vmax.f32 %v4788, 0.0
        %v5314 = vmax.f32 %v5296, 0.0
        %v5315 = vmax.f32 %v5298, 0.0
        %v5316 = vmax.f32 %v4792, 0.0
        %v5317 = vmax.f32 %v4794, 0.0
        %v5318 = vmax.f32 %v5302, 0.0
        %v5319 = vmax.f32 %v5304, 0.0
        %v5320 = vpack.c.bf16 %v5312, %v5308
        %v5321 = vpack.c.bf16 %v5313, %v5309
        %v5322 = vpack.c.bf16 %v5314, %v5310
        %v5323 = vpack.c.bf16 %v5315, %v5311
        %v5324 = vpack.c.bf16 %v5316, %v5316
        %v5325 = vpack.c.bf16 %v5317, %v5317
        %v5326 = vpack.c.bf16 %v5318, %v5318
        %v5327 = vpack.c.bf16 %v5319, %v5319
        %v5336 = vunpack.c.l.b16 %v5320
        %v5337 = vunpack.c.l.b16 %v5321
        %v5338 = vunpack.c.l.b16 %v5322
        %v5339 = vunpack.c.l.b16 %v5323
        %v5340 = vunpack.c.h.b16 %v5320
        %v5341 = vunpack.c.h.b16 %v5321
        %v5342 = vunpack.c.h.b16 %v5322
        %v5343 = vunpack.c.h.b16 %v5323
        %v5344 = vunpack.c.l.b16 %v5324
        %v5345 = vunpack.c.l.b16 %v5325
        %v5346 = vunpack.c.l.b16 %v5326
        %v5347 = vunpack.c.l.b16 %v5327
        %v5348 = vpack.c.b16 %v5337, %v5336
        %v5349 = vpack.c.b16 %v5339, %v5338
        %v5350 = vpack.c.b16 %v5341, %v5340
        %v5351 = vpack.c.b16 %v5343, %v5342
        %v5352 = vpack.c.b16 %v5345, %v5344
        %v5353 = vpack.c.b16 %v5347, %v5346
        %5360 = vst [vmem:[%s222] sm:$0xff] %v5348
        %5361 = vst [vmem:[%s222 + $0x8] sm:$0xff] %v5349
        %5362 = vst [vmem:[%s222 + $0x10] sm:$0xff] %v5350
        %5363 = vst [vmem:[%s222 + $0x18] sm:$0xff] %v5351
        %5364 = vst [vmem:[%s222 + $0x20] sm:$0xff] %v5352
        %5365 = vst [vmem:[%s222 + $0x28] sm:$0xff] %v5353
        %s5366 = sand.u32 %s101, 1
        %s5367 = sand.u32 %s101, 1
        %s5368 = smul.addr %s5367, 48
        %s5369 = scalar_lea.vmem [#allocation6], %s5368
        // Predicated region
        $region41: #{discriminator_forward.6} parent=31 // pred_check
          %p5370 = pneg %p111
        $region42: #{discriminator_forward.6} parent=31 // pred_check_branch
          %5372 = sbr.rel (%p5370) target = $region44
        $region43: #{discriminator_forward.6} parent=31 // pred_region
          %s5373 = smul.u32 4, %s20
          %s5374 = smul.addr %s5373, 4
          %s5375 = scalar_lea.vmem %s3, %s5374
          // Predicated region
          $region45: #{discriminator_forward.6} parent=43 // pred_check
            _
          $region46: #{discriminator_forward.6} parent=43 // pred_check_branch
            %5377 = sbr.rel (0) target = $region48
          $region47: #{discriminator_forward.6} parent=43 // pred_region
            // Predicated region
            $region49: #{discriminator_forward.6} parent=47 // pred_check
              _
            $region50: #{discriminator_forward.6} parent=47 // pred_check_branch
              %5379 = sbr.rel (0) target = $region52
            $region51: #{discriminator_forward.6} parent=47 // pred_region
              loop: start=0, step=1, limit=1
              $region53: #{discriminator_forward.6} parent=51 // loop_pre_header
                _
              $region54: #{discriminator_forward.6} parent=51 // loop_header
                %s5381 = sphi 0, %s5385
                %p5382 = scmp.ge.s32.totalorder %s5381, 1
                %s5386 = sphi %s5369, %s5369
                %s5387 = sphi %s5375, %s5375
              $region55: #{discriminator_forward.6} parent=51 // loop_header_branch
                %5384 = sbr.rel (%p5382) target = $region59
              $region56: #{discriminator_forward.6} parent=51 // loop_body
                %v5388 = vld [vmem:[%s5386] sm:$0xff]
                %5389 = vst [vmem:[%s5387] sm:$0xff] %v5388
                %v5390 = vld [vmem:[%s5386 + $0x8] sm:$0xff]
                %5391 = vst [vmem:[%s5387 + $0x8] sm:$0xff] %v5390
                %v5392 = vld [vmem:[%s5386 + $0x10] sm:$0xff]
                %5393 = vst [vmem:[%s5387 + $0x20] sm:$0xff] %v5392
                %v5394 = vld [vmem:[%s5386 + $0x18] sm:$0xff]
                %5395 = vst [vmem:[%s5387 + $0x28] sm:$0xff] %v5394
                %v5396 = vld [vmem:[%s5386 + $0x20] sm:$0xff]
                %5397 = vst [vmem:[%s5387 + $0x40] sm:$0xff] %v5396
                %v5398 = vld [vmem:[%s5386 + $0x28] sm:$0xff]
                %5399 = vst [vmem:[%s5387 + $0x48] sm:$0xff] %v5398
              $region57: #{discriminator_forward.6} parent=51 // loop_footer
                %s5385 = sadd.s32 1, %s5381
              $region58: #{discriminator_forward.6} parent=51 // loop_footer_branch
                %5380 = sbr.rel target = $region54
              $region59: #{discriminator_forward.6} parent=51 // loop_exit
                _
            $region52: #{discriminator_forward.6} parent=47 // pred_fallthru
              _
            // Predicated region
            $region60: #{discriminator_forward.6} parent=47 // pred_check
              _
            $region61: #{discriminator_forward.6} parent=47 // pred_check_branch
              %5401 = sbr.rel target = $region63
            $region62: #{discriminator_forward.6} parent=47 // pred_region
              _
            $region63: #{discriminator_forward.6} parent=47 // pred_fallthru
              _
          $region48: #{discriminator_forward.6} parent=43 // pred_fallthru
            _
          %5402 = vnop
        $region44: #{discriminator_forward.6} parent=31 // pred_fallthru
          _
      $region32: #{discriminator_forward.6} parent=5 // pred_fallthru
        _
      %p5403 = scmp.le.s32.totalorder 2, %s15
      // Predicated region
      $region64: #{discriminator_forward.6} parent=5 // pred_check
        %p5404 = pneg %p5403
      $region65: #{discriminator_forward.6} parent=5 // pred_check_branch
        %5406 = sbr.rel (%p5404) target = $region67
      $region66: #{discriminator_forward.6} parent=5 // pred_region
        %s5407 = ssub.s32 %s15, 2
        // Predicated region
        $region68: #{discriminator_forward.6} parent=66 // pred_check
          %p5408 = pneg %p117
        $region69: #{discriminator_forward.6} parent=66 // pred_check_branch
          %5410 = sbr.rel (%p5408) target = $region71
        $region70: #{discriminator_forward.6} parent=66 // pred_region
          %s5411 = sand.u32 %s102, 1
          %s5412 = sand.u32 %s102, 1
          %s5413 = smul.addr %s5412, 48
          %s5414 = scalar_lea.vmem [#allocation6], %s5413
        $region71: #{discriminator_forward.6} parent=66 // pred_fallthru
          _
      $region67: #{discriminator_forward.6} parent=5 // pred_fallthru
        _
    $region6: #{discriminator_forward.6} parent=1 // loop_footer
      %s19 = sadd.s32 1, %s15
    $region7: #{discriminator_forward.6} parent=1 // loop_footer_branch
      %14 = sbr.rel target = $region3
    $region8: #{discriminator_forward.6} parent=1 // loop_exit
      _
    %5415 = vsyncpa [#allocation3], 1
    %s5416 = scalar_lea.sflag [#allocation3], 1
    %5417 = vsyncpa %s5416, 1
    %5418 = vsyncpa [#allocation5], 1
    %s5419 = scalar_lea.sflag [#allocation5], 1
    %5420 = vsyncpa %s5419, 1

</llo_original>
